<compile_context>
chip_gen: v6e
topology: v6e:2x2x1
jax: 0.10.0
libtpu: 0.0.40
codegen_flags: <defaults>
</compile_context>

<pallas_src>
import itertools

import numpy as np
import jax
import jax.numpy as jnp
from jax.experimental import pallas as pl
from jax.experimental.pallas import tpu as pltpu


# ==========================================================================
# Fused Pallas kernel
# ==========================================================================
def nlp_rnn_kernel(
    text_ref,     # (T*B, 1) int32  time-major token ids
    emb_ref,      # (Vp, E)         zero-padded embedding table
    lwih_ref,     # (E, 8H)         LSTM W_ih  [fwd i,f,o,g | bwd i,f,o,g]
    lwhh_f_ref,   # (H, 4H)         LSTM W_hh forward  [i,f,o,g]
    lwhh_b_ref,   # (H, 4H)         LSTM W_hh backward [i,f,o,g]
    lb_ref,       # (1, 8H)         LSTM b_ih + b_hh, same column order
    gwih_f_ref,   # (2H, 3H)        GRU W_ih forward  [r,z,n]
    gwih_b_ref,   # (2H, 3H)        GRU W_ih backward [r,z,n]
    gwhh_f_ref,   # (H, 3H)
    gwhh_b_ref,   # (H, 3H)
    gbih_f_ref,   # (1, 3H)
    gbih_b_ref,   # (1, 3H)
    gbhh_f_ref,   # (1, 3H)
    gbhh_b_ref,   # (1, 3H)
    alw_ref,      # (1, 2H)         lstm attention weight
    alb_ref,      # (1, T)          lstm attention bias (per time step)
    agw_ref,      # (1, 2H)
    agb_ref,      # (1, T)
    cont_ref,     # (B, C)          continuous features
    cw_ref,       # (C, NLP_H)      per-feature Dense(1, NLP_H) weights
    cb_ref,       # (C, NLP_H)
    fcw_ref,      # (FC, OUT_H)
    fcb_ref,      # (1, OUT_H)
    ow_ref,       # (OUT_H, 1)
    ob_ref,       # (1, 1)
    out_ref,      # (B, 1)          output
):
    f32 = jnp.float32
    B = out_ref.shape[0]
    T = alb_ref.shape[1]
    H = lwhh_f_ref.shape[0]
    Vp = emb_ref.shape[0]
    TB = T * B

    # ---- embedding lookup as an unmasked one-hot matmul (Vp padded to 64) --
    ids = text_ref[...]                                            # (TB, 1)
    vocab_iota = jax.lax.broadcasted_iota(jnp.int32, (TB, Vp), 1)
    onehot = (vocab_iota == ids).astype(f32)                       # (TB, Vp)
    x = jnp.dot(onehot, emb_ref[...], preferred_element_type=f32)  # (TB, E)

    # ---- hoisted LSTM input projection (both directions, biases folded) ----
    xp_l = (jnp.dot(x, lwih_ref[...], preferred_element_type=f32)
            + lb_ref[...])                                         # (TB, 8H)

    # ---- biLSTM: separate fwd/bwd carries, no per-step concat / stores -----
    lwhh_f = lwhh_f_ref[...]
    lwhh_b = lwhh_b_ref[...]
    h_f = jnp.zeros((B, H), f32)
    c_f = jnp.zeros((B, H), f32)
    h_b = jnp.zeros((B, H), f32)
    c_b = jnp.zeros((B, H), f32)
    xl_fwd = [None] * T          # fwd hidden at time t
    xl_bwd = [None] * T          # bwd hidden at time t
    for t in range(T):           # statically unrolled; fwd & bwd interleaved
        rf = t * B
        rb = (T - 1 - t) * B
        gx_f = xp_l[rf:rf + B, 0:4 * H]          # static slices of a value,
        gx_b = xp_l[rb:rb + B, 4 * H:8 * H]      # off the serial chain
        g_f = jnp.dot(h_f, lwhh_f, preferred_element_type=f32) + gx_f
        g_b = jnp.dot(h_b, lwhh_b, preferred_element_type=f32) + gx_b
        # gate column order [i, f, o | g]: one sigmoid(3H) + one tanh(H)/dir
        s_f = jax.nn.sigmoid(g_f[:, 0:3 * H])
        s_b = jax.nn.sigmoid(g_b[:, 0:3 * H])
        c_f = s_f[:, H:2 * H] * c_f + s_f[:, 0:H] * jnp.tanh(g_f[:, 3 * H:])
        c_b = s_b[:, H:2 * H] * c_b + s_b[:, 0:H] * jnp.tanh(g_b[:, 3 * H:])
        h_f = s_f[:, 2 * H:3 * H] * jnp.tanh(c_f)
        h_b = s_b[:, 2 * H:3 * H] * jnp.tanh(c_b)
        xl_fwd[t] = h_f
        xl_bwd[T - 1 - t] = h_b

    # x_lstm per time step (B, 2H) — built once, off any recurrence path.
    xl_t = [jnp.concatenate([xl_fwd[t], xl_bwd[t]], axis=1) for t in range(T)]

    # ---- hoisted GRU input projections (per direction, per time step) ------
    gwih_f = gwih_f_ref[...]
    gwih_b = gwih_b_ref[...]
    gbih_f = gbih_f_ref[...]
    gbih_b = gbih_b_ref[...]
    xpg_f = [jnp.dot(xl_t[t], gwih_f, preferred_element_type=f32) + gbih_f
             for t in range(T)]
    xpg_b = [jnp.dot(xl_t[t], gwih_b, preferred_element_type=f32) + gbih_b
             for t in range(T)]

    # ---- biGRU: separate fwd/bwd carries ------------------------------------
    gwhh_f = gwhh_f_ref[...]
    gwhh_b = gwhh_b_ref[...]
    gbhh_f = gbhh_f_ref[...]
    gbhh_b = gbhh_b_ref[...]
    h_f = jnp.zeros((B, H), f32)
    h_b = jnp.zeros((B, H), f32)
    xg_fwd = [None] * T
    xg_bwd = [None] * T
    for t in range(T):
        gh_f = jnp.dot(h_f, gwhh_f, preferred_element_type=f32) + gbhh_f
        gh_b = jnp.dot(h_b, gwhh_b, preferred_element_type=f32) + gbhh_b
        gx_f = xpg_f[t]
        gx_b = xpg_b[T - 1 - t]
        # gate order r, z | n; r multiplies (h@W_hn + b_hn)
        rz_f = jax.nn.sigmoid(gx_f[:, 0:2 * H] + gh_f[:, 0:2 * H])
        rz_b = jax.nn.sigmoid(gx_b[:, 0:2 * H] + gh_b[:, 0:2 * H])
        n_f = jnp.tanh(gx_f[:, 2 * H:3 * H] + rz_f[:, 0:H] * gh_f[:, 2 * H:3 * H])
        n_b = jnp.tanh(gx_b[:, 2 * H:3 * H] + rz_b[:, 0:H] * gh_b[:, 2 * H:3 * H])
        z_f = rz_f[:, H:2 * H]
        z_b = rz_b[:, H:2 * H]
        h_f = (1.0 - z_f) * n_f + z_f * h_f
        h_b = (1.0 - z_b) * n_b + z_b * h_b
        xg_fwd[t] = h_f
        xg_bwd[T - 1 - t] = h_b

    xg_t = [jnp.concatenate([xg_fwd[t], xg_bwd[t]], axis=1) for t in range(T)]

    # ---- head: attentions, pooling, FM interactions, dense, fc, output -----
    def attention(seq_t, w, b_row):
        # seq_t: list of T (B, 2H) values; w (1, 2H); b_row (1, T)
        a = [jnp.exp(jnp.tanh(
                jnp.sum(seq_t[t] * w, axis=-1, keepdims=True)
                + b_row[0:1, t:t + 1]))
             for t in range(T)]
        denom = a[0]
        for t in range(1, T):
            denom = denom + a[t]
        inv = pl.reciprocal(denom + 1e-10, approx=True)
        out = seq_t[0] * (a[0] * inv)
        for t in range(1, T):
            out = out + seq_t[t] * (a[t] * inv)
        return out

    lstm_attn = attention(xl_t, alw_ref[...], alb_ref[...])
    gru_attn = attention(xg_t, agw_ref[...], agb_ref[...])

    s = xg_t[0]
    m = xg_t[0]
    for t in range(1, T):
        s = s + xg_t[t]
        m = jnp.maximum(m, xg_t[t])
    avg_pool = s * (1.0 / T)
    max_pool = m

    # second-order FM interactions (itertools.combinations order)
    s01 = lstm_attn * gru_attn
    s02 = lstm_attn * avg_pool
    s03 = lstm_attn * max_pool
    s12 = gru_attn * avg_pool
    s13 = gru_attn * max_pool
    s23 = avg_pool * max_pool

    cont = cont_ref[...]
    cw = cw_ref[...]
    cb = cb_ref[...]
    C = cw.shape[0]
    x_cont = [jax.nn.relu(cont[:, c:c + 1] * cw[c:c + 1, :] + cb[c:c + 1, :])
              for c in range(C)]

    # fc layer: pair 64-wide blocks into 128-wide blocks (128-deep MXU
    # contractions) and tree-sum the partials — no 13-deep serial add chain.
    blocks = [
        jnp.concatenate([lstm_attn, gru_attn], axis=1),   # rows   0:128
        jnp.concatenate([avg_pool, max_pool], axis=1),    # rows 128:256
        jnp.concatenate([s01, s02], axis=1),              # rows 256:384
        jnp.concatenate([s03, s12], axis=1),              # rows 384:512
        jnp.concatenate([s13, s23], axis=1),              # rows 512:640
        jnp.concatenate(x_cont, axis=1),                  # rows 640:FC
    ]
    partials = []
    off = 0
    for blk in blocks:
        k = blk.shape[1]
        partials.append(jnp.dot(blk, fcw_ref[off:off + k, :],
                                preferred_element_type=f32))
        off += k
    while len(partials) > 1:
        nxt = []
        for i in range(0, len(partials) - 1, 2):
            nxt.append(partials[i] + partials[i + 1])
        if len(partials) % 2 == 1:
            nxt.append(partials[-1])
        partials = nxt

    x_fc = jax.nn.relu(partials[0] + fcb_ref[...])
    out_ref[...] = (jnp.dot(x_fc, ow_ref[...], preferred_element_type=f32)
                    + ob_ref[...])


# ==========================================================================
# Wrapper (weight packing + pallas_call plumbing)
# ==========================================================================
def _lstm_cols_ifog(w_t):
    """Columns (in, 4H) in torch order [i,f,g,o] -> [i,f,o,g]."""
    H = w_t.shape[1] // 4
    return jnp.concatenate([w_t[:, 0:2 * H], w_t[:, 3 * H:4 * H],
                            w_t[:, 2 * H:3 * H]], axis=1)


def _lstm_bias_ifog(b):
    H = b.shape[0] // 4
    return jnp.concatenate([b[0:2 * H], b[3 * H:4 * H], b[2 * H:3 * H]])


def nlp_rnn_forward(text, cont, params):
    B, T = text.shape
    L, G = params["lstm"], params["gru"]
    H = L["w_hh_f"].shape[1]
    V, E = params["embedding"].shape
    C, NLP_H = params["cont_w"].shape
    OUT_H, FC = params["fc_w"].shape

    # pad vocab rows to a multiple of 64 so the one-hot compare / contraction
    # is unmasked and tile-aligned
    Vp = ((V + 63) // 64) * 64
    emb_p = jnp.zeros((Vp, E), jnp.float32).at[:V].set(params["embedding"])

    # torch (out,in) -> (in,out); LSTM gate columns reordered to [i,f,o,g];
    # W_hh kept per-direction (no block-diagonal, no per-step h concat).
    lwih = jnp.concatenate([_lstm_cols_ifog(L["w_ih_f"].T),
                            _lstm_cols_ifog(L["w_ih_b"].T)], axis=1)   # (E, 8H)
    lb = jnp.concatenate([_lstm_bias_ifog(L["b_ih_f"] + L["b_hh_f"]),
                          _lstm_bias_ifog(L["b_ih_b"] + L["b_hh_b"])])[None, :]
    lwhh_f = _lstm_cols_ifog(L["w_hh_f"].T)                            # (H, 4H)
    lwhh_b = _lstm_cols_ifog(L["w_hh_b"].T)

    gwih_f = G["w_ih_f"].T                                             # (2H, 3H)
    gwih_b = G["w_ih_b"].T
    gwhh_f = G["w_hh_f"].T                                             # (H, 3H)
    gwhh_b = G["w_hh_b"].T
    gbih_f = G["b_ih_f"][None, :]
    gbih_b = G["b_ih_b"][None, :]
    gbhh_f = G["b_hh_f"][None, :]
    gbhh_b = G["b_hh_b"][None, :]

    alw = params["attn_lstm_w"].T                                      # (1, 2H)
    alb = params["attn_lstm_b"][None, :]                               # (1, T)
    agw = params["attn_gru_w"].T
    agb = params["attn_gru_b"][None, :]

    text_tm = text.T.reshape(T * B, 1).astype(jnp.int32)   # time-major ids

    args = (
        text_tm, emb_p,
        lwih, lwhh_f, lwhh_b, lb,
        gwih_f, gwih_b, gwhh_f, gwhh_b,
        gbih_f, gbih_b, gbhh_f, gbhh_b,
        alw, alb, agw, agb,
        cont, params["cont_w"], params["cont_b"],
        params["fc_w"].T, params["fc_b"][None, :],
        params["out_w"].T, params["out_b"][None, :],
    )

    # advisory cost hint (kernel is latency-bound; numbers approximate)
    flops = 2 * (T * B * Vp * E + T * B * E * 8 * H
                 + 2 * T * B * H * 4 * H              # LSTM hidden matmuls
                 + T * B * 2 * H * 6 * H              # GRU input projections
                 + 2 * T * B * H * 3 * H              # GRU hidden matmuls
                 + B * FC * OUT_H + B * OUT_H)
    transcendentals = T * B * (2 * (3 * H + 2 * H) + 2 * (2 * H + H)) + 4 * T * B
    bytes_accessed = int(sum(int(np.prod(a.shape)) * 4 for a in args) + B * 4)

    vmem = pltpu.MemorySpace.VMEM
    return pl.pallas_call(
        nlp_rnn_kernel,
        out_shape=jax.ShapeDtypeStruct((B, 1), jnp.float32),
        in_specs=[pl.BlockSpec(memory_space=vmem) for _ in args],
        out_specs=pl.BlockSpec(memory_space=vmem),
        cost_estimate=pl.CostEstimate(flops=flops,
                                      transcendentals=transcendentals,
                                      bytes_accessed=bytes_accessed),
    )(*args)


# ==========================================================================
# Pure-JAX reference (mirrors the PyTorch module, eval mode)
# ==========================================================================
def _lstm_dir(x, wih_t, whh_t, b, reverse):
    B, T, _ = x.shape
    H = whh_t.shape[0]
    h = jnp.zeros((B, H), jnp.float32)
    c = jnp.zeros((B, H), jnp.float32)
    hs = [None] * T
    order = range(T - 1, -1, -1) if reverse else range(T)
    for t in order:
        g = (jnp.dot(x[:, t, :], wih_t, preferred_element_type=jnp.float32)
             + jnp.dot(h, whh_t, preferred_element_type=jnp.float32) + b)
        i_g = jax.nn.sigmoid(g[:, 0:H])
        f_g = jax.nn.sigmoid(g[:, H:2 * H])
        g_g = jnp.tanh(g[:, 2 * H:3 * H])
        o_g = jax.nn.sigmoid(g[:, 3 * H:4 * H])
        c = f_g * c + i_g * g_g
        h = o_g * jnp.tanh(c)
        hs[t] = h
    return jnp.stack(hs, axis=1)


def _gru_dir(x, wih_t, whh_t, bih, bhh, reverse):
    B, T, _ = x.shape
    H = whh_t.shape[0]
    h = jnp.zeros((B, H), jnp.float32)
    hs = [None] * T
    order = range(T - 1, -1, -1) if reverse else range(T)
    for t in order:
        xg = jnp.dot(x[:, t, :], wih_t, preferred_element_type=jnp.float32) + bih
        hg = jnp.dot(h, whh_t, preferred_element_type=jnp.float32) + bhh
        r = jax.nn.sigmoid(xg[:, 0:H] + hg[:, 0:H])
        z = jax.nn.sigmoid(xg[:, H:2 * H] + hg[:, H:2 * H])
        n = jnp.tanh(xg[:, 2 * H:3 * H] + r * hg[:, 2 * H:3 * H])
        h = (1.0 - z) * n + z * h
        hs[t] = h
    return jnp.stack(hs, axis=1)


def _attention_ref(x, w, b):
    eij = jnp.sum(x * w[:, None, :], axis=-1) + b
    a = jnp.exp(jnp.tanh(eij))
    a = a / (jnp.sum(a, axis=1, keepdims=True) + 1e-10)
    return jnp.sum(x * a[:, :, None], axis=1)


def _head_ref(x_lstm, x_gru, cont, wl, bl, wg, bg, cw, cb, fcw_t, fcb, ow_t, ob):
    lstm_attn = _attention_ref(x_lstm, wl, bl)
    gru_attn = _attention_ref(x_gru, wg, bg)
    avg_pool = jnp.mean(x_gru, axis=1)
    max_pool = jnp.max(x_gru, axis=1)
    fm_first = [lstm_attn, gru_attn, avg_pool, max_pool]
    fm_second = [t1 * t2 for t1, t2 in itertools.combinations(fm_first, 2)]
    C = cw.shape[0]
    x_cont = [jax.nn.relu(cont[:, c:c + 1] * cw[c:c + 1, :] + cb[c:c + 1, :])
              for c in range(C)]
    feats = jnp.concatenate(fm_first + fm_second + x_cont, axis=1)
    x_fc = jax.nn.relu(
        jnp.dot(feats, fcw_t, preferred_element_type=jnp.float32) + fcb)
    return jnp.dot(x_fc, ow_t, preferred_element_type=jnp.float32) + ob


def reference_forward(text, cont, p):
    emb = p["embedding"][text]
    L, G = p["lstm"], p["gru"]
    lf = _lstm_dir(emb, L["w_ih_f"].T, L["w_hh_f"].T,
                   (L["b_ih_f"] + L["b_hh_f"])[None, :], False)
    lb = _lstm_dir(emb, L["w_ih_b"].T, L["w_hh_b"].T,
                   (L["b_ih_b"] + L["b_hh_b"])[None, :], True)
    x_lstm = jnp.concatenate([lf, lb], axis=-1)
    gf = _gru_dir(x_lstm, G["w_ih_f"].T, G["w_hh_f"].T,
                  G["b_ih_f"][None, :], G["b_hh_f"][None, :], False)
    gb = _gru_dir(x_lstm, G["w_ih_b"].T, G["w_hh_b"].T,
                  G["b_ih_b"][None, :], G["b_hh_b"][None, :], True)
    x_gru = jnp.concatenate([gf, gb], axis=-1)
    return _head_ref(x_lstm, x_gru, cont,
                     p["attn_lstm_w"].T, p["attn_lstm_b"][None, :],
                     p["attn_gru_w"].T, p["attn_gru_b"][None, :],
                     p["cont_w"], p["cont_b"],
                     p["fc_w"].T, p["fc_b"][None, :],
                     p["out_w"].T, p["out_b"][None, :])


# ==========================================================================
# Deterministic parameter construction (synthetic; torch-shaped weights)
# ==========================================================================
def init_params(key, V, E, T, H, C, NLP_H, OUT_H):
    keys = iter(jax.random.split(key, 40))

    def nrm(shape, s=0.1):
        return s * jax.random.normal(next(keys), shape, jnp.float32)

    p = {"embedding": nrm((V, E), 1.0)}
    lstm, gru = {}, {}
    for d in ("f", "b"):
        lstm[f"w_ih_{d}"] = nrm((4 * H, E))
        lstm[f"w_hh_{d}"] = nrm((4 * H, H))
        lstm[f"b_ih_{d}"] = nrm((4 * H,))
        lstm[f"b_hh_{d}"] = nrm((4 * H,))
        gru[f"w_ih_{d}"] = nrm((3 * H, 2 * H))
        gru[f"w_hh_{d}"] = nrm((3 * H, H))
        gru[f"b_ih_{d}"] = nrm((3 * H,))
        gru[f"b_hh_{d}"] = nrm((3 * H,))
    p["lstm"], p["gru"] = lstm, gru
    p["attn_lstm_w"] = nrm((2 * H, 1))
    p["attn_lstm_b"] = nrm((T,))
    p["attn_gru_w"] = nrm((2 * H, 1))
    p["attn_gru_b"] = nrm((T,))
    p["cont_w"] = nrm((C, NLP_H))
    p["cont_b"] = nrm((C, NLP_H))
    fc_size = 2 * H * 4 + 2 * H * 6 + C * NLP_H
    p["fc_w"] = nrm((OUT_H, fc_size))
    p["fc_b"] = nrm((OUT_H,))
    p["out_w"] = nrm((1, OUT_H))
    p["out_b"] = nrm((1,))
    return p


if __name__ == "__main__":
    B, T, V, E, H, C, NLP_H, OUT_H = 2, 8, 50, 32, 32, 3, 32, 32
    key = jax.random.PRNGKey(0)
    kp, kt, kc = jax.random.split(key, 3)
    params = init_params(kp, V, E, T, H, C, NLP_H, OUT_H)
    text = jax.random.randint(kt, (B, T), 0, V, dtype=jnp.int32)
    cont = jax.random.normal(kc, (B, C), jnp.float32)

    out = nlp_rnn_forward(text, cont, params)
    out = jax.block_until_ready(out)
    assert out.shape == (B, 1)

    ref = reference_forward(text, cont, params)
    np.testing.assert_allclose(np.asarray(out), np.asarray(ref),
                               rtol=5e-3, atol=5e-3)
    print("KERNEL_OK")
</pallas_src>

<mosaic_0001>
module attributes {stable_mosaic.version = 11 : i64} {
  func.func @nlp_rnn_kernel(%arg0: memref<16x1xi32, #tpu.memory_space<vmem>>, %arg1: memref<64x32xf32, #tpu.memory_space<vmem>>, %arg2: memref<32x256xf32, #tpu.memory_space<vmem>>, %arg3: memref<32x128xf32, #tpu.memory_space<vmem>>, %arg4: memref<32x128xf32, #tpu.memory_space<vmem>>, %arg5: memref<1x256xf32, #tpu.memory_space<vmem>>, %arg6: memref<64x96xf32, #tpu.memory_space<vmem>>, %arg7: memref<64x96xf32, #tpu.memory_space<vmem>>, %arg8: memref<32x96xf32, #tpu.memory_space<vmem>>, %arg9: memref<32x96xf32, #tpu.memory_space<vmem>>, %arg10: memref<1x96xf32, #tpu.memory_space<vmem>>, %arg11: memref<1x96xf32, #tpu.memory_space<vmem>>, %arg12: memref<1x96xf32, #tpu.memory_space<vmem>>, %arg13: memref<1x96xf32, #tpu.memory_space<vmem>>, %arg14: memref<1x64xf32, #tpu.memory_space<vmem>>, %arg15: memref<1x8xf32, #tpu.memory_space<vmem>>, %arg16: memref<1x64xf32, #tpu.memory_space<vmem>>, %arg17: memref<1x8xf32, #tpu.memory_space<vmem>>, %arg18: memref<2x3xf32, #tpu.memory_space<vmem>>, %arg19: memref<3x32xf32, #tpu.memory_space<vmem>>, %arg20: memref<3x32xf32, #tpu.memory_space<vmem>>, %arg21: memref<736x32xf32, #tpu.memory_space<vmem>>, %arg22: memref<1x32xf32, #tpu.memory_space<vmem>>, %arg23: memref<32x1xf32, #tpu.memory_space<vmem>>, %arg24: memref<1x1xf32, #tpu.memory_space<vmem>>, %arg25: memref<2x1xf32, #tpu.memory_space<vmem>>) attributes {dimension_semantics = [], scalar_prefetch = 0 : i64, scratch_operands = 0 : i64, tpu.core_type = #tpu.core_type<tc>} {
    %c0 = arith.constant 0 : index
    %c0_0 = arith.constant 0 : index
    %0 = vector.load %arg0[%c0, %c0_0] : memref<16x1xi32, #tpu.memory_space<vmem>>, vector<16x1xi32>
    %1 = tpu.iota {dimensions = array<i32: 1>} : vector<16x64xi32>
    %2 = vector.broadcast %0 : vector<16x1xi32> to vector<16x64xi32>
    %3 = arith.cmpi eq, %1, %2 : vector<16x64xi32>
    %4 = arith.extui %3 : vector<16x64xi1> to vector<16x64xi32>
    %5 = arith.sitofp %4 : vector<16x64xi32> to vector<16x64xf32>
    %c0_1 = arith.constant 0 : index
    %c0_2 = arith.constant 0 : index
    %6 = vector.load %arg1[%c0_1, %c0_2] : memref<64x32xf32, #tpu.memory_space<vmem>>, vector<64x32xf32>
    %cst = arith.constant dense<0.000000e+00> : vector<16x32xf32>
    %7 = tpu.matmul %5, %6, %cst {dimension_numbers = #tpu.dot_dimension_numbers<[1], [0], [0], [1], [0, 0, 1, 1], [], []>} : vector<16x64xf32>, vector<64x32xf32>, vector<16x32xf32> -> vector<16x32xf32>
    %c0_3 = arith.constant 0 : index
    %c0_4 = arith.constant 0 : index
    %8 = vector.load %arg2[%c0_3, %c0_4] : memref<32x256xf32, #tpu.memory_space<vmem>>, vector<32x256xf32>
    %cst_5 = arith.constant dense<0.000000e+00> : vector<16x256xf32>
    %9 = tpu.matmul %7, %8, %cst_5 {dimension_numbers = #tpu.dot_dimension_numbers<[1], [0], [0], [1], [0, 0, 1, 1], [], []>} : vector<16x32xf32>, vector<32x256xf32>, vector<16x256xf32> -> vector<16x256xf32>
    %c0_6 = arith.constant 0 : index
    %c0_7 = arith.constant 0 : index
    %10 = vector.load %arg5[%c0_6, %c0_7] : memref<1x256xf32, #tpu.memory_space<vmem>>, vector<1x256xf32>
    %11 = vector.broadcast %10 : vector<1x256xf32> to vector<16x256xf32>
    %12 = arith.addf %9, %11 : vector<16x256xf32>
    %c0_8 = arith.constant 0 : index
    %c0_9 = arith.constant 0 : index
    %13 = vector.load %arg3[%c0_8, %c0_9] : memref<32x128xf32, #tpu.memory_space<vmem>>, vector<32x128xf32>
    %c0_10 = arith.constant 0 : index
    %c0_11 = arith.constant 0 : index
    %14 = vector.load %arg4[%c0_10, %c0_11] : memref<32x128xf32, #tpu.memory_space<vmem>>, vector<32x128xf32>
    %cst_12 = arith.constant 0.000000e+00 : f32
    %15 = vector.broadcast %cst_12 : f32 to vector<2x32xf32>
    %cst_13 = arith.constant 0.000000e+00 : f32
    %16 = vector.broadcast %cst_13 : f32 to vector<2x32xf32>
    %cst_14 = arith.constant 0.000000e+00 : f32
    %17 = vector.broadcast %cst_14 : f32 to vector<2x32xf32>
    %cst_15 = arith.constant 0.000000e+00 : f32
    %18 = vector.broadcast %cst_15 : f32 to vector<2x32xf32>
    %19 = vector.extract_strided_slice %12 {offsets = [0, 0], sizes = [2, 128], strides = [1, 1]} : vector<16x256xf32> to vector<2x128xf32>
    %20 = vector.extract_strided_slice %12 {offsets = [14, 128], sizes = [2, 128], strides = [1, 1]} : vector<16x256xf32> to vector<2x128xf32>
    %cst_16 = arith.constant dense<0.000000e+00> : vector<2x128xf32>
    %21 = tpu.matmul %15, %13, %cst_16 {dimension_numbers = #tpu.dot_dimension_numbers<[1], [0], [0], [1], [0, 0, 1, 1], [], []>} : vector<2x32xf32>, vector<32x128xf32>, vector<2x128xf32> -> vector<2x128xf32>
    %22 = arith.addf %21, %19 : vector<2x128xf32>
    %cst_17 = arith.constant dense<0.000000e+00> : vector<2x128xf32>
    %23 = tpu.matmul %17, %14, %cst_17 {dimension_numbers = #tpu.dot_dimension_numbers<[1], [0], [0], [1], [0, 0, 1, 1], [], []>} : vector<2x32xf32>, vector<32x128xf32>, vector<2x128xf32> -> vector<2x128xf32>
    %24 = arith.addf %23, %20 : vector<2x128xf32>
    %25 = vector.extract_strided_slice %22 {offsets = [0, 0], sizes = [2, 96], strides = [1, 1]} : vector<2x128xf32> to vector<2x96xf32>
    %26 = arith.negf %25 : vector<2x96xf32>
    %27 = math.exp %26 : vector<2x96xf32>
    %cst_18 = arith.constant 1.000000e+00 : f32
    %28 = vector.broadcast %cst_18 : f32 to vector<2x96xf32>
    %29 = arith.addf %28, %27 : vector<2x96xf32>
    %30 = arith.divf %28, %29 : vector<2x96xf32>
    %31 = vector.extract_strided_slice %24 {offsets = [0, 0], sizes = [2, 96], strides = [1, 1]} : vector<2x128xf32> to vector<2x96xf32>
    %32 = arith.negf %31 : vector<2x96xf32>
    %33 = math.exp %32 : vector<2x96xf32>
    %cst_19 = arith.constant 1.000000e+00 : f32
    %34 = vector.broadcast %cst_19 : f32 to vector<2x96xf32>
    %35 = arith.addf %34, %33 : vector<2x96xf32>
    %36 = arith.divf %34, %35 : vector<2x96xf32>
    %37 = vector.extract_strided_slice %30 {offsets = [0, 32], sizes = [2, 32], strides = [1, 1]} : vector<2x96xf32> to vector<2x32xf32>
    %38 = arith.mulf %37, %16 : vector<2x32xf32>
    %39 = vector.extract_strided_slice %30 {offsets = [0, 0], sizes = [2, 32], strides = [1, 1]} : vector<2x96xf32> to vector<2x32xf32>
    %40 = vector.extract_strided_slice %22 {offsets = [0, 96], sizes = [2, 32], strides = [1, 1]} : vector<2x128xf32> to vector<2x32xf32>
    %41 = math.tanh %40 : vector<2x32xf32>
    %42 = arith.mulf %39, %41 : vector<2x32xf32>
    %43 = arith.addf %38, %42 : vector<2x32xf32>
    %44 = vector.extract_strided_slice %36 {offsets = [0, 32], sizes = [2, 32], strides = [1, 1]} : vector<2x96xf32> to vector<2x32xf32>
    %45 = arith.mulf %44, %18 : vector<2x32xf32>
    %46 = vector.extract_strided_slice %36 {offsets = [0, 0], sizes = [2, 32], strides = [1, 1]} : vector<2x96xf32> to vector<2x32xf32>
    %47 = vector.extract_strided_slice %24 {offsets = [0, 96], sizes = [2, 32], strides = [1, 1]} : vector<2x128xf32> to vector<2x32xf32>
    %48 = math.tanh %47 : vector<2x32xf32>
    %49 = arith.mulf %46, %48 : vector<2x32xf32>
    %50 = arith.addf %45, %49 : vector<2x32xf32>
    %51 = vector.extract_strided_slice %30 {offsets = [0, 64], sizes = [2, 32], strides = [1, 1]} : vector<2x96xf32> to vector<2x32xf32>
    %52 = math.tanh %43 : vector<2x32xf32>
    %53 = arith.mulf %51, %52 : vector<2x32xf32>
    %54 = vector.extract_strided_slice %36 {offsets = [0, 64], sizes = [2, 32], strides = [1, 1]} : vector<2x96xf32> to vector<2x32xf32>
    %55 = math.tanh %50 : vector<2x32xf32>
    %56 = arith.mulf %54, %55 : vector<2x32xf32>
    %57 = vector.extract_strided_slice %12 {offsets = [2, 0], sizes = [2, 128], strides = [1, 1]} : vector<16x256xf32> to vector<2x128xf32>
    %58 = vector.extract_strided_slice %12 {offsets = [12, 128], sizes = [2, 128], strides = [1, 1]} : vector<16x256xf32> to vector<2x128xf32>
    %cst_20 = arith.constant dense<0.000000e+00> : vector<2x128xf32>
    %59 = tpu.matmul %53, %13, %cst_20 {dimension_numbers = #tpu.dot_dimension_numbers<[1], [0], [0], [1], [0, 0, 1, 1], [], []>} : vector<2x32xf32>, vector<32x128xf32>, vector<2x128xf32> -> vector<2x128xf32>
    %60 = arith.addf %59, %57 : vector<2x128xf32>
    %cst_21 = arith.constant dense<0.000000e+00> : vector<2x128xf32>
    %61 = tpu.matmul %56, %14, %cst_21 {dimension_numbers = #tpu.dot_dimension_numbers<[1], [0], [0], [1], [0, 0, 1, 1], [], []>} : vector<2x32xf32>, vector<32x128xf32>, vector<2x128xf32> -> vector<2x128xf32>
    %62 = arith.addf %61, %58 : vector<2x128xf32>
    %63 = vector.extract_strided_slice %60 {offsets = [0, 0], sizes = [2, 96], strides = [1, 1]} : vector<2x128xf32> to vector<2x96xf32>
    %64 = arith.negf %63 : vector<2x96xf32>
    %65 = math.exp %64 : vector<2x96xf32>
    %cst_22 = arith.constant 1.000000e+00 : f32
    %66 = vector.broadcast %cst_22 : f32 to vector<2x96xf32>
    %67 = arith.addf %66, %65 : vector<2x96xf32>
    %68 = arith.divf %66, %67 : vector<2x96xf32>
    %69 = vector.extract_strided_slice %62 {offsets = [0, 0], sizes = [2, 96], strides = [1, 1]} : vector<2x128xf32> to vector<2x96xf32>
    %70 = arith.negf %69 : vector<2x96xf32>
    %71 = math.exp %70 : vector<2x96xf32>
    %cst_23 = arith.constant 1.000000e+00 : f32
    %72 = vector.broadcast %cst_23 : f32 to vector<2x96xf32>
    %73 = arith.addf %72, %71 : vector<2x96xf32>
    %74 = arith.divf %72, %73 : vector<2x96xf32>
    %75 = vector.extract_strided_slice %68 {offsets = [0, 32], sizes = [2, 32], strides = [1, 1]} : vector<2x96xf32> to vector<2x32xf32>
    %76 = arith.mulf %75, %43 : vector<2x32xf32>
    %77 = vector.extract_strided_slice %68 {offsets = [0, 0], sizes = [2, 32], strides = [1, 1]} : vector<2x96xf32> to vector<2x32xf32>
    %78 = vector.extract_strided_slice %60 {offsets = [0, 96], sizes = [2, 32], strides = [1, 1]} : vector<2x128xf32> to vector<2x32xf32>
    %79 = math.tanh %78 : vector<2x32xf32>
    %80 = arith.mulf %77, %79 : vector<2x32xf32>
    %81 = arith.addf %76, %80 : vector<2x32xf32>
    %82 = vector.extract_strided_slice %74 {offsets = [0, 32], sizes = [2, 32], strides = [1, 1]} : vector<2x96xf32> to vector<2x32xf32>
    %83 = arith.mulf %82, %50 : vector<2x32xf32>
    %84 = vector.extract_strided_slice %74 {offsets = [0, 0], sizes = [2, 32], strides = [1, 1]} : vector<2x96xf32> to vector<2x32xf32>
    %85 = vector.extract_strided_slice %62 {offsets = [0, 96], sizes = [2, 32], strides = [1, 1]} : vector<2x128xf32> to vector<2x32xf32>
    %86 = math.tanh %85 : vector<2x32xf32>
    %87 = arith.mulf %84, %86 : vector<2x32xf32>
    %88 = arith.addf %83, %87 : vector<2x32xf32>
    %89 = vector.extract_strided_slice %68 {offsets = [0, 64], sizes = [2, 32], strides = [1, 1]} : vector<2x96xf32> to vector<2x32xf32>
    %90 = math.tanh %81 : vector<2x32xf32>
    %91 = arith.mulf %89, %90 : vector<2x32xf32>
    %92 = vector.extract_strided_slice %74 {offsets = [0, 64], sizes = [2, 32], strides = [1, 1]} : vector<2x96xf32> to vector<2x32xf32>
    %93 = math.tanh %88 : vector<2x32xf32>
    %94 = arith.mulf %92, %93 : vector<2x32xf32>
    %95 = vector.extract_strided_slice %12 {offsets = [4, 0], sizes = [2, 128], strides = [1, 1]} : vector<16x256xf32> to vector<2x128xf32>
    %96 = vector.extract_strided_slice %12 {offsets = [10, 128], sizes = [2, 128], strides = [1, 1]} : vector<16x256xf32> to vector<2x128xf32>
    %cst_24 = arith.constant dense<0.000000e+00> : vector<2x128xf32>
    %97 = tpu.matmul %91, %13, %cst_24 {dimension_numbers = #tpu.dot_dimension_numbers<[1], [0], [0], [1], [0, 0, 1, 1], [], []>} : vector<2x32xf32>, vector<32x128xf32>, vector<2x128xf32> -> vector<2x128xf32>
    %98 = arith.addf %97, %95 : vector<2x128xf32>
    %cst_25 = arith.constant dense<0.000000e+00> : vector<2x128xf32>
    %99 = tpu.matmul %94, %14, %cst_25 {dimension_numbers = #tpu.dot_dimension_numbers<[1], [0], [0], [1], [0, 0, 1, 1], [], []>} : vector<2x32xf32>, vector<32x128xf32>, vector<2x128xf32> -> vector<2x128xf32>
    %100 = arith.addf %99, %96 : vector<2x128xf32>
    %101 = vector.extract_strided_slice %98 {offsets = [0, 0], sizes = [2, 96], strides = [1, 1]} : vector<2x128xf32> to vector<2x96xf32>
    %102 = arith.negf %101 : vector<2x96xf32>
    %103 = math.exp %102 : vector<2x96xf32>
    %cst_26 = arith.constant 1.000000e+00 : f32
    %104 = vector.broadcast %cst_26 : f32 to vector<2x96xf32>
    %105 = arith.addf %104, %103 : vector<2x96xf32>
    %106 = arith.divf %104, %105 : vector<2x96xf32>
    %107 = vector.extract_strided_slice %100 {offsets = [0, 0], sizes = [2, 96], strides = [1, 1]} : vector<2x128xf32> to vector<2x96xf32>
    %108 = arith.negf %107 : vector<2x96xf32>
    %109 = math.exp %108 : vector<2x96xf32>
    %cst_27 = arith.constant 1.000000e+00 : f32
    %110 = vector.broadcast %cst_27 : f32 to vector<2x96xf32>
    %111 = arith.addf %110, %109 : vector<2x96xf32>
    %112 = arith.divf %110, %111 : vector<2x96xf32>
    %113 = vector.extract_strided_slice %106 {offsets = [0, 32], sizes = [2, 32], strides = [1, 1]} : vector<2x96xf32> to vector<2x32xf32>
    %114 = arith.mulf %113, %81 : vector<2x32xf32>
    %115 = vector.extract_strided_slice %106 {offsets = [0, 0], sizes = [2, 32], strides = [1, 1]} : vector<2x96xf32> to vector<2x32xf32>
    %116 = vector.extract_strided_slice %98 {offsets = [0, 96], sizes = [2, 32], strides = [1, 1]} : vector<2x128xf32> to vector<2x32xf32>
    %117 = math.tanh %116 : vector<2x32xf32>
    %118 = arith.mulf %115, %117 : vector<2x32xf32>
    %119 = arith.addf %114, %118 : vector<2x32xf32>
    %120 = vector.extract_strided_slice %112 {offsets = [0, 32], sizes = [2, 32], strides = [1, 1]} : vector<2x96xf32> to vector<2x32xf32>
    %121 = arith.mulf %120, %88 : vector<2x32xf32>
    %122 = vector.extract_strided_slice %112 {offsets = [0, 0], sizes = [2, 32], strides = [1, 1]} : vector<2x96xf32> to vector<2x32xf32>
    %123 = vector.extract_strided_slice %100 {offsets = [0, 96], sizes = [2, 32], strides = [1, 1]} : vector<2x128xf32> to vector<2x32xf32>
    %124 = math.tanh %123 : vector<2x32xf32>
    %125 = arith.mulf %122, %124 : vector<2x32xf32>
    %126 = arith.addf %121, %125 : vector<2x32xf32>
    %127 = vector.extract_strided_slice %106 {offsets = [0, 64], sizes = [2, 32], strides = [1, 1]} : vector<2x96xf32> to vector<2x32xf32>
    %128 = math.tanh %119 : vector<2x32xf32>
    %129 = arith.mulf %127, %128 : vector<2x32xf32>
    %130 = vector.extract_strided_slice %112 {offsets = [0, 64], sizes = [2, 32], strides = [1, 1]} : vector<2x96xf32> to vector<2x32xf32>
    %131 = math.tanh %126 : vector<2x32xf32>
    %132 = arith.mulf %130, %131 : vector<2x32xf32>
    %133 = vector.extract_strided_slice %12 {offsets = [6, 0], sizes = [2, 128], strides = [1, 1]} : vector<16x256xf32> to vector<2x128xf32>
    %134 = vector.extract_strided_slice %12 {offsets = [8, 128], sizes = [2, 128], strides = [1, 1]} : vector<16x256xf32> to vector<2x128xf32>
    %cst_28 = arith.constant dense<0.000000e+00> : vector<2x128xf32>
    %135 = tpu.matmul %129, %13, %cst_28 {dimension_numbers = #tpu.dot_dimension_numbers<[1], [0], [0], [1], [0, 0, 1, 1], [], []>} : vector<2x32xf32>, vector<32x128xf32>, vector<2x128xf32> -> vector<2x128xf32>
    %136 = arith.addf %135, %133 : vector<2x128xf32>
    %cst_29 = arith.constant dense<0.000000e+00> : vector<2x128xf32>
    %137 = tpu.matmul %132, %14, %cst_29 {dimension_numbers = #tpu.dot_dimension_numbers<[1], [0], [0], [1], [0, 0, 1, 1], [], []>} : vector<2x32xf32>, vector<32x128xf32>, vector<2x128xf32> -> vector<2x128xf32>
    %138 = arith.addf %137, %134 : vector<2x128xf32>
    %139 = vector.extract_strided_slice %136 {offsets = [0, 0], sizes = [2, 96], strides = [1, 1]} : vector<2x128xf32> to vector<2x96xf32>
    %140 = arith.negf %139 : vector<2x96xf32>
    %141 = math.exp %140 : vector<2x96xf32>
    %cst_30 = arith.constant 1.000000e+00 : f32
    %142 = vector.broadcast %cst_30 : f32 to vector<2x96xf32>
    %143 = arith.addf %142, %141 : vector<2x96xf32>
    %144 = arith.divf %142, %143 : vector<2x96xf32>
    %145 = vector.extract_strided_slice %138 {offsets = [0, 0], sizes = [2, 96], strides = [1, 1]} : vector<2x128xf32> to vector<2x96xf32>
    %146 = arith.negf %145 : vector<2x96xf32>
    %147 = math.exp %146 : vector<2x96xf32>
    %cst_31 = arith.constant 1.000000e+00 : f32
    %148 = vector.broadcast %cst_31 : f32 to vector<2x96xf32>
    %149 = arith.addf %148, %147 : vector<2x96xf32>
    %150 = arith.divf %148, %149 : vector<2x96xf32>
    %151 = vector.extract_strided_slice %144 {offsets = [0, 32], sizes = [2, 32], strides = [1, 1]} : vector<2x96xf32> to vector<2x32xf32>
    %152 = arith.mulf %151, %119 : vector<2x32xf32>
    %153 = vector.extract_strided_slice %144 {offsets = [0, 0], sizes = [2, 32], strides = [1, 1]} : vector<2x96xf32> to vector<2x32xf32>
    %154 = vector.extract_strided_slice %136 {offsets = [0, 96], sizes = [2, 32], strides = [1, 1]} : vector<2x128xf32> to vector<2x32xf32>
    %155 = math.tanh %154 : vector<2x32xf32>
    %156 = arith.mulf %153, %155 : vector<2x32xf32>
    %157 = arith.addf %152, %156 : vector<2x32xf32>
    %158 = vector.extract_strided_slice %150 {offsets = [0, 32], sizes = [2, 32], strides = [1, 1]} : vector<2x96xf32> to vector<2x32xf32>
    %159 = arith.mulf %158, %126 : vector<2x32xf32>
    %160 = vector.extract_strided_slice %150 {offsets = [0, 0], sizes = [2, 32], strides = [1, 1]} : vector<2x96xf32> to vector<2x32xf32>
    %161 = vector.extract_strided_slice %138 {offsets = [0, 96], sizes = [2, 32], strides = [1, 1]} : vector<2x128xf32> to vector<2x32xf32>
    %162 = math.tanh %161 : vector<2x32xf32>
    %163 = arith.mulf %160, %162 : vector<2x32xf32>
    %164 = arith.addf %159, %163 : vector<2x32xf32>
    %165 = vector.extract_strided_slice %144 {offsets = [0, 64], sizes = [2, 32], strides = [1, 1]} : vector<2x96xf32> to vector<2x32xf32>
    %166 = math.tanh %157 : vector<2x32xf32>
    %167 = arith.mulf %165, %166 : vector<2x32xf32>
    %168 = vector.extract_strided_slice %150 {offsets = [0, 64], sizes = [2, 32], strides = [1, 1]} : vector<2x96xf32> to vector<2x32xf32>
    %169 = math.tanh %164 : vector<2x32xf32>
    %170 = arith.mulf %168, %169 : vector<2x32xf32>
    %171 = vector.extract_strided_slice %12 {offsets = [8, 0], sizes = [2, 128], strides = [1, 1]} : vector<16x256xf32> to vector<2x128xf32>
    %172 = vector.extract_strided_slice %12 {offsets = [6, 128], sizes = [2, 128], strides = [1, 1]} : vector<16x256xf32> to vector<2x128xf32>
    %cst_32 = arith.constant dense<0.000000e+00> : vector<2x128xf32>
    %173 = tpu.matmul %167, %13, %cst_32 {dimension_numbers = #tpu.dot_dimension_numbers<[1], [0], [0], [1], [0, 0, 1, 1], [], []>} : vector<2x32xf32>, vector<32x128xf32>, vector<2x128xf32> -> vector<2x128xf32>
    %174 = arith.addf %173, %171 : vector<2x128xf32>
    %cst_33 = arith.constant dense<0.000000e+00> : vector<2x128xf32>
    %175 = tpu.matmul %170, %14, %cst_33 {dimension_numbers = #tpu.dot_dimension_numbers<[1], [0], [0], [1], [0, 0, 1, 1], [], []>} : vector<2x32xf32>, vector<32x128xf32>, vector<2x128xf32> -> vector<2x128xf32>
    %176 = arith.addf %175, %172 : vector<2x128xf32>
    %177 = vector.extract_strided_slice %174 {offsets = [0, 0], sizes = [2, 96], strides = [1, 1]} : vector<2x128xf32> to vector<2x96xf32>
    %178 = arith.negf %177 : vector<2x96xf32>
    %179 = math.exp %178 : vector<2x96xf32>
    %cst_34 = arith.constant 1.000000e+00 : f32
    %180 = vector.broadcast %cst_34 : f32 to vector<2x96xf32>
    %181 = arith.addf %180, %179 : vector<2x96xf32>
    %182 = arith.divf %180, %181 : vector<2x96xf32>
    %183 = vector.extract_strided_slice %176 {offsets = [0, 0], sizes = [2, 96], strides = [1, 1]} : vector<2x128xf32> to vector<2x96xf32>
    %184 = arith.negf %183 : vector<2x96xf32>
    %185 = math.exp %184 : vector<2x96xf32>
    %cst_35 = arith.constant 1.000000e+00 : f32
    %186 = vector.broadcast %cst_35 : f32 to vector<2x96xf32>
    %187 = arith.addf %186, %185 : vector<2x96xf32>
    %188 = arith.divf %186, %187 : vector<2x96xf32>
    %189 = vector.extract_strided_slice %182 {offsets = [0, 32], sizes = [2, 32], strides = [1, 1]} : vector<2x96xf32> to vector<2x32xf32>
    %190 = arith.mulf %189, %157 : vector<2x32xf32>
    %191 = vector.extract_strided_slice %182 {offsets = [0, 0], sizes = [2, 32], strides = [1, 1]} : vector<2x96xf32> to vector<2x32xf32>
    %192 = vector.extract_strided_slice %174 {offsets = [0, 96], sizes = [2, 32], strides = [1, 1]} : vector<2x128xf32> to vector<2x32xf32>
    %193 = math.tanh %192 : vector<2x32xf32>
    %194 = arith.mulf %191, %193 : vector<2x32xf32>
    %195 = arith.addf %190, %194 : vector<2x32xf32>
    %196 = vector.extract_strided_slice %188 {offsets = [0, 32], sizes = [2, 32], strides = [1, 1]} : vector<2x96xf32> to vector<2x32xf32>
    %197 = arith.mulf %196, %164 : vector<2x32xf32>
    %198 = vector.extract_strided_slice %188 {offsets = [0, 0], sizes = [2, 32], strides = [1, 1]} : vector<2x96xf32> to vector<2x32xf32>
    %199 = vector.extract_strided_slice %176 {offsets = [0, 96], sizes = [2, 32], strides = [1, 1]} : vector<2x128xf32> to vector<2x32xf32>
    %200 = math.tanh %199 : vector<2x32xf32>
    %201 = arith.mulf %198, %200 : vector<2x32xf32>
    %202 = arith.addf %197, %201 : vector<2x32xf32>
    %203 = vector.extract_strided_slice %182 {offsets = [0, 64], sizes = [2, 32], strides = [1, 1]} : vector<2x96xf32> to vector<2x32xf32>
    %204 = math.tanh %195 : vector<2x32xf32>
    %205 = arith.mulf %203, %204 : vector<2x32xf32>
    %206 = vector.extract_strided_slice %188 {offsets = [0, 64], sizes = [2, 32], strides = [1, 1]} : vector<2x96xf32> to vector<2x32xf32>
    %207 = math.tanh %202 : vector<2x32xf32>
    %208 = arith.mulf %206, %207 : vector<2x32xf32>
    %209 = vector.extract_strided_slice %12 {offsets = [10, 0], sizes = [2, 128], strides = [1, 1]} : vector<16x256xf32> to vector<2x128xf32>
    %210 = vector.extract_strided_slice %12 {offsets = [4, 128], sizes = [2, 128], strides = [1, 1]} : vector<16x256xf32> to vector<2x128xf32>
    %cst_36 = arith.constant dense<0.000000e+00> : vector<2x128xf32>
    %211 = tpu.matmul %205, %13, %cst_36 {dimension_numbers = #tpu.dot_dimension_numbers<[1], [0], [0], [1], [0, 0, 1, 1], [], []>} : vector<2x32xf32>, vector<32x128xf32>, vector<2x128xf32> -> vector<2x128xf32>
    %212 = arith.addf %211, %209 : vector<2x128xf32>
    %cst_37 = arith.constant dense<0.000000e+00> : vector<2x128xf32>
    %213 = tpu.matmul %208, %14, %cst_37 {dimension_numbers = #tpu.dot_dimension_numbers<[1], [0], [0], [1], [0, 0, 1, 1], [], []>} : vector<2x32xf32>, vector<32x128xf32>, vector<2x128xf32> -> vector<2x128xf32>
    %214 = arith.addf %213, %210 : vector<2x128xf32>
    %215 = vector.extract_strided_slice %212 {offsets = [0, 0], sizes = [2, 96], strides = [1, 1]} : vector<2x128xf32> to vector<2x96xf32>
    %216 = arith.negf %215 : vector<2x96xf32>
    %217 = math.exp %216 : vector<2x96xf32>
    %cst_38 = arith.constant 1.000000e+00 : f32
    %218 = vector.broadcast %cst_38 : f32 to vector<2x96xf32>
    %219 = arith.addf %218, %217 : vector<2x96xf32>
    %220 = arith.divf %218, %219 : vector<2x96xf32>
    %221 = vector.extract_strided_slice %214 {offsets = [0, 0], sizes = [2, 96], strides = [1, 1]} : vector<2x128xf32> to vector<2x96xf32>
    %222 = arith.negf %221 : vector<2x96xf32>
    %223 = math.exp %222 : vector<2x96xf32>
    %cst_39 = arith.constant 1.000000e+00 : f32
    %224 = vector.broadcast %cst_39 : f32 to vector<2x96xf32>
    %225 = arith.addf %224, %223 : vector<2x96xf32>
    %226 = arith.divf %224, %225 : vector<2x96xf32>
    %227 = vector.extract_strided_slice %220 {offsets = [0, 32], sizes = [2, 32], strides = [1, 1]} : vector<2x96xf32> to vector<2x32xf32>
    %228 = arith.mulf %227, %195 : vector<2x32xf32>
    %229 = vector.extract_strided_slice %220 {offsets = [0, 0], sizes = [2, 32], strides = [1, 1]} : vector<2x96xf32> to vector<2x32xf32>
    %230 = vector.extract_strided_slice %212 {offsets = [0, 96], sizes = [2, 32], strides = [1, 1]} : vector<2x128xf32> to vector<2x32xf32>
    %231 = math.tanh %230 : vector<2x32xf32>
    %232 = arith.mulf %229, %231 : vector<2x32xf32>
    %233 = arith.addf %228, %232 : vector<2x32xf32>
    %234 = vector.extract_strided_slice %226 {offsets = [0, 32], sizes = [2, 32], strides = [1, 1]} : vector<2x96xf32> to vector<2x32xf32>
    %235 = arith.mulf %234, %202 : vector<2x32xf32>
    %236 = vector.extract_strided_slice %226 {offsets = [0, 0], sizes = [2, 32], strides = [1, 1]} : vector<2x96xf32> to vector<2x32xf32>
    %237 = vector.extract_strided_slice %214 {offsets = [0, 96], sizes = [2, 32], strides = [1, 1]} : vector<2x128xf32> to vector<2x32xf32>
    %238 = math.tanh %237 : vector<2x32xf32>
    %239 = arith.mulf %236, %238 : vector<2x32xf32>
    %240 = arith.addf %235, %239 : vector<2x32xf32>
    %241 = vector.extract_strided_slice %220 {offsets = [0, 64], sizes = [2, 32], strides = [1, 1]} : vector<2x96xf32> to vector<2x32xf32>
    %242 = math.tanh %233 : vector<2x32xf32>
    %243 = arith.mulf %241, %242 : vector<2x32xf32>
    %244 = vector.extract_strided_slice %226 {offsets = [0, 64], sizes = [2, 32], strides = [1, 1]} : vector<2x96xf32> to vector<2x32xf32>
    %245 = math.tanh %240 : vector<2x32xf32>
    %246 = arith.mulf %244, %245 : vector<2x32xf32>
    %247 = vector.extract_strided_slice %12 {offsets = [12, 0], sizes = [2, 128], strides = [1, 1]} : vector<16x256xf32> to vector<2x128xf32>
    %248 = vector.extract_strided_slice %12 {offsets = [2, 128], sizes = [2, 128], strides = [1, 1]} : vector<16x256xf32> to vector<2x128xf32>
    %cst_40 = arith.constant dense<0.000000e+00> : vector<2x128xf32>
    %249 = tpu.matmul %243, %13, %cst_40 {dimension_numbers = #tpu.dot_dimension_numbers<[1], [0], [0], [1], [0, 0, 1, 1], [], []>} : vector<2x32xf32>, vector<32x128xf32>, vector<2x128xf32> -> vector<2x128xf32>
    %250 = arith.addf %249, %247 : vector<2x128xf32>
    %cst_41 = arith.constant dense<0.000000e+00> : vector<2x128xf32>
    %251 = tpu.matmul %246, %14, %cst_41 {dimension_numbers = #tpu.dot_dimension_numbers<[1], [0], [0], [1], [0, 0, 1, 1], [], []>} : vector<2x32xf32>, vector<32x128xf32>, vector<2x128xf32> -> vector<2x128xf32>
    %252 = arith.addf %251, %248 : vector<2x128xf32>
    %253 = vector.extract_strided_slice %250 {offsets = [0, 0], sizes = [2, 96], strides = [1, 1]} : vector<2x128xf32> to vector<2x96xf32>
    %254 = arith.negf %253 : vector<2x96xf32>
    %255 = math.exp %254 : vector<2x96xf32>
    %cst_42 = arith.constant 1.000000e+00 : f32
    %256 = vector.broadcast %cst_42 : f32 to vector<2x96xf32>
    %257 = arith.addf %256, %255 : vector<2x96xf32>
    %258 = arith.divf %256, %257 : vector<2x96xf32>
    %259 = vector.extract_strided_slice %252 {offsets = [0, 0], sizes = [2, 96], strides = [1, 1]} : vector<2x128xf32> to vector<2x96xf32>
    %260 = arith.negf %259 : vector<2x96xf32>
    %261 = math.exp %260 : vector<2x96xf32>
    %cst_43 = arith.constant 1.000000e+00 : f32
    %262 = vector.broadcast %cst_43 : f32 to vector<2x96xf32>
    %263 = arith.addf %262, %261 : vector<2x96xf32>
    %264 = arith.divf %262, %263 : vector<2x96xf32>
    %265 = vector.extract_strided_slice %258 {offsets = [0, 32], sizes = [2, 32], strides = [1, 1]} : vector<2x96xf32> to vector<2x32xf32>
    %266 = arith.mulf %265, %233 : vector<2x32xf32>
    %267 = vector.extract_strided_slice %258 {offsets = [0, 0], sizes = [2, 32], strides = [1, 1]} : vector<2x96xf32> to vector<2x32xf32>
    %268 = vector.extract_strided_slice %250 {offsets = [0, 96], sizes = [2, 32], strides = [1, 1]} : vector<2x128xf32> to vector<2x32xf32>
    %269 = math.tanh %268 : vector<2x32xf32>
    %270 = arith.mulf %267, %269 : vector<2x32xf32>
    %271 = arith.addf %266, %270 : vector<2x32xf32>
    %272 = vector.extract_strided_slice %264 {offsets = [0, 32], sizes = [2, 32], strides = [1, 1]} : vector<2x96xf32> to vector<2x32xf32>
    %273 = arith.mulf %272, %240 : vector<2x32xf32>
    %274 = vector.extract_strided_slice %264 {offsets = [0, 0], sizes = [2, 32], strides = [1, 1]} : vector<2x96xf32> to vector<2x32xf32>
    %275 = vector.extract_strided_slice %252 {offsets = [0, 96], sizes = [2, 32], strides = [1, 1]} : vector<2x128xf32> to vector<2x32xf32>
    %276 = math.tanh %275 : vector<2x32xf32>
    %277 = arith.mulf %274, %276 : vector<2x32xf32>
    %278 = arith.addf %273, %277 : vector<2x32xf32>
    %279 = vector.extract_strided_slice %258 {offsets = [0, 64], sizes = [2, 32], strides = [1, 1]} : vector<2x96xf32> to vector<2x32xf32>
    %280 = math.tanh %271 : vector<2x32xf32>
    %281 = arith.mulf %279, %280 : vector<2x32xf32>
    %282 = vector.extract_strided_slice %264 {offsets = [0, 64], sizes = [2, 32], strides = [1, 1]} : vector<2x96xf32> to vector<2x32xf32>
    %283 = math.tanh %278 : vector<2x32xf32>
    %284 = arith.mulf %282, %283 : vector<2x32xf32>
    %285 = vector.extract_strided_slice %12 {offsets = [14, 0], sizes = [2, 128], strides = [1, 1]} : vector<16x256xf32> to vector<2x128xf32>
    %286 = vector.extract_strided_slice %12 {offsets = [0, 128], sizes = [2, 128], strides = [1, 1]} : vector<16x256xf32> to vector<2x128xf32>
    %cst_44 = arith.constant dense<0.000000e+00> : vector<2x128xf32>
    %287 = tpu.matmul %281, %13, %cst_44 {dimension_numbers = #tpu.dot_dimension_numbers<[1], [0], [0], [1], [0, 0, 1, 1], [], []>} : vector<2x32xf32>, vector<32x128xf32>, vector<2x128xf32> -> vector<2x128xf32>
    %288 = arith.addf %287, %285 : vector<2x128xf32>
    %cst_45 = arith.constant dense<0.000000e+00> : vector<2x128xf32>
    %289 = tpu.matmul %284, %14, %cst_45 {dimension_numbers = #tpu.dot_dimension_numbers<[1], [0], [0], [1], [0, 0, 1, 1], [], []>} : vector<2x32xf32>, vector<32x128xf32>, vector<2x128xf32> -> vector<2x128xf32>
    %290 = arith.addf %289, %286 : vector<2x128xf32>
    %291 = vector.extract_strided_slice %288 {offsets = [0, 0], sizes = [2, 96], strides = [1, 1]} : vector<2x128xf32> to vector<2x96xf32>
    %292 = arith.negf %291 : vector<2x96xf32>
    %293 = math.exp %292 : vector<2x96xf32>
    %cst_46 = arith.constant 1.000000e+00 : f32
    %294 = vector.broadcast %cst_46 : f32 to vector<2x96xf32>
    %295 = arith.addf %294, %293 : vector<2x96xf32>
    %296 = arith.divf %294, %295 : vector<2x96xf32>
    %297 = vector.extract_strided_slice %290 {offsets = [0, 0], sizes = [2, 96], strides = [1, 1]} : vector<2x128xf32> to vector<2x96xf32>
    %298 = arith.negf %297 : vector<2x96xf32>
    %299 = math.exp %298 : vector<2x96xf32>
    %cst_47 = arith.constant 1.000000e+00 : f32
    %300 = vector.broadcast %cst_47 : f32 to vector<2x96xf32>
    %301 = arith.addf %300, %299 : vector<2x96xf32>
    %302 = arith.divf %300, %301 : vector<2x96xf32>
    %303 = vector.extract_strided_slice %296 {offsets = [0, 32], sizes = [2, 32], strides = [1, 1]} : vector<2x96xf32> to vector<2x32xf32>
    %304 = arith.mulf %303, %271 : vector<2x32xf32>
    %305 = vector.extract_strided_slice %296 {offsets = [0, 0], sizes = [2, 32], strides = [1, 1]} : vector<2x96xf32> to vector<2x32xf32>
    %306 = vector.extract_strided_slice %288 {offsets = [0, 96], sizes = [2, 32], strides = [1, 1]} : vector<2x128xf32> to vector<2x32xf32>
    %307 = math.tanh %306 : vector<2x32xf32>
    %308 = arith.mulf %305, %307 : vector<2x32xf32>
    %309 = arith.addf %304, %308 : vector<2x32xf32>
    %310 = vector.extract_strided_slice %302 {offsets = [0, 32], sizes = [2, 32], strides = [1, 1]} : vector<2x96xf32> to vector<2x32xf32>
    %311 = arith.mulf %310, %278 : vector<2x32xf32>
    %312 = vector.extract_strided_slice %302 {offsets = [0, 0], sizes = [2, 32], strides = [1, 1]} : vector<2x96xf32> to vector<2x32xf32>
    %313 = vector.extract_strided_slice %290 {offsets = [0, 96], sizes = [2, 32], strides = [1, 1]} : vector<2x128xf32> to vector<2x32xf32>
    %314 = math.tanh %313 : vector<2x32xf32>
    %315 = arith.mulf %312, %314 : vector<2x32xf32>
    %316 = arith.addf %311, %315 : vector<2x32xf32>
    %317 = vector.extract_strided_slice %296 {offsets = [0, 64], sizes = [2, 32], strides = [1, 1]} : vector<2x96xf32> to vector<2x32xf32>
    %318 = math.tanh %309 : vector<2x32xf32>
    %319 = arith.mulf %317, %318 : vector<2x32xf32>
    %320 = vector.extract_strided_slice %302 {offsets = [0, 64], sizes = [2, 32], strides = [1, 1]} : vector<2x96xf32> to vector<2x32xf32>
    %321 = math.tanh %316 : vector<2x32xf32>
    %322 = arith.mulf %320, %321 : vector<2x32xf32>
    %323 = tpu.concatenate %53, %322 in 1 : vector<2x32xf32>, vector<2x32xf32> -> vector<2x64xf32>
    %324 = tpu.concatenate %91, %284 in 1 : vector<2x32xf32>, vector<2x32xf32> -> vector<2x64xf32>
    %325 = tpu.concatenate %129, %246 in 1 : vector<2x32xf32>, vector<2x32xf32> -> vector<2x64xf32>
    %326 = tpu.concatenate %167, %208 in 1 : vector<2x32xf32>, vector<2x32xf32> -> vector<2x64xf32>
    %327 = tpu.concatenate %205, %170 in 1 : vector<2x32xf32>, vector<2x32xf32> -> vector<2x64xf32>
    %328 = tpu.concatenate %243, %132 in 1 : vector<2x32xf32>, vector<2x32xf32> -> vector<2x64xf32>
    %329 = tpu.concatenate %281, %94 in 1 : vector<2x32xf32>, vector<2x32xf32> -> vector<2x64xf32>
    %330 = tpu.concatenate %319, %56 in 1 : vector<2x32xf32>, vector<2x32xf32> -> vector<2x64xf32>
    %c0_48 = arith.constant 0 : index
    %c0_49 = arith.constant 0 : index
    %331 = vector.load %arg6[%c0_48, %c0_49] : memref<64x96xf32, #tpu.memory_space<vmem>>, vector<64x96xf32>
    %c0_50 = arith.constant 0 : index
    %c0_51 = arith.constant 0 : index
    %332 = vector.load %arg7[%c0_50, %c0_51] : memref<64x96xf32, #tpu.memory_space<vmem>>, vector<64x96xf32>
    %c0_52 = arith.constant 0 : index
    %c0_53 = arith.constant 0 : index
    %333 = vector.load %arg10[%c0_52, %c0_53] : memref<1x96xf32, #tpu.memory_space<vmem>>, vector<1x96xf32>
    %c0_54 = arith.constant 0 : index
    %c0_55 = arith.constant 0 : index
    %334 = vector.load %arg11[%c0_54, %c0_55] : memref<1x96xf32, #tpu.memory_space<vmem>>, vector<1x96xf32>
    %cst_56 = arith.constant dense<0.000000e+00> : vector<2x96xf32>
    %335 = tpu.matmul %323, %331, %cst_56 {dimension_numbers = #tpu.dot_dimension_numbers<[1], [0], [0], [1], [0, 0, 1, 1], [], []>} : vector<2x64xf32>, vector<64x96xf32>, vector<2x96xf32> -> vector<2x96xf32>
    %336 = vector.broadcast %333 : vector<1x96xf32> to vector<2x96xf32>
    %337 = arith.addf %335, %336 : vector<2x96xf32>
    %cst_57 = arith.constant dense<0.000000e+00> : vector<2x96xf32>
    %338 = tpu.matmul %324, %331, %cst_57 {dimension_numbers = #tpu.dot_dimension_numbers<[1], [0], [0], [1], [0, 0, 1, 1], [], []>} : vector<2x64xf32>, vector<64x96xf32>, vector<2x96xf32> -> vector<2x96xf32>
    %339 = vector.broadcast %333 : vector<1x96xf32> to vector<2x96xf32>
    %340 = arith.addf %338, %339 : vector<2x96xf32>
    %cst_58 = arith.constant dense<0.000000e+00> : vector<2x96xf32>
    %341 = tpu.matmul %325, %331, %cst_58 {dimension_numbers = #tpu.dot_dimension_numbers<[1], [0], [0], [1], [0, 0, 1, 1], [], []>} : vector<2x64xf32>, vector<64x96xf32>, vector<2x96xf32> -> vector<2x96xf32>
    %342 = vector.broadcast %333 : vector<1x96xf32> to vector<2x96xf32>
    %343 = arith.addf %341, %342 : vector<2x96xf32>
    %cst_59 = arith.constant dense<0.000000e+00> : vector<2x96xf32>
    %344 = tpu.matmul %326, %331, %cst_59 {dimension_numbers = #tpu.dot_dimension_numbers<[1], [0], [0], [1], [0, 0, 1, 1], [], []>} : vector<2x64xf32>, vector<64x96xf32>, vector<2x96xf32> -> vector<2x96xf32>
    %345 = vector.broadcast %333 : vector<1x96xf32> to vector<2x96xf32>
    %346 = arith.addf %344, %345 : vector<2x96xf32>
    %cst_60 = arith.constant dense<0.000000e+00> : vector<2x96xf32>
    %347 = tpu.matmul %327, %331, %cst_60 {dimension_numbers = #tpu.dot_dimension_numbers<[1], [0], [0], [1], [0, 0, 1, 1], [], []>} : vector<2x64xf32>, vector<64x96xf32>, vector<2x96xf32> -> vector<2x96xf32>
    %348 = vector.broadcast %333 : vector<1x96xf32> to vector<2x96xf32>
    %349 = arith.addf %347, %348 : vector<2x96xf32>
    %cst_61 = arith.constant dense<0.000000e+00> : vector<2x96xf32>
    %350 = tpu.matmul %328, %331, %cst_61 {dimension_numbers = #tpu.dot_dimension_numbers<[1], [0], [0], [1], [0, 0, 1, 1], [], []>} : vector<2x64xf32>, vector<64x96xf32>, vector<2x96xf32> -> vector<2x96xf32>
    %351 = vector.broadcast %333 : vector<1x96xf32> to vector<2x96xf32>
    %352 = arith.addf %350, %351 : vector<2x96xf32>
    %cst_62 = arith.constant dense<0.000000e+00> : vector<2x96xf32>
    %353 = tpu.matmul %329, %331, %cst_62 {dimension_numbers = #tpu.dot_dimension_numbers<[1], [0], [0], [1], [0, 0, 1, 1], [], []>} : vector<2x64xf32>, vector<64x96xf32>, vector<2x96xf32> -> vector<2x96xf32>
    %354 = vector.broadcast %333 : vector<1x96xf32> to vector<2x96xf32>
    %355 = arith.addf %353, %354 : vector<2x96xf32>
    %cst_63 = arith.constant dense<0.000000e+00> : vector<2x96xf32>
    %356 = tpu.matmul %330, %331, %cst_63 {dimension_numbers = #tpu.dot_dimension_numbers<[1], [0], [0], [1], [0, 0, 1, 1], [], []>} : vector<2x64xf32>, vector<64x96xf32>, vector<2x96xf32> -> vector<2x96xf32>
    %357 = vector.broadcast %333 : vector<1x96xf32> to vector<2x96xf32>
    %358 = arith.addf %356, %357 : vector<2x96xf32>
    %cst_64 = arith.constant dense<0.000000e+00> : vector<2x96xf32>
    %359 = tpu.matmul %323, %332, %cst_64 {dimension_numbers = #tpu.dot_dimension_numbers<[1], [0], [0], [1], [0, 0, 1, 1], [], []>} : vector<2x64xf32>, vector<64x96xf32>, vector<2x96xf32> -> vector<2x96xf32>
    %360 = vector.broadcast %334 : vector<1x96xf32> to vector<2x96xf32>
    %361 = arith.addf %359, %360 : vector<2x96xf32>
    %cst_65 = arith.constant dense<0.000000e+00> : vector<2x96xf32>
    %362 = tpu.matmul %324, %332, %cst_65 {dimension_numbers = #tpu.dot_dimension_numbers<[1], [0], [0], [1], [0, 0, 1, 1], [], []>} : vector<2x64xf32>, vector<64x96xf32>, vector<2x96xf32> -> vector<2x96xf32>
    %363 = vector.broadcast %334 : vector<1x96xf32> to vector<2x96xf32>
    %364 = arith.addf %362, %363 : vector<2x96xf32>
    %cst_66 = arith.constant dense<0.000000e+00> : vector<2x96xf32>
    %365 = tpu.matmul %325, %332, %cst_66 {dimension_numbers = #tpu.dot_dimension_numbers<[1], [0], [0], [1], [0, 0, 1, 1], [], []>} : vector<2x64xf32>, vector<64x96xf32>, vector<2x96xf32> -> vector<2x96xf32>
    %366 = vector.broadcast %334 : vector<1x96xf32> to vector<2x96xf32>
    %367 = arith.addf %365, %366 : vector<2x96xf32>
    %cst_67 = arith.constant dense<0.000000e+00> : vector<2x96xf32>
    %368 = tpu.matmul %326, %332, %cst_67 {dimension_numbers = #tpu.dot_dimension_numbers<[1], [0], [0], [1], [0, 0, 1, 1], [], []>} : vector<2x64xf32>, vector<64x96xf32>, vector<2x96xf32> -> vector<2x96xf32>
    %369 = vector.broadcast %334 : vector<1x96xf32> to vector<2x96xf32>
    %370 = arith.addf %368, %369 : vector<2x96xf32>
    %cst_68 = arith.constant dense<0.000000e+00> : vector<2x96xf32>
    %371 = tpu.matmul %327, %332, %cst_68 {dimension_numbers = #tpu.dot_dimension_numbers<[1], [0], [0], [1], [0, 0, 1, 1], [], []>} : vector<2x64xf32>, vector<64x96xf32>, vector<2x96xf32> -> vector<2x96xf32>
    %372 = vector.broadcast %334 : vector<1x96xf32> to vector<2x96xf32>
    %373 = arith.addf %371, %372 : vector<2x96xf32>
    %cst_69 = arith.constant dense<0.000000e+00> : vector<2x96xf32>
    %374 = tpu.matmul %328, %332, %cst_69 {dimension_numbers = #tpu.dot_dimension_numbers<[1], [0], [0], [1], [0, 0, 1, 1], [], []>} : vector<2x64xf32>, vector<64x96xf32>, vector<2x96xf32> -> vector<2x96xf32>
    %375 = vector.broadcast %334 : vector<1x96xf32> to vector<2x96xf32>
    %376 = arith.addf %374, %375 : vector<2x96xf32>
    %cst_70 = arith.constant dense<0.000000e+00> : vector<2x96xf32>
    %377 = tpu.matmul %329, %332, %cst_70 {dimension_numbers = #tpu.dot_dimension_numbers<[1], [0], [0], [1], [0, 0, 1, 1], [], []>} : vector<2x64xf32>, vector<64x96xf32>, vector<2x96xf32> -> vector<2x96xf32>
    %378 = vector.broadcast %334 : vector<1x96xf32> to vector<2x96xf32>
    %379 = arith.addf %377, %378 : vector<2x96xf32>
    %cst_71 = arith.constant dense<0.000000e+00> : vector<2x96xf32>
    %380 = tpu.matmul %330, %332, %cst_71 {dimension_numbers = #tpu.dot_dimension_numbers<[1], [0], [0], [1], [0, 0, 1, 1], [], []>} : vector<2x64xf32>, vector<64x96xf32>, vector<2x96xf32> -> vector<2x96xf32>
    %381 = vector.broadcast %334 : vector<1x96xf32> to vector<2x96xf32>
    %382 = arith.addf %380, %381 : vector<2x96xf32>
    %c0_72 = arith.constant 0 : index
    %c0_73 = arith.constant 0 : index
    %383 = vector.load %arg8[%c0_72, %c0_73] : memref<32x96xf32, #tpu.memory_space<vmem>>, vector<32x96xf32>
    %c0_74 = arith.constant 0 : index
    %c0_75 = arith.constant 0 : index
    %384 = vector.load %arg9[%c0_74, %c0_75] : memref<32x96xf32, #tpu.memory_space<vmem>>, vector<32x96xf32>
    %c0_76 = arith.constant 0 : index
    %c0_77 = arith.constant 0 : index
    %385 = vector.load %arg12[%c0_76, %c0_77] : memref<1x96xf32, #tpu.memory_space<vmem>>, vector<1x96xf32>
    %c0_78 = arith.constant 0 : index
    %c0_79 = arith.constant 0 : index
    %386 = vector.load %arg13[%c0_78, %c0_79] : memref<1x96xf32, #tpu.memory_space<vmem>>, vector<1x96xf32>
    %cst_80 = arith.constant 0.000000e+00 : f32
    %387 = vector.broadcast %cst_80 : f32 to vector<2x32xf32>
    %cst_81 = arith.constant 0.000000e+00 : f32
    %388 = vector.broadcast %cst_81 : f32 to vector<2x32xf32>
    %cst_82 = arith.constant dense<0.000000e+00> : vector<2x96xf32>
    %389 = tpu.matmul %387, %383, %cst_82 {dimension_numbers = #tpu.dot_dimension_numbers<[1], [0], [0], [1], [0, 0, 1, 1], [], []>} : vector<2x32xf32>, vector<32x96xf32>, vector<2x96xf32> -> vector<2x96xf32>
    %390 = vector.broadcast %385 : vector<1x96xf32> to vector<2x96xf32>
    %391 = arith.addf %389, %390 : vector<2x96xf32>
    %cst_83 = arith.constant dense<0.000000e+00> : vector<2x96xf32>
    %392 = tpu.matmul %388, %384, %cst_83 {dimension_numbers = #tpu.dot_dimension_numbers<[1], [0], [0], [1], [0, 0, 1, 1], [], []>} : vector<2x32xf32>, vector<32x96xf32>, vector<2x96xf32> -> vector<2x96xf32>
    %393 = vector.broadcast %386 : vector<1x96xf32> to vector<2x96xf32>
    %394 = arith.addf %392, %393 : vector<2x96xf32>
    %395 = vector.extract_strided_slice %337 {offsets = [0, 0], sizes = [2, 64], strides = [1, 1]} : vector<2x96xf32> to vector<2x64xf32>
    %396 = vector.extract_strided_slice %391 {offsets = [0, 0], sizes = [2, 64], strides = [1, 1]} : vector<2x96xf32> to vector<2x64xf32>
    %397 = arith.addf %395, %396 : vector<2x64xf32>
    %398 = arith.negf %397 : vector<2x64xf32>
    %399 = math.exp %398 : vector<2x64xf32>
    %cst_84 = arith.constant 1.000000e+00 : f32
    %400 = vector.broadcast %cst_84 : f32 to vector<2x64xf32>
    %401 = arith.addf %400, %399 : vector<2x64xf32>
    %402 = arith.divf %400, %401 : vector<2x64xf32>
    %403 = vector.extract_strided_slice %382 {offsets = [0, 0], sizes = [2, 64], strides = [1, 1]} : vector<2x96xf32> to vector<2x64xf32>
    %404 = vector.extract_strided_slice %394 {offsets = [0, 0], sizes = [2, 64], strides = [1, 1]} : vector<2x96xf32> to vector<2x64xf32>
    %405 = arith.addf %403, %404 : vector<2x64xf32>
    %406 = arith.negf %405 : vector<2x64xf32>
    %407 = math.exp %406 : vector<2x64xf32>
    %cst_85 = arith.constant 1.000000e+00 : f32
    %408 = vector.broadcast %cst_85 : f32 to vector<2x64xf32>
    %409 = arith.addf %408, %407 : vector<2x64xf32>
    %410 = arith.divf %408, %409 : vector<2x64xf32>
    %411 = vector.extract_strided_slice %337 {offsets = [0, 64], sizes = [2, 32], strides = [1, 1]} : vector<2x96xf32> to vector<2x32xf32>
    %412 = vector.extract_strided_slice %402 {offsets = [0, 0], sizes = [2, 32], strides = [1, 1]} : vector<2x64xf32> to vector<2x32xf32>
    %413 = vector.extract_strided_slice %391 {offsets = [0, 64], sizes = [2, 32], strides = [1, 1]} : vector<2x96xf32> to vector<2x32xf32>
    %414 = arith.mulf %412, %413 : vector<2x32xf32>
    %415 = arith.addf %411, %414 : vector<2x32xf32>
    %416 = math.tanh %415 : vector<2x32xf32>
    %417 = vector.extract_strided_slice %382 {offsets = [0, 64], sizes = [2, 32], strides = [1, 1]} : vector<2x96xf32> to vector<2x32xf32>
    %418 = vector.extract_strided_slice %410 {offsets = [0, 0], sizes = [2, 32], strides = [1, 1]} : vector<2x64xf32> to vector<2x32xf32>
    %419 = vector.extract_strided_slice %394 {offsets = [0, 64], sizes = [2, 32], strides = [1, 1]} : vector<2x96xf32> to vector<2x32xf32>
    %420 = arith.mulf %418, %419 : vector<2x32xf32>
    %421 = arith.addf %417, %420 : vector<2x32xf32>
    %422 = math.tanh %421 : vector<2x32xf32>
    %423 = vector.extract_strided_slice %402 {offsets = [0, 32], sizes = [2, 32], strides = [1, 1]} : vector<2x64xf32> to vector<2x32xf32>
    %424 = vector.extract_strided_slice %410 {offsets = [0, 32], sizes = [2, 32], strides = [1, 1]} : vector<2x64xf32> to vector<2x32xf32>
    %cst_86 = arith.constant 1.000000e+00 : f32
    %425 = vector.broadcast %cst_86 : f32 to vector<2x32xf32>
    %426 = arith.subf %425, %423 : vector<2x32xf32>
    %427 = arith.mulf %426, %416 : vector<2x32xf32>
    %428 = arith.mulf %423, %387 : vector<2x32xf32>
    %429 = arith.addf %427, %428 : vector<2x32xf32>
    %cst_87 = arith.constant 1.000000e+00 : f32
    %430 = vector.broadcast %cst_87 : f32 to vector<2x32xf32>
    %431 = arith.subf %430, %424 : vector<2x32xf32>
    %432 = arith.mulf %431, %422 : vector<2x32xf32>
    %433 = arith.mulf %424, %388 : vector<2x32xf32>
    %434 = arith.addf %432, %433 : vector<2x32xf32>
    %cst_88 = arith.constant dense<0.000000e+00> : vector<2x96xf32>
    %435 = tpu.matmul %429, %383, %cst_88 {dimension_numbers = #tpu.dot_dimension_numbers<[1], [0], [0], [1], [0, 0, 1, 1], [], []>} : vector<2x32xf32>, vector<32x96xf32>, vector<2x96xf32> -> vector<2x96xf32>
    %436 = vector.broadcast %385 : vector<1x96xf32> to vector<2x96xf32>
    %437 = arith.addf %435, %436 : vector<2x96xf32>
    %cst_89 = arith.constant dense<0.000000e+00> : vector<2x96xf32>
    %438 = tpu.matmul %434, %384, %cst_89 {dimension_numbers = #tpu.dot_dimension_numbers<[1], [0], [0], [1], [0, 0, 1, 1], [], []>} : vector<2x32xf32>, vector<32x96xf32>, vector<2x96xf32> -> vector<2x96xf32>
    %439 = vector.broadcast %386 : vector<1x96xf32> to vector<2x96xf32>
    %440 = arith.addf %438, %439 : vector<2x96xf32>
    %441 = vector.extract_strided_slice %340 {offsets = [0, 0], sizes = [2, 64], strides = [1, 1]} : vector<2x96xf32> to vector<2x64xf32>
    %442 = vector.extract_strided_slice %437 {offsets = [0, 0], sizes = [2, 64], strides = [1, 1]} : vector<2x96xf32> to vector<2x64xf32>
    %443 = arith.addf %441, %442 : vector<2x64xf32>
    %444 = arith.negf %443 : vector<2x64xf32>
    %445 = math.exp %444 : vector<2x64xf32>
    %cst_90 = arith.constant 1.000000e+00 : f32
    %446 = vector.broadcast %cst_90 : f32 to vector<2x64xf32>
    %447 = arith.addf %446, %445 : vector<2x64xf32>
    %448 = arith.divf %446, %447 : vector<2x64xf32>
    %449 = vector.extract_strided_slice %379 {offsets = [0, 0], sizes = [2, 64], strides = [1, 1]} : vector<2x96xf32> to vector<2x64xf32>
    %450 = vector.extract_strided_slice %440 {offsets = [0, 0], sizes = [2, 64], strides = [1, 1]} : vector<2x96xf32> to vector<2x64xf32>
    %451 = arith.addf %449, %450 : vector<2x64xf32>
    %452 = arith.negf %451 : vector<2x64xf32>
    %453 = math.exp %452 : vector<2x64xf32>
    %cst_91 = arith.constant 1.000000e+00 : f32
    %454 = vector.broadcast %cst_91 : f32 to vector<2x64xf32>
    %455 = arith.addf %454, %453 : vector<2x64xf32>
    %456 = arith.divf %454, %455 : vector<2x64xf32>
    %457 = vector.extract_strided_slice %340 {offsets = [0, 64], sizes = [2, 32], strides = [1, 1]} : vector<2x96xf32> to vector<2x32xf32>
    %458 = vector.extract_strided_slice %448 {offsets = [0, 0], sizes = [2, 32], strides = [1, 1]} : vector<2x64xf32> to vector<2x32xf32>
    %459 = vector.extract_strided_slice %437 {offsets = [0, 64], sizes = [2, 32], strides = [1, 1]} : vector<2x96xf32> to vector<2x32xf32>
    %460 = arith.mulf %458, %459 : vector<2x32xf32>
    %461 = arith.addf %457, %460 : vector<2x32xf32>
    %462 = math.tanh %461 : vector<2x32xf32>
    %463 = vector.extract_strided_slice %379 {offsets = [0, 64], sizes = [2, 32], strides = [1, 1]} : vector<2x96xf32> to vector<2x32xf32>
    %464 = vector.extract_strided_slice %456 {offsets = [0, 0], sizes = [2, 32], strides = [1, 1]} : vector<2x64xf32> to vector<2x32xf32>
    %465 = vector.extract_strided_slice %440 {offsets = [0, 64], sizes = [2, 32], strides = [1, 1]} : vector<2x96xf32> to vector<2x32xf32>
    %466 = arith.mulf %464, %465 : vector<2x32xf32>
    %467 = arith.addf %463, %466 : vector<2x32xf32>
    %468 = math.tanh %467 : vector<2x32xf32>
    %469 = vector.extract_strided_slice %448 {offsets = [0, 32], sizes = [2, 32], strides = [1, 1]} : vector<2x64xf32> to vector<2x32xf32>
    %470 = vector.extract_strided_slice %456 {offsets = [0, 32], sizes = [2, 32], strides = [1, 1]} : vector<2x64xf32> to vector<2x32xf32>
    %cst_92 = arith.constant 1.000000e+00 : f32
    %471 = vector.broadcast %cst_92 : f32 to vector<2x32xf32>
    %472 = arith.subf %471, %469 : vector<2x32xf32>
    %473 = arith.mulf %472, %462 : vector<2x32xf32>
    %474 = arith.mulf %469, %429 : vector<2x32xf32>
    %475 = arith.addf %473, %474 : vector<2x32xf32>
    %cst_93 = arith.constant 1.000000e+00 : f32
    %476 = vector.broadcast %cst_93 : f32 to vector<2x32xf32>
    %477 = arith.subf %476, %470 : vector<2x32xf32>
    %478 = arith.mulf %477, %468 : vector<2x32xf32>
    %479 = arith.mulf %470, %434 : vector<2x32xf32>
    %480 = arith.addf %478, %479 : vector<2x32xf32>
    %cst_94 = arith.constant dense<0.000000e+00> : vector<2x96xf32>
    %481 = tpu.matmul %475, %383, %cst_94 {dimension_numbers = #tpu.dot_dimension_numbers<[1], [0], [0], [1], [0, 0, 1, 1], [], []>} : vector<2x32xf32>, vector<32x96xf32>, vector<2x96xf32> -> vector<2x96xf32>
    %482 = vector.broadcast %385 : vector<1x96xf32> to vector<2x96xf32>
    %483 = arith.addf %481, %482 : vector<2x96xf32>
    %cst_95 = arith.constant dense<0.000000e+00> : vector<2x96xf32>
    %484 = tpu.matmul %480, %384, %cst_95 {dimension_numbers = #tpu.dot_dimension_numbers<[1], [0], [0], [1], [0, 0, 1, 1], [], []>} : vector<2x32xf32>, vector<32x96xf32>, vector<2x96xf32> -> vector<2x96xf32>
    %485 = vector.broadcast %386 : vector<1x96xf32> to vector<2x96xf32>
    %486 = arith.addf %484, %485 : vector<2x96xf32>
    %487 = vector.extract_strided_slice %343 {offsets = [0, 0], sizes = [2, 64], strides = [1, 1]} : vector<2x96xf32> to vector<2x64xf32>
    %488 = vector.extract_strided_slice %483 {offsets = [0, 0], sizes = [2, 64], strides = [1, 1]} : vector<2x96xf32> to vector<2x64xf32>
    %489 = arith.addf %487, %488 : vector<2x64xf32>
    %490 = arith.negf %489 : vector<2x64xf32>
    %491 = math.exp %490 : vector<2x64xf32>
    %cst_96 = arith.constant 1.000000e+00 : f32
    %492 = vector.broadcast %cst_96 : f32 to vector<2x64xf32>
    %493 = arith.addf %492, %491 : vector<2x64xf32>
    %494 = arith.divf %492, %493 : vector<2x64xf32>
    %495 = vector.extract_strided_slice %376 {offsets = [0, 0], sizes = [2, 64], strides = [1, 1]} : vector<2x96xf32> to vector<2x64xf32>
    %496 = vector.extract_strided_slice %486 {offsets = [0, 0], sizes = [2, 64], strides = [1, 1]} : vector<2x96xf32> to vector<2x64xf32>
    %497 = arith.addf %495, %496 : vector<2x64xf32>
    %498 = arith.negf %497 : vector<2x64xf32>
    %499 = math.exp %498 : vector<2x64xf32>
    %cst_97 = arith.constant 1.000000e+00 : f32
    %500 = vector.broadcast %cst_97 : f32 to vector<2x64xf32>
    %501 = arith.addf %500, %499 : vector<2x64xf32>
    %502 = arith.divf %500, %501 : vector<2x64xf32>
    %503 = vector.extract_strided_slice %343 {offsets = [0, 64], sizes = [2, 32], strides = [1, 1]} : vector<2x96xf32> to vector<2x32xf32>
    %504 = vector.extract_strided_slice %494 {offsets = [0, 0], sizes = [2, 32], strides = [1, 1]} : vector<2x64xf32> to vector<2x32xf32>
    %505 = vector.extract_strided_slice %483 {offsets = [0, 64], sizes = [2, 32], strides = [1, 1]} : vector<2x96xf32> to vector<2x32xf32>
    %506 = arith.mulf %504, %505 : vector<2x32xf32>
    %507 = arith.addf %503, %506 : vector<2x32xf32>
    %508 = math.tanh %507 : vector<2x32xf32>
    %509 = vector.extract_strided_slice %376 {offsets = [0, 64], sizes = [2, 32], strides = [1, 1]} : vector<2x96xf32> to vector<2x32xf32>
    %510 = vector.extract_strided_slice %502 {offsets = [0, 0], sizes = [2, 32], strides = [1, 1]} : vector<2x64xf32> to vector<2x32xf32>
    %511 = vector.extract_strided_slice %486 {offsets = [0, 64], sizes = [2, 32], strides = [1, 1]} : vector<2x96xf32> to vector<2x32xf32>
    %512 = arith.mulf %510, %511 : vector<2x32xf32>
    %513 = arith.addf %509, %512 : vector<2x32xf32>
    %514 = math.tanh %513 : vector<2x32xf32>
    %515 = vector.extract_strided_slice %494 {offsets = [0, 32], sizes = [2, 32], strides = [1, 1]} : vector<2x64xf32> to vector<2x32xf32>
    %516 = vector.extract_strided_slice %502 {offsets = [0, 32], sizes = [2, 32], strides = [1, 1]} : vector<2x64xf32> to vector<2x32xf32>
    %cst_98 = arith.constant 1.000000e+00 : f32
    %517 = vector.broadcast %cst_98 : f32 to vector<2x32xf32>
    %518 = arith.subf %517, %515 : vector<2x32xf32>
    %519 = arith.mulf %518, %508 : vector<2x32xf32>
    %520 = arith.mulf %515, %475 : vector<2x32xf32>
    %521 = arith.addf %519, %520 : vector<2x32xf32>
    %cst_99 = arith.constant 1.000000e+00 : f32
    %522 = vector.broadcast %cst_99 : f32 to vector<2x32xf32>
    %523 = arith.subf %522, %516 : vector<2x32xf32>
    %524 = arith.mulf %523, %514 : vector<2x32xf32>
    %525 = arith.mulf %516, %480 : vector<2x32xf32>
    %526 = arith.addf %524, %525 : vector<2x32xf32>
    %cst_100 = arith.constant dense<0.000000e+00> : vector<2x96xf32>
    %527 = tpu.matmul %521, %383, %cst_100 {dimension_numbers = #tpu.dot_dimension_numbers<[1], [0], [0], [1], [0, 0, 1, 1], [], []>} : vector<2x32xf32>, vector<32x96xf32>, vector<2x96xf32> -> vector<2x96xf32>
    %528 = vector.broadcast %385 : vector<1x96xf32> to vector<2x96xf32>
    %529 = arith.addf %527, %528 : vector<2x96xf32>
    %cst_101 = arith.constant dense<0.000000e+00> : vector<2x96xf32>
    %530 = tpu.matmul %526, %384, %cst_101 {dimension_numbers = #tpu.dot_dimension_numbers<[1], [0], [0], [1], [0, 0, 1, 1], [], []>} : vector<2x32xf32>, vector<32x96xf32>, vector<2x96xf32> -> vector<2x96xf32>
    %531 = vector.broadcast %386 : vector<1x96xf32> to vector<2x96xf32>
    %532 = arith.addf %530, %531 : vector<2x96xf32>
    %533 = vector.extract_strided_slice %346 {offsets = [0, 0], sizes = [2, 64], strides = [1, 1]} : vector<2x96xf32> to vector<2x64xf32>
    %534 = vector.extract_strided_slice %529 {offsets = [0, 0], sizes = [2, 64], strides = [1, 1]} : vector<2x96xf32> to vector<2x64xf32>
    %535 = arith.addf %533, %534 : vector<2x64xf32>
    %536 = arith.negf %535 : vector<2x64xf32>
    %537 = math.exp %536 : vector<2x64xf32>
    %cst_102 = arith.constant 1.000000e+00 : f32
    %538 = vector.broadcast %cst_102 : f32 to vector<2x64xf32>
    %539 = arith.addf %538, %537 : vector<2x64xf32>
    %540 = arith.divf %538, %539 : vector<2x64xf32>
    %541 = vector.extract_strided_slice %373 {offsets = [0, 0], sizes = [2, 64], strides = [1, 1]} : vector<2x96xf32> to vector<2x64xf32>
    %542 = vector.extract_strided_slice %532 {offsets = [0, 0], sizes = [2, 64], strides = [1, 1]} : vector<2x96xf32> to vector<2x64xf32>
    %543 = arith.addf %541, %542 : vector<2x64xf32>
    %544 = arith.negf %543 : vector<2x64xf32>
    %545 = math.exp %544 : vector<2x64xf32>
    %cst_103 = arith.constant 1.000000e+00 : f32
    %546 = vector.broadcast %cst_103 : f32 to vector<2x64xf32>
    %547 = arith.addf %546, %545 : vector<2x64xf32>
    %548 = arith.divf %546, %547 : vector<2x64xf32>
    %549 = vector.extract_strided_slice %346 {offsets = [0, 64], sizes = [2, 32], strides = [1, 1]} : vector<2x96xf32> to vector<2x32xf32>
    %550 = vector.extract_strided_slice %540 {offsets = [0, 0], sizes = [2, 32], strides = [1, 1]} : vector<2x64xf32> to vector<2x32xf32>
    %551 = vector.extract_strided_slice %529 {offsets = [0, 64], sizes = [2, 32], strides = [1, 1]} : vector<2x96xf32> to vector<2x32xf32>
    %552 = arith.mulf %550, %551 : vector<2x32xf32>
    %553 = arith.addf %549, %552 : vector<2x32xf32>
    %554 = math.tanh %553 : vector<2x32xf32>
    %555 = vector.extract_strided_slice %373 {offsets = [0, 64], sizes = [2, 32], strides = [1, 1]} : vector<2x96xf32> to vector<2x32xf32>
    %556 = vector.extract_strided_slice %548 {offsets = [0, 0], sizes = [2, 32], strides = [1, 1]} : vector<2x64xf32> to vector<2x32xf32>
    %557 = vector.extract_strided_slice %532 {offsets = [0, 64], sizes = [2, 32], strides = [1, 1]} : vector<2x96xf32> to vector<2x32xf32>
    %558 = arith.mulf %556, %557 : vector<2x32xf32>
    %559 = arith.addf %555, %558 : vector<2x32xf32>
    %560 = math.tanh %559 : vector<2x32xf32>
    %561 = vector.extract_strided_slice %540 {offsets = [0, 32], sizes = [2, 32], strides = [1, 1]} : vector<2x64xf32> to vector<2x32xf32>
    %562 = vector.extract_strided_slice %548 {offsets = [0, 32], sizes = [2, 32], strides = [1, 1]} : vector<2x64xf32> to vector<2x32xf32>
    %cst_104 = arith.constant 1.000000e+00 : f32
    %563 = vector.broadcast %cst_104 : f32 to vector<2x32xf32>
    %564 = arith.subf %563, %561 : vector<2x32xf32>
    %565 = arith.mulf %564, %554 : vector<2x32xf32>
    %566 = arith.mulf %561, %521 : vector<2x32xf32>
    %567 = arith.addf %565, %566 : vector<2x32xf32>
    %cst_105 = arith.constant 1.000000e+00 : f32
    %568 = vector.broadcast %cst_105 : f32 to vector<2x32xf32>
    %569 = arith.subf %568, %562 : vector<2x32xf32>
    %570 = arith.mulf %569, %560 : vector<2x32xf32>
    %571 = arith.mulf %562, %526 : vector<2x32xf32>
    %572 = arith.addf %570, %571 : vector<2x32xf32>
    %cst_106 = arith.constant dense<0.000000e+00> : vector<2x96xf32>
    %573 = tpu.matmul %567, %383, %cst_106 {dimension_numbers = #tpu.dot_dimension_numbers<[1], [0], [0], [1], [0, 0, 1, 1], [], []>} : vector<2x32xf32>, vector<32x96xf32>, vector<2x96xf32> -> vector<2x96xf32>
    %574 = vector.broadcast %385 : vector<1x96xf32> to vector<2x96xf32>
    %575 = arith.addf %573, %574 : vector<2x96xf32>
    %cst_107 = arith.constant dense<0.000000e+00> : vector<2x96xf32>
    %576 = tpu.matmul %572, %384, %cst_107 {dimension_numbers = #tpu.dot_dimension_numbers<[1], [0], [0], [1], [0, 0, 1, 1], [], []>} : vector<2x32xf32>, vector<32x96xf32>, vector<2x96xf32> -> vector<2x96xf32>
    %577 = vector.broadcast %386 : vector<1x96xf32> to vector<2x96xf32>
    %578 = arith.addf %576, %577 : vector<2x96xf32>
    %579 = vector.extract_strided_slice %349 {offsets = [0, 0], sizes = [2, 64], strides = [1, 1]} : vector<2x96xf32> to vector<2x64xf32>
    %580 = vector.extract_strided_slice %575 {offsets = [0, 0], sizes = [2, 64], strides = [1, 1]} : vector<2x96xf32> to vector<2x64xf32>
    %581 = arith.addf %579, %580 : vector<2x64xf32>
    %582 = arith.negf %581 : vector<2x64xf32>
    %583 = math.exp %582 : vector<2x64xf32>
    %cst_108 = arith.constant 1.000000e+00 : f32
    %584 = vector.broadcast %cst_108 : f32 to vector<2x64xf32>
    %585 = arith.addf %584, %583 : vector<2x64xf32>
    %586 = arith.divf %584, %585 : vector<2x64xf32>
    %587 = vector.extract_strided_slice %370 {offsets = [0, 0], sizes = [2, 64], strides = [1, 1]} : vector<2x96xf32> to vector<2x64xf32>
    %588 = vector.extract_strided_slice %578 {offsets = [0, 0], sizes = [2, 64], strides = [1, 1]} : vector<2x96xf32> to vector<2x64xf32>
    %589 = arith.addf %587, %588 : vector<2x64xf32>
    %590 = arith.negf %589 : vector<2x64xf32>
    %591 = math.exp %590 : vector<2x64xf32>
    %cst_109 = arith.constant 1.000000e+00 : f32
    %592 = vector.broadcast %cst_109 : f32 to vector<2x64xf32>
    %593 = arith.addf %592, %591 : vector<2x64xf32>
    %594 = arith.divf %592, %593 : vector<2x64xf32>
    %595 = vector.extract_strided_slice %349 {offsets = [0, 64], sizes = [2, 32], strides = [1, 1]} : vector<2x96xf32> to vector<2x32xf32>
    %596 = vector.extract_strided_slice %586 {offsets = [0, 0], sizes = [2, 32], strides = [1, 1]} : vector<2x64xf32> to vector<2x32xf32>
    %597 = vector.extract_strided_slice %575 {offsets = [0, 64], sizes = [2, 32], strides = [1, 1]} : vector<2x96xf32> to vector<2x32xf32>
    %598 = arith.mulf %596, %597 : vector<2x32xf32>
    %599 = arith.addf %595, %598 : vector<2x32xf32>
    %600 = math.tanh %599 : vector<2x32xf32>
    %601 = vector.extract_strided_slice %370 {offsets = [0, 64], sizes = [2, 32], strides = [1, 1]} : vector<2x96xf32> to vector<2x32xf32>
    %602 = vector.extract_strided_slice %594 {offsets = [0, 0], sizes = [2, 32], strides = [1, 1]} : vector<2x64xf32> to vector<2x32xf32>
    %603 = vector.extract_strided_slice %578 {offsets = [0, 64], sizes = [2, 32], strides = [1, 1]} : vector<2x96xf32> to vector<2x32xf32>
    %604 = arith.mulf %602, %603 : vector<2x32xf32>
    %605 = arith.addf %601, %604 : vector<2x32xf32>
    %606 = math.tanh %605 : vector<2x32xf32>
    %607 = vector.extract_strided_slice %586 {offsets = [0, 32], sizes = [2, 32], strides = [1, 1]} : vector<2x64xf32> to vector<2x32xf32>
    %608 = vector.extract_strided_slice %594 {offsets = [0, 32], sizes = [2, 32], strides = [1, 1]} : vector<2x64xf32> to vector<2x32xf32>
    %cst_110 = arith.constant 1.000000e+00 : f32
    %609 = vector.broadcast %cst_110 : f32 to vector<2x32xf32>
    %610 = arith.subf %609, %607 : vector<2x32xf32>
    %611 = arith.mulf %610, %600 : vector<2x32xf32>
    %612 = arith.mulf %607, %567 : vector<2x32xf32>
    %613 = arith.addf %611, %612 : vector<2x32xf32>
    %cst_111 = arith.constant 1.000000e+00 : f32
    %614 = vector.broadcast %cst_111 : f32 to vector<2x32xf32>
    %615 = arith.subf %614, %608 : vector<2x32xf32>
    %616 = arith.mulf %615, %606 : vector<2x32xf32>
    %617 = arith.mulf %608, %572 : vector<2x32xf32>
    %618 = arith.addf %616, %617 : vector<2x32xf32>
    %cst_112 = arith.constant dense<0.000000e+00> : vector<2x96xf32>
    %619 = tpu.matmul %613, %383, %cst_112 {dimension_numbers = #tpu.dot_dimension_numbers<[1], [0], [0], [1], [0, 0, 1, 1], [], []>} : vector<2x32xf32>, vector<32x96xf32>, vector<2x96xf32> -> vector<2x96xf32>
    %620 = vector.broadcast %385 : vector<1x96xf32> to vector<2x96xf32>
    %621 = arith.addf %619, %620 : vector<2x96xf32>
    %cst_113 = arith.constant dense<0.000000e+00> : vector<2x96xf32>
    %622 = tpu.matmul %618, %384, %cst_113 {dimension_numbers = #tpu.dot_dimension_numbers<[1], [0], [0], [1], [0, 0, 1, 1], [], []>} : vector<2x32xf32>, vector<32x96xf32>, vector<2x96xf32> -> vector<2x96xf32>
    %623 = vector.broadcast %386 : vector<1x96xf32> to vector<2x96xf32>
    %624 = arith.addf %622, %623 : vector<2x96xf32>
    %625 = vector.extract_strided_slice %352 {offsets = [0, 0], sizes = [2, 64], strides = [1, 1]} : vector<2x96xf32> to vector<2x64xf32>
    %626 = vector.extract_strided_slice %621 {offsets = [0, 0], sizes = [2, 64], strides = [1, 1]} : vector<2x96xf32> to vector<2x64xf32>
    %627 = arith.addf %625, %626 : vector<2x64xf32>
    %628 = arith.negf %627 : vector<2x64xf32>
    %629 = math.exp %628 : vector<2x64xf32>
    %cst_114 = arith.constant 1.000000e+00 : f32
    %630 = vector.broadcast %cst_114 : f32 to vector<2x64xf32>
    %631 = arith.addf %630, %629 : vector<2x64xf32>
    %632 = arith.divf %630, %631 : vector<2x64xf32>
    %633 = vector.extract_strided_slice %367 {offsets = [0, 0], sizes = [2, 64], strides = [1, 1]} : vector<2x96xf32> to vector<2x64xf32>
    %634 = vector.extract_strided_slice %624 {offsets = [0, 0], sizes = [2, 64], strides = [1, 1]} : vector<2x96xf32> to vector<2x64xf32>
    %635 = arith.addf %633, %634 : vector<2x64xf32>
    %636 = arith.negf %635 : vector<2x64xf32>
    %637 = math.exp %636 : vector<2x64xf32>
    %cst_115 = arith.constant 1.000000e+00 : f32
    %638 = vector.broadcast %cst_115 : f32 to vector<2x64xf32>
    %639 = arith.addf %638, %637 : vector<2x64xf32>
    %640 = arith.divf %638, %639 : vector<2x64xf32>
    %641 = vector.extract_strided_slice %352 {offsets = [0, 64], sizes = [2, 32], strides = [1, 1]} : vector<2x96xf32> to vector<2x32xf32>
    %642 = vector.extract_strided_slice %632 {offsets = [0, 0], sizes = [2, 32], strides = [1, 1]} : vector<2x64xf32> to vector<2x32xf32>
    %643 = vector.extract_strided_slice %621 {offsets = [0, 64], sizes = [2, 32], strides = [1, 1]} : vector<2x96xf32> to vector<2x32xf32>
    %644 = arith.mulf %642, %643 : vector<2x32xf32>
    %645 = arith.addf %641, %644 : vector<2x32xf32>
    %646 = math.tanh %645 : vector<2x32xf32>
    %647 = vector.extract_strided_slice %367 {offsets = [0, 64], sizes = [2, 32], strides = [1, 1]} : vector<2x96xf32> to vector<2x32xf32>
    %648 = vector.extract_strided_slice %640 {offsets = [0, 0], sizes = [2, 32], strides = [1, 1]} : vector<2x64xf32> to vector<2x32xf32>
    %649 = vector.extract_strided_slice %624 {offsets = [0, 64], sizes = [2, 32], strides = [1, 1]} : vector<2x96xf32> to vector<2x32xf32>
    %650 = arith.mulf %648, %649 : vector<2x32xf32>
    %651 = arith.addf %647, %650 : vector<2x32xf32>
    %652 = math.tanh %651 : vector<2x32xf32>
    %653 = vector.extract_strided_slice %632 {offsets = [0, 32], sizes = [2, 32], strides = [1, 1]} : vector<2x64xf32> to vector<2x32xf32>
    %654 = vector.extract_strided_slice %640 {offsets = [0, 32], sizes = [2, 32], strides = [1, 1]} : vector<2x64xf32> to vector<2x32xf32>
    %cst_116 = arith.constant 1.000000e+00 : f32
    %655 = vector.broadcast %cst_116 : f32 to vector<2x32xf32>
    %656 = arith.subf %655, %653 : vector<2x32xf32>
    %657 = arith.mulf %656, %646 : vector<2x32xf32>
    %658 = arith.mulf %653, %613 : vector<2x32xf32>
    %659 = arith.addf %657, %658 : vector<2x32xf32>
    %cst_117 = arith.constant 1.000000e+00 : f32
    %660 = vector.broadcast %cst_117 : f32 to vector<2x32xf32>
    %661 = arith.subf %660, %654 : vector<2x32xf32>
    %662 = arith.mulf %661, %652 : vector<2x32xf32>
    %663 = arith.mulf %654, %618 : vector<2x32xf32>
    %664 = arith.addf %662, %663 : vector<2x32xf32>
    %cst_118 = arith.constant dense<0.000000e+00> : vector<2x96xf32>
    %665 = tpu.matmul %659, %383, %cst_118 {dimension_numbers = #tpu.dot_dimension_numbers<[1], [0], [0], [1], [0, 0, 1, 1], [], []>} : vector<2x32xf32>, vector<32x96xf32>, vector<2x96xf32> -> vector<2x96xf32>
    %666 = vector.broadcast %385 : vector<1x96xf32> to vector<2x96xf32>
    %667 = arith.addf %665, %666 : vector<2x96xf32>
    %cst_119 = arith.constant dense<0.000000e+00> : vector<2x96xf32>
    %668 = tpu.matmul %664, %384, %cst_119 {dimension_numbers = #tpu.dot_dimension_numbers<[1], [0], [0], [1], [0, 0, 1, 1], [], []>} : vector<2x32xf32>, vector<32x96xf32>, vector<2x96xf32> -> vector<2x96xf32>
    %669 = vector.broadcast %386 : vector<1x96xf32> to vector<2x96xf32>
    %670 = arith.addf %668, %669 : vector<2x96xf32>
    %671 = vector.extract_strided_slice %355 {offsets = [0, 0], sizes = [2, 64], strides = [1, 1]} : vector<2x96xf32> to vector<2x64xf32>
    %672 = vector.extract_strided_slice %667 {offsets = [0, 0], sizes = [2, 64], strides = [1, 1]} : vector<2x96xf32> to vector<2x64xf32>
    %673 = arith.addf %671, %672 : vector<2x64xf32>
    %674 = arith.negf %673 : vector<2x64xf32>
    %675 = math.exp %674 : vector<2x64xf32>
    %cst_120 = arith.constant 1.000000e+00 : f32
    %676 = vector.broadcast %cst_120 : f32 to vector<2x64xf32>
    %677 = arith.addf %676, %675 : vector<2x64xf32>
    %678 = arith.divf %676, %677 : vector<2x64xf32>
    %679 = vector.extract_strided_slice %364 {offsets = [0, 0], sizes = [2, 64], strides = [1, 1]} : vector<2x96xf32> to vector<2x64xf32>
    %680 = vector.extract_strided_slice %670 {offsets = [0, 0], sizes = [2, 64], strides = [1, 1]} : vector<2x96xf32> to vector<2x64xf32>
    %681 = arith.addf %679, %680 : vector<2x64xf32>
    %682 = arith.negf %681 : vector<2x64xf32>
    %683 = math.exp %682 : vector<2x64xf32>
    %cst_121 = arith.constant 1.000000e+00 : f32
    %684 = vector.broadcast %cst_121 : f32 to vector<2x64xf32>
    %685 = arith.addf %684, %683 : vector<2x64xf32>
    %686 = arith.divf %684, %685 : vector<2x64xf32>
    %687 = vector.extract_strided_slice %355 {offsets = [0, 64], sizes = [2, 32], strides = [1, 1]} : vector<2x96xf32> to vector<2x32xf32>
    %688 = vector.extract_strided_slice %678 {offsets = [0, 0], sizes = [2, 32], strides = [1, 1]} : vector<2x64xf32> to vector<2x32xf32>
    %689 = vector.extract_strided_slice %667 {offsets = [0, 64], sizes = [2, 32], strides = [1, 1]} : vector<2x96xf32> to vector<2x32xf32>
    %690 = arith.mulf %688, %689 : vector<2x32xf32>
    %691 = arith.addf %687, %690 : vector<2x32xf32>
    %692 = math.tanh %691 : vector<2x32xf32>
    %693 = vector.extract_strided_slice %364 {offsets = [0, 64], sizes = [2, 32], strides = [1, 1]} : vector<2x96xf32> to vector<2x32xf32>
    %694 = vector.extract_strided_slice %686 {offsets = [0, 0], sizes = [2, 32], strides = [1, 1]} : vector<2x64xf32> to vector<2x32xf32>
    %695 = vector.extract_strided_slice %670 {offsets = [0, 64], sizes = [2, 32], strides = [1, 1]} : vector<2x96xf32> to vector<2x32xf32>
    %696 = arith.mulf %694, %695 : vector<2x32xf32>
    %697 = arith.addf %693, %696 : vector<2x32xf32>
    %698 = math.tanh %697 : vector<2x32xf32>
    %699 = vector.extract_strided_slice %678 {offsets = [0, 32], sizes = [2, 32], strides = [1, 1]} : vector<2x64xf32> to vector<2x32xf32>
    %700 = vector.extract_strided_slice %686 {offsets = [0, 32], sizes = [2, 32], strides = [1, 1]} : vector<2x64xf32> to vector<2x32xf32>
    %cst_122 = arith.constant 1.000000e+00 : f32
    %701 = vector.broadcast %cst_122 : f32 to vector<2x32xf32>
    %702 = arith.subf %701, %699 : vector<2x32xf32>
    %703 = arith.mulf %702, %692 : vector<2x32xf32>
    %704 = arith.mulf %699, %659 : vector<2x32xf32>
    %705 = arith.addf %703, %704 : vector<2x32xf32>
    %cst_123 = arith.constant 1.000000e+00 : f32
    %706 = vector.broadcast %cst_123 : f32 to vector<2x32xf32>
    %707 = arith.subf %706, %700 : vector<2x32xf32>
    %708 = arith.mulf %707, %698 : vector<2x32xf32>
    %709 = arith.mulf %700, %664 : vector<2x32xf32>
    %710 = arith.addf %708, %709 : vector<2x32xf32>
    %cst_124 = arith.constant dense<0.000000e+00> : vector<2x96xf32>
    %711 = tpu.matmul %705, %383, %cst_124 {dimension_numbers = #tpu.dot_dimension_numbers<[1], [0], [0], [1], [0, 0, 1, 1], [], []>} : vector<2x32xf32>, vector<32x96xf32>, vector<2x96xf32> -> vector<2x96xf32>
    %712 = vector.broadcast %385 : vector<1x96xf32> to vector<2x96xf32>
    %713 = arith.addf %711, %712 : vector<2x96xf32>
    %cst_125 = arith.constant dense<0.000000e+00> : vector<2x96xf32>
    %714 = tpu.matmul %710, %384, %cst_125 {dimension_numbers = #tpu.dot_dimension_numbers<[1], [0], [0], [1], [0, 0, 1, 1], [], []>} : vector<2x32xf32>, vector<32x96xf32>, vector<2x96xf32> -> vector<2x96xf32>
    %715 = vector.broadcast %386 : vector<1x96xf32> to vector<2x96xf32>
    %716 = arith.addf %714, %715 : vector<2x96xf32>
    %717 = vector.extract_strided_slice %358 {offsets = [0, 0], sizes = [2, 64], strides = [1, 1]} : vector<2x96xf32> to vector<2x64xf32>
    %718 = vector.extract_strided_slice %713 {offsets = [0, 0], sizes = [2, 64], strides = [1, 1]} : vector<2x96xf32> to vector<2x64xf32>
    %719 = arith.addf %717, %718 : vector<2x64xf32>
    %720 = arith.negf %719 : vector<2x64xf32>
    %721 = math.exp %720 : vector<2x64xf32>
    %cst_126 = arith.constant 1.000000e+00 : f32
    %722 = vector.broadcast %cst_126 : f32 to vector<2x64xf32>
    %723 = arith.addf %722, %721 : vector<2x64xf32>
    %724 = arith.divf %722, %723 : vector<2x64xf32>
    %725 = vector.extract_strided_slice %361 {offsets = [0, 0], sizes = [2, 64], strides = [1, 1]} : vector<2x96xf32> to vector<2x64xf32>
    %726 = vector.extract_strided_slice %716 {offsets = [0, 0], sizes = [2, 64], strides = [1, 1]} : vector<2x96xf32> to vector<2x64xf32>
    %727 = arith.addf %725, %726 : vector<2x64xf32>
    %728 = arith.negf %727 : vector<2x64xf32>
    %729 = math.exp %728 : vector<2x64xf32>
    %cst_127 = arith.constant 1.000000e+00 : f32
    %730 = vector.broadcast %cst_127 : f32 to vector<2x64xf32>
    %731 = arith.addf %730, %729 : vector<2x64xf32>
    %732 = arith.divf %730, %731 : vector<2x64xf32>
    %733 = vector.extract_strided_slice %358 {offsets = [0, 64], sizes = [2, 32], strides = [1, 1]} : vector<2x96xf32> to vector<2x32xf32>
    %734 = vector.extract_strided_slice %724 {offsets = [0, 0], sizes = [2, 32], strides = [1, 1]} : vector<2x64xf32> to vector<2x32xf32>
    %735 = vector.extract_strided_slice %713 {offsets = [0, 64], sizes = [2, 32], strides = [1, 1]} : vector<2x96xf32> to vector<2x32xf32>
    %736 = arith.mulf %734, %735 : vector<2x32xf32>
    %737 = arith.addf %733, %736 : vector<2x32xf32>
    %738 = math.tanh %737 : vector<2x32xf32>
    %739 = vector.extract_strided_slice %361 {offsets = [0, 64], sizes = [2, 32], strides = [1, 1]} : vector<2x96xf32> to vector<2x32xf32>
    %740 = vector.extract_strided_slice %732 {offsets = [0, 0], sizes = [2, 32], strides = [1, 1]} : vector<2x64xf32> to vector<2x32xf32>
    %741 = vector.extract_strided_slice %716 {offsets = [0, 64], sizes = [2, 32], strides = [1, 1]} : vector<2x96xf32> to vector<2x32xf32>
    %742 = arith.mulf %740, %741 : vector<2x32xf32>
    %743 = arith.addf %739, %742 : vector<2x32xf32>
    %744 = math.tanh %743 : vector<2x32xf32>
    %745 = vector.extract_strided_slice %724 {offsets = [0, 32], sizes = [2, 32], strides = [1, 1]} : vector<2x64xf32> to vector<2x32xf32>
    %746 = vector.extract_strided_slice %732 {offsets = [0, 32], sizes = [2, 32], strides = [1, 1]} : vector<2x64xf32> to vector<2x32xf32>
    %cst_128 = arith.constant 1.000000e+00 : f32
    %747 = vector.broadcast %cst_128 : f32 to vector<2x32xf32>
    %748 = arith.subf %747, %745 : vector<2x32xf32>
    %749 = arith.mulf %748, %738 : vector<2x32xf32>
    %750 = arith.mulf %745, %705 : vector<2x32xf32>
    %751 = arith.addf %749, %750 : vector<2x32xf32>
    %cst_129 = arith.constant 1.000000e+00 : f32
    %752 = vector.broadcast %cst_129 : f32 to vector<2x32xf32>
    %753 = arith.subf %752, %746 : vector<2x32xf32>
    %754 = arith.mulf %753, %744 : vector<2x32xf32>
    %755 = arith.mulf %746, %710 : vector<2x32xf32>
    %756 = arith.addf %754, %755 : vector<2x32xf32>
    %757 = tpu.concatenate %429, %756 in 1 : vector<2x32xf32>, vector<2x32xf32> -> vector<2x64xf32>
    %758 = tpu.concatenate %475, %710 in 1 : vector<2x32xf32>, vector<2x32xf32> -> vector<2x64xf32>
    %759 = tpu.concatenate %521, %664 in 1 : vector<2x32xf32>, vector<2x32xf32> -> vector<2x64xf32>
    %760 = tpu.concatenate %567, %618 in 1 : vector<2x32xf32>, vector<2x32xf32> -> vector<2x64xf32>
    %761 = tpu.concatenate %613, %572 in 1 : vector<2x32xf32>, vector<2x32xf32> -> vector<2x64xf32>
    %762 = tpu.concatenate %659, %526 in 1 : vector<2x32xf32>, vector<2x32xf32> -> vector<2x64xf32>
    %763 = tpu.concatenate %705, %480 in 1 : vector<2x32xf32>, vector<2x32xf32> -> vector<2x64xf32>
    %764 = tpu.concatenate %751, %434 in 1 : vector<2x32xf32>, vector<2x32xf32> -> vector<2x64xf32>
    %c0_130 = arith.constant 0 : index
    %c0_131 = arith.constant 0 : index
    %765 = vector.load %arg14[%c0_130, %c0_131] : memref<1x64xf32, #tpu.memory_space<vmem>>, vector<1x64xf32>
    %c0_132 = arith.constant 0 : index
    %c0_133 = arith.constant 0 : index
    %766 = vector.load %arg15[%c0_132, %c0_133] : memref<1x8xf32, #tpu.memory_space<vmem>>, vector<1x8xf32>
    %767 = vector.broadcast %765 : vector<1x64xf32> to vector<2x64xf32>
    %768 = arith.mulf %323, %767 : vector<2x64xf32>
    %cst_134 = arith.constant dense<0.000000e+00> : vector<2xf32>
    %769 = vector.multi_reduction <add>, %768, %cst_134 [1] : vector<2x64xf32> to vector<2xf32>
    %770 = vector.shape_cast %769 : vector<2xf32> to vector<2x1xf32>
    %771 = vector.extract_strided_slice %766 {offsets = [0, 0], sizes = [1, 1], strides = [1, 1]} : vector<1x8xf32> to vector<1x1xf32>
    %772 = vector.broadcast %771 : vector<1x1xf32> to vector<2x1xf32>
    %773 = arith.addf %770, %772 : vector<2x1xf32>
    %774 = math.tanh %773 : vector<2x1xf32>
    %775 = math.exp %774 : vector<2x1xf32>
    %776 = vector.broadcast %765 : vector<1x64xf32> to vector<2x64xf32>
    %777 = arith.mulf %324, %776 : vector<2x64xf32>
    %cst_135 = arith.constant dense<0.000000e+00> : vector<2xf32>
    %778 = vector.multi_reduction <add>, %777, %cst_135 [1] : vector<2x64xf32> to vector<2xf32>
    %779 = vector.shape_cast %778 : vector<2xf32> to vector<2x1xf32>
    %780 = vector.extract_strided_slice %766 {offsets = [0, 1], sizes = [1, 1], strides = [1, 1]} : vector<1x8xf32> to vector<1x1xf32>
    %781 = vector.broadcast %780 : vector<1x1xf32> to vector<2x1xf32>
    %782 = arith.addf %779, %781 : vector<2x1xf32>
    %783 = math.tanh %782 : vector<2x1xf32>
    %784 = math.exp %783 : vector<2x1xf32>
    %785 = vector.broadcast %765 : vector<1x64xf32> to vector<2x64xf32>
    %786 = arith.mulf %325, %785 : vector<2x64xf32>
    %cst_136 = arith.constant dense<0.000000e+00> : vector<2xf32>
    %787 = vector.multi_reduction <add>, %786, %cst_136 [1] : vector<2x64xf32> to vector<2xf32>
    %788 = vector.shape_cast %787 : vector<2xf32> to vector<2x1xf32>
    %789 = vector.extract_strided_slice %766 {offsets = [0, 2], sizes = [1, 1], strides = [1, 1]} : vector<1x8xf32> to vector<1x1xf32>
    %790 = vector.broadcast %789 : vector<1x1xf32> to vector<2x1xf32>
    %791 = arith.addf %788, %790 : vector<2x1xf32>
    %792 = math.tanh %791 : vector<2x1xf32>
    %793 = math.exp %792 : vector<2x1xf32>
    %794 = vector.broadcast %765 : vector<1x64xf32> to vector<2x64xf32>
    %795 = arith.mulf %326, %794 : vector<2x64xf32>
    %cst_137 = arith.constant dense<0.000000e+00> : vector<2xf32>
    %796 = vector.multi_reduction <add>, %795, %cst_137 [1] : vector<2x64xf32> to vector<2xf32>
    %797 = vector.shape_cast %796 : vector<2xf32> to vector<2x1xf32>
    %798 = vector.extract_strided_slice %766 {offsets = [0, 3], sizes = [1, 1], strides = [1, 1]} : vector<1x8xf32> to vector<1x1xf32>
    %799 = vector.broadcast %798 : vector<1x1xf32> to vector<2x1xf32>
    %800 = arith.addf %797, %799 : vector<2x1xf32>
    %801 = math.tanh %800 : vector<2x1xf32>
    %802 = math.exp %801 : vector<2x1xf32>
    %803 = vector.broadcast %765 : vector<1x64xf32> to vector<2x64xf32>
    %804 = arith.mulf %327, %803 : vector<2x64xf32>
    %cst_138 = arith.constant dense<0.000000e+00> : vector<2xf32>
    %805 = vector.multi_reduction <add>, %804, %cst_138 [1] : vector<2x64xf32> to vector<2xf32>
    %806 = vector.shape_cast %805 : vector<2xf32> to vector<2x1xf32>
    %807 = vector.extract_strided_slice %766 {offsets = [0, 4], sizes = [1, 1], strides = [1, 1]} : vector<1x8xf32> to vector<1x1xf32>
    %808 = vector.broadcast %807 : vector<1x1xf32> to vector<2x1xf32>
    %809 = arith.addf %806, %808 : vector<2x1xf32>
    %810 = math.tanh %809 : vector<2x1xf32>
    %811 = math.exp %810 : vector<2x1xf32>
    %812 = vector.broadcast %765 : vector<1x64xf32> to vector<2x64xf32>
    %813 = arith.mulf %328, %812 : vector<2x64xf32>
    %cst_139 = arith.constant dense<0.000000e+00> : vector<2xf32>
    %814 = vector.multi_reduction <add>, %813, %cst_139 [1] : vector<2x64xf32> to vector<2xf32>
    %815 = vector.shape_cast %814 : vector<2xf32> to vector<2x1xf32>
    %816 = vector.extract_strided_slice %766 {offsets = [0, 5], sizes = [1, 1], strides = [1, 1]} : vector<1x8xf32> to vector<1x1xf32>
    %817 = vector.broadcast %816 : vector<1x1xf32> to vector<2x1xf32>
    %818 = arith.addf %815, %817 : vector<2x1xf32>
    %819 = math.tanh %818 : vector<2x1xf32>
    %820 = math.exp %819 : vector<2x1xf32>
    %821 = vector.broadcast %765 : vector<1x64xf32> to vector<2x64xf32>
    %822 = arith.mulf %329, %821 : vector<2x64xf32>
    %cst_140 = arith.constant dense<0.000000e+00> : vector<2xf32>
    %823 = vector.multi_reduction <add>, %822, %cst_140 [1] : vector<2x64xf32> to vector<2xf32>
    %824 = vector.shape_cast %823 : vector<2xf32> to vector<2x1xf32>
    %825 = vector.extract_strided_slice %766 {offsets = [0, 6], sizes = [1, 1], strides = [1, 1]} : vector<1x8xf32> to vector<1x1xf32>
    %826 = vector.broadcast %825 : vector<1x1xf32> to vector<2x1xf32>
    %827 = arith.addf %824, %826 : vector<2x1xf32>
    %828 = math.tanh %827 : vector<2x1xf32>
    %829 = math.exp %828 : vector<2x1xf32>
    %830 = vector.broadcast %765 : vector<1x64xf32> to vector<2x64xf32>
    %831 = arith.mulf %330, %830 : vector<2x64xf32>
    %cst_141 = arith.constant dense<0.000000e+00> : vector<2xf32>
    %832 = vector.multi_reduction <add>, %831, %cst_141 [1] : vector<2x64xf32> to vector<2xf32>
    %833 = vector.shape_cast %832 : vector<2xf32> to vector<2x1xf32>
    %834 = vector.extract_strided_slice %766 {offsets = [0, 7], sizes = [1, 1], strides = [1, 1]} : vector<1x8xf32> to vector<1x1xf32>
    %835 = vector.broadcast %834 : vector<1x1xf32> to vector<2x1xf32>
    %836 = arith.addf %833, %835 : vector<2x1xf32>
    %837 = math.tanh %836 : vector<2x1xf32>
    %838 = math.exp %837 : vector<2x1xf32>
    %839 = arith.addf %775, %784 : vector<2x1xf32>
    %840 = arith.addf %839, %793 : vector<2x1xf32>
    %841 = arith.addf %840, %802 : vector<2x1xf32>
    %842 = arith.addf %841, %811 : vector<2x1xf32>
    %843 = arith.addf %842, %820 : vector<2x1xf32>
    %844 = arith.addf %843, %829 : vector<2x1xf32>
    %845 = arith.addf %844, %838 : vector<2x1xf32>
    %cst_142 = arith.constant 1.000000e-10 : f32
    %846 = vector.broadcast %cst_142 : f32 to vector<2x1xf32>
    %847 = arith.addf %845, %846 : vector<2x1xf32>
    %848 = tpu.reciprocal %847 {approx = true} : vector<2x1xf32> -> vector<2x1xf32>
    %849 = arith.mulf %775, %848 : vector<2x1xf32>
    %850 = vector.broadcast %849 : vector<2x1xf32> to vector<2x64xf32>
    %851 = arith.mulf %323, %850 : vector<2x64xf32>
    %852 = arith.mulf %784, %848 : vector<2x1xf32>
    %853 = vector.broadcast %852 : vector<2x1xf32> to vector<2x64xf32>
    %854 = arith.mulf %324, %853 : vector<2x64xf32>
    %855 = arith.addf %851, %854 : vector<2x64xf32>
    %856 = arith.mulf %793, %848 : vector<2x1xf32>
    %857 = vector.broadcast %856 : vector<2x1xf32> to vector<2x64xf32>
    %858 = arith.mulf %325, %857 : vector<2x64xf32>
    %859 = arith.addf %855, %858 : vector<2x64xf32>
    %860 = arith.mulf %802, %848 : vector<2x1xf32>
    %861 = vector.broadcast %860 : vector<2x1xf32> to vector<2x64xf32>
    %862 = arith.mulf %326, %861 : vector<2x64xf32>
    %863 = arith.addf %859, %862 : vector<2x64xf32>
    %864 = arith.mulf %811, %848 : vector<2x1xf32>
    %865 = vector.broadcast %864 : vector<2x1xf32> to vector<2x64xf32>
    %866 = arith.mulf %327, %865 : vector<2x64xf32>
    %867 = arith.addf %863, %866 : vector<2x64xf32>
    %868 = arith.mulf %820, %848 : vector<2x1xf32>
    %869 = vector.broadcast %868 : vector<2x1xf32> to vector<2x64xf32>
    %870 = arith.mulf %328, %869 : vector<2x64xf32>
    %871 = arith.addf %867, %870 : vector<2x64xf32>
    %872 = arith.mulf %829, %848 : vector<2x1xf32>
    %873 = vector.broadcast %872 : vector<2x1xf32> to vector<2x64xf32>
    %874 = arith.mulf %329, %873 : vector<2x64xf32>
    %875 = arith.addf %871, %874 : vector<2x64xf32>
    %876 = arith.mulf %838, %848 : vector<2x1xf32>
    %877 = vector.broadcast %876 : vector<2x1xf32> to vector<2x64xf32>
    %878 = arith.mulf %330, %877 : vector<2x64xf32>
    %879 = arith.addf %875, %878 : vector<2x64xf32>
    %c0_143 = arith.constant 0 : index
    %c0_144 = arith.constant 0 : index
    %880 = vector.load %arg16[%c0_143, %c0_144] : memref<1x64xf32, #tpu.memory_space<vmem>>, vector<1x64xf32>
    %c0_145 = arith.constant 0 : index
    %c0_146 = arith.constant 0 : index
    %881 = vector.load %arg17[%c0_145, %c0_146] : memref<1x8xf32, #tpu.memory_space<vmem>>, vector<1x8xf32>
    %882 = vector.broadcast %880 : vector<1x64xf32> to vector<2x64xf32>
    %883 = arith.mulf %757, %882 : vector<2x64xf32>
    %cst_147 = arith.constant dense<0.000000e+00> : vector<2xf32>
    %884 = vector.multi_reduction <add>, %883, %cst_147 [1] : vector<2x64xf32> to vector<2xf32>
    %885 = vector.shape_cast %884 : vector<2xf32> to vector<2x1xf32>
    %886 = vector.extract_strided_slice %881 {offsets = [0, 0], sizes = [1, 1], strides = [1, 1]} : vector<1x8xf32> to vector<1x1xf32>
    %887 = vector.broadcast %886 : vector<1x1xf32> to vector<2x1xf32>
    %888 = arith.addf %885, %887 : vector<2x1xf32>
    %889 = math.tanh %888 : vector<2x1xf32>
    %890 = math.exp %889 : vector<2x1xf32>
    %891 = vector.broadcast %880 : vector<1x64xf32> to vector<2x64xf32>
    %892 = arith.mulf %758, %891 : vector<2x64xf32>
    %cst_148 = arith.constant dense<0.000000e+00> : vector<2xf32>
    %893 = vector.multi_reduction <add>, %892, %cst_148 [1] : vector<2x64xf32> to vector<2xf32>
    %894 = vector.shape_cast %893 : vector<2xf32> to vector<2x1xf32>
    %895 = vector.extract_strided_slice %881 {offsets = [0, 1], sizes = [1, 1], strides = [1, 1]} : vector<1x8xf32> to vector<1x1xf32>
    %896 = vector.broadcast %895 : vector<1x1xf32> to vector<2x1xf32>
    %897 = arith.addf %894, %896 : vector<2x1xf32>
    %898 = math.tanh %897 : vector<2x1xf32>
    %899 = math.exp %898 : vector<2x1xf32>
    %900 = vector.broadcast %880 : vector<1x64xf32> to vector<2x64xf32>
    %901 = arith.mulf %759, %900 : vector<2x64xf32>
    %cst_149 = arith.constant dense<0.000000e+00> : vector<2xf32>
    %902 = vector.multi_reduction <add>, %901, %cst_149 [1] : vector<2x64xf32> to vector<2xf32>
    %903 = vector.shape_cast %902 : vector<2xf32> to vector<2x1xf32>
    %904 = vector.extract_strided_slice %881 {offsets = [0, 2], sizes = [1, 1], strides = [1, 1]} : vector<1x8xf32> to vector<1x1xf32>
    %905 = vector.broadcast %904 : vector<1x1xf32> to vector<2x1xf32>
    %906 = arith.addf %903, %905 : vector<2x1xf32>
    %907 = math.tanh %906 : vector<2x1xf32>
    %908 = math.exp %907 : vector<2x1xf32>
    %909 = vector.broadcast %880 : vector<1x64xf32> to vector<2x64xf32>
    %910 = arith.mulf %760, %909 : vector<2x64xf32>
    %cst_150 = arith.constant dense<0.000000e+00> : vector<2xf32>
    %911 = vector.multi_reduction <add>, %910, %cst_150 [1] : vector<2x64xf32> to vector<2xf32>
    %912 = vector.shape_cast %911 : vector<2xf32> to vector<2x1xf32>
    %913 = vector.extract_strided_slice %881 {offsets = [0, 3], sizes = [1, 1], strides = [1, 1]} : vector<1x8xf32> to vector<1x1xf32>
    %914 = vector.broadcast %913 : vector<1x1xf32> to vector<2x1xf32>
    %915 = arith.addf %912, %914 : vector<2x1xf32>
    %916 = math.tanh %915 : vector<2x1xf32>
    %917 = math.exp %916 : vector<2x1xf32>
    %918 = vector.broadcast %880 : vector<1x64xf32> to vector<2x64xf32>
    %919 = arith.mulf %761, %918 : vector<2x64xf32>
    %cst_151 = arith.constant dense<0.000000e+00> : vector<2xf32>
    %920 = vector.multi_reduction <add>, %919, %cst_151 [1] : vector<2x64xf32> to vector<2xf32>
    %921 = vector.shape_cast %920 : vector<2xf32> to vector<2x1xf32>
    %922 = vector.extract_strided_slice %881 {offsets = [0, 4], sizes = [1, 1], strides = [1, 1]} : vector<1x8xf32> to vector<1x1xf32>
    %923 = vector.broadcast %922 : vector<1x1xf32> to vector<2x1xf32>
    %924 = arith.addf %921, %923 : vector<2x1xf32>
    %925 = math.tanh %924 : vector<2x1xf32>
    %926 = math.exp %925 : vector<2x1xf32>
    %927 = vector.broadcast %880 : vector<1x64xf32> to vector<2x64xf32>
    %928 = arith.mulf %762, %927 : vector<2x64xf32>
    %cst_152 = arith.constant dense<0.000000e+00> : vector<2xf32>
    %929 = vector.multi_reduction <add>, %928, %cst_152 [1] : vector<2x64xf32> to vector<2xf32>
    %930 = vector.shape_cast %929 : vector<2xf32> to vector<2x1xf32>
    %931 = vector.extract_strided_slice %881 {offsets = [0, 5], sizes = [1, 1], strides = [1, 1]} : vector<1x8xf32> to vector<1x1xf32>
    %932 = vector.broadcast %931 : vector<1x1xf32> to vector<2x1xf32>
    %933 = arith.addf %930, %932 : vector<2x1xf32>
    %934 = math.tanh %933 : vector<2x1xf32>
    %935 = math.exp %934 : vector<2x1xf32>
    %936 = vector.broadcast %880 : vector<1x64xf32> to vector<2x64xf32>
    %937 = arith.mulf %763, %936 : vector<2x64xf32>
    %cst_153 = arith.constant dense<0.000000e+00> : vector<2xf32>
    %938 = vector.multi_reduction <add>, %937, %cst_153 [1] : vector<2x64xf32> to vector<2xf32>
    %939 = vector.shape_cast %938 : vector<2xf32> to vector<2x1xf32>
    %940 = vector.extract_strided_slice %881 {offsets = [0, 6], sizes = [1, 1], strides = [1, 1]} : vector<1x8xf32> to vector<1x1xf32>
    %941 = vector.broadcast %940 : vector<1x1xf32> to vector<2x1xf32>
    %942 = arith.addf %939, %941 : vector<2x1xf32>
    %943 = math.tanh %942 : vector<2x1xf32>
    %944 = math.exp %943 : vector<2x1xf32>
    %945 = vector.broadcast %880 : vector<1x64xf32> to vector<2x64xf32>
    %946 = arith.mulf %764, %945 : vector<2x64xf32>
    %cst_154 = arith.constant dense<0.000000e+00> : vector<2xf32>
    %947 = vector.multi_reduction <add>, %946, %cst_154 [1] : vector<2x64xf32> to vector<2xf32>
    %948 = vector.shape_cast %947 : vector<2xf32> to vector<2x1xf32>
    %949 = vector.extract_strided_slice %881 {offsets = [0, 7], sizes = [1, 1], strides = [1, 1]} : vector<1x8xf32> to vector<1x1xf32>
    %950 = vector.broadcast %949 : vector<1x1xf32> to vector<2x1xf32>
    %951 = arith.addf %948, %950 : vector<2x1xf32>
    %952 = math.tanh %951 : vector<2x1xf32>
    %953 = math.exp %952 : vector<2x1xf32>
    %954 = arith.addf %890, %899 : vector<2x1xf32>
    %955 = arith.addf %954, %908 : vector<2x1xf32>
    %956 = arith.addf %955, %917 : vector<2x1xf32>
    %957 = arith.addf %956, %926 : vector<2x1xf32>
    %958 = arith.addf %957, %935 : vector<2x1xf32>
    %959 = arith.addf %958, %944 : vector<2x1xf32>
    %960 = arith.addf %959, %953 : vector<2x1xf32>
    %cst_155 = arith.constant 1.000000e-10 : f32
    %961 = vector.broadcast %cst_155 : f32 to vector<2x1xf32>
    %962 = arith.addf %960, %961 : vector<2x1xf32>
    %963 = tpu.reciprocal %962 {approx = true} : vector<2x1xf32> -> vector<2x1xf32>
    %964 = arith.mulf %890, %963 : vector<2x1xf32>
    %965 = vector.broadcast %964 : vector<2x1xf32> to vector<2x64xf32>
    %966 = arith.mulf %757, %965 : vector<2x64xf32>
    %967 = arith.mulf %899, %963 : vector<2x1xf32>
    %968 = vector.broadcast %967 : vector<2x1xf32> to vector<2x64xf32>
    %969 = arith.mulf %758, %968 : vector<2x64xf32>
    %970 = arith.addf %966, %969 : vector<2x64xf32>
    %971 = arith.mulf %908, %963 : vector<2x1xf32>
    %972 = vector.broadcast %971 : vector<2x1xf32> to vector<2x64xf32>
    %973 = arith.mulf %759, %972 : vector<2x64xf32>
    %974 = arith.addf %970, %973 : vector<2x64xf32>
    %975 = arith.mulf %917, %963 : vector<2x1xf32>
    %976 = vector.broadcast %975 : vector<2x1xf32> to vector<2x64xf32>
    %977 = arith.mulf %760, %976 : vector<2x64xf32>
    %978 = arith.addf %974, %977 : vector<2x64xf32>
    %979 = arith.mulf %926, %963 : vector<2x1xf32>
    %980 = vector.broadcast %979 : vector<2x1xf32> to vector<2x64xf32>
    %981 = arith.mulf %761, %980 : vector<2x64xf32>
    %982 = arith.addf %978, %981 : vector<2x64xf32>
    %983 = arith.mulf %935, %963 : vector<2x1xf32>
    %984 = vector.broadcast %983 : vector<2x1xf32> to vector<2x64xf32>
    %985 = arith.mulf %762, %984 : vector<2x64xf32>
    %986 = arith.addf %982, %985 : vector<2x64xf32>
    %987 = arith.mulf %944, %963 : vector<2x1xf32>
    %988 = vector.broadcast %987 : vector<2x1xf32> to vector<2x64xf32>
    %989 = arith.mulf %763, %988 : vector<2x64xf32>
    %990 = arith.addf %986, %989 : vector<2x64xf32>
    %991 = arith.mulf %953, %963 : vector<2x1xf32>
    %992 = vector.broadcast %991 : vector<2x1xf32> to vector<2x64xf32>
    %993 = arith.mulf %764, %992 : vector<2x64xf32>
    %994 = arith.addf %990, %993 : vector<2x64xf32>
    %995 = arith.addf %757, %758 : vector<2x64xf32>
    %996 = arith.maximumf %757, %758 : vector<2x64xf32>
    %997 = arith.addf %995, %759 : vector<2x64xf32>
    %998 = arith.maximumf %996, %759 : vector<2x64xf32>
    %999 = arith.addf %997, %760 : vector<2x64xf32>
    %1000 = arith.maximumf %998, %760 : vector<2x64xf32>
    %1001 = arith.addf %999, %761 : vector<2x64xf32>
    %1002 = arith.maximumf %1000, %761 : vector<2x64xf32>
    %1003 = arith.addf %1001, %762 : vector<2x64xf32>
    %1004 = arith.maximumf %1002, %762 : vector<2x64xf32>
    %1005 = arith.addf %1003, %763 : vector<2x64xf32>
    %1006 = arith.maximumf %1004, %763 : vector<2x64xf32>
    %1007 = arith.addf %1005, %764 : vector<2x64xf32>
    %1008 = arith.maximumf %1006, %764 : vector<2x64xf32>
    %cst_156 = arith.constant 1.250000e-01 : f32
    %1009 = vector.broadcast %cst_156 : f32 to vector<2x64xf32>
    %1010 = arith.mulf %1007, %1009 : vector<2x64xf32>
    %1011 = arith.mulf %879, %994 : vector<2x64xf32>
    %1012 = arith.mulf %879, %1010 : vector<2x64xf32>
    %1013 = arith.mulf %879, %1008 : vector<2x64xf32>
    %1014 = arith.mulf %994, %1010 : vector<2x64xf32>
    %1015 = arith.mulf %994, %1008 : vector<2x64xf32>
    %1016 = arith.mulf %1010, %1008 : vector<2x64xf32>
    %c0_157 = arith.constant 0 : index
    %c0_158 = arith.constant 0 : index
    %1017 = vector.load %arg18[%c0_157, %c0_158] : memref<2x3xf32, #tpu.memory_space<vmem>>, vector<2x3xf32>
    %c0_159 = arith.constant 0 : index
    %c0_160 = arith.constant 0 : index
    %1018 = vector.load %arg19[%c0_159, %c0_160] : memref<3x32xf32, #tpu.memory_space<vmem>>, vector<3x32xf32>
    %c0_161 = arith.constant 0 : index
    %c0_162 = arith.constant 0 : index
    %1019 = vector.load %arg20[%c0_161, %c0_162] : memref<3x32xf32, #tpu.memory_space<vmem>>, vector<3x32xf32>
    %1020 = vector.extract_strided_slice %1017 {offsets = [0, 0], sizes = [2, 1], strides = [1, 1]} : vector<2x3xf32> to vector<2x1xf32>
    %1021 = vector.extract_strided_slice %1018 {offsets = [0, 0], sizes = [1, 32], strides = [1, 1]} : vector<3x32xf32> to vector<1x32xf32>
    %1022 = vector.broadcast %1020 : vector<2x1xf32> to vector<2x32xf32>
    %1023 = vector.broadcast %1021 : vector<1x32xf32> to vector<2x32xf32>
    %1024 = arith.mulf %1022, %1023 : vector<2x32xf32>
    %1025 = vector.extract_strided_slice %1019 {offsets = [0, 0], sizes = [1, 32], strides = [1, 1]} : vector<3x32xf32> to vector<1x32xf32>
    %1026 = vector.broadcast %1025 : vector<1x32xf32> to vector<2x32xf32>
    %1027 = arith.addf %1024, %1026 : vector<2x32xf32>
    %cst_163 = arith.constant 0.000000e+00 : f32
    %1028 = vector.broadcast %cst_163 : f32 to vector<2x32xf32>
    %1029 = arith.maximumf %1027, %1028 : vector<2x32xf32>
    %1030 = vector.extract_strided_slice %1017 {offsets = [0, 1], sizes = [2, 1], strides = [1, 1]} : vector<2x3xf32> to vector<2x1xf32>
    %1031 = vector.extract_strided_slice %1018 {offsets = [1, 0], sizes = [1, 32], strides = [1, 1]} : vector<3x32xf32> to vector<1x32xf32>
    %1032 = vector.broadcast %1030 : vector<2x1xf32> to vector<2x32xf32>
    %1033 = vector.broadcast %1031 : vector<1x32xf32> to vector<2x32xf32>
    %1034 = arith.mulf %1032, %1033 : vector<2x32xf32>
    %1035 = vector.extract_strided_slice %1019 {offsets = [1, 0], sizes = [1, 32], strides = [1, 1]} : vector<3x32xf32> to vector<1x32xf32>
    %1036 = vector.broadcast %1035 : vector<1x32xf32> to vector<2x32xf32>
    %1037 = arith.addf %1034, %1036 : vector<2x32xf32>
    %cst_164 = arith.constant 0.000000e+00 : f32
    %1038 = vector.broadcast %cst_164 : f32 to vector<2x32xf32>
    %1039 = arith.maximumf %1037, %1038 : vector<2x32xf32>
    %1040 = vector.extract_strided_slice %1017 {offsets = [0, 2], sizes = [2, 1], strides = [1, 1]} : vector<2x3xf32> to vector<2x1xf32>
    %1041 = vector.extract_strided_slice %1018 {offsets = [2, 0], sizes = [1, 32], strides = [1, 1]} : vector<3x32xf32> to vector<1x32xf32>
    %1042 = vector.broadcast %1040 : vector<2x1xf32> to vector<2x32xf32>
    %1043 = vector.broadcast %1041 : vector<1x32xf32> to vector<2x32xf32>
    %1044 = arith.mulf %1042, %1043 : vector<2x32xf32>
    %1045 = vector.extract_strided_slice %1019 {offsets = [2, 0], sizes = [1, 32], strides = [1, 1]} : vector<3x32xf32> to vector<1x32xf32>
    %1046 = vector.broadcast %1045 : vector<1x32xf32> to vector<2x32xf32>
    %1047 = arith.addf %1044, %1046 : vector<2x32xf32>
    %cst_165 = arith.constant 0.000000e+00 : f32
    %1048 = vector.broadcast %cst_165 : f32 to vector<2x32xf32>
    %1049 = arith.maximumf %1047, %1048 : vector<2x32xf32>
    %1050 = tpu.concatenate %879, %994 in 1 : vector<2x64xf32>, vector<2x64xf32> -> vector<2x128xf32>
    %1051 = tpu.concatenate %1010, %1008 in 1 : vector<2x64xf32>, vector<2x64xf32> -> vector<2x128xf32>
    %1052 = tpu.concatenate %1011, %1012 in 1 : vector<2x64xf32>, vector<2x64xf32> -> vector<2x128xf32>
    %1053 = tpu.concatenate %1013, %1014 in 1 : vector<2x64xf32>, vector<2x64xf32> -> vector<2x128xf32>
    %1054 = tpu.concatenate %1015, %1016 in 1 : vector<2x64xf32>, vector<2x64xf32> -> vector<2x128xf32>
    %1055 = tpu.concatenate %1029, %1039, %1049 in 1 : vector<2x32xf32>, vector<2x32xf32>, vector<2x32xf32> -> vector<2x96xf32>
    %c0_166 = arith.constant 0 : index
    %c0_167 = arith.constant 0 : index
    %1056 = vector.load %arg21[%c0_166, %c0_167] : memref<736x32xf32, #tpu.memory_space<vmem>>, vector<128x32xf32>
    %cst_168 = arith.constant dense<0.000000e+00> : vector<2x32xf32>
    %1057 = tpu.matmul %1050, %1056, %cst_168 {dimension_numbers = #tpu.dot_dimension_numbers<[1], [0], [0], [1], [0, 0, 1, 1], [], []>} : vector<2x128xf32>, vector<128x32xf32>, vector<2x32xf32> -> vector<2x32xf32>
    %c128 = arith.constant 128 : index
    %c0_169 = arith.constant 0 : index
    %1058 = vector.load %arg21[%c128, %c0_169] : memref<736x32xf32, #tpu.memory_space<vmem>>, vector<128x32xf32>
    %cst_170 = arith.constant dense<0.000000e+00> : vector<2x32xf32>
    %1059 = tpu.matmul %1051, %1058, %cst_170 {dimension_numbers = #tpu.dot_dimension_numbers<[1], [0], [0], [1], [0, 0, 1, 1], [], []>} : vector<2x128xf32>, vector<128x32xf32>, vector<2x32xf32> -> vector<2x32xf32>
    %c256 = arith.constant 256 : index
    %c0_171 = arith.constant 0 : index
    %1060 = vector.load %arg21[%c256, %c0_171] : memref<736x32xf32, #tpu.memory_space<vmem>>, vector<128x32xf32>
    %cst_172 = arith.constant dense<0.000000e+00> : vector<2x32xf32>
    %1061 = tpu.matmul %1052, %1060, %cst_172 {dimension_numbers = #tpu.dot_dimension_numbers<[1], [0], [0], [1], [0, 0, 1, 1], [], []>} : vector<2x128xf32>, vector<128x32xf32>, vector<2x32xf32> -> vector<2x32xf32>
    %c384 = arith.constant 384 : index
    %c0_173 = arith.constant 0 : index
    %1062 = vector.load %arg21[%c384, %c0_173] : memref<736x32xf32, #tpu.memory_space<vmem>>, vector<128x32xf32>
    %cst_174 = arith.constant dense<0.000000e+00> : vector<2x32xf32>
    %1063 = tpu.matmul %1053, %1062, %cst_174 {dimension_numbers = #tpu.dot_dimension_numbers<[1], [0], [0], [1], [0, 0, 1, 1], [], []>} : vector<2x128xf32>, vector<128x32xf32>, vector<2x32xf32> -> vector<2x32xf32>
    %c512 = arith.constant 512 : index
    %c0_175 = arith.constant 0 : index
    %1064 = vector.load %arg21[%c512, %c0_175] : memref<736x32xf32, #tpu.memory_space<vmem>>, vector<128x32xf32>
    %cst_176 = arith.constant dense<0.000000e+00> : vector<2x32xf32>
    %1065 = tpu.matmul %1054, %1064, %cst_176 {dimension_numbers = #tpu.dot_dimension_numbers<[1], [0], [0], [1], [0, 0, 1, 1], [], []>} : vector<2x128xf32>, vector<128x32xf32>, vector<2x32xf32> -> vector<2x32xf32>
    %c640 = arith.constant 640 : index
    %c0_177 = arith.constant 0 : index
    %1066 = vector.load %arg21[%c640, %c0_177] : memref<736x32xf32, #tpu.memory_space<vmem>>, vector<96x32xf32>
    %cst_178 = arith.constant dense<0.000000e+00> : vector<2x32xf32>
    %1067 = tpu.matmul %1055, %1066, %cst_178 {dimension_numbers = #tpu.dot_dimension_numbers<[1], [0], [0], [1], [0, 0, 1, 1], [], []>} : vector<2x96xf32>, vector<96x32xf32>, vector<2x32xf32> -> vector<2x32xf32>
    %1068 = arith.addf %1057, %1059 : vector<2x32xf32>
    %1069 = arith.addf %1061, %1063 : vector<2x32xf32>
    %1070 = arith.addf %1065, %1067 : vector<2x32xf32>
    %1071 = arith.addf %1068, %1069 : vector<2x32xf32>
    %1072 = arith.addf %1071, %1070 : vector<2x32xf32>
    %c0_179 = arith.constant 0 : index
    %c0_180 = arith.constant 0 : index
    %1073 = vector.load %arg22[%c0_179, %c0_180] : memref<1x32xf32, #tpu.memory_space<vmem>>, vector<1x32xf32>
    %1074 = vector.broadcast %1073 : vector<1x32xf32> to vector<2x32xf32>
    %1075 = arith.addf %1072, %1074 : vector<2x32xf32>
    %cst_181 = arith.constant 0.000000e+00 : f32
    %1076 = vector.broadcast %cst_181 : f32 to vector<2x32xf32>
    %1077 = arith.maximumf %1075, %1076 : vector<2x32xf32>
    %c0_182 = arith.constant 0 : index
    %c0_183 = arith.constant 0 : index
    %1078 = vector.load %arg23[%c0_182, %c0_183] : memref<32x1xf32, #tpu.memory_space<vmem>>, vector<32x1xf32>
    %cst_184 = arith.constant dense<0.000000e+00> : vector<2x1xf32>
    %1079 = tpu.matmul %1077, %1078, %cst_184 {dimension_numbers = #tpu.dot_dimension_numbers<[1], [0], [0], [1], [0, 0, 1, 1], [], []>} : vector<2x32xf32>, vector<32x1xf32>, vector<2x1xf32> -> vector<2x1xf32>
    %c0_185 = arith.constant 0 : index
    %c0_186 = arith.constant 0 : index
    %1080 = vector.load %arg24[%c0_185, %c0_186] : memref<1x1xf32, #tpu.memory_space<vmem>>, vector<1x1xf32>
    %1081 = vector.broadcast %1080 : vector<1x1xf32> to vector<2x1xf32>
    %1082 = arith.addf %1079, %1081 : vector<2x1xf32>
    %c0_187 = arith.constant 0 : index
    %c0_188 = arith.constant 0 : index
    %1083 = vector.load %arg25[%c0_187, %c0_188] : memref<2x1xf32, #tpu.memory_space<vmem>>, vector<2x1xf32>
    tpu.vector_store %arg25[%c0_187, %c0_188], %1082 {strides = array<i32>} : memref<2x1xf32, #tpu.memory_space<vmem>>, vector<2x1xf32>,
    return
  }
}

</mosaic_0001>

<llo_original>
// kernel: tpu_custom_call.1
$region0: #{tpu_custom_call.1}
  #allocation0 [shape = 'u32[]', space=smem, size = 0x4, offset = 0x4, fixed_abs, tag = 'smem constant byte address 0x4 - core index']
  #allocation1 [shape = 'u32[144,128]{1,0:T(1,128)}', space=vmem, size = 0x12000, scoped, tag = 'internal scratch']
  #allocation2 [shape = 'f32[1,1]{1,0:T(1,128)S(1)}', space=vmem, size = 0x200, scoped, tag = 'scoped memory for tpu_custom_call.1']
  %s0 = inlined_call_operand.vmem [shape: s32[16,1], index: 0, kind: input, shape index: {}]
  %s1 = inlined_call_operand.vmem [shape: f32[64,32], index: 1, kind: input, shape index: {}]
  %s2 = inlined_call_operand.vmem [shape: f32[32,256], index: 2, kind: input, shape index: {}]
  %s3 = inlined_call_operand.vmem [shape: f32[32,128], index: 3, kind: input, shape index: {}]
  %s4 = inlined_call_operand.vmem [shape: f32[32,128], index: 4, kind: input, shape index: {}]
  %s5 = inlined_call_operand.vmem [shape: f32[1,256], index: 5, kind: input, shape index: {}]
  %s6 = inlined_call_operand.vmem [shape: f32[64,96], index: 6, kind: input, shape index: {}]
  %s7 = inlined_call_operand.vmem [shape: f32[64,96], index: 7, kind: input, shape index: {}]
  %s8 = inlined_call_operand.vmem [shape: f32[32,96], index: 8, kind: input, shape index: {}]
  %s9 = inlined_call_operand.vmem [shape: f32[32,96], index: 9, kind: input, shape index: {}]
  %s10 = inlined_call_operand.vmem [shape: f32[1,96], index: 10, kind: input, shape index: {}]
  %s11 = inlined_call_operand.vmem [shape: f32[1,96], index: 11, kind: input, shape index: {}]
  %s12 = inlined_call_operand.vmem [shape: f32[1,96], index: 12, kind: input, shape index: {}]
  %s13 = inlined_call_operand.vmem [shape: f32[1,96], index: 13, kind: input, shape index: {}]
  %s14 = inlined_call_operand.vmem [shape: f32[1,64], index: 14, kind: input, shape index: {}]
  %s15 = inlined_call_operand.vmem [shape: f32[1,8], index: 15, kind: input, shape index: {}]
  %s16 = inlined_call_operand.vmem [shape: f32[1,64], index: 16, kind: input, shape index: {}]
  %s17 = inlined_call_operand.vmem [shape: f32[1,8], index: 17, kind: input, shape index: {}]
  %s18 = inlined_call_operand.vmem [shape: f32[2,3], index: 18, kind: input, shape index: {}]
  %s19 = inlined_call_operand.vmem [shape: f32[3,32], index: 19, kind: input, shape index: {}]
  %s20 = inlined_call_operand.vmem [shape: f32[3,32], index: 20, kind: input, shape index: {}]
  %s21 = inlined_call_operand.vmem [shape: f32[736,32], index: 21, kind: input, shape index: {}]
  %s22 = inlined_call_operand.vmem [shape: f32[1,32], index: 22, kind: input, shape index: {}]
  %s23 = inlined_call_operand.vmem [shape: f32[32,1], index: 23, kind: input, shape index: {}]
  %s24 = inlined_call_operand.<no memory space> [shape: f32[1,1], index: 24, kind: input, shape index: {}]
  %s25 = inlined_call_operand.vmem [shape: f32[2,1], index: 25, kind: output, shape index: {}]
  %s26 = sld [smem:[#allocation0]]
  $region110: #{tpu_custom_call.1} parent=0
    _
  %s28 = ssub.s32 1, %s26
  %s29 = scalar_select 0, %s28, %s26
  %v30 = vstv %s24
  %31 = vst [vmem:[#allocation2] sm:$0x1] %v30
  // Predicated region
  $region2: #{tpu_custom_call.1} parent=0 // pred_check
    _
  $region3: #{tpu_custom_call.1} parent=0 // pred_check_branch
    %33 = sbr.rel (0) target = $region5
  $region4: #{tpu_custom_call.1} parent=0 // pred_region
    _
  $region5: #{tpu_custom_call.1} parent=0 // pred_fallthru
    _
  // Predicated region
  $region6: #{tpu_custom_call.1} parent=0 // pred_check
    _
  $region7: #{tpu_custom_call.1} parent=0 // pred_check_branch
    %35 = sbr.rel (0) target = $region9
  $region8: #{tpu_custom_call.1} parent=0 // pred_region
    _
  $region9: #{tpu_custom_call.1} parent=0 // pred_fallthru
    _
  // Predicated region
  $region10: #{tpu_custom_call.1} parent=0 // pred_check
    _
  $region11: #{tpu_custom_call.1} parent=0 // pred_check_branch
    %37 = sbr.rel (0) target = $region13
  $region12: #{tpu_custom_call.1} parent=0 // pred_region
    _
  $region13: #{tpu_custom_call.1} parent=0 // pred_fallthru
    _
  // Predicated region
  $region14: #{tpu_custom_call.1} parent=0 // pred_check
    _
  $region15: #{tpu_custom_call.1} parent=0 // pred_check_branch
    %39 = sbr.rel (0) target = $region17
  $region16: #{tpu_custom_call.1} parent=0 // pred_region
    _
  $region17: #{tpu_custom_call.1} parent=0 // pred_fallthru
    _
  // Predicated region
  $region18: #{tpu_custom_call.1} parent=0 // pred_check
    _
  $region19: #{tpu_custom_call.1} parent=0 // pred_check_branch
    %41 = sbr.rel (0) target = $region21
  $region20: #{tpu_custom_call.1} parent=0 // pred_region
    _
  $region21: #{tpu_custom_call.1} parent=0 // pred_fallthru
    _
  // Predicated region
  $region22: #{tpu_custom_call.1} parent=0 // pred_check
    _
  $region23: #{tpu_custom_call.1} parent=0 // pred_check_branch
    %43 = sbr.rel (0) target = $region25
  $region24: #{tpu_custom_call.1} parent=0 // pred_region
    _
  $region25: #{tpu_custom_call.1} parent=0 // pred_fallthru
    _
  // Predicated region
  $region26: #{tpu_custom_call.1} parent=0 // pred_check
    _
  $region27: #{tpu_custom_call.1} parent=0 // pred_check_branch
    %45 = sbr.rel (0) target = $region29
  $region28: #{tpu_custom_call.1} parent=0 // pred_region
    _
  $region29: #{tpu_custom_call.1} parent=0 // pred_fallthru
    _
  // Predicated region
  $region30: #{tpu_custom_call.1} parent=0 // pred_check
    _
  $region31: #{tpu_custom_call.1} parent=0 // pred_check_branch
    %47 = sbr.rel (0) target = $region33
  $region32: #{tpu_custom_call.1} parent=0 // pred_region
    _
  $region33: #{tpu_custom_call.1} parent=0 // pred_fallthru
    _
  // Predicated region
  $region34: #{tpu_custom_call.1} parent=0 // pred_check
    _
  $region35: #{tpu_custom_call.1} parent=0 // pred_check_branch
    %49 = sbr.rel (0) target = $region37
  $region36: #{tpu_custom_call.1} parent=0 // pred_region
    _
  $region37: #{tpu_custom_call.1} parent=0 // pred_fallthru
    _
  // Predicated region
  $region38: #{tpu_custom_call.1} parent=0 // pred_check
    _
  $region39: #{tpu_custom_call.1} parent=0 // pred_check_branch
    %51 = sbr.rel (0) target = $region41
  $region40: #{tpu_custom_call.1} parent=0 // pred_region
    _
  $region41: #{tpu_custom_call.1} parent=0 // pred_fallthru
    _
  // Predicated region
  $region42: #{tpu_custom_call.1} parent=0 // pred_check
    _
  $region43: #{tpu_custom_call.1} parent=0 // pred_check_branch
    %53 = sbr.rel (0) target = $region45
  $region44: #{tpu_custom_call.1} parent=0 // pred_region
    _
  $region45: #{tpu_custom_call.1} parent=0 // pred_fallthru
    _
  // Predicated region
  $region46: #{tpu_custom_call.1} parent=0 // pred_check
    _
  $region47: #{tpu_custom_call.1} parent=0 // pred_check_branch
    %55 = sbr.rel (0) target = $region49
  $region48: #{tpu_custom_call.1} parent=0 // pred_region
    _
  $region49: #{tpu_custom_call.1} parent=0 // pred_fallthru
    _
  // Predicated region
  $region50: #{tpu_custom_call.1} parent=0 // pred_check
    _
  $region51: #{tpu_custom_call.1} parent=0 // pred_check_branch
    %57 = sbr.rel (0) target = $region53
  $region52: #{tpu_custom_call.1} parent=0 // pred_region
    _
  $region53: #{tpu_custom_call.1} parent=0 // pred_fallthru
    _
  // Predicated region
  $region54: #{tpu_custom_call.1} parent=0 // pred_check
    _
  $region55: #{tpu_custom_call.1} parent=0 // pred_check_branch
    %59 = sbr.rel (0) target = $region57
  $region56: #{tpu_custom_call.1} parent=0 // pred_region
    _
  $region57: #{tpu_custom_call.1} parent=0 // pred_fallthru
    _
  // Predicated region
  $region58: #{tpu_custom_call.1} parent=0 // pred_check
    _
  $region59: #{tpu_custom_call.1} parent=0 // pred_check_branch
    %61 = sbr.rel (0) target = $region61
  $region60: #{tpu_custom_call.1} parent=0 // pred_region
    _
  $region61: #{tpu_custom_call.1} parent=0 // pred_fallthru
    _
  // Predicated region
  $region62: #{tpu_custom_call.1} parent=0 // pred_check
    _
  $region63: #{tpu_custom_call.1} parent=0 // pred_check_branch
    %63 = sbr.rel (0) target = $region65
  $region64: #{tpu_custom_call.1} parent=0 // pred_region
    _
  $region65: #{tpu_custom_call.1} parent=0 // pred_fallthru
    _
  // Predicated region
  $region66: #{tpu_custom_call.1} parent=0 // pred_check
    _
  $region67: #{tpu_custom_call.1} parent=0 // pred_check_branch
    %65 = sbr.rel (0) target = $region69
  $region68: #{tpu_custom_call.1} parent=0 // pred_region
    _
  $region69: #{tpu_custom_call.1} parent=0 // pred_fallthru
    _
  // Predicated region
  $region70: #{tpu_custom_call.1} parent=0 // pred_check
    _
  $region71: #{tpu_custom_call.1} parent=0 // pred_check_branch
    %67 = sbr.rel (0) target = $region73
  $region72: #{tpu_custom_call.1} parent=0 // pred_region
    _
  $region73: #{tpu_custom_call.1} parent=0 // pred_fallthru
    _
  // Predicated region
  $region74: #{tpu_custom_call.1} parent=0 // pred_check
    _
  $region75: #{tpu_custom_call.1} parent=0 // pred_check_branch
    %69 = sbr.rel (0) target = $region77
  $region76: #{tpu_custom_call.1} parent=0 // pred_region
    _
  $region77: #{tpu_custom_call.1} parent=0 // pred_fallthru
    _
  // Predicated region
  $region78: #{tpu_custom_call.1} parent=0 // pred_check
    _
  $region79: #{tpu_custom_call.1} parent=0 // pred_check_branch
    %71 = sbr.rel (0) target = $region81
  $region80: #{tpu_custom_call.1} parent=0 // pred_region
    _
  $region81: #{tpu_custom_call.1} parent=0 // pred_fallthru
    _
  // Predicated region
  $region82: #{tpu_custom_call.1} parent=0 // pred_check
    _
  $region83: #{tpu_custom_call.1} parent=0 // pred_check_branch
    %73 = sbr.rel (0) target = $region85
  $region84: #{tpu_custom_call.1} parent=0 // pred_region
    _
  $region85: #{tpu_custom_call.1} parent=0 // pred_fallthru
    _
  // Predicated region
  $region86: #{tpu_custom_call.1} parent=0 // pred_check
    _
  $region87: #{tpu_custom_call.1} parent=0 // pred_check_branch
    %75 = sbr.rel (0) target = $region89
  $region88: #{tpu_custom_call.1} parent=0 // pred_region
    _
  $region89: #{tpu_custom_call.1} parent=0 // pred_fallthru
    _
  // Predicated region
  $region90: #{tpu_custom_call.1} parent=0 // pred_check
    _
  $region91: #{tpu_custom_call.1} parent=0 // pred_check_branch
    %77 = sbr.rel (0) target = $region93
  $region92: #{tpu_custom_call.1} parent=0 // pred_region
    _
  $region93: #{tpu_custom_call.1} parent=0 // pred_fallthru
    _
  // Predicated region
  $region94: #{tpu_custom_call.1} parent=0 // pred_check
    _
  $region95: #{tpu_custom_call.1} parent=0 // pred_check_branch
    %79 = sbr.rel (0) target = $region97
  $region96: #{tpu_custom_call.1} parent=0 // pred_region
    _
  $region97: #{tpu_custom_call.1} parent=0 // pred_fallthru
    _
  // Predicated region
  $region98: #{tpu_custom_call.1} parent=0 // pred_check
    _
  $region99: #{tpu_custom_call.1} parent=0 // pred_check_branch
    %81 = sbr.rel (0) target = $region101
  $region100: #{tpu_custom_call.1} parent=0 // pred_region
    _
  $region101: #{tpu_custom_call.1} parent=0 // pred_fallthru
    _
  %v82 = vld [vmem:[%s0] sm:$0xff]
  %v83 = vld [vmem:[%s0 + $0x8] sm:$0xff]
  %v84 = vlaneseq
  %v85 = vand.u32 %v84, 127
  %86 = vset.pattern.permute.xlu0 0
  %87 = vperm.xlu0 %86, %v82
  %v88 = vpop.permute.xlu0 %87
  %89 = vset.pattern.permute.xlu0 0
  %90 = vperm.xlu0 %89, %v83
  %v91 = vpop.permute.xlu0 %90
  %vm92 = vcmp.eq.s32.totalorder %v85, %v88
  %vm93 = vcmp.eq.s32.totalorder %v85, %v91
  %v94 = vsel %vm92, 1, 0
  %v95 = vsel %vm93, 1, 0
  %v96 = vcvt.s32.f32 %v94
  %v97 = vcvt.s32.f32 %v95
  %v98 = vld [vmem:[%s1] sm:$0xff]
  %v99 = vld [vmem:[%s1 + $0x8] sm:$0xff]
  %v100 = vld [vmem:[%s1 + $0x10] sm:$0xff]
  %v101 = vld [vmem:[%s1 + $0x18] sm:$0xff]
  %v102 = vld [vmem:[%s1 + $0x20] sm:$0xff]
  %v103 = vld [vmem:[%s1 + $0x28] sm:$0xff]
  %v104 = vld [vmem:[%s1 + $0x30] sm:$0xff]
  %v105 = vld [vmem:[%s1 + $0x38] sm:$0xff]
  %vm106 = vcmask 523264
  %v108 = vsel %vm106, %v96, 0
  %v111 = vsel %vm106, %v97, 0
  %113 = vmatprep.subr.mxu0 0.0
  %114 = vmatpush1.msra.mxu0 0.0
  %115 = vmatprep.subr.mxu0 0.0
  %116 = vmatpush1.msra.mxu0 0.0
  %117 = vmatprep.subr.mxu0 0.0
  %118 = vmatpush1.msra.mxu0 0.0
  %119 = vmatprep.subr.mxu0 0.0
  %120 = vmatpush1.msra.mxu0 0.0
  %121 = vmatprep.subr.mxu0 0.0
  %122 = vmatpush1.msra.mxu0 0.0
  %123 = vmatprep.subr.mxu0 0.0
  %124 = vmatpush1.msra.mxu0 0.0
  %125 = vmatprep.subr.mxu0 0.0
  %126 = vmatpush1.msra.mxu0 0.0
  %127 = vmatprep.subr.mxu0 0.0
  %128 = vmatpush1.msra.mxu0 0.0
  %129 = vmatprep.subr.mxu0 0.0
  %130 = vmatpush1.msra.mxu0 %v105
  %131 = vmatprep.subr.mxu0 0.0
  %132 = vmatpush1.msra.mxu0 %v104
  %133 = vmatprep.subr.mxu0 0.0
  %134 = vmatpush1.msra.mxu0 %v103
  %135 = vmatprep.subr.mxu0 0.0
  %136 = vmatpush1.msra.mxu0 %v102
  %137 = vmatprep.subr.mxu0 0.0
  %138 = vmatpush1.msra.mxu0 %v101
  %139 = vmatprep.subr.mxu0 0.0
  %140 = vmatpush1.msra.mxu0 %v100
  %141 = vmatprep.subr.mxu0 0.0
  %142 = vmatpush1.msra.mxu0 %v99
  %143 = vmatprep.subr.mxu0 0.0
  %144 = vmatpush1.msra.mxu0 %v98
  %145 = vmatprep.subr.mxu0 0.0
  %146 = vmatpush2.msra.mxu0 0.0
  %147 = vmatprep.subr.mxu0 0.0
  %148 = vmatpush2.msra.mxu0 0.0
  %149 = vmatprep.subr.mxu0 0.0
  %150 = vmatpush2.msra.mxu0 0.0
  %151 = vmatprep.subr.mxu0 0.0
  %152 = vmatpush2.msra.mxu0 0.0
  %153 = vmatprep.subr.mxu0 0.0
  %154 = vmatpush2.msra.mxu0 0.0
  %155 = vmatprep.subr.mxu0 0.0
  %156 = vmatpush2.msra.mxu0 0.0
  %157 = vmatprep.subr.mxu0 0.0
  %158 = vmatpush2.msra.mxu0 0.0
  %159 = vmatprep.subr.mxu0 0.0
  %160 = vmatpush2.msra.mxu0 0.0
  %161 = vmatprep.subr.mxu0 0.0
  %162 = vmatpush2.msra.mxu0 0.0
  %163 = vmatprep.subr.mxu0 0.0
  %164 = vmatpush2.msra.mxu0 0.0
  %165 = vmatprep.subr.mxu0 0.0
  %166 = vmatpush2.msra.mxu0 0.0
  %167 = vmatprep.subr.mxu0 0.0
  %168 = vmatpush2.msra.mxu0 0.0
  %169 = vmatprep.subr.mxu0 0.0
  %170 = vmatpush2.msra.mxu0 0.0
  %171 = vmatprep.subr.mxu0 0.0
  %172 = vmatpush2.msra.mxu0 0.0
  %173 = vmatprep.subr.mxu0 0.0
  %174 = vmatpush2.msra.mxu0 0.0
  %175 = vmatprep.subr.mxu0 0.0
  %176 = vmatpush2.msra.mxu0 0.0
  %177 = vmatprep.mubr.f32.mxu0 0.0
  %178 = vmatmul.mubr.f32.gmra.mxu0 %v108
  %v179 = vpop.f32.mrf.mxu0
  %v180 = vadd.f32 0.0, %v179
  %v181 = vpop.f32.mrf.mxu0
  %182 = vmatprep.mubr.f32.mxu0 0.0
  %183 = vmatmul.mubr.f32.gmra.mxu0 %v111
  %v184 = vpop.f32.mrf.mxu0
  %v185 = vadd.f32 0.0, %v184
  %v186 = vpop.f32.mrf.mxu0
  %187 = vdwg.mxu0
  %v188 = vld [vmem:[%s2] sm:$0xff]
  %v189 = vld [vmem:[%s2 + $0x8] sm:$0xff]
  %v190 = vld [vmem:[%s2 + $0x10] sm:$0xff]
  %v191 = vld [vmem:[%s2 + $0x18] sm:$0xff]
  %v192 = vld [vmem:[%s2 + $0x20] sm:$0xff]
  %v193 = vld [vmem:[%s2 + $0x28] sm:$0xff]
  %v194 = vld [vmem:[%s2 + $0x30] sm:$0xff]
  %v195 = vld [vmem:[%s2 + $0x38] sm:$0xff]
  %v196 = vld [vmem:[%s5] sm:$0x3]
  %v198 = vlaneseq
  %v199 = vshrl.u32 %v198, 7
  %v200 = vsub.s32 0, %v199
  %v201 = vrot.slane %v196, %v200
  %v202 = vlaneseq
  %v203 = vshrl.u32 %v202, 7
  %v204 = vsub.s32 1, %v203
  %v205 = vrot.slane %v196, %v204
  %vm208 = vcmask 261120
  %v210 = vsel %vm208, %v180, 0
  %v213 = vsel %vm208, %v185, 0
  %215 = vmatprep.subr.mxu0 0.0
  %216 = vmatpush1.msra.mxu0 0.0
  %217 = vmatprep.subr.mxu0 0.0
  %218 = vmatpush1.msra.mxu0 0.0
  %219 = vmatprep.subr.mxu0 0.0
  %220 = vmatpush1.msra.mxu0 0.0
  %221 = vmatprep.subr.mxu0 0.0
  %222 = vmatpush1.msra.mxu0 0.0
  %223 = vmatprep.subr.mxu0 0.0
  %224 = vmatpush1.msra.mxu0 0.0
  %225 = vmatprep.subr.mxu0 0.0
  %226 = vmatpush1.msra.mxu0 0.0
  %227 = vmatprep.subr.mxu0 0.0
  %228 = vmatpush1.msra.mxu0 0.0
  %229 = vmatprep.subr.mxu0 0.0
  %230 = vmatpush1.msra.mxu0 0.0
  %231 = vmatprep.subr.mxu0 0.0
  %232 = vmatpush1.msra.mxu0 0.0
  %233 = vmatprep.subr.mxu0 0.0
  %234 = vmatpush1.msra.mxu0 0.0
  %235 = vmatprep.subr.mxu0 0.0
  %236 = vmatpush1.msra.mxu0 0.0
  %237 = vmatprep.subr.mxu0 0.0
  %238 = vmatpush1.msra.mxu0 0.0
  %239 = vmatprep.subr.mxu0 %v195
  %240 = vmatpush1.msra.mxu0 %v194
  %241 = vmatprep.subr.mxu0 %v193
  %242 = vmatpush1.msra.mxu0 %v192
  %243 = vmatprep.subr.mxu0 %v191
  %244 = vmatpush1.msra.mxu0 %v190
  %245 = vmatprep.subr.mxu0 %v189
  %246 = vmatpush1.msra.mxu0 %v188
  %247 = vmatprep.subr.mxu0 0.0
  %248 = vmatpush2.msra.mxu0 0.0
  %249 = vmatprep.subr.mxu0 0.0
  %250 = vmatpush2.msra.mxu0 0.0
  %251 = vmatprep.subr.mxu0 0.0
  %252 = vmatpush2.msra.mxu0 0.0
  %253 = vmatprep.subr.mxu0 0.0
  %254 = vmatpush2.msra.mxu0 0.0
  %255 = vmatprep.subr.mxu0 0.0
  %256 = vmatpush2.msra.mxu0 0.0
  %257 = vmatprep.subr.mxu0 0.0
  %258 = vmatpush2.msra.mxu0 0.0
  %259 = vmatprep.subr.mxu0 0.0
  %260 = vmatpush2.msra.mxu0 0.0
  %261 = vmatprep.subr.mxu0 0.0
  %262 = vmatpush2.msra.mxu0 0.0
  %263 = vmatprep.subr.mxu0 0.0
  %264 = vmatpush2.msra.mxu0 0.0
  %265 = vmatprep.subr.mxu0 0.0
  %266 = vmatpush2.msra.mxu0 0.0
  %267 = vmatprep.subr.mxu0 0.0
  %268 = vmatpush2.msra.mxu0 0.0
  %269 = vmatprep.subr.mxu0 0.0
  %270 = vmatpush2.msra.mxu0 0.0
  %271 = vmatprep.subr.mxu0 0.0
  %272 = vmatpush2.msra.mxu0 0.0
  %273 = vmatprep.subr.mxu0 0.0
  %274 = vmatpush2.msra.mxu0 0.0
  %275 = vmatprep.subr.mxu0 0.0
  %276 = vmatpush2.msra.mxu0 0.0
  %277 = vmatprep.subr.mxu0 0.0
  %278 = vmatpush2.msra.mxu0 0.0
  %279 = vmatprep.mubr.f32.mxu0 0.0
  %280 = vmatmul.mubr.f32.gmra.mxu0 %v210
  %v281 = vpop.f32.mrf.mxu0
  %v282 = vadd.f32 %v201, %v281
  %v283 = vpop.f32.mrf.mxu0
  %v284 = vadd.f32 %v205, %v283
  %285 = vmatprep.mubr.f32.mxu0 0.0
  %286 = vmatmul.mubr.f32.gmra.mxu0 %v213
  %v287 = vpop.f32.mrf.mxu0
  %v288 = vadd.f32 %v201, %v287
  %v289 = vpop.f32.mrf.mxu0
  %v290 = vadd.f32 %v205, %v289
  %291 = vdwg.mxu0
  %v292 = vld [vmem:[%s3] sm:$0xff]
  %v293 = vld [vmem:[%s3 + $0x8] sm:$0xff]
  %v294 = vld [vmem:[%s3 + $0x10] sm:$0xff]
  %v295 = vld [vmem:[%s3 + $0x18] sm:$0xff]
  %v296 = vld [vmem:[%s4] sm:$0xff]
  %v297 = vld [vmem:[%s4 + $0x8] sm:$0xff]
  %v298 = vld [vmem:[%s4 + $0x10] sm:$0xff]
  %v299 = vld [vmem:[%s4 + $0x18] sm:$0xff]
  %v301 = vsel %vm208, 0.0, 0
  %303 = vmatprep.subr.mxu0 0.0
  %304 = vmatpush1.msra.mxu0 0.0
  %305 = vmatprep.subr.mxu0 0.0
  %306 = vmatpush1.msra.mxu0 0.0
  %307 = vmatprep.subr.mxu0 0.0
  %308 = vmatpush1.msra.mxu0 0.0
  %309 = vmatprep.subr.mxu0 0.0
  %310 = vmatpush1.msra.mxu0 0.0
  %311 = vmatprep.subr.mxu0 0.0
  %312 = vmatpush1.msra.mxu0 0.0
  %313 = vmatprep.subr.mxu0 0.0
  %314 = vmatpush1.msra.mxu0 0.0
  %315 = vmatprep.subr.mxu0 0.0
  %316 = vmatpush1.msra.mxu0 0.0
  %317 = vmatprep.subr.mxu0 0.0
  %318 = vmatpush1.msra.mxu0 0.0
  %319 = vmatprep.subr.mxu0 0.0
  %320 = vmatpush1.msra.mxu0 0.0
  %321 = vmatprep.subr.mxu0 0.0
  %322 = vmatpush1.msra.mxu0 0.0
  %323 = vmatprep.subr.mxu0 0.0
  %324 = vmatpush1.msra.mxu0 0.0
  %325 = vmatprep.subr.mxu0 0.0
  %326 = vmatpush1.msra.mxu0 0.0
  %327 = vmatprep.subr.mxu0 0.0
  %328 = vmatpush1.msra.mxu0 %v295
  %329 = vmatprep.subr.mxu0 0.0
  %330 = vmatpush1.msra.mxu0 %v294
  %331 = vmatprep.subr.mxu0 0.0
  %332 = vmatpush1.msra.mxu0 %v293
  %333 = vmatprep.subr.mxu0 0.0
  %334 = vmatpush1.msra.mxu0 %v292
  %335 = vmatprep.subr.mxu0 0.0
  %336 = vmatpush2.msra.mxu0 0.0
  %337 = vmatprep.subr.mxu0 0.0
  %338 = vmatpush2.msra.mxu0 0.0
  %339 = vmatprep.subr.mxu0 0.0
  %340 = vmatpush2.msra.mxu0 0.0
  %341 = vmatprep.subr.mxu0 0.0
  %342 = vmatpush2.msra.mxu0 0.0
  %343 = vmatprep.subr.mxu0 0.0
  %344 = vmatpush2.msra.mxu0 0.0
  %345 = vmatprep.subr.mxu0 0.0
  %346 = vmatpush2.msra.mxu0 0.0
  %347 = vmatprep.subr.mxu0 0.0
  %348 = vmatpush2.msra.mxu0 0.0
  %349 = vmatprep.subr.mxu0 0.0
  %350 = vmatpush2.msra.mxu0 0.0
  %351 = vmatprep.subr.mxu0 0.0
  %352 = vmatpush2.msra.mxu0 0.0
  %353 = vmatprep.subr.mxu0 0.0
  %354 = vmatpush2.msra.mxu0 0.0
  %355 = vmatprep.subr.mxu0 0.0
  %356 = vmatpush2.msra.mxu0 0.0
  %357 = vmatprep.subr.mxu0 0.0
  %358 = vmatpush2.msra.mxu0 0.0
  %359 = vmatprep.subr.mxu0 0.0
  %360 = vmatpush2.msra.mxu0 0.0
  %361 = vmatprep.subr.mxu0 0.0
  %362 = vmatpush2.msra.mxu0 0.0
  %363 = vmatprep.subr.mxu0 0.0
  %364 = vmatpush2.msra.mxu0 0.0
  %365 = vmatprep.subr.mxu0 0.0
  %366 = vmatpush2.msra.mxu0 0.0
  %367 = vmatprep.mubr.f32.mxu0 0.0
  %368 = vmatmul.mubr.f32.gmra.mxu0 %v301
  %v369 = vpop.f32.mrf.mxu0
  %v370 = vadd.f32 %v282, %v369
  %v371 = vpop.f32.mrf.mxu0
  %372 = vdwg.mxu0
  %v374 = vrot.slane %v290, 6
  %376 = vmatprep.subr.mxu0 0.0
  %377 = vmatpush1.msra.mxu0 0.0
  %378 = vmatprep.subr.mxu0 0.0
  %379 = vmatpush1.msra.mxu0 0.0
  %380 = vmatprep.subr.mxu0 0.0
  %381 = vmatpush1.msra.mxu0 0.0
  %382 = vmatprep.subr.mxu0 0.0
  %383 = vmatpush1.msra.mxu0 0.0
  %384 = vmatprep.subr.mxu0 0.0
  %385 = vmatpush1.msra.mxu0 0.0
  %386 = vmatprep.subr.mxu0 0.0
  %387 = vmatpush1.msra.mxu0 0.0
  %388 = vmatprep.subr.mxu0 0.0
  %389 = vmatpush1.msra.mxu0 0.0
  %390 = vmatprep.subr.mxu0 0.0
  %391 = vmatpush1.msra.mxu0 0.0
  %392 = vmatprep.subr.mxu0 0.0
  %393 = vmatpush1.msra.mxu0 0.0
  %394 = vmatprep.subr.mxu0 0.0
  %395 = vmatpush1.msra.mxu0 0.0
  %396 = vmatprep.subr.mxu0 0.0
  %397 = vmatpush1.msra.mxu0 0.0
  %398 = vmatprep.subr.mxu0 0.0
  %399 = vmatpush1.msra.mxu0 0.0
  %400 = vmatprep.subr.mxu0 0.0
  %401 = vmatpush1.msra.mxu0 %v299
  %402 = vmatprep.subr.mxu0 0.0
  %403 = vmatpush1.msra.mxu0 %v298
  %404 = vmatprep.subr.mxu0 0.0
  %405 = vmatpush1.msra.mxu0 %v297
  %406 = vmatprep.subr.mxu0 0.0
  %407 = vmatpush1.msra.mxu0 %v296
  %408 = vmatprep.subr.mxu0 0.0
  %409 = vmatpush2.msra.mxu0 0.0
  %410 = vmatprep.subr.mxu0 0.0
  %411 = vmatpush2.msra.mxu0 0.0
  %412 = vmatprep.subr.mxu0 0.0
  %413 = vmatpush2.msra.mxu0 0.0
  %414 = vmatprep.subr.mxu0 0.0
  %415 = vmatpush2.msra.mxu0 0.0
  %416 = vmatprep.subr.mxu0 0.0
  %417 = vmatpush2.msra.mxu0 0.0
  %418 = vmatprep.subr.mxu0 0.0
  %419 = vmatpush2.msra.mxu0 0.0
  %420 = vmatprep.subr.mxu0 0.0
  %421 = vmatpush2.msra.mxu0 0.0
  %422 = vmatprep.subr.mxu0 0.0
  %423 = vmatpush2.msra.mxu0 0.0
  %424 = vmatprep.subr.mxu0 0.0
  %425 = vmatpush2.msra.mxu0 0.0
  %426 = vmatprep.subr.mxu0 0.0
  %427 = vmatpush2.msra.mxu0 0.0
  %428 = vmatprep.subr.mxu0 0.0
  %429 = vmatpush2.msra.mxu0 0.0
  %430 = vmatprep.subr.mxu0 0.0
  %431 = vmatpush2.msra.mxu0 0.0
  %432 = vmatprep.subr.mxu0 0.0
  %433 = vmatpush2.msra.mxu0 0.0
  %434 = vmatprep.subr.mxu0 0.0
  %435 = vmatpush2.msra.mxu0 0.0
  %436 = vmatprep.subr.mxu0 0.0
  %437 = vmatpush2.msra.mxu0 0.0
  %438 = vmatprep.subr.mxu0 0.0
  %439 = vmatpush2.msra.mxu0 0.0
  %440 = vmatprep.mubr.f32.mxu0 0.0
  %441 = vmatmul.mubr.f32.gmra.mxu0 %v301
  %v442 = vpop.f32.mrf.mxu0
  %v443 = vadd.f32 %v374, %v442
  %v444 = vpop.f32.mrf.mxu0
  %445 = vdwg.mxu0
  %v446 = vxor.u32 %v370, 2147483648
  %v447 = vmul.f32 %v446, 1.442695
  %v448 = vpow.pop %v447
  %v449 = vadd.f32 %v448, 1.0
  %v450 = vrcp.pop %v449
  %v451 = vmul.f32 1.0, %v450
  %v452 = vxor.u32 %v443, 2147483648
  %v453 = vmul.f32 %v452, 1.442695
  %v454 = vpow.pop %v453
  %v455 = vadd.f32 %v454, 1.0
  %v456 = vrcp.pop %v455
  %v457 = vmul.f32 1.0, %v456
  %v458 = vmul.f32 %v451, 0.0
  %v459 = vtanh.pop %v370
  %461 = vrot.lane.b32.xlu0 %v459, 32
  %v462 = vpop.permute.xlu0 %461
  %v464 = vmul.f32 %v451, %v462
  %466 = vrot.lane.b32.xlu0 %v464, 32
  %v467 = vpop.permute.xlu0 %466
  %v469 = vadd.f32 %v458, %v467
  %v470 = vmul.f32 %v457, 0.0
  %v471 = vtanh.pop %v443
  %473 = vrot.lane.b32.xlu0 %v471, 32
  %v474 = vpop.permute.xlu0 %473
  %v476 = vmul.f32 %v457, %v474
  %478 = vrot.lane.b32.xlu0 %v476, 32
  %v479 = vpop.permute.xlu0 %478
  %v481 = vadd.f32 %v470, %v479
  %v482 = vtanh.pop %v469
  %484 = vrot.lane.b32.xlu0 %v482, 32
  %v485 = vpop.permute.xlu0 %484
  %v487 = vmul.f32 %v451, %v485
  %v488 = vtanh.pop %v481
  %490 = vrot.lane.b32.xlu0 %v488, 32
  %v491 = vpop.permute.xlu0 %490
  %v493 = vmul.f32 %v457, %v491
  %495 = vrot.lane.b32.xlu0 %v487, 64
  %v496 = vpop.permute.xlu0 %495
  %v498 = vrot.slane %v282, 2
  %v500 = vsel %vm208, %v496, 0
  %502 = vmatprep.subr.mxu0 0.0
  %503 = vmatpush1.msra.mxu0 0.0
  %504 = vmatprep.subr.mxu0 0.0
  %505 = vmatpush1.msra.mxu0 0.0
  %506 = vmatprep.subr.mxu0 0.0
  %507 = vmatpush1.msra.mxu0 0.0
  %508 = vmatprep.subr.mxu0 0.0
  %509 = vmatpush1.msra.mxu0 0.0
  %510 = vmatprep.subr.mxu0 0.0
  %511 = vmatpush1.msra.mxu0 0.0
  %512 = vmatprep.subr.mxu0 0.0
  %513 = vmatpush1.msra.mxu0 0.0
  %514 = vmatprep.subr.mxu0 0.0
  %515 = vmatpush1.msra.mxu0 0.0
  %516 = vmatprep.subr.mxu0 0.0
  %517 = vmatpush1.msra.mxu0 0.0
  %518 = vmatprep.subr.mxu0 0.0
  %519 = vmatpush1.msra.mxu0 0.0
  %520 = vmatprep.subr.mxu0 0.0
  %521 = vmatpush1.msra.mxu0 0.0
  %522 = vmatprep.subr.mxu0 0.0
  %523 = vmatpush1.msra.mxu0 0.0
  %524 = vmatprep.subr.mxu0 0.0
  %525 = vmatpush1.msra.mxu0 0.0
  %526 = vmatprep.subr.mxu0 0.0
  %527 = vmatpush1.msra.mxu0 %v295
  %528 = vmatprep.subr.mxu0 0.0
  %529 = vmatpush1.msra.mxu0 %v294
  %530 = vmatprep.subr.mxu0 0.0
  %531 = vmatpush1.msra.mxu0 %v293
  %532 = vmatprep.subr.mxu0 0.0
  %533 = vmatpush1.msra.mxu0 %v292
  %534 = vmatprep.subr.mxu0 0.0
  %535 = vmatpush2.msra.mxu0 0.0
  %536 = vmatprep.subr.mxu0 0.0
  %537 = vmatpush2.msra.mxu0 0.0
  %538 = vmatprep.subr.mxu0 0.0
  %539 = vmatpush2.msra.mxu0 0.0
  %540 = vmatprep.subr.mxu0 0.0
  %541 = vmatpush2.msra.mxu0 0.0
  %542 = vmatprep.subr.mxu0 0.0
  %543 = vmatpush2.msra.mxu0 0.0
  %544 = vmatprep.subr.mxu0 0.0
  %545 = vmatpush2.msra.mxu0 0.0
  %546 = vmatprep.subr.mxu0 0.0
  %547 = vmatpush2.msra.mxu0 0.0
  %548 = vmatprep.subr.mxu0 0.0
  %549 = vmatpush2.msra.mxu0 0.0
  %550 = vmatprep.subr.mxu0 0.0
  %551 = vmatpush2.msra.mxu0 0.0
  %552 = vmatprep.subr.mxu0 0.0
  %553 = vmatpush2.msra.mxu0 0.0
  %554 = vmatprep.subr.mxu0 0.0
  %555 = vmatpush2.msra.mxu0 0.0
  %556 = vmatprep.subr.mxu0 0.0
  %557 = vmatpush2.msra.mxu0 0.0
  %558 = vmatprep.subr.mxu0 0.0
  %559 = vmatpush2.msra.mxu0 0.0
  %560 = vmatprep.subr.mxu0 0.0
  %561 = vmatpush2.msra.mxu0 0.0
  %562 = vmatprep.subr.mxu0 0.0
  %563 = vmatpush2.msra.mxu0 0.0
  %564 = vmatprep.subr.mxu0 0.0
  %565 = vmatpush2.msra.mxu0 0.0
  %566 = vmatprep.mubr.f32.mxu0 0.0
  %567 = vmatmul.mubr.f32.gmra.mxu0 %v500
  %v568 = vpop.f32.mrf.mxu0
  %v569 = vadd.f32 %v498, %v568
  %v570 = vpop.f32.mrf.mxu0
  %571 = vdwg.mxu0
  %573 = vrot.lane.b32.xlu0 %v493, 64
  %v574 = vpop.permute.xlu0 %573
  %v575 = vrot.slane %v290, 4
  %v577 = vsel %vm208, %v574, 0
  %579 = vmatprep.subr.mxu0 0.0
  %580 = vmatpush1.msra.mxu0 0.0
  %581 = vmatprep.subr.mxu0 0.0
  %582 = vmatpush1.msra.mxu0 0.0
  %583 = vmatprep.subr.mxu0 0.0
  %584 = vmatpush1.msra.mxu0 0.0
  %585 = vmatprep.subr.mxu0 0.0
  %586 = vmatpush1.msra.mxu0 0.0
  %587 = vmatprep.subr.mxu0 0.0
  %588 = vmatpush1.msra.mxu0 0.0
  %589 = vmatprep.subr.mxu0 0.0
  %590 = vmatpush1.msra.mxu0 0.0
  %591 = vmatprep.subr.mxu0 0.0
  %592 = vmatpush1.msra.mxu0 0.0
  %593 = vmatprep.subr.mxu0 0.0
  %594 = vmatpush1.msra.mxu0 0.0
  %595 = vmatprep.subr.mxu0 0.0
  %596 = vmatpush1.msra.mxu0 0.0
  %597 = vmatprep.subr.mxu0 0.0
  %598 = vmatpush1.msra.mxu0 0.0
  %599 = vmatprep.subr.mxu0 0.0
  %600 = vmatpush1.msra.mxu0 0.0
  %601 = vmatprep.subr.mxu0 0.0
  %602 = vmatpush1.msra.mxu0 0.0
  %603 = vmatprep.subr.mxu0 0.0
  %604 = vmatpush1.msra.mxu0 %v299
  %605 = vmatprep.subr.mxu0 0.0
  %606 = vmatpush1.msra.mxu0 %v298
  %607 = vmatprep.subr.mxu0 0.0
  %608 = vmatpush1.msra.mxu0 %v297
  %609 = vmatprep.subr.mxu0 0.0
  %610 = vmatpush1.msra.mxu0 %v296
  %611 = vmatprep.subr.mxu0 0.0
  %612 = vmatpush2.msra.mxu0 0.0
  %613 = vmatprep.subr.mxu0 0.0
  %614 = vmatpush2.msra.mxu0 0.0
  %615 = vmatprep.subr.mxu0 0.0
  %616 = vmatpush2.msra.mxu0 0.0
  %617 = vmatprep.subr.mxu0 0.0
  %618 = vmatpush2.msra.mxu0 0.0
  %619 = vmatprep.subr.mxu0 0.0
  %620 = vmatpush2.msra.mxu0 0.0
  %621 = vmatprep.subr.mxu0 0.0
  %622 = vmatpush2.msra.mxu0 0.0
  %623 = vmatprep.subr.mxu0 0.0
  %624 = vmatpush2.msra.mxu0 0.0
  %625 = vmatprep.subr.mxu0 0.0
  %626 = vmatpush2.msra.mxu0 0.0
  %627 = vmatprep.subr.mxu0 0.0
  %628 = vmatpush2.msra.mxu0 0.0
  %629 = vmatprep.subr.mxu0 0.0
  %630 = vmatpush2.msra.mxu0 0.0
  %631 = vmatprep.subr.mxu0 0.0
  %632 = vmatpush2.msra.mxu0 0.0
  %633 = vmatprep.subr.mxu0 0.0
  %634 = vmatpush2.msra.mxu0 0.0
  %635 = vmatprep.subr.mxu0 0.0
  %636 = vmatpush2.msra.mxu0 0.0
  %637 = vmatprep.subr.mxu0 0.0
  %638 = vmatpush2.msra.mxu0 0.0
  %639 = vmatprep.subr.mxu0 0.0
  %640 = vmatpush2.msra.mxu0 0.0
  %641 = vmatprep.subr.mxu0 0.0
  %642 = vmatpush2.msra.mxu0 0.0
  %643 = vmatprep.mubr.f32.mxu0 0.0
  %644 = vmatmul.mubr.f32.gmra.mxu0 %v577
  %v645 = vpop.f32.mrf.mxu0
  %v646 = vadd.f32 %v575, %v645
  %v647 = vpop.f32.mrf.mxu0
  %648 = vdwg.mxu0
  %v649 = vxor.u32 %v569, 2147483648
  %v650 = vmul.f32 %v649, 1.442695
  %v651 = vpow.pop %v650
  %v652 = vadd.f32 %v651, 1.0
  %v653 = vrcp.pop %v652
  %v654 = vmul.f32 1.0, %v653
  %v655 = vxor.u32 %v646, 2147483648
  %v656 = vmul.f32 %v655, 1.442695
  %v657 = vpow.pop %v656
  %v658 = vadd.f32 %v657, 1.0
  %v659 = vrcp.pop %v658
  %v660 = vmul.f32 1.0, %v659
  %v661 = vmul.f32 %v654, %v469
  %v662 = vtanh.pop %v569
  %664 = vrot.lane.b32.xlu0 %v662, 32
  %v665 = vpop.permute.xlu0 %664
  %v667 = vmul.f32 %v654, %v665
  %669 = vrot.lane.b32.xlu0 %v667, 32
  %v670 = vpop.permute.xlu0 %669
  %v672 = vadd.f32 %v661, %v670
  %v673 = vmul.f32 %v660, %v481
  %v674 = vtanh.pop %v646
  %676 = vrot.lane.b32.xlu0 %v674, 32
  %v677 = vpop.permute.xlu0 %676
  %v679 = vmul.f32 %v660, %v677
  %681 = vrot.lane.b32.xlu0 %v679, 32
  %v682 = vpop.permute.xlu0 %681
  %v684 = vadd.f32 %v673, %v682
  %v685 = vtanh.pop %v672
  %687 = vrot.lane.b32.xlu0 %v685, 32
  %v688 = vpop.permute.xlu0 %687
  %v690 = vmul.f32 %v654, %v688
  %v691 = vtanh.pop %v684
  %693 = vrot.lane.b32.xlu0 %v691, 32
  %v694 = vpop.permute.xlu0 %693
  %v696 = vmul.f32 %v660, %v694
  %698 = vrot.lane.b32.xlu0 %v690, 64
  %v699 = vpop.permute.xlu0 %698
  %v700 = vrot.slane %v282, 4
  %v702 = vsel %vm208, %v699, 0
  %704 = vmatprep.subr.mxu0 0.0
  %705 = vmatpush1.msra.mxu0 0.0
  %706 = vmatprep.subr.mxu0 0.0
  %707 = vmatpush1.msra.mxu0 0.0
  %708 = vmatprep.subr.mxu0 0.0
  %709 = vmatpush1.msra.mxu0 0.0
  %710 = vmatprep.subr.mxu0 0.0
  %711 = vmatpush1.msra.mxu0 0.0
  %712 = vmatprep.subr.mxu0 0.0
  %713 = vmatpush1.msra.mxu0 0.0
  %714 = vmatprep.subr.mxu0 0.0
  %715 = vmatpush1.msra.mxu0 0.0
  %716 = vmatprep.subr.mxu0 0.0
  %717 = vmatpush1.msra.mxu0 0.0
  %718 = vmatprep.subr.mxu0 0.0
  %719 = vmatpush1.msra.mxu0 0.0
  %720 = vmatprep.subr.mxu0 0.0
  %721 = vmatpush1.msra.mxu0 0.0
  %722 = vmatprep.subr.mxu0 0.0
  %723 = vmatpush1.msra.mxu0 0.0
  %724 = vmatprep.subr.mxu0 0.0
  %725 = vmatpush1.msra.mxu0 0.0
  %726 = vmatprep.subr.mxu0 0.0
  %727 = vmatpush1.msra.mxu0 0.0
  %728 = vmatprep.subr.mxu0 0.0
  %729 = vmatpush1.msra.mxu0 %v295
  %730 = vmatprep.subr.mxu0 0.0
  %731 = vmatpush1.msra.mxu0 %v294
  %732 = vmatprep.subr.mxu0 0.0
  %733 = vmatpush1.msra.mxu0 %v293
  %734 = vmatprep.subr.mxu0 0.0
  %735 = vmatpush1.msra.mxu0 %v292
  %736 = vmatprep.subr.mxu0 0.0
  %737 = vmatpush2.msra.mxu0 0.0
  %738 = vmatprep.subr.mxu0 0.0
  %739 = vmatpush2.msra.mxu0 0.0
  %740 = vmatprep.subr.mxu0 0.0
  %741 = vmatpush2.msra.mxu0 0.0
  %742 = vmatprep.subr.mxu0 0.0
  %743 = vmatpush2.msra.mxu0 0.0
  %744 = vmatprep.subr.mxu0 0.0
  %745 = vmatpush2.msra.mxu0 0.0
  %746 = vmatprep.subr.mxu0 0.0
  %747 = vmatpush2.msra.mxu0 0.0
  %748 = vmatprep.subr.mxu0 0.0
  %749 = vmatpush2.msra.mxu0 0.0
  %750 = vmatprep.subr.mxu0 0.0
  %751 = vmatpush2.msra.mxu0 0.0
  %752 = vmatprep.subr.mxu0 0.0
  %753 = vmatpush2.msra.mxu0 0.0
  %754 = vmatprep.subr.mxu0 0.0
  %755 = vmatpush2.msra.mxu0 0.0
  %756 = vmatprep.subr.mxu0 0.0
  %757 = vmatpush2.msra.mxu0 0.0
  %758 = vmatprep.subr.mxu0 0.0
  %759 = vmatpush2.msra.mxu0 0.0
  %760 = vmatprep.subr.mxu0 0.0
  %761 = vmatpush2.msra.mxu0 0.0
  %762 = vmatprep.subr.mxu0 0.0
  %763 = vmatpush2.msra.mxu0 0.0
  %764 = vmatprep.subr.mxu0 0.0
  %765 = vmatpush2.msra.mxu0 0.0
  %766 = vmatprep.subr.mxu0 0.0
  %767 = vmatpush2.msra.mxu0 0.0
  %768 = vmatprep.mubr.f32.mxu0 0.0
  %769 = vmatmul.mubr.f32.gmra.mxu0 %v702
  %v770 = vpop.f32.mrf.mxu0
  %v771 = vadd.f32 %v700, %v770
  %v772 = vpop.f32.mrf.mxu0
  %773 = vdwg.mxu0
  %775 = vrot.lane.b32.xlu0 %v696, 64
  %v776 = vpop.permute.xlu0 %775
  %v777 = vrot.slane %v290, 2
  %v779 = vsel %vm208, %v776, 0
  %781 = vmatprep.subr.mxu0 0.0
  %782 = vmatpush1.msra.mxu0 0.0
  %783 = vmatprep.subr.mxu0 0.0
  %784 = vmatpush1.msra.mxu0 0.0
  %785 = vmatprep.subr.mxu0 0.0
  %786 = vmatpush1.msra.mxu0 0.0
  %787 = vmatprep.subr.mxu0 0.0
  %788 = vmatpush1.msra.mxu0 0.0
  %789 = vmatprep.subr.mxu0 0.0
  %790 = vmatpush1.msra.mxu0 0.0
  %791 = vmatprep.subr.mxu0 0.0
  %792 = vmatpush1.msra.mxu0 0.0
  %793 = vmatprep.subr.mxu0 0.0
  %794 = vmatpush1.msra.mxu0 0.0
  %795 = vmatprep.subr.mxu0 0.0
  %796 = vmatpush1.msra.mxu0 0.0
  %797 = vmatprep.subr.mxu0 0.0
  %798 = vmatpush1.msra.mxu0 0.0
  %799 = vmatprep.subr.mxu0 0.0
  %800 = vmatpush1.msra.mxu0 0.0
  %801 = vmatprep.subr.mxu0 0.0
  %802 = vmatpush1.msra.mxu0 0.0
  %803 = vmatprep.subr.mxu0 0.0
  %804 = vmatpush1.msra.mxu0 0.0
  %805 = vmatprep.subr.mxu0 0.0
  %806 = vmatpush1.msra.mxu0 %v299
  %807 = vmatprep.subr.mxu0 0.0
  %808 = vmatpush1.msra.mxu0 %v298
  %809 = vmatprep.subr.mxu0 0.0
  %810 = vmatpush1.msra.mxu0 %v297
  %811 = vmatprep.subr.mxu0 0.0
  %812 = vmatpush1.msra.mxu0 %v296
  %813 = vmatprep.subr.mxu0 0.0
  %814 = vmatpush2.msra.mxu0 0.0
  %815 = vmatprep.subr.mxu0 0.0
  %816 = vmatpush2.msra.mxu0 0.0
  %817 = vmatprep.subr.mxu0 0.0
  %818 = vmatpush2.msra.mxu0 0.0
  %819 = vmatprep.subr.mxu0 0.0
  %820 = vmatpush2.msra.mxu0 0.0
  %821 = vmatprep.subr.mxu0 0.0
  %822 = vmatpush2.msra.mxu0 0.0
  %823 = vmatprep.subr.mxu0 0.0
  %824 = vmatpush2.msra.mxu0 0.0
  %825 = vmatprep.subr.mxu0 0.0
  %826 = vmatpush2.msra.mxu0 0.0
  %827 = vmatprep.subr.mxu0 0.0
  %828 = vmatpush2.msra.mxu0 0.0
  %829 = vmatprep.subr.mxu0 0.0
  %830 = vmatpush2.msra.mxu0 0.0
  %831 = vmatprep.subr.mxu0 0.0
  %832 = vmatpush2.msra.mxu0 0.0
  %833 = vmatprep.subr.mxu0 0.0
  %834 = vmatpush2.msra.mxu0 0.0
  %835 = vmatprep.subr.mxu0 0.0
  %836 = vmatpush2.msra.mxu0 0.0
  %837 = vmatprep.subr.mxu0 0.0
  %838 = vmatpush2.msra.mxu0 0.0
  %839 = vmatprep.subr.mxu0 0.0
  %840 = vmatpush2.msra.mxu0 0.0
  %841 = vmatprep.subr.mxu0 0.0
  %842 = vmatpush2.msra.mxu0 0.0
  %843 = vmatprep.subr.mxu0 0.0
  %844 = vmatpush2.msra.mxu0 0.0
  %845 = vmatprep.mubr.f32.mxu0 0.0
  %846 = vmatmul.mubr.f32.gmra.mxu0 %v779
  %v847 = vpop.f32.mrf.mxu0
  %v848 = vadd.f32 %v777, %v847
  %v849 = vpop.f32.mrf.mxu0
  %850 = vdwg.mxu0
  %v851 = vxor.u32 %v771, 2147483648
  %v852 = vmul.f32 %v851, 1.442695
  %v853 = vpow.pop %v852
  %v854 = vadd.f32 %v853, 1.0
  %v855 = vrcp.pop %v854
  %v856 = vmul.f32 1.0, %v855
  %v857 = vxor.u32 %v848, 2147483648
  %v858 = vmul.f32 %v857, 1.442695
  %v859 = vpow.pop %v858
  %v860 = vadd.f32 %v859, 1.0
  %v861 = vrcp.pop %v860
  %v862 = vmul.f32 1.0, %v861
  %v863 = vmul.f32 %v856, %v672
  %v864 = vtanh.pop %v771
  %866 = vrot.lane.b32.xlu0 %v864, 32
  %v867 = vpop.permute.xlu0 %866
  %v869 = vmul.f32 %v856, %v867
  %871 = vrot.lane.b32.xlu0 %v869, 32
  %v872 = vpop.permute.xlu0 %871
  %v874 = vadd.f32 %v863, %v872
  %v875 = vmul.f32 %v862, %v684
  %v876 = vtanh.pop %v848
  %878 = vrot.lane.b32.xlu0 %v876, 32
  %v879 = vpop.permute.xlu0 %878
  %v881 = vmul.f32 %v862, %v879
  %883 = vrot.lane.b32.xlu0 %v881, 32
  %v884 = vpop.permute.xlu0 %883
  %v886 = vadd.f32 %v875, %v884
  %v887 = vtanh.pop %v874
  %889 = vrot.lane.b32.xlu0 %v887, 32
  %v890 = vpop.permute.xlu0 %889
  %v892 = vmul.f32 %v856, %v890
  %v893 = vtanh.pop %v886
  %895 = vrot.lane.b32.xlu0 %v893, 32
  %v896 = vpop.permute.xlu0 %895
  %v898 = vmul.f32 %v862, %v896
  %900 = vrot.lane.b32.xlu0 %v892, 64
  %v901 = vpop.permute.xlu0 %900
  %v902 = vrot.slane %v282, 6
  %v904 = vsel %vm208, %v901, 0
  %906 = vmatprep.subr.mxu0 0.0
  %907 = vmatpush1.msra.mxu0 0.0
  %908 = vmatprep.subr.mxu0 0.0
  %909 = vmatpush1.msra.mxu0 0.0
  %910 = vmatprep.subr.mxu0 0.0
  %911 = vmatpush1.msra.mxu0 0.0
  %912 = vmatprep.subr.mxu0 0.0
  %913 = vmatpush1.msra.mxu0 0.0
  %914 = vmatprep.subr.mxu0 0.0
  %915 = vmatpush1.msra.mxu0 0.0
  %916 = vmatprep.subr.mxu0 0.0
  %917 = vmatpush1.msra.mxu0 0.0
  %918 = vmatprep.subr.mxu0 0.0
  %919 = vmatpush1.msra.mxu0 0.0
  %920 = vmatprep.subr.mxu0 0.0
  %921 = vmatpush1.msra.mxu0 0.0
  %922 = vmatprep.subr.mxu0 0.0
  %923 = vmatpush1.msra.mxu0 0.0
  %924 = vmatprep.subr.mxu0 0.0
  %925 = vmatpush1.msra.mxu0 0.0
  %926 = vmatprep.subr.mxu0 0.0
  %927 = vmatpush1.msra.mxu0 0.0
  %928 = vmatprep.subr.mxu0 0.0
  %929 = vmatpush1.msra.mxu0 0.0
  %930 = vmatprep.subr.mxu0 0.0
  %931 = vmatpush1.msra.mxu0 %v295
  %932 = vmatprep.subr.mxu0 0.0
  %933 = vmatpush1.msra.mxu0 %v294
  %934 = vmatprep.subr.mxu0 0.0
  %935 = vmatpush1.msra.mxu0 %v293
  %936 = vmatprep.subr.mxu0 0.0
  %937 = vmatpush1.msra.mxu0 %v292
  %938 = vmatprep.subr.mxu0 0.0
  %939 = vmatpush2.msra.mxu0 0.0
  %940 = vmatprep.subr.mxu0 0.0
  %941 = vmatpush2.msra.mxu0 0.0
  %942 = vmatprep.subr.mxu0 0.0
  %943 = vmatpush2.msra.mxu0 0.0
  %944 = vmatprep.subr.mxu0 0.0
  %945 = vmatpush2.msra.mxu0 0.0
  %946 = vmatprep.subr.mxu0 0.0
  %947 = vmatpush2.msra.mxu0 0.0
  %948 = vmatprep.subr.mxu0 0.0
  %949 = vmatpush2.msra.mxu0 0.0
  %950 = vmatprep.subr.mxu0 0.0
  %951 = vmatpush2.msra.mxu0 0.0
  %952 = vmatprep.subr.mxu0 0.0
  %953 = vmatpush2.msra.mxu0 0.0
  %954 = vmatprep.subr.mxu0 0.0
  %955 = vmatpush2.msra.mxu0 0.0
  %956 = vmatprep.subr.mxu0 0.0
  %957 = vmatpush2.msra.mxu0 0.0
  %958 = vmatprep.subr.mxu0 0.0
  %959 = vmatpush2.msra.mxu0 0.0
  %960 = vmatprep.subr.mxu0 0.0
  %961 = vmatpush2.msra.mxu0 0.0
  %962 = vmatprep.subr.mxu0 0.0
  %963 = vmatpush2.msra.mxu0 0.0
  %964 = vmatprep.subr.mxu0 0.0
  %965 = vmatpush2.msra.mxu0 0.0
  %966 = vmatprep.subr.mxu0 0.0
  %967 = vmatpush2.msra.mxu0 0.0
  %968 = vmatprep.subr.mxu0 0.0
  %969 = vmatpush2.msra.mxu0 0.0
  %970 = vmatprep.mubr.f32.mxu0 0.0
  %971 = vmatmul.mubr.f32.gmra.mxu0 %v904
  %v972 = vpop.f32.mrf.mxu0
  %v973 = vadd.f32 %v902, %v972
  %v974 = vpop.f32.mrf.mxu0
  %975 = vdwg.mxu0
  %977 = vrot.lane.b32.xlu0 %v898, 64
  %v978 = vpop.permute.xlu0 %977
  %v979 = vsel %vm208, %v978, 0
  %981 = vmatprep.subr.mxu0 0.0
  %982 = vmatpush1.msra.mxu0 0.0
  %983 = vmatprep.subr.mxu0 0.0
  %984 = vmatpush1.msra.mxu0 0.0
  %985 = vmatprep.subr.mxu0 0.0
  %986 = vmatpush1.msra.mxu0 0.0
  %987 = vmatprep.subr.mxu0 0.0
  %988 = vmatpush1.msra.mxu0 0.0
  %989 = vmatprep.subr.mxu0 0.0
  %990 = vmatpush1.msra.mxu0 0.0
  %991 = vmatprep.subr.mxu0 0.0
  %992 = vmatpush1.msra.mxu0 0.0
  %993 = vmatprep.subr.mxu0 0.0
  %994 = vmatpush1.msra.mxu0 0.0
  %995 = vmatprep.subr.mxu0 0.0
  %996 = vmatpush1.msra.mxu0 0.0
  %997 = vmatprep.subr.mxu0 0.0
  %998 = vmatpush1.msra.mxu0 0.0
  %999 = vmatprep.subr.mxu0 0.0
  %1000 = vmatpush1.msra.mxu0 0.0
  %1001 = vmatprep.subr.mxu0 0.0
  %1002 = vmatpush1.msra.mxu0 0.0
  %1003 = vmatprep.subr.mxu0 0.0
  %1004 = vmatpush1.msra.mxu0 0.0
  %1005 = vmatprep.subr.mxu0 0.0
  %1006 = vmatpush1.msra.mxu0 %v299
  %1007 = vmatprep.subr.mxu0 0.0
  %1008 = vmatpush1.msra.mxu0 %v298
  %1009 = vmatprep.subr.mxu0 0.0
  %1010 = vmatpush1.msra.mxu0 %v297
  %1011 = vmatprep.subr.mxu0 0.0
  %1012 = vmatpush1.msra.mxu0 %v296
  %1013 = vmatprep.subr.mxu0 0.0
  %1014 = vmatpush2.msra.mxu0 0.0
  %1015 = vmatprep.subr.mxu0 0.0
  %1016 = vmatpush2.msra.mxu0 0.0
  %1017 = vmatprep.subr.mxu0 0.0
  %1018 = vmatpush2.msra.mxu0 0.0
  %1019 = vmatprep.subr.mxu0 0.0
  %1020 = vmatpush2.msra.mxu0 0.0
  %1021 = vmatprep.subr.mxu0 0.0
  %1022 = vmatpush2.msra.mxu0 0.0
  %1023 = vmatprep.subr.mxu0 0.0
  %1024 = vmatpush2.msra.mxu0 0.0
  %1025 = vmatprep.subr.mxu0 0.0
  %1026 = vmatpush2.msra.mxu0 0.0
  %1027 = vmatprep.subr.mxu0 0.0
  %1028 = vmatpush2.msra.mxu0 0.0
  %1029 = vmatprep.subr.mxu0 0.0
  %1030 = vmatpush2.msra.mxu0 0.0
  %1031 = vmatprep.subr.mxu0 0.0
  %1032 = vmatpush2.msra.mxu0 0.0
  %1033 = vmatprep.subr.mxu0 0.0
  %1034 = vmatpush2.msra.mxu0 0.0
  %1035 = vmatprep.subr.mxu0 0.0
  %1036 = vmatpush2.msra.mxu0 0.0
  %1037 = vmatprep.subr.mxu0 0.0
  %1038 = vmatpush2.msra.mxu0 0.0
  %1039 = vmatprep.subr.mxu0 0.0
  %1040 = vmatpush2.msra.mxu0 0.0
  %1041 = vmatprep.subr.mxu0 0.0
  %1042 = vmatpush2.msra.mxu0 0.0
  %1043 = vmatprep.subr.mxu0 0.0
  %1044 = vmatpush2.msra.mxu0 0.0
  %1045 = vmatprep.mubr.f32.mxu0 0.0
  %1046 = vmatmul.mubr.f32.gmra.mxu0 %v979
  %v1047 = vpop.f32.mrf.mxu0
  %v1048 = vadd.f32 %v290, %v1047
  %v1049 = vpop.f32.mrf.mxu0
  %1050 = vdwg.mxu0
  %v1051 = vxor.u32 %v973, 2147483648
  %v1052 = vmul.f32 %v1051, 1.442695
  %v1053 = vpow.pop %v1052
  %v1054 = vadd.f32 %v1053, 1.0
  %v1055 = vrcp.pop %v1054
  %v1056 = vmul.f32 1.0, %v1055
  %v1057 = vxor.u32 %v1048, 2147483648
  %v1058 = vmul.f32 %v1057, 1.442695
  %v1059 = vpow.pop %v1058
  %v1060 = vadd.f32 %v1059, 1.0
  %v1061 = vrcp.pop %v1060
  %v1062 = vmul.f32 1.0, %v1061
  %v1063 = vmul.f32 %v1056, %v874
  %v1064 = vtanh.pop %v973
  %1066 = vrot.lane.b32.xlu0 %v1064, 32
  %v1067 = vpop.permute.xlu0 %1066
  %v1069 = vmul.f32 %v1056, %v1067
  %1071 = vrot.lane.b32.xlu0 %v1069, 32
  %v1072 = vpop.permute.xlu0 %1071
  %v1074 = vadd.f32 %v1063, %v1072
  %v1075 = vmul.f32 %v1062, %v886
  %v1076 = vtanh.pop %v1048
  %1078 = vrot.lane.b32.xlu0 %v1076, 32
  %v1079 = vpop.permute.xlu0 %1078
  %v1081 = vmul.f32 %v1062, %v1079
  %1083 = vrot.lane.b32.xlu0 %v1081, 32
  %v1084 = vpop.permute.xlu0 %1083
  %v1086 = vadd.f32 %v1075, %v1084
  %v1087 = vtanh.pop %v1074
  %1089 = vrot.lane.b32.xlu0 %v1087, 32
  %v1090 = vpop.permute.xlu0 %1089
  %v1092 = vmul.f32 %v1056, %v1090
  %v1093 = vtanh.pop %v1086
  %1095 = vrot.lane.b32.xlu0 %v1093, 32
  %v1096 = vpop.permute.xlu0 %1095
  %v1098 = vmul.f32 %v1062, %v1096
  %1100 = vrot.lane.b32.xlu0 %v1092, 64
  %v1101 = vpop.permute.xlu0 %1100
  %v1102 = vsel %vm208, %v1101, 0
  %1104 = vmatprep.subr.mxu0 0.0
  %1105 = vmatpush1.msra.mxu0 0.0
  %1106 = vmatprep.subr.mxu0 0.0
  %1107 = vmatpush1.msra.mxu0 0.0
  %1108 = vmatprep.subr.mxu0 0.0
  %1109 = vmatpush1.msra.mxu0 0.0
  %1110 = vmatprep.subr.mxu0 0.0
  %1111 = vmatpush1.msra.mxu0 0.0
  %1112 = vmatprep.subr.mxu0 0.0
  %1113 = vmatpush1.msra.mxu0 0.0
  %1114 = vmatprep.subr.mxu0 0.0
  %1115 = vmatpush1.msra.mxu0 0.0
  %1116 = vmatprep.subr.mxu0 0.0
  %1117 = vmatpush1.msra.mxu0 0.0
  %1118 = vmatprep.subr.mxu0 0.0
  %1119 = vmatpush1.msra.mxu0 0.0
  %1120 = vmatprep.subr.mxu0 0.0
  %1121 = vmatpush1.msra.mxu0 0.0
  %1122 = vmatprep.subr.mxu0 0.0
  %1123 = vmatpush1.msra.mxu0 0.0
  %1124 = vmatprep.subr.mxu0 0.0
  %1125 = vmatpush1.msra.mxu0 0.0
  %1126 = vmatprep.subr.mxu0 0.0
  %1127 = vmatpush1.msra.mxu0 0.0
  %1128 = vmatprep.subr.mxu0 0.0
  %1129 = vmatpush1.msra.mxu0 %v295
  %1130 = vmatprep.subr.mxu0 0.0
  %1131 = vmatpush1.msra.mxu0 %v294
  %1132 = vmatprep.subr.mxu0 0.0
  %1133 = vmatpush1.msra.mxu0 %v293
  %1134 = vmatprep.subr.mxu0 0.0
  %1135 = vmatpush1.msra.mxu0 %v292
  %1136 = vmatprep.subr.mxu0 0.0
  %1137 = vmatpush2.msra.mxu0 0.0
  %1138 = vmatprep.subr.mxu0 0.0
  %1139 = vmatpush2.msra.mxu0 0.0
  %1140 = vmatprep.subr.mxu0 0.0
  %1141 = vmatpush2.msra.mxu0 0.0
  %1142 = vmatprep.subr.mxu0 0.0
  %1143 = vmatpush2.msra.mxu0 0.0
  %1144 = vmatprep.subr.mxu0 0.0
  %1145 = vmatpush2.msra.mxu0 0.0
  %1146 = vmatprep.subr.mxu0 0.0
  %1147 = vmatpush2.msra.mxu0 0.0
  %1148 = vmatprep.subr.mxu0 0.0
  %1149 = vmatpush2.msra.mxu0 0.0
  %1150 = vmatprep.subr.mxu0 0.0
  %1151 = vmatpush2.msra.mxu0 0.0
  %1152 = vmatprep.subr.mxu0 0.0
  %1153 = vmatpush2.msra.mxu0 0.0
  %1154 = vmatprep.subr.mxu0 0.0
  %1155 = vmatpush2.msra.mxu0 0.0
  %1156 = vmatprep.subr.mxu0 0.0
  %1157 = vmatpush2.msra.mxu0 0.0
  %1158 = vmatprep.subr.mxu0 0.0
  %1159 = vmatpush2.msra.mxu0 0.0
  %1160 = vmatprep.subr.mxu0 0.0
  %1161 = vmatpush2.msra.mxu0 0.0
  %1162 = vmatprep.subr.mxu0 0.0
  %1163 = vmatpush2.msra.mxu0 0.0
  %1164 = vmatprep.subr.mxu0 0.0
  %1165 = vmatpush2.msra.mxu0 0.0
  %1166 = vmatprep.subr.mxu0 0.0
  %1167 = vmatpush2.msra.mxu0 0.0
  %1168 = vmatprep.mubr.f32.mxu0 0.0
  %1169 = vmatmul.mubr.f32.gmra.mxu0 %v1102
  %v1170 = vpop.f32.mrf.mxu0
  %v1171 = vadd.f32 %v288, %v1170
  %v1172 = vpop.f32.mrf.mxu0
  %1173 = vdwg.mxu0
  %1175 = vrot.lane.b32.xlu0 %v1098, 64
  %v1176 = vpop.permute.xlu0 %1175
  %v1178 = vrot.slane %v284, 6
  %v1180 = vsel %vm208, %v1176, 0
  %1182 = vmatprep.subr.mxu0 0.0
  %1183 = vmatpush1.msra.mxu0 0.0
  %1184 = vmatprep.subr.mxu0 0.0
  %1185 = vmatpush1.msra.mxu0 0.0
  %1186 = vmatprep.subr.mxu0 0.0
  %1187 = vmatpush1.msra.mxu0 0.0
  %1188 = vmatprep.subr.mxu0 0.0
  %1189 = vmatpush1.msra.mxu0 0.0
  %1190 = vmatprep.subr.mxu0 0.0
  %1191 = vmatpush1.msra.mxu0 0.0
  %1192 = vmatprep.subr.mxu0 0.0
  %1193 = vmatpush1.msra.mxu0 0.0
  %1194 = vmatprep.subr.mxu0 0.0
  %1195 = vmatpush1.msra.mxu0 0.0
  %1196 = vmatprep.subr.mxu0 0.0
  %1197 = vmatpush1.msra.mxu0 0.0
  %1198 = vmatprep.subr.mxu0 0.0
  %1199 = vmatpush1.msra.mxu0 0.0
  %1200 = vmatprep.subr.mxu0 0.0
  %1201 = vmatpush1.msra.mxu0 0.0
  %1202 = vmatprep.subr.mxu0 0.0
  %1203 = vmatpush1.msra.mxu0 0.0
  %1204 = vmatprep.subr.mxu0 0.0
  %1205 = vmatpush1.msra.mxu0 0.0
  %1206 = vmatprep.subr.mxu0 0.0
  %1207 = vmatpush1.msra.mxu0 %v299
  %1208 = vmatprep.subr.mxu0 0.0
  %1209 = vmatpush1.msra.mxu0 %v298
  %1210 = vmatprep.subr.mxu0 0.0
  %1211 = vmatpush1.msra.mxu0 %v297
  %1212 = vmatprep.subr.mxu0 0.0
  %1213 = vmatpush1.msra.mxu0 %v296
  %1214 = vmatprep.subr.mxu0 0.0
  %1215 = vmatpush2.msra.mxu0 0.0
  %1216 = vmatprep.subr.mxu0 0.0
  %1217 = vmatpush2.msra.mxu0 0.0
  %1218 = vmatprep.subr.mxu0 0.0
  %1219 = vmatpush2.msra.mxu0 0.0
  %1220 = vmatprep.subr.mxu0 0.0
  %1221 = vmatpush2.msra.mxu0 0.0
  %1222 = vmatprep.subr.mxu0 0.0
  %1223 = vmatpush2.msra.mxu0 0.0
  %1224 = vmatprep.subr.mxu0 0.0
  %1225 = vmatpush2.msra.mxu0 0.0
  %1226 = vmatprep.subr.mxu0 0.0
  %1227 = vmatpush2.msra.mxu0 0.0
  %1228 = vmatprep.subr.mxu0 0.0
  %1229 = vmatpush2.msra.mxu0 0.0
  %1230 = vmatprep.subr.mxu0 0.0
  %1231 = vmatpush2.msra.mxu0 0.0
  %1232 = vmatprep.subr.mxu0 0.0
  %1233 = vmatpush2.msra.mxu0 0.0
  %1234 = vmatprep.subr.mxu0 0.0
  %1235 = vmatpush2.msra.mxu0 0.0
  %1236 = vmatprep.subr.mxu0 0.0
  %1237 = vmatpush2.msra.mxu0 0.0
  %1238 = vmatprep.subr.mxu0 0.0
  %1239 = vmatpush2.msra.mxu0 0.0
  %1240 = vmatprep.subr.mxu0 0.0
  %1241 = vmatpush2.msra.mxu0 0.0
  %1242 = vmatprep.subr.mxu0 0.0
  %1243 = vmatpush2.msra.mxu0 0.0
  %1244 = vmatprep.subr.mxu0 0.0
  %1245 = vmatpush2.msra.mxu0 0.0
  %1246 = vmatprep.mubr.f32.mxu0 0.0
  %1247 = vmatmul.mubr.f32.gmra.mxu0 %v1180
  %v1248 = vpop.f32.mrf.mxu0
  %v1249 = vadd.f32 %v1178, %v1248
  %v1250 = vpop.f32.mrf.mxu0
  %1251 = vdwg.mxu0
  %v1252 = vxor.u32 %v1171, 2147483648
  %v1253 = vmul.f32 %v1252, 1.442695
  %v1254 = vpow.pop %v1253
  %v1255 = vadd.f32 %v1254, 1.0
  %v1256 = vrcp.pop %v1255
  %v1257 = vmul.f32 1.0, %v1256
  %v1258 = vxor.u32 %v1249, 2147483648
  %v1259 = vmul.f32 %v1258, 1.442695
  %v1260 = vpow.pop %v1259
  %v1261 = vadd.f32 %v1260, 1.0
  %v1262 = vrcp.pop %v1261
  %v1263 = vmul.f32 1.0, %v1262
  %v1264 = vmul.f32 %v1257, %v1074
  %v1265 = vtanh.pop %v1171
  %1267 = vrot.lane.b32.xlu0 %v1265, 32
  %v1268 = vpop.permute.xlu0 %1267
  %v1270 = vmul.f32 %v1257, %v1268
  %1272 = vrot.lane.b32.xlu0 %v1270, 32
  %v1273 = vpop.permute.xlu0 %1272
  %v1275 = vadd.f32 %v1264, %v1273
  %v1276 = vmul.f32 %v1263, %v1086
  %v1277 = vtanh.pop %v1249
  %1279 = vrot.lane.b32.xlu0 %v1277, 32
  %v1280 = vpop.permute.xlu0 %1279
  %v1282 = vmul.f32 %v1263, %v1280
  %1284 = vrot.lane.b32.xlu0 %v1282, 32
  %v1285 = vpop.permute.xlu0 %1284
  %v1287 = vadd.f32 %v1276, %v1285
  %v1288 = vtanh.pop %v1275
  %1290 = vrot.lane.b32.xlu0 %v1288, 32
  %v1291 = vpop.permute.xlu0 %1290
  %v1293 = vmul.f32 %v1257, %v1291
  %v1294 = vtanh.pop %v1287
  %1296 = vrot.lane.b32.xlu0 %v1294, 32
  %v1297 = vpop.permute.xlu0 %1296
  %v1299 = vmul.f32 %v1263, %v1297
  %1301 = vrot.lane.b32.xlu0 %v1293, 64
  %v1302 = vpop.permute.xlu0 %1301
  %v1304 = vrot.slane %v288, 2
  %v1306 = vsel %vm208, %v1302, 0
  %1308 = vmatprep.subr.mxu0 0.0
  %1309 = vmatpush1.msra.mxu0 0.0
  %1310 = vmatprep.subr.mxu0 0.0
  %1311 = vmatpush1.msra.mxu0 0.0
  %1312 = vmatprep.subr.mxu0 0.0
  %1313 = vmatpush1.msra.mxu0 0.0
  %1314 = vmatprep.subr.mxu0 0.0
  %1315 = vmatpush1.msra.mxu0 0.0
  %1316 = vmatprep.subr.mxu0 0.0
  %1317 = vmatpush1.msra.mxu0 0.0
  %1318 = vmatprep.subr.mxu0 0.0
  %1319 = vmatpush1.msra.mxu0 0.0
  %1320 = vmatprep.subr.mxu0 0.0
  %1321 = vmatpush1.msra.mxu0 0.0
  %1322 = vmatprep.subr.mxu0 0.0
  %1323 = vmatpush1.msra.mxu0 0.0
  %1324 = vmatprep.subr.mxu0 0.0
  %1325 = vmatpush1.msra.mxu0 0.0
  %1326 = vmatprep.subr.mxu0 0.0
  %1327 = vmatpush1.msra.mxu0 0.0
  %1328 = vmatprep.subr.mxu0 0.0
  %1329 = vmatpush1.msra.mxu0 0.0
  %1330 = vmatprep.subr.mxu0 0.0
  %1331 = vmatpush1.msra.mxu0 0.0
  %1332 = vmatprep.subr.mxu0 0.0
  %1333 = vmatpush1.msra.mxu0 %v295
  %1334 = vmatprep.subr.mxu0 0.0
  %1335 = vmatpush1.msra.mxu0 %v294
  %1336 = vmatprep.subr.mxu0 0.0
  %1337 = vmatpush1.msra.mxu0 %v293
  %1338 = vmatprep.subr.mxu0 0.0
  %1339 = vmatpush1.msra.mxu0 %v292
  %1340 = vmatprep.subr.mxu0 0.0
  %1341 = vmatpush2.msra.mxu0 0.0
  %1342 = vmatprep.subr.mxu0 0.0
  %1343 = vmatpush2.msra.mxu0 0.0
  %1344 = vmatprep.subr.mxu0 0.0
  %1345 = vmatpush2.msra.mxu0 0.0
  %1346 = vmatprep.subr.mxu0 0.0
  %1347 = vmatpush2.msra.mxu0 0.0
  %1348 = vmatprep.subr.mxu0 0.0
  %1349 = vmatpush2.msra.mxu0 0.0
  %1350 = vmatprep.subr.mxu0 0.0
  %1351 = vmatpush2.msra.mxu0 0.0
  %1352 = vmatprep.subr.mxu0 0.0
  %1353 = vmatpush2.msra.mxu0 0.0
  %1354 = vmatprep.subr.mxu0 0.0
  %1355 = vmatpush2.msra.mxu0 0.0
  %1356 = vmatprep.subr.mxu0 0.0
  %1357 = vmatpush2.msra.mxu0 0.0
  %1358 = vmatprep.subr.mxu0 0.0
  %1359 = vmatpush2.msra.mxu0 0.0
  %1360 = vmatprep.subr.mxu0 0.0
  %1361 = vmatpush2.msra.mxu0 0.0
  %1362 = vmatprep.subr.mxu0 0.0
  %1363 = vmatpush2.msra.mxu0 0.0
  %1364 = vmatprep.subr.mxu0 0.0
  %1365 = vmatpush2.msra.mxu0 0.0
  %1366 = vmatprep.subr.mxu0 0.0
  %1367 = vmatpush2.msra.mxu0 0.0
  %1368 = vmatprep.subr.mxu0 0.0
  %1369 = vmatpush2.msra.mxu0 0.0
  %1370 = vmatprep.subr.mxu0 0.0
  %1371 = vmatpush2.msra.mxu0 0.0
  %1372 = vmatprep.mubr.f32.mxu0 0.0
  %1373 = vmatmul.mubr.f32.gmra.mxu0 %v1306
  %v1374 = vpop.f32.mrf.mxu0
  %v1375 = vadd.f32 %v1304, %v1374
  %v1376 = vpop.f32.mrf.mxu0
  %1377 = vdwg.mxu0
  %1379 = vrot.lane.b32.xlu0 %v1299, 64
  %v1380 = vpop.permute.xlu0 %1379
  %v1381 = vrot.slane %v284, 4
  %v1383 = vsel %vm208, %v1380, 0
  %1385 = vmatprep.subr.mxu0 0.0
  %1386 = vmatpush1.msra.mxu0 0.0
  %1387 = vmatprep.subr.mxu0 0.0
  %1388 = vmatpush1.msra.mxu0 0.0
  %1389 = vmatprep.subr.mxu0 0.0
  %1390 = vmatpush1.msra.mxu0 0.0
  %1391 = vmatprep.subr.mxu0 0.0
  %1392 = vmatpush1.msra.mxu0 0.0
  %1393 = vmatprep.subr.mxu0 0.0
  %1394 = vmatpush1.msra.mxu0 0.0
  %1395 = vmatprep.subr.mxu0 0.0
  %1396 = vmatpush1.msra.mxu0 0.0
  %1397 = vmatprep.subr.mxu0 0.0
  %1398 = vmatpush1.msra.mxu0 0.0
  %1399 = vmatprep.subr.mxu0 0.0
  %1400 = vmatpush1.msra.mxu0 0.0
  %1401 = vmatprep.subr.mxu0 0.0
  %1402 = vmatpush1.msra.mxu0 0.0
  %1403 = vmatprep.subr.mxu0 0.0
  %1404 = vmatpush1.msra.mxu0 0.0
  %1405 = vmatprep.subr.mxu0 0.0
  %1406 = vmatpush1.msra.mxu0 0.0
  %1407 = vmatprep.subr.mxu0 0.0
  %1408 = vmatpush1.msra.mxu0 0.0
  %1409 = vmatprep.subr.mxu0 0.0
  %1410 = vmatpush1.msra.mxu0 %v299
  %1411 = vmatprep.subr.mxu0 0.0
  %1412 = vmatpush1.msra.mxu0 %v298
  %1413 = vmatprep.subr.mxu0 0.0
  %1414 = vmatpush1.msra.mxu0 %v297
  %1415 = vmatprep.subr.mxu0 0.0
  %1416 = vmatpush1.msra.mxu0 %v296
  %1417 = vmatprep.subr.mxu0 0.0
  %1418 = vmatpush2.msra.mxu0 0.0
  %1419 = vmatprep.subr.mxu0 0.0
  %1420 = vmatpush2.msra.mxu0 0.0
  %1421 = vmatprep.subr.mxu0 0.0
  %1422 = vmatpush2.msra.mxu0 0.0
  %1423 = vmatprep.subr.mxu0 0.0
  %1424 = vmatpush2.msra.mxu0 0.0
  %1425 = vmatprep.subr.mxu0 0.0
  %1426 = vmatpush2.msra.mxu0 0.0
  %1427 = vmatprep.subr.mxu0 0.0
  %1428 = vmatpush2.msra.mxu0 0.0
  %1429 = vmatprep.subr.mxu0 0.0
  %1430 = vmatpush2.msra.mxu0 0.0
  %1431 = vmatprep.subr.mxu0 0.0
  %1432 = vmatpush2.msra.mxu0 0.0
  %1433 = vmatprep.subr.mxu0 0.0
  %1434 = vmatpush2.msra.mxu0 0.0
  %1435 = vmatprep.subr.mxu0 0.0
  %1436 = vmatpush2.msra.mxu0 0.0
  %1437 = vmatprep.subr.mxu0 0.0
  %1438 = vmatpush2.msra.mxu0 0.0
  %1439 = vmatprep.subr.mxu0 0.0
  %1440 = vmatpush2.msra.mxu0 0.0
  %1441 = vmatprep.subr.mxu0 0.0
  %1442 = vmatpush2.msra.mxu0 0.0
  %1443 = vmatprep.subr.mxu0 0.0
  %1444 = vmatpush2.msra.mxu0 0.0
  %1445 = vmatprep.subr.mxu0 0.0
  %1446 = vmatpush2.msra.mxu0 0.0
  %1447 = vmatprep.subr.mxu0 0.0
  %1448 = vmatpush2.msra.mxu0 0.0
  %1449 = vmatprep.mubr.f32.mxu0 0.0
  %1450 = vmatmul.mubr.f32.gmra.mxu0 %v1383
  %v1451 = vpop.f32.mrf.mxu0
  %v1452 = vadd.f32 %v1381, %v1451
  %v1453 = vpop.f32.mrf.mxu0
  %1454 = vdwg.mxu0
  %v1455 = vxor.u32 %v1375, 2147483648
  %v1456 = vmul.f32 %v1455, 1.442695
  %v1457 = vpow.pop %v1456
  %v1458 = vadd.f32 %v1457, 1.0
  %v1459 = vrcp.pop %v1458
  %v1460 = vmul.f32 1.0, %v1459
  %v1461 = vxor.u32 %v1452, 2147483648
  %v1462 = vmul.f32 %v1461, 1.442695
  %v1463 = vpow.pop %v1462
  %v1464 = vadd.f32 %v1463, 1.0
  %v1465 = vrcp.pop %v1464
  %v1466 = vmul.f32 1.0, %v1465
  %v1467 = vmul.f32 %v1460, %v1275
  %v1468 = vtanh.pop %v1375
  %1470 = vrot.lane.b32.xlu0 %v1468, 32
  %v1471 = vpop.permute.xlu0 %1470
  %v1473 = vmul.f32 %v1460, %v1471
  %1475 = vrot.lane.b32.xlu0 %v1473, 32
  %v1476 = vpop.permute.xlu0 %1475
  %v1478 = vadd.f32 %v1467, %v1476
  %v1479 = vmul.f32 %v1466, %v1287
  %v1480 = vtanh.pop %v1452
  %1482 = vrot.lane.b32.xlu0 %v1480, 32
  %v1483 = vpop.permute.xlu0 %1482
  %v1485 = vmul.f32 %v1466, %v1483
  %1487 = vrot.lane.b32.xlu0 %v1485, 32
  %v1488 = vpop.permute.xlu0 %1487
  %v1490 = vadd.f32 %v1479, %v1488
  %v1491 = vtanh.pop %v1478
  %1493 = vrot.lane.b32.xlu0 %v1491, 32
  %v1494 = vpop.permute.xlu0 %1493
  %v1496 = vmul.f32 %v1460, %v1494
  %v1497 = vtanh.pop %v1490
  %1499 = vrot.lane.b32.xlu0 %v1497, 32
  %v1500 = vpop.permute.xlu0 %1499
  %v1502 = vmul.f32 %v1466, %v1500
  %1504 = vrot.lane.b32.xlu0 %v1496, 64
  %v1505 = vpop.permute.xlu0 %1504
  %v1506 = vrot.slane %v288, 4
  %v1508 = vsel %vm208, %v1505, 0
  %1510 = vmatprep.subr.mxu0 0.0
  %1511 = vmatpush1.msra.mxu0 0.0
  %1512 = vmatprep.subr.mxu0 0.0
  %1513 = vmatpush1.msra.mxu0 0.0
  %1514 = vmatprep.subr.mxu0 0.0
  %1515 = vmatpush1.msra.mxu0 0.0
  %1516 = vmatprep.subr.mxu0 0.0
  %1517 = vmatpush1.msra.mxu0 0.0
  %1518 = vmatprep.subr.mxu0 0.0
  %1519 = vmatpush1.msra.mxu0 0.0
  %1520 = vmatprep.subr.mxu0 0.0
  %1521 = vmatpush1.msra.mxu0 0.0
  %1522 = vmatprep.subr.mxu0 0.0
  %1523 = vmatpush1.msra.mxu0 0.0
  %1524 = vmatprep.subr.mxu0 0.0
  %1525 = vmatpush1.msra.mxu0 0.0
  %1526 = vmatprep.subr.mxu0 0.0
  %1527 = vmatpush1.msra.mxu0 0.0
  %1528 = vmatprep.subr.mxu0 0.0
  %1529 = vmatpush1.msra.mxu0 0.0
  %1530 = vmatprep.subr.mxu0 0.0
  %1531 = vmatpush1.msra.mxu0 0.0
  %1532 = vmatprep.subr.mxu0 0.0
  %1533 = vmatpush1.msra.mxu0 0.0
  %1534 = vmatprep.subr.mxu0 0.0
  %1535 = vmatpush1.msra.mxu0 %v295
  %1536 = vmatprep.subr.mxu0 0.0
  %1537 = vmatpush1.msra.mxu0 %v294
  %1538 = vmatprep.subr.mxu0 0.0
  %1539 = vmatpush1.msra.mxu0 %v293
  %1540 = vmatprep.subr.mxu0 0.0
  %1541 = vmatpush1.msra.mxu0 %v292
  %1542 = vmatprep.subr.mxu0 0.0
  %1543 = vmatpush2.msra.mxu0 0.0
  %1544 = vmatprep.subr.mxu0 0.0
  %1545 = vmatpush2.msra.mxu0 0.0
  %1546 = vmatprep.subr.mxu0 0.0
  %1547 = vmatpush2.msra.mxu0 0.0
  %1548 = vmatprep.subr.mxu0 0.0
  %1549 = vmatpush2.msra.mxu0 0.0
  %1550 = vmatprep.subr.mxu0 0.0
  %1551 = vmatpush2.msra.mxu0 0.0
  %1552 = vmatprep.subr.mxu0 0.0
  %1553 = vmatpush2.msra.mxu0 0.0
  %1554 = vmatprep.subr.mxu0 0.0
  %1555 = vmatpush2.msra.mxu0 0.0
  %1556 = vmatprep.subr.mxu0 0.0
  %1557 = vmatpush2.msra.mxu0 0.0
  %1558 = vmatprep.subr.mxu0 0.0
  %1559 = vmatpush2.msra.mxu0 0.0
  %1560 = vmatprep.subr.mxu0 0.0
  %1561 = vmatpush2.msra.mxu0 0.0
  %1562 = vmatprep.subr.mxu0 0.0
  %1563 = vmatpush2.msra.mxu0 0.0
  %1564 = vmatprep.subr.mxu0 0.0
  %1565 = vmatpush2.msra.mxu0 0.0
  %1566 = vmatprep.subr.mxu0 0.0
  %1567 = vmatpush2.msra.mxu0 0.0
  %1568 = vmatprep.subr.mxu0 0.0
  %1569 = vmatpush2.msra.mxu0 0.0
  %1570 = vmatprep.subr.mxu0 0.0
  %1571 = vmatpush2.msra.mxu0 0.0
  %1572 = vmatprep.subr.mxu0 0.0
  %1573 = vmatpush2.msra.mxu0 0.0
  %1574 = vmatprep.mubr.f32.mxu0 0.0
  %1575 = vmatmul.mubr.f32.gmra.mxu0 %v1508
  %v1576 = vpop.f32.mrf.mxu0
  %v1577 = vadd.f32 %v1506, %v1576
  %v1578 = vpop.f32.mrf.mxu0
  %1579 = vdwg.mxu0
  %1581 = vrot.lane.b32.xlu0 %v1502, 64
  %v1582 = vpop.permute.xlu0 %1581
  %v1583 = vrot.slane %v284, 2
  %v1585 = vsel %vm208, %v1582, 0
  %1587 = vmatprep.subr.mxu0 0.0
  %1588 = vmatpush1.msra.mxu0 0.0
  %1589 = vmatprep.subr.mxu0 0.0
  %1590 = vmatpush1.msra.mxu0 0.0
  %1591 = vmatprep.subr.mxu0 0.0
  %1592 = vmatpush1.msra.mxu0 0.0
  %1593 = vmatprep.subr.mxu0 0.0
  %1594 = vmatpush1.msra.mxu0 0.0
  %1595 = vmatprep.subr.mxu0 0.0
  %1596 = vmatpush1.msra.mxu0 0.0
  %1597 = vmatprep.subr.mxu0 0.0
  %1598 = vmatpush1.msra.mxu0 0.0
  %1599 = vmatprep.subr.mxu0 0.0
  %1600 = vmatpush1.msra.mxu0 0.0
  %1601 = vmatprep.subr.mxu0 0.0
  %1602 = vmatpush1.msra.mxu0 0.0
  %1603 = vmatprep.subr.mxu0 0.0
  %1604 = vmatpush1.msra.mxu0 0.0
  %1605 = vmatprep.subr.mxu0 0.0
  %1606 = vmatpush1.msra.mxu0 0.0
  %1607 = vmatprep.subr.mxu0 0.0
  %1608 = vmatpush1.msra.mxu0 0.0
  %1609 = vmatprep.subr.mxu0 0.0
  %1610 = vmatpush1.msra.mxu0 0.0
  %1611 = vmatprep.subr.mxu0 0.0
  %1612 = vmatpush1.msra.mxu0 %v299
  %1613 = vmatprep.subr.mxu0 0.0
  %1614 = vmatpush1.msra.mxu0 %v298
  %1615 = vmatprep.subr.mxu0 0.0
  %1616 = vmatpush1.msra.mxu0 %v297
  %1617 = vmatprep.subr.mxu0 0.0
  %1618 = vmatpush1.msra.mxu0 %v296
  %1619 = vmatprep.subr.mxu0 0.0
  %1620 = vmatpush2.msra.mxu0 0.0
  %1621 = vmatprep.subr.mxu0 0.0
  %1622 = vmatpush2.msra.mxu0 0.0
  %1623 = vmatprep.subr.mxu0 0.0
  %1624 = vmatpush2.msra.mxu0 0.0
  %1625 = vmatprep.subr.mxu0 0.0
  %1626 = vmatpush2.msra.mxu0 0.0
  %1627 = vmatprep.subr.mxu0 0.0
  %1628 = vmatpush2.msra.mxu0 0.0
  %1629 = vmatprep.subr.mxu0 0.0
  %1630 = vmatpush2.msra.mxu0 0.0
  %1631 = vmatprep.subr.mxu0 0.0
  %1632 = vmatpush2.msra.mxu0 0.0
  %1633 = vmatprep.subr.mxu0 0.0
  %1634 = vmatpush2.msra.mxu0 0.0
  %1635 = vmatprep.subr.mxu0 0.0
  %1636 = vmatpush2.msra.mxu0 0.0
  %1637 = vmatprep.subr.mxu0 0.0
  %1638 = vmatpush2.msra.mxu0 0.0
  %1639 = vmatprep.subr.mxu0 0.0
  %1640 = vmatpush2.msra.mxu0 0.0
  %1641 = vmatprep.subr.mxu0 0.0
  %1642 = vmatpush2.msra.mxu0 0.0
  %1643 = vmatprep.subr.mxu0 0.0
  %1644 = vmatpush2.msra.mxu0 0.0
  %1645 = vmatprep.subr.mxu0 0.0
  %1646 = vmatpush2.msra.mxu0 0.0
  %1647 = vmatprep.subr.mxu0 0.0
  %1648 = vmatpush2.msra.mxu0 0.0
  %1649 = vmatprep.subr.mxu0 0.0
  %1650 = vmatpush2.msra.mxu0 0.0
  %1651 = vmatprep.mubr.f32.mxu0 0.0
  %1652 = vmatmul.mubr.f32.gmra.mxu0 %v1585
  %v1653 = vpop.f32.mrf.mxu0
  %v1654 = vadd.f32 %v1583, %v1653
  %v1655 = vpop.f32.mrf.mxu0
  %1656 = vdwg.mxu0
  %v1657 = vxor.u32 %v1577, 2147483648
  %v1658 = vmul.f32 %v1657, 1.442695
  %v1659 = vpow.pop %v1658
  %v1660 = vadd.f32 %v1659, 1.0
  %v1661 = vrcp.pop %v1660
  %v1662 = vmul.f32 1.0, %v1661
  %v1663 = vxor.u32 %v1654, 2147483648
  %v1664 = vmul.f32 %v1663, 1.442695
  %v1665 = vpow.pop %v1664
  %v1666 = vadd.f32 %v1665, 1.0
  %v1667 = vrcp.pop %v1666
  %v1668 = vmul.f32 1.0, %v1667
  %v1669 = vmul.f32 %v1662, %v1478
  %v1670 = vtanh.pop %v1577
  %1672 = vrot.lane.b32.xlu0 %v1670, 32
  %v1673 = vpop.permute.xlu0 %1672
  %v1675 = vmul.f32 %v1662, %v1673
  %1677 = vrot.lane.b32.xlu0 %v1675, 32
  %v1678 = vpop.permute.xlu0 %1677
  %v1680 = vadd.f32 %v1669, %v1678
  %v1681 = vmul.f32 %v1668, %v1490
  %v1682 = vtanh.pop %v1654
  %1684 = vrot.lane.b32.xlu0 %v1682, 32
  %v1685 = vpop.permute.xlu0 %1684
  %v1687 = vmul.f32 %v1668, %v1685
  %1689 = vrot.lane.b32.xlu0 %v1687, 32
  %v1690 = vpop.permute.xlu0 %1689
  %v1692 = vadd.f32 %v1681, %v1690
  %v1693 = vtanh.pop %v1680
  %1695 = vrot.lane.b32.xlu0 %v1693, 32
  %v1696 = vpop.permute.xlu0 %1695
  %v1698 = vmul.f32 %v1662, %v1696
  %v1699 = vtanh.pop %v1692
  %1701 = vrot.lane.b32.xlu0 %v1699, 32
  %v1702 = vpop.permute.xlu0 %1701
  %v1704 = vmul.f32 %v1668, %v1702
  %1706 = vrot.lane.b32.xlu0 %v1698, 64
  %v1707 = vpop.permute.xlu0 %1706
  %v1708 = vrot.slane %v288, 6
  %v1710 = vsel %vm208, %v1707, 0
  %1712 = vmatprep.subr.mxu0 0.0
  %1713 = vmatpush1.msra.mxu0 0.0
  %1714 = vmatprep.subr.mxu0 0.0
  %1715 = vmatpush1.msra.mxu0 0.0
  %1716 = vmatprep.subr.mxu0 0.0
  %1717 = vmatpush1.msra.mxu0 0.0
  %1718 = vmatprep.subr.mxu0 0.0
  %1719 = vmatpush1.msra.mxu0 0.0
  %1720 = vmatprep.subr.mxu0 0.0
  %1721 = vmatpush1.msra.mxu0 0.0
  %1722 = vmatprep.subr.mxu0 0.0
  %1723 = vmatpush1.msra.mxu0 0.0
  %1724 = vmatprep.subr.mxu0 0.0
  %1725 = vmatpush1.msra.mxu0 0.0
  %1726 = vmatprep.subr.mxu0 0.0
  %1727 = vmatpush1.msra.mxu0 0.0
  %1728 = vmatprep.subr.mxu0 0.0
  %1729 = vmatpush1.msra.mxu0 0.0
  %1730 = vmatprep.subr.mxu0 0.0
  %1731 = vmatpush1.msra.mxu0 0.0
  %1732 = vmatprep.subr.mxu0 0.0
  %1733 = vmatpush1.msra.mxu0 0.0
  %1734 = vmatprep.subr.mxu0 0.0
  %1735 = vmatpush1.msra.mxu0 0.0
  %1736 = vmatprep.subr.mxu0 0.0
  %1737 = vmatpush1.msra.mxu0 %v295
  %1738 = vmatprep.subr.mxu0 0.0
  %1739 = vmatpush1.msra.mxu0 %v294
  %1740 = vmatprep.subr.mxu0 0.0
  %1741 = vmatpush1.msra.mxu0 %v293
  %1742 = vmatprep.subr.mxu0 0.0
  %1743 = vmatpush1.msra.mxu0 %v292
  %1744 = vmatprep.subr.mxu0 0.0
  %1745 = vmatpush2.msra.mxu0 0.0
  %1746 = vmatprep.subr.mxu0 0.0
  %1747 = vmatpush2.msra.mxu0 0.0
  %1748 = vmatprep.subr.mxu0 0.0
  %1749 = vmatpush2.msra.mxu0 0.0
  %1750 = vmatprep.subr.mxu0 0.0
  %1751 = vmatpush2.msra.mxu0 0.0
  %1752 = vmatprep.subr.mxu0 0.0
  %1753 = vmatpush2.msra.mxu0 0.0
  %1754 = vmatprep.subr.mxu0 0.0
  %1755 = vmatpush2.msra.mxu0 0.0
  %1756 = vmatprep.subr.mxu0 0.0
  %1757 = vmatpush2.msra.mxu0 0.0
  %1758 = vmatprep.subr.mxu0 0.0
  %1759 = vmatpush2.msra.mxu0 0.0
  %1760 = vmatprep.subr.mxu0 0.0
  %1761 = vmatpush2.msra.mxu0 0.0
  %1762 = vmatprep.subr.mxu0 0.0
  %1763 = vmatpush2.msra.mxu0 0.0
  %1764 = vmatprep.subr.mxu0 0.0
  %1765 = vmatpush2.msra.mxu0 0.0
  %1766 = vmatprep.subr.mxu0 0.0
  %1767 = vmatpush2.msra.mxu0 0.0
  %1768 = vmatprep.subr.mxu0 0.0
  %1769 = vmatpush2.msra.mxu0 0.0
  %1770 = vmatprep.subr.mxu0 0.0
  %1771 = vmatpush2.msra.mxu0 0.0
  %1772 = vmatprep.subr.mxu0 0.0
  %1773 = vmatpush2.msra.mxu0 0.0
  %1774 = vmatprep.subr.mxu0 0.0
  %1775 = vmatpush2.msra.mxu0 0.0
  %1776 = vmatprep.mubr.f32.mxu0 0.0
  %1777 = vmatmul.mubr.f32.gmra.mxu0 %v1710
  %v1778 = vpop.f32.mrf.mxu0
  %v1779 = vadd.f32 %v1708, %v1778
  %v1780 = vpop.f32.mrf.mxu0
  %1781 = vdwg.mxu0
  %1783 = vrot.lane.b32.xlu0 %v1704, 64
  %v1784 = vpop.permute.xlu0 %1783
  %v1785 = vsel %vm208, %v1784, 0
  %1787 = vmatprep.subr.mxu0 0.0
  %1788 = vmatpush1.msra.mxu0 0.0
  %1789 = vmatprep.subr.mxu0 0.0
  %1790 = vmatpush1.msra.mxu0 0.0
  %1791 = vmatprep.subr.mxu0 0.0
  %1792 = vmatpush1.msra.mxu0 0.0
  %1793 = vmatprep.subr.mxu0 0.0
  %1794 = vmatpush1.msra.mxu0 0.0
  %1795 = vmatprep.subr.mxu0 0.0
  %1796 = vmatpush1.msra.mxu0 0.0
  %1797 = vmatprep.subr.mxu0 0.0
  %1798 = vmatpush1.msra.mxu0 0.0
  %1799 = vmatprep.subr.mxu0 0.0
  %1800 = vmatpush1.msra.mxu0 0.0
  %1801 = vmatprep.subr.mxu0 0.0
  %1802 = vmatpush1.msra.mxu0 0.0
  %1803 = vmatprep.subr.mxu0 0.0
  %1804 = vmatpush1.msra.mxu0 0.0
  %1805 = vmatprep.subr.mxu0 0.0
  %1806 = vmatpush1.msra.mxu0 0.0
  %1807 = vmatprep.subr.mxu0 0.0
  %1808 = vmatpush1.msra.mxu0 0.0
  %1809 = vmatprep.subr.mxu0 0.0
  %1810 = vmatpush1.msra.mxu0 0.0
  %1811 = vmatprep.subr.mxu0 0.0
  %1812 = vmatpush1.msra.mxu0 %v299
  %1813 = vmatprep.subr.mxu0 0.0
  %1814 = vmatpush1.msra.mxu0 %v298
  %1815 = vmatprep.subr.mxu0 0.0
  %1816 = vmatpush1.msra.mxu0 %v297
  %1817 = vmatprep.subr.mxu0 0.0
  %1818 = vmatpush1.msra.mxu0 %v296
  %1819 = vmatprep.subr.mxu0 0.0
  %1820 = vmatpush2.msra.mxu0 0.0
  %1821 = vmatprep.subr.mxu0 0.0
  %1822 = vmatpush2.msra.mxu0 0.0
  %1823 = vmatprep.subr.mxu0 0.0
  %1824 = vmatpush2.msra.mxu0 0.0
  %1825 = vmatprep.subr.mxu0 0.0
  %1826 = vmatpush2.msra.mxu0 0.0
  %1827 = vmatprep.subr.mxu0 0.0
  %1828 = vmatpush2.msra.mxu0 0.0
  %1829 = vmatprep.subr.mxu0 0.0
  %1830 = vmatpush2.msra.mxu0 0.0
  %1831 = vmatprep.subr.mxu0 0.0
  %1832 = vmatpush2.msra.mxu0 0.0
  %1833 = vmatprep.subr.mxu0 0.0
  %1834 = vmatpush2.msra.mxu0 0.0
  %1835 = vmatprep.subr.mxu0 0.0
  %1836 = vmatpush2.msra.mxu0 0.0
  %1837 = vmatprep.subr.mxu0 0.0
  %1838 = vmatpush2.msra.mxu0 0.0
  %1839 = vmatprep.subr.mxu0 0.0
  %1840 = vmatpush2.msra.mxu0 0.0
  %1841 = vmatprep.subr.mxu0 0.0
  %1842 = vmatpush2.msra.mxu0 0.0
  %1843 = vmatprep.subr.mxu0 0.0
  %1844 = vmatpush2.msra.mxu0 0.0
  %1845 = vmatprep.subr.mxu0 0.0
  %1846 = vmatpush2.msra.mxu0 0.0
  %1847 = vmatprep.subr.mxu0 0.0
  %1848 = vmatpush2.msra.mxu0 0.0
  %1849 = vmatprep.subr.mxu0 0.0
  %1850 = vmatpush2.msra.mxu0 0.0
  %1851 = vmatprep.mubr.f32.mxu0 0.0
  %1852 = vmatmul.mubr.f32.gmra.mxu0 %v1785
  %v1853 = vpop.f32.mrf.mxu0
  %v1854 = vadd.f32 %v284, %v1853
  %v1855 = vpop.f32.mrf.mxu0
  %1856 = vdwg.mxu0
  %v1857 = vxor.u32 %v1779, 2147483648
  %v1858 = vmul.f32 %v1857, 1.442695
  %v1859 = vpow.pop %v1858
  %v1860 = vadd.f32 %v1859, 1.0
  %v1861 = vrcp.pop %v1860
  %v1862 = vmul.f32 1.0, %v1861
  %v1863 = vxor.u32 %v1854, 2147483648
  %v1864 = vmul.f32 %v1863, 1.442695
  %v1865 = vpow.pop %v1864
  %v1866 = vadd.f32 %v1865, 1.0
  %v1867 = vrcp.pop %v1866
  %v1868 = vmul.f32 1.0, %v1867
  %v1869 = vmul.f32 %v1862, %v1680
  %v1870 = vtanh.pop %v1779
  %1872 = vrot.lane.b32.xlu0 %v1870, 32
  %v1873 = vpop.permute.xlu0 %1872
  %v1875 = vmul.f32 %v1862, %v1873
  %1877 = vrot.lane.b32.xlu0 %v1875, 32
  %v1878 = vpop.permute.xlu0 %1877
  %v1880 = vadd.f32 %v1869, %v1878
  %v1881 = vmul.f32 %v1868, %v1692
  %v1882 = vtanh.pop %v1854
  %1884 = vrot.lane.b32.xlu0 %v1882, 32
  %v1885 = vpop.permute.xlu0 %1884
  %v1887 = vmul.f32 %v1868, %v1885
  %1889 = vrot.lane.b32.xlu0 %v1887, 32
  %v1890 = vpop.permute.xlu0 %1889
  %v1892 = vadd.f32 %v1881, %v1890
  %v1893 = vtanh.pop %v1880
  %1895 = vrot.lane.b32.xlu0 %v1893, 32
  %v1896 = vpop.permute.xlu0 %1895
  %v1898 = vmul.f32 %v1862, %v1896
  %v1899 = vtanh.pop %v1892
  %1901 = vrot.lane.b32.xlu0 %v1899, 32
  %v1902 = vpop.permute.xlu0 %1901
  %v1904 = vmul.f32 %v1868, %v1902
  %1907 = vrot.lane.b32.xlu0 %v1904, 96
  %v1908 = vpop.permute.xlu0 %1907
  %v1910 = vsel %vm208, %v496, %v1908
  %1912 = vrot.lane.b32.xlu0 %v1704, 96
  %v1913 = vpop.permute.xlu0 %1912
  %v1915 = vsel %vm208, %v699, %v1913
  %1917 = vrot.lane.b32.xlu0 %v1502, 96
  %v1918 = vpop.permute.xlu0 %1917
  %v1920 = vsel %vm208, %v901, %v1918
  %1922 = vrot.lane.b32.xlu0 %v1299, 96
  %v1923 = vpop.permute.xlu0 %1922
  %v1925 = vsel %vm208, %v1101, %v1923
  %1927 = vrot.lane.b32.xlu0 %v1098, 96
  %v1928 = vpop.permute.xlu0 %1927
  %v1930 = vsel %vm208, %v1302, %v1928
  %1932 = vrot.lane.b32.xlu0 %v898, 96
  %v1933 = vpop.permute.xlu0 %1932
  %v1935 = vsel %vm208, %v1505, %v1933
  %1937 = vrot.lane.b32.xlu0 %v696, 96
  %v1938 = vpop.permute.xlu0 %1937
  %v1940 = vsel %vm208, %v1707, %v1938
  %1942 = vrot.lane.b32.xlu0 %v1898, 64
  %v1943 = vpop.permute.xlu0 %1942
  %1945 = vrot.lane.b32.xlu0 %v493, 96
  %v1946 = vpop.permute.xlu0 %1945
  %v1948 = vsel %vm208, %v1943, %v1946
  %v1949 = vld [vmem:[%s6] sm:$0xff]
  %v1950 = vld [vmem:[%s6 + $0x8] sm:$0xff]
  %v1951 = vld [vmem:[%s6 + $0x10] sm:$0xff]
  %v1952 = vld [vmem:[%s6 + $0x18] sm:$0xff]
  %v1953 = vld [vmem:[%s6 + $0x20] sm:$0xff]
  %v1954 = vld [vmem:[%s6 + $0x28] sm:$0xff]
  %v1955 = vld [vmem:[%s6 + $0x30] sm:$0xff]
  %v1956 = vld [vmem:[%s6 + $0x38] sm:$0xff]
  %v1957 = vld [vmem:[%s7] sm:$0xff]
  %v1958 = vld [vmem:[%s7 + $0x8] sm:$0xff]
  %v1959 = vld [vmem:[%s7 + $0x10] sm:$0xff]
  %v1960 = vld [vmem:[%s7 + $0x18] sm:$0xff]
  %v1961 = vld [vmem:[%s7 + $0x20] sm:$0xff]
  %v1962 = vld [vmem:[%s7 + $0x28] sm:$0xff]
  %v1963 = vld [vmem:[%s7 + $0x30] sm:$0xff]
  %v1964 = vld [vmem:[%s7 + $0x38] sm:$0xff]
  %v1965 = vld [vmem:[%s10] sm:$0x1]
  %v1966 = vld [vmem:[%s11] sm:$0x1]
  %v1968 = vlaneseq
  %v1969 = vshrl.u32 %v1968, 7
  %v1970 = vsub.s32 0, %v1969
  %v1971 = vrot.slane %v1965, %v1970
  %v1974 = vsel %vm106, %v1910, 0
  %1976 = vmatprep.subr.mxu0 0.0
  %1977 = vmatpush1.msra.mxu0 0.0
  %1978 = vmatprep.subr.mxu0 0.0
  %1979 = vmatpush1.msra.mxu0 0.0
  %1980 = vmatprep.subr.mxu0 0.0
  %1981 = vmatpush1.msra.mxu0 0.0
  %1982 = vmatprep.subr.mxu0 0.0
  %1983 = vmatpush1.msra.mxu0 0.0
  %1984 = vmatprep.subr.mxu0 0.0
  %1985 = vmatpush1.msra.mxu0 0.0
  %1986 = vmatprep.subr.mxu0 0.0
  %1987 = vmatpush1.msra.mxu0 0.0
  %1988 = vmatprep.subr.mxu0 0.0
  %1989 = vmatpush1.msra.mxu0 0.0
  %1990 = vmatprep.subr.mxu0 0.0
  %1991 = vmatpush1.msra.mxu0 0.0
  %1992 = vmatprep.subr.mxu0 0.0
  %1993 = vmatpush1.msra.mxu0 %v1956
  %1994 = vmatprep.subr.mxu0 0.0
  %1995 = vmatpush1.msra.mxu0 %v1955
  %1996 = vmatprep.subr.mxu0 0.0
  %1997 = vmatpush1.msra.mxu0 %v1954
  %1998 = vmatprep.subr.mxu0 0.0
  %1999 = vmatpush1.msra.mxu0 %v1953
  %2000 = vmatprep.subr.mxu0 0.0
  %2001 = vmatpush1.msra.mxu0 %v1952
  %2002 = vmatprep.subr.mxu0 0.0
  %2003 = vmatpush1.msra.mxu0 %v1951
  %2004 = vmatprep.subr.mxu0 0.0
  %2005 = vmatpush1.msra.mxu0 %v1950
  %2006 = vmatprep.subr.mxu0 0.0
  %2007 = vmatpush1.msra.mxu0 %v1949
  %2008 = vmatprep.subr.mxu0 0.0
  %2009 = vmatpush2.msra.mxu0 0.0
  %2010 = vmatprep.subr.mxu0 0.0
  %2011 = vmatpush2.msra.mxu0 0.0
  %2012 = vmatprep.subr.mxu0 0.0
  %2013 = vmatpush2.msra.mxu0 0.0
  %2014 = vmatprep.subr.mxu0 0.0
  %2015 = vmatpush2.msra.mxu0 0.0
  %2016 = vmatprep.subr.mxu0 0.0
  %2017 = vmatpush2.msra.mxu0 0.0
  %2018 = vmatprep.subr.mxu0 0.0
  %2019 = vmatpush2.msra.mxu0 0.0
  %2020 = vmatprep.subr.mxu0 0.0
  %2021 = vmatpush2.msra.mxu0 0.0
  %2022 = vmatprep.subr.mxu0 0.0
  %2023 = vmatpush2.msra.mxu0 0.0
  %2024 = vmatprep.subr.mxu0 0.0
  %2025 = vmatpush2.msra.mxu0 0.0
  %2026 = vmatprep.subr.mxu0 0.0
  %2027 = vmatpush2.msra.mxu0 0.0
  %2028 = vmatprep.subr.mxu0 0.0
  %2029 = vmatpush2.msra.mxu0 0.0
  %2030 = vmatprep.subr.mxu0 0.0
  %2031 = vmatpush2.msra.mxu0 0.0
  %2032 = vmatprep.subr.mxu0 0.0
  %2033 = vmatpush2.msra.mxu0 0.0
  %2034 = vmatprep.subr.mxu0 0.0
  %2035 = vmatpush2.msra.mxu0 0.0
  %2036 = vmatprep.subr.mxu0 0.0
  %2037 = vmatpush2.msra.mxu0 0.0
  %2038 = vmatprep.subr.mxu0 0.0
  %2039 = vmatpush2.msra.mxu0 0.0
  %2040 = vmatprep.mubr.f32.mxu0 0.0
  %2041 = vmatmul.mubr.f32.gmra.mxu0 %v1974
  %v2042 = vpop.f32.mrf.mxu0
  %v2043 = vadd.f32 %v1971, %v2042
  %v2044 = vpop.f32.mrf.mxu0
  %2045 = vdwg.mxu0
  %v2047 = vsel %vm106, %v1915, 0
  %2049 = vmatprep.subr.mxu0 0.0
  %2050 = vmatpush1.msra.mxu0 0.0
  %2051 = vmatprep.subr.mxu0 0.0
  %2052 = vmatpush1.msra.mxu0 0.0
  %2053 = vmatprep.subr.mxu0 0.0
  %2054 = vmatpush1.msra.mxu0 0.0
  %2055 = vmatprep.subr.mxu0 0.0
  %2056 = vmatpush1.msra.mxu0 0.0
  %2057 = vmatprep.subr.mxu0 0.0
  %2058 = vmatpush1.msra.mxu0 0.0
  %2059 = vmatprep.subr.mxu0 0.0
  %2060 = vmatpush1.msra.mxu0 0.0
  %2061 = vmatprep.subr.mxu0 0.0
  %2062 = vmatpush1.msra.mxu0 0.0
  %2063 = vmatprep.subr.mxu0 0.0
  %2064 = vmatpush1.msra.mxu0 0.0
  %2065 = vmatprep.subr.mxu0 0.0
  %2066 = vmatpush1.msra.mxu0 %v1956
  %2067 = vmatprep.subr.mxu0 0.0
  %2068 = vmatpush1.msra.mxu0 %v1955
  %2069 = vmatprep.subr.mxu0 0.0
  %2070 = vmatpush1.msra.mxu0 %v1954
  %2071 = vmatprep.subr.mxu0 0.0
  %2072 = vmatpush1.msra.mxu0 %v1953
  %2073 = vmatprep.subr.mxu0 0.0
  %2074 = vmatpush1.msra.mxu0 %v1952
  %2075 = vmatprep.subr.mxu0 0.0
  %2076 = vmatpush1.msra.mxu0 %v1951
  %2077 = vmatprep.subr.mxu0 0.0
  %2078 = vmatpush1.msra.mxu0 %v1950
  %2079 = vmatprep.subr.mxu0 0.0
  %2080 = vmatpush1.msra.mxu0 %v1949
  %2081 = vmatprep.subr.mxu0 0.0
  %2082 = vmatpush2.msra.mxu0 0.0
  %2083 = vmatprep.subr.mxu0 0.0
  %2084 = vmatpush2.msra.mxu0 0.0
  %2085 = vmatprep.subr.mxu0 0.0
  %2086 = vmatpush2.msra.mxu0 0.0
  %2087 = vmatprep.subr.mxu0 0.0
  %2088 = vmatpush2.msra.mxu0 0.0
  %2089 = vmatprep.subr.mxu0 0.0
  %2090 = vmatpush2.msra.mxu0 0.0
  %2091 = vmatprep.subr.mxu0 0.0
  %2092 = vmatpush2.msra.mxu0 0.0
  %2093 = vmatprep.subr.mxu0 0.0
  %2094 = vmatpush2.msra.mxu0 0.0
  %2095 = vmatprep.subr.mxu0 0.0
  %2096 = vmatpush2.msra.mxu0 0.0
  %2097 = vmatprep.subr.mxu0 0.0
  %2098 = vmatpush2.msra.mxu0 0.0
  %2099 = vmatprep.subr.mxu0 0.0
  %2100 = vmatpush2.msra.mxu0 0.0
  %2101 = vmatprep.subr.mxu0 0.0
  %2102 = vmatpush2.msra.mxu0 0.0
  %2103 = vmatprep.subr.mxu0 0.0
  %2104 = vmatpush2.msra.mxu0 0.0
  %2105 = vmatprep.subr.mxu0 0.0
  %2106 = vmatpush2.msra.mxu0 0.0
  %2107 = vmatprep.subr.mxu0 0.0
  %2108 = vmatpush2.msra.mxu0 0.0
  %2109 = vmatprep.subr.mxu0 0.0
  %2110 = vmatpush2.msra.mxu0 0.0
  %2111 = vmatprep.subr.mxu0 0.0
  %2112 = vmatpush2.msra.mxu0 0.0
  %2113 = vmatprep.mubr.f32.mxu0 0.0
  %2114 = vmatmul.mubr.f32.gmra.mxu0 %v2047
  %v2115 = vpop.f32.mrf.mxu0
  %v2116 = vadd.f32 %v1971, %v2115
  %v2117 = vpop.f32.mrf.mxu0
  %2118 = vdwg.mxu0
  %v2120 = vsel %vm106, %v1920, 0
  %2122 = vmatprep.subr.mxu0 0.0
  %2123 = vmatpush1.msra.mxu0 0.0
  %2124 = vmatprep.subr.mxu0 0.0
  %2125 = vmatpush1.msra.mxu0 0.0
  %2126 = vmatprep.subr.mxu0 0.0
  %2127 = vmatpush1.msra.mxu0 0.0
  %2128 = vmatprep.subr.mxu0 0.0
  %2129 = vmatpush1.msra.mxu0 0.0
  %2130 = vmatprep.subr.mxu0 0.0
  %2131 = vmatpush1.msra.mxu0 0.0
  %2132 = vmatprep.subr.mxu0 0.0
  %2133 = vmatpush1.msra.mxu0 0.0
  %2134 = vmatprep.subr.mxu0 0.0
  %2135 = vmatpush1.msra.mxu0 0.0
  %2136 = vmatprep.subr.mxu0 0.0
  %2137 = vmatpush1.msra.mxu0 0.0
  %2138 = vmatprep.subr.mxu0 0.0
  %2139 = vmatpush1.msra.mxu0 %v1956
  %2140 = vmatprep.subr.mxu0 0.0
  %2141 = vmatpush1.msra.mxu0 %v1955
  %2142 = vmatprep.subr.mxu0 0.0
  %2143 = vmatpush1.msra.mxu0 %v1954
  %2144 = vmatprep.subr.mxu0 0.0
  %2145 = vmatpush1.msra.mxu0 %v1953
  %2146 = vmatprep.subr.mxu0 0.0
  %2147 = vmatpush1.msra.mxu0 %v1952
  %2148 = vmatprep.subr.mxu0 0.0
  %2149 = vmatpush1.msra.mxu0 %v1951
  %2150 = vmatprep.subr.mxu0 0.0
  %2151 = vmatpush1.msra.mxu0 %v1950
  %2152 = vmatprep.subr.mxu0 0.0
  %2153 = vmatpush1.msra.mxu0 %v1949
  %2154 = vmatprep.subr.mxu0 0.0
  %2155 = vmatpush2.msra.mxu0 0.0
  %2156 = vmatprep.subr.mxu0 0.0
  %2157 = vmatpush2.msra.mxu0 0.0
  %2158 = vmatprep.subr.mxu0 0.0
  %2159 = vmatpush2.msra.mxu0 0.0
  %2160 = vmatprep.subr.mxu0 0.0
  %2161 = vmatpush2.msra.mxu0 0.0
  %2162 = vmatprep.subr.mxu0 0.0
  %2163 = vmatpush2.msra.mxu0 0.0
  %2164 = vmatprep.subr.mxu0 0.0
  %2165 = vmatpush2.msra.mxu0 0.0
  %2166 = vmatprep.subr.mxu0 0.0
  %2167 = vmatpush2.msra.mxu0 0.0
  %2168 = vmatprep.subr.mxu0 0.0
  %2169 = vmatpush2.msra.mxu0 0.0
  %2170 = vmatprep.subr.mxu0 0.0
  %2171 = vmatpush2.msra.mxu0 0.0
  %2172 = vmatprep.subr.mxu0 0.0
  %2173 = vmatpush2.msra.mxu0 0.0
  %2174 = vmatprep.subr.mxu0 0.0
  %2175 = vmatpush2.msra.mxu0 0.0
  %2176 = vmatprep.subr.mxu0 0.0
  %2177 = vmatpush2.msra.mxu0 0.0
  %2178 = vmatprep.subr.mxu0 0.0
  %2179 = vmatpush2.msra.mxu0 0.0
  %2180 = vmatprep.subr.mxu0 0.0
  %2181 = vmatpush2.msra.mxu0 0.0
  %2182 = vmatprep.subr.mxu0 0.0
  %2183 = vmatpush2.msra.mxu0 0.0
  %2184 = vmatprep.subr.mxu0 0.0
  %2185 = vmatpush2.msra.mxu0 0.0
  %2186 = vmatprep.mubr.f32.mxu0 0.0
  %2187 = vmatmul.mubr.f32.gmra.mxu0 %v2120
  %v2188 = vpop.f32.mrf.mxu0
  %v2189 = vadd.f32 %v1971, %v2188
  %v2190 = vpop.f32.mrf.mxu0
  %2191 = vdwg.mxu0
  %v2193 = vsel %vm106, %v1925, 0
  %2195 = vmatprep.subr.mxu0 0.0
  %2196 = vmatpush1.msra.mxu0 0.0
  %2197 = vmatprep.subr.mxu0 0.0
  %2198 = vmatpush1.msra.mxu0 0.0
  %2199 = vmatprep.subr.mxu0 0.0
  %2200 = vmatpush1.msra.mxu0 0.0
  %2201 = vmatprep.subr.mxu0 0.0
  %2202 = vmatpush1.msra.mxu0 0.0
  %2203 = vmatprep.subr.mxu0 0.0
  %2204 = vmatpush1.msra.mxu0 0.0
  %2205 = vmatprep.subr.mxu0 0.0
  %2206 = vmatpush1.msra.mxu0 0.0
  %2207 = vmatprep.subr.mxu0 0.0
  %2208 = vmatpush1.msra.mxu0 0.0
  %2209 = vmatprep.subr.mxu0 0.0
  %2210 = vmatpush1.msra.mxu0 0.0
  %2211 = vmatprep.subr.mxu0 0.0
  %2212 = vmatpush1.msra.mxu0 %v1956
  %2213 = vmatprep.subr.mxu0 0.0
  %2214 = vmatpush1.msra.mxu0 %v1955
  %2215 = vmatprep.subr.mxu0 0.0
  %2216 = vmatpush1.msra.mxu0 %v1954
  %2217 = vmatprep.subr.mxu0 0.0
  %2218 = vmatpush1.msra.mxu0 %v1953
  %2219 = vmatprep.subr.mxu0 0.0
  %2220 = vmatpush1.msra.mxu0 %v1952
  %2221 = vmatprep.subr.mxu0 0.0
  %2222 = vmatpush1.msra.mxu0 %v1951
  %2223 = vmatprep.subr.mxu0 0.0
  %2224 = vmatpush1.msra.mxu0 %v1950
  %2225 = vmatprep.subr.mxu0 0.0
  %2226 = vmatpush1.msra.mxu0 %v1949
  %2227 = vmatprep.subr.mxu0 0.0
  %2228 = vmatpush2.msra.mxu0 0.0
  %2229 = vmatprep.subr.mxu0 0.0
  %2230 = vmatpush2.msra.mxu0 0.0
  %2231 = vmatprep.subr.mxu0 0.0
  %2232 = vmatpush2.msra.mxu0 0.0
  %2233 = vmatprep.subr.mxu0 0.0
  %2234 = vmatpush2.msra.mxu0 0.0
  %2235 = vmatprep.subr.mxu0 0.0
  %2236 = vmatpush2.msra.mxu0 0.0
  %2237 = vmatprep.subr.mxu0 0.0
  %2238 = vmatpush2.msra.mxu0 0.0
  %2239 = vmatprep.subr.mxu0 0.0
  %2240 = vmatpush2.msra.mxu0 0.0
  %2241 = vmatprep.subr.mxu0 0.0
  %2242 = vmatpush2.msra.mxu0 0.0
  %2243 = vmatprep.subr.mxu0 0.0
  %2244 = vmatpush2.msra.mxu0 0.0
  %2245 = vmatprep.subr.mxu0 0.0
  %2246 = vmatpush2.msra.mxu0 0.0
  %2247 = vmatprep.subr.mxu0 0.0
  %2248 = vmatpush2.msra.mxu0 0.0
  %2249 = vmatprep.subr.mxu0 0.0
  %2250 = vmatpush2.msra.mxu0 0.0
  %2251 = vmatprep.subr.mxu0 0.0
  %2252 = vmatpush2.msra.mxu0 0.0
  %2253 = vmatprep.subr.mxu0 0.0
  %2254 = vmatpush2.msra.mxu0 0.0
  %2255 = vmatprep.subr.mxu0 0.0
  %2256 = vmatpush2.msra.mxu0 0.0
  %2257 = vmatprep.subr.mxu0 0.0
  %2258 = vmatpush2.msra.mxu0 0.0
  %2259 = vmatprep.mubr.f32.mxu0 0.0
  %2260 = vmatmul.mubr.f32.gmra.mxu0 %v2193
  %v2261 = vpop.f32.mrf.mxu0
  %v2262 = vadd.f32 %v1971, %v2261
  %v2263 = vpop.f32.mrf.mxu0
  %2264 = vdwg.mxu0
  %v2266 = vsel %vm106, %v1930, 0
  %2268 = vmatprep.subr.mxu0 0.0
  %2269 = vmatpush1.msra.mxu0 0.0
  %2270 = vmatprep.subr.mxu0 0.0
  %2271 = vmatpush1.msra.mxu0 0.0
  %2272 = vmatprep.subr.mxu0 0.0
  %2273 = vmatpush1.msra.mxu0 0.0
  %2274 = vmatprep.subr.mxu0 0.0
  %2275 = vmatpush1.msra.mxu0 0.0
  %2276 = vmatprep.subr.mxu0 0.0
  %2277 = vmatpush1.msra.mxu0 0.0
  %2278 = vmatprep.subr.mxu0 0.0
  %2279 = vmatpush1.msra.mxu0 0.0
  %2280 = vmatprep.subr.mxu0 0.0
  %2281 = vmatpush1.msra.mxu0 0.0
  %2282 = vmatprep.subr.mxu0 0.0
  %2283 = vmatpush1.msra.mxu0 0.0
  %2284 = vmatprep.subr.mxu0 0.0
  %2285 = vmatpush1.msra.mxu0 %v1956
  %2286 = vmatprep.subr.mxu0 0.0
  %2287 = vmatpush1.msra.mxu0 %v1955
  %2288 = vmatprep.subr.mxu0 0.0
  %2289 = vmatpush1.msra.mxu0 %v1954
  %2290 = vmatprep.subr.mxu0 0.0
  %2291 = vmatpush1.msra.mxu0 %v1953
  %2292 = vmatprep.subr.mxu0 0.0
  %2293 = vmatpush1.msra.mxu0 %v1952
  %2294 = vmatprep.subr.mxu0 0.0
  %2295 = vmatpush1.msra.mxu0 %v1951
  %2296 = vmatprep.subr.mxu0 0.0
  %2297 = vmatpush1.msra.mxu0 %v1950
  %2298 = vmatprep.subr.mxu0 0.0
  %2299 = vmatpush1.msra.mxu0 %v1949
  %2300 = vmatprep.subr.mxu0 0.0
  %2301 = vmatpush2.msra.mxu0 0.0
  %2302 = vmatprep.subr.mxu0 0.0
  %2303 = vmatpush2.msra.mxu0 0.0
  %2304 = vmatprep.subr.mxu0 0.0
  %2305 = vmatpush2.msra.mxu0 0.0
  %2306 = vmatprep.subr.mxu0 0.0
  %2307 = vmatpush2.msra.mxu0 0.0
  %2308 = vmatprep.subr.mxu0 0.0
  %2309 = vmatpush2.msra.mxu0 0.0
  %2310 = vmatprep.subr.mxu0 0.0
  %2311 = vmatpush2.msra.mxu0 0.0
  %2312 = vmatprep.subr.mxu0 0.0
  %2313 = vmatpush2.msra.mxu0 0.0
  %2314 = vmatprep.subr.mxu0 0.0
  %2315 = vmatpush2.msra.mxu0 0.0
  %2316 = vmatprep.subr.mxu0 0.0
  %2317 = vmatpush2.msra.mxu0 0.0
  %2318 = vmatprep.subr.mxu0 0.0
  %2319 = vmatpush2.msra.mxu0 0.0
  %2320 = vmatprep.subr.mxu0 0.0
  %2321 = vmatpush2.msra.mxu0 0.0
  %2322 = vmatprep.subr.mxu0 0.0
  %2323 = vmatpush2.msra.mxu0 0.0
  %2324 = vmatprep.subr.mxu0 0.0
  %2325 = vmatpush2.msra.mxu0 0.0
  %2326 = vmatprep.subr.mxu0 0.0
  %2327 = vmatpush2.msra.mxu0 0.0
  %2328 = vmatprep.subr.mxu0 0.0
  %2329 = vmatpush2.msra.mxu0 0.0
  %2330 = vmatprep.subr.mxu0 0.0
  %2331 = vmatpush2.msra.mxu0 0.0
  %2332 = vmatprep.mubr.f32.mxu0 0.0
  %2333 = vmatmul.mubr.f32.gmra.mxu0 %v2266
  %v2334 = vpop.f32.mrf.mxu0
  %v2335 = vadd.f32 %v1971, %v2334
  %v2336 = vpop.f32.mrf.mxu0
  %2337 = vdwg.mxu0
  %v2339 = vsel %vm106, %v1935, 0
  %2341 = vmatprep.subr.mxu0 0.0
  %2342 = vmatpush1.msra.mxu0 0.0
  %2343 = vmatprep.subr.mxu0 0.0
  %2344 = vmatpush1.msra.mxu0 0.0
  %2345 = vmatprep.subr.mxu0 0.0
  %2346 = vmatpush1.msra.mxu0 0.0
  %2347 = vmatprep.subr.mxu0 0.0
  %2348 = vmatpush1.msra.mxu0 0.0
  %2349 = vmatprep.subr.mxu0 0.0
  %2350 = vmatpush1.msra.mxu0 0.0
  %2351 = vmatprep.subr.mxu0 0.0
  %2352 = vmatpush1.msra.mxu0 0.0
  %2353 = vmatprep.subr.mxu0 0.0
  %2354 = vmatpush1.msra.mxu0 0.0
  %2355 = vmatprep.subr.mxu0 0.0
  %2356 = vmatpush1.msra.mxu0 0.0
  %2357 = vmatprep.subr.mxu0 0.0
  %2358 = vmatpush1.msra.mxu0 %v1956
  %2359 = vmatprep.subr.mxu0 0.0
  %2360 = vmatpush1.msra.mxu0 %v1955
  %2361 = vmatprep.subr.mxu0 0.0
  %2362 = vmatpush1.msra.mxu0 %v1954
  %2363 = vmatprep.subr.mxu0 0.0
  %2364 = vmatpush1.msra.mxu0 %v1953
  %2365 = vmatprep.subr.mxu0 0.0
  %2366 = vmatpush1.msra.mxu0 %v1952
  %2367 = vmatprep.subr.mxu0 0.0
  %2368 = vmatpush1.msra.mxu0 %v1951
  %2369 = vmatprep.subr.mxu0 0.0
  %2370 = vmatpush1.msra.mxu0 %v1950
  %2371 = vmatprep.subr.mxu0 0.0
  %2372 = vmatpush1.msra.mxu0 %v1949
  %2373 = vmatprep.subr.mxu0 0.0
  %2374 = vmatpush2.msra.mxu0 0.0
  %2375 = vmatprep.subr.mxu0 0.0
  %2376 = vmatpush2.msra.mxu0 0.0
  %2377 = vmatprep.subr.mxu0 0.0
  %2378 = vmatpush2.msra.mxu0 0.0
  %2379 = vmatprep.subr.mxu0 0.0
  %2380 = vmatpush2.msra.mxu0 0.0
  %2381 = vmatprep.subr.mxu0 0.0
  %2382 = vmatpush2.msra.mxu0 0.0
  %2383 = vmatprep.subr.mxu0 0.0
  %2384 = vmatpush2.msra.mxu0 0.0
  %2385 = vmatprep.subr.mxu0 0.0
  %2386 = vmatpush2.msra.mxu0 0.0
  %2387 = vmatprep.subr.mxu0 0.0
  %2388 = vmatpush2.msra.mxu0 0.0
  %2389 = vmatprep.subr.mxu0 0.0
  %2390 = vmatpush2.msra.mxu0 0.0
  %2391 = vmatprep.subr.mxu0 0.0
  %2392 = vmatpush2.msra.mxu0 0.0
  %2393 = vmatprep.subr.mxu0 0.0
  %2394 = vmatpush2.msra.mxu0 0.0
  %2395 = vmatprep.subr.mxu0 0.0
  %2396 = vmatpush2.msra.mxu0 0.0
  %2397 = vmatprep.subr.mxu0 0.0
  %2398 = vmatpush2.msra.mxu0 0.0
  %2399 = vmatprep.subr.mxu0 0.0
  %2400 = vmatpush2.msra.mxu0 0.0
  %2401 = vmatprep.subr.mxu0 0.0
  %2402 = vmatpush2.msra.mxu0 0.0
  %2403 = vmatprep.subr.mxu0 0.0
  %2404 = vmatpush2.msra.mxu0 0.0
  %2405 = vmatprep.mubr.f32.mxu0 0.0
  %2406 = vmatmul.mubr.f32.gmra.mxu0 %v2339
  %v2407 = vpop.f32.mrf.mxu0
  %v2408 = vadd.f32 %v1971, %v2407
  %v2409 = vpop.f32.mrf.mxu0
  %2410 = vdwg.mxu0
  %v2412 = vsel %vm106, %v1940, 0
  %2414 = vmatprep.subr.mxu0 0.0
  %2415 = vmatpush1.msra.mxu0 0.0
  %2416 = vmatprep.subr.mxu0 0.0
  %2417 = vmatpush1.msra.mxu0 0.0
  %2418 = vmatprep.subr.mxu0 0.0
  %2419 = vmatpush1.msra.mxu0 0.0
  %2420 = vmatprep.subr.mxu0 0.0
  %2421 = vmatpush1.msra.mxu0 0.0
  %2422 = vmatprep.subr.mxu0 0.0
  %2423 = vmatpush1.msra.mxu0 0.0
  %2424 = vmatprep.subr.mxu0 0.0
  %2425 = vmatpush1.msra.mxu0 0.0
  %2426 = vmatprep.subr.mxu0 0.0
  %2427 = vmatpush1.msra.mxu0 0.0
  %2428 = vmatprep.subr.mxu0 0.0
  %2429 = vmatpush1.msra.mxu0 0.0
  %2430 = vmatprep.subr.mxu0 0.0
  %2431 = vmatpush1.msra.mxu0 %v1956
  %2432 = vmatprep.subr.mxu0 0.0
  %2433 = vmatpush1.msra.mxu0 %v1955
  %2434 = vmatprep.subr.mxu0 0.0
  %2435 = vmatpush1.msra.mxu0 %v1954
  %2436 = vmatprep.subr.mxu0 0.0
  %2437 = vmatpush1.msra.mxu0 %v1953
  %2438 = vmatprep.subr.mxu0 0.0
  %2439 = vmatpush1.msra.mxu0 %v1952
  %2440 = vmatprep.subr.mxu0 0.0
  %2441 = vmatpush1.msra.mxu0 %v1951
  %2442 = vmatprep.subr.mxu0 0.0
  %2443 = vmatpush1.msra.mxu0 %v1950
  %2444 = vmatprep.subr.mxu0 0.0
  %2445 = vmatpush1.msra.mxu0 %v1949
  %2446 = vmatprep.subr.mxu0 0.0
  %2447 = vmatpush2.msra.mxu0 0.0
  %2448 = vmatprep.subr.mxu0 0.0
  %2449 = vmatpush2.msra.mxu0 0.0
  %2450 = vmatprep.subr.mxu0 0.0
  %2451 = vmatpush2.msra.mxu0 0.0
  %2452 = vmatprep.subr.mxu0 0.0
  %2453 = vmatpush2.msra.mxu0 0.0
  %2454 = vmatprep.subr.mxu0 0.0
  %2455 = vmatpush2.msra.mxu0 0.0
  %2456 = vmatprep.subr.mxu0 0.0
  %2457 = vmatpush2.msra.mxu0 0.0
  %2458 = vmatprep.subr.mxu0 0.0
  %2459 = vmatpush2.msra.mxu0 0.0
  %2460 = vmatprep.subr.mxu0 0.0
  %2461 = vmatpush2.msra.mxu0 0.0
  %2462 = vmatprep.subr.mxu0 0.0
  %2463 = vmatpush2.msra.mxu0 0.0
  %2464 = vmatprep.subr.mxu0 0.0
  %2465 = vmatpush2.msra.mxu0 0.0
  %2466 = vmatprep.subr.mxu0 0.0
  %2467 = vmatpush2.msra.mxu0 0.0
  %2468 = vmatprep.subr.mxu0 0.0
  %2469 = vmatpush2.msra.mxu0 0.0
  %2470 = vmatprep.subr.mxu0 0.0
  %2471 = vmatpush2.msra.mxu0 0.0
  %2472 = vmatprep.subr.mxu0 0.0
  %2473 = vmatpush2.msra.mxu0 0.0
  %2474 = vmatprep.subr.mxu0 0.0
  %2475 = vmatpush2.msra.mxu0 0.0
  %2476 = vmatprep.subr.mxu0 0.0
  %2477 = vmatpush2.msra.mxu0 0.0
  %2478 = vmatprep.mubr.f32.mxu0 0.0
  %2479 = vmatmul.mubr.f32.gmra.mxu0 %v2412
  %v2480 = vpop.f32.mrf.mxu0
  %v2481 = vadd.f32 %v1971, %v2480
  %v2482 = vpop.f32.mrf.mxu0
  %2483 = vdwg.mxu0
  %v2485 = vsel %vm106, %v1948, 0
  %2487 = vmatprep.subr.mxu0 0.0
  %2488 = vmatpush1.msra.mxu0 0.0
  %2489 = vmatprep.subr.mxu0 0.0
  %2490 = vmatpush1.msra.mxu0 0.0
  %2491 = vmatprep.subr.mxu0 0.0
  %2492 = vmatpush1.msra.mxu0 0.0
  %2493 = vmatprep.subr.mxu0 0.0
  %2494 = vmatpush1.msra.mxu0 0.0
  %2495 = vmatprep.subr.mxu0 0.0
  %2496 = vmatpush1.msra.mxu0 0.0
  %2497 = vmatprep.subr.mxu0 0.0
  %2498 = vmatpush1.msra.mxu0 0.0
  %2499 = vmatprep.subr.mxu0 0.0
  %2500 = vmatpush1.msra.mxu0 0.0
  %2501 = vmatprep.subr.mxu0 0.0
  %2502 = vmatpush1.msra.mxu0 0.0
  %2503 = vmatprep.subr.mxu0 0.0
  %2504 = vmatpush1.msra.mxu0 %v1956
  %2505 = vmatprep.subr.mxu0 0.0
  %2506 = vmatpush1.msra.mxu0 %v1955
  %2507 = vmatprep.subr.mxu0 0.0
  %2508 = vmatpush1.msra.mxu0 %v1954
  %2509 = vmatprep.subr.mxu0 0.0
  %2510 = vmatpush1.msra.mxu0 %v1953
  %2511 = vmatprep.subr.mxu0 0.0
  %2512 = vmatpush1.msra.mxu0 %v1952
  %2513 = vmatprep.subr.mxu0 0.0
  %2514 = vmatpush1.msra.mxu0 %v1951
  %2515 = vmatprep.subr.mxu0 0.0
  %2516 = vmatpush1.msra.mxu0 %v1950
  %2517 = vmatprep.subr.mxu0 0.0
  %2518 = vmatpush1.msra.mxu0 %v1949
  %2519 = vmatprep.subr.mxu0 0.0
  %2520 = vmatpush2.msra.mxu0 0.0
  %2521 = vmatprep.subr.mxu0 0.0
  %2522 = vmatpush2.msra.mxu0 0.0
  %2523 = vmatprep.subr.mxu0 0.0
  %2524 = vmatpush2.msra.mxu0 0.0
  %2525 = vmatprep.subr.mxu0 0.0
  %2526 = vmatpush2.msra.mxu0 0.0
  %2527 = vmatprep.subr.mxu0 0.0
  %2528 = vmatpush2.msra.mxu0 0.0
  %2529 = vmatprep.subr.mxu0 0.0
  %2530 = vmatpush2.msra.mxu0 0.0
  %2531 = vmatprep.subr.mxu0 0.0
  %2532 = vmatpush2.msra.mxu0 0.0
  %2533 = vmatprep.subr.mxu0 0.0
  %2534 = vmatpush2.msra.mxu0 0.0
  %2535 = vmatprep.subr.mxu0 0.0
  %2536 = vmatpush2.msra.mxu0 0.0
  %2537 = vmatprep.subr.mxu0 0.0
  %2538 = vmatpush2.msra.mxu0 0.0
  %2539 = vmatprep.subr.mxu0 0.0
  %2540 = vmatpush2.msra.mxu0 0.0
  %2541 = vmatprep.subr.mxu0 0.0
  %2542 = vmatpush2.msra.mxu0 0.0
  %2543 = vmatprep.subr.mxu0 0.0
  %2544 = vmatpush2.msra.mxu0 0.0
  %2545 = vmatprep.subr.mxu0 0.0
  %2546 = vmatpush2.msra.mxu0 0.0
  %2547 = vmatprep.subr.mxu0 0.0
  %2548 = vmatpush2.msra.mxu0 0.0
  %2549 = vmatprep.subr.mxu0 0.0
  %2550 = vmatpush2.msra.mxu0 0.0
  %2551 = vmatprep.mubr.f32.mxu0 0.0
  %2552 = vmatmul.mubr.f32.gmra.mxu0 %v2485
  %v2553 = vpop.f32.mrf.mxu0
  %v2554 = vadd.f32 %v1971, %v2553
  %v2555 = vpop.f32.mrf.mxu0
  %2556 = vdwg.mxu0
  %v2558 = vlaneseq
  %v2559 = vshrl.u32 %v2558, 7
  %v2560 = vsub.s32 0, %v2559
  %v2561 = vrot.slane %v1966, %v2560
  %2563 = vmatprep.subr.mxu0 0.0
  %2564 = vmatpush1.msra.mxu0 0.0
  %2565 = vmatprep.subr.mxu0 0.0
  %2566 = vmatpush1.msra.mxu0 0.0
  %2567 = vmatprep.subr.mxu0 0.0
  %2568 = vmatpush1.msra.mxu0 0.0
  %2569 = vmatprep.subr.mxu0 0.0
  %2570 = vmatpush1.msra.mxu0 0.0
  %2571 = vmatprep.subr.mxu0 0.0
  %2572 = vmatpush1.msra.mxu0 0.0
  %2573 = vmatprep.subr.mxu0 0.0
  %2574 = vmatpush1.msra.mxu0 0.0
  %2575 = vmatprep.subr.mxu0 0.0
  %2576 = vmatpush1.msra.mxu0 0.0
  %2577 = vmatprep.subr.mxu0 0.0
  %2578 = vmatpush1.msra.mxu0 0.0
  %2579 = vmatprep.subr.mxu0 0.0
  %2580 = vmatpush1.msra.mxu0 %v1964
  %2581 = vmatprep.subr.mxu0 0.0
  %2582 = vmatpush1.msra.mxu0 %v1963
  %2583 = vmatprep.subr.mxu0 0.0
  %2584 = vmatpush1.msra.mxu0 %v1962
  %2585 = vmatprep.subr.mxu0 0.0
  %2586 = vmatpush1.msra.mxu0 %v1961
  %2587 = vmatprep.subr.mxu0 0.0
  %2588 = vmatpush1.msra.mxu0 %v1960
  %2589 = vmatprep.subr.mxu0 0.0
  %2590 = vmatpush1.msra.mxu0 %v1959
  %2591 = vmatprep.subr.mxu0 0.0
  %2592 = vmatpush1.msra.mxu0 %v1958
  %2593 = vmatprep.subr.mxu0 0.0
  %2594 = vmatpush1.msra.mxu0 %v1957
  %2595 = vmatprep.subr.mxu0 0.0
  %2596 = vmatpush2.msra.mxu0 0.0
  %2597 = vmatprep.subr.mxu0 0.0
  %2598 = vmatpush2.msra.mxu0 0.0
  %2599 = vmatprep.subr.mxu0 0.0
  %2600 = vmatpush2.msra.mxu0 0.0
  %2601 = vmatprep.subr.mxu0 0.0
  %2602 = vmatpush2.msra.mxu0 0.0
  %2603 = vmatprep.subr.mxu0 0.0
  %2604 = vmatpush2.msra.mxu0 0.0
  %2605 = vmatprep.subr.mxu0 0.0
  %2606 = vmatpush2.msra.mxu0 0.0
  %2607 = vmatprep.subr.mxu0 0.0
  %2608 = vmatpush2.msra.mxu0 0.0
  %2609 = vmatprep.subr.mxu0 0.0
  %2610 = vmatpush2.msra.mxu0 0.0
  %2611 = vmatprep.subr.mxu0 0.0
  %2612 = vmatpush2.msra.mxu0 0.0
  %2613 = vmatprep.subr.mxu0 0.0
  %2614 = vmatpush2.msra.mxu0 0.0
  %2615 = vmatprep.subr.mxu0 0.0
  %2616 = vmatpush2.msra.mxu0 0.0
  %2617 = vmatprep.subr.mxu0 0.0
  %2618 = vmatpush2.msra.mxu0 0.0
  %2619 = vmatprep.subr.mxu0 0.0
  %2620 = vmatpush2.msra.mxu0 0.0
  %2621 = vmatprep.subr.mxu0 0.0
  %2622 = vmatpush2.msra.mxu0 0.0
  %2623 = vmatprep.subr.mxu0 0.0
  %2624 = vmatpush2.msra.mxu0 0.0
  %2625 = vmatprep.subr.mxu0 0.0
  %2626 = vmatpush2.msra.mxu0 0.0
  %2627 = vmatprep.mubr.f32.mxu0 0.0
  %2628 = vmatmul.mubr.f32.gmra.mxu0 %v1974
  %v2629 = vpop.f32.mrf.mxu0
  %v2630 = vadd.f32 %v2561, %v2629
  %v2631 = vpop.f32.mrf.mxu0
  %2632 = vdwg.mxu0
  %2633 = vmatprep.subr.mxu0 0.0
  %2634 = vmatpush1.msra.mxu0 0.0
  %2635 = vmatprep.subr.mxu0 0.0
  %2636 = vmatpush1.msra.mxu0 0.0
  %2637 = vmatprep.subr.mxu0 0.0
  %2638 = vmatpush1.msra.mxu0 0.0
  %2639 = vmatprep.subr.mxu0 0.0
  %2640 = vmatpush1.msra.mxu0 0.0
  %2641 = vmatprep.subr.mxu0 0.0
  %2642 = vmatpush1.msra.mxu0 0.0
  %2643 = vmatprep.subr.mxu0 0.0
  %2644 = vmatpush1.msra.mxu0 0.0
  %2645 = vmatprep.subr.mxu0 0.0
  %2646 = vmatpush1.msra.mxu0 0.0
  %2647 = vmatprep.subr.mxu0 0.0
  %2648 = vmatpush1.msra.mxu0 0.0
  %2649 = vmatprep.subr.mxu0 0.0
  %2650 = vmatpush1.msra.mxu0 %v1964
  %2651 = vmatprep.subr.mxu0 0.0
  %2652 = vmatpush1.msra.mxu0 %v1963
  %2653 = vmatprep.subr.mxu0 0.0
  %2654 = vmatpush1.msra.mxu0 %v1962
  %2655 = vmatprep.subr.mxu0 0.0
  %2656 = vmatpush1.msra.mxu0 %v1961
  %2657 = vmatprep.subr.mxu0 0.0
  %2658 = vmatpush1.msra.mxu0 %v1960
  %2659 = vmatprep.subr.mxu0 0.0
  %2660 = vmatpush1.msra.mxu0 %v1959
  %2661 = vmatprep.subr.mxu0 0.0
  %2662 = vmatpush1.msra.mxu0 %v1958
  %2663 = vmatprep.subr.mxu0 0.0
  %2664 = vmatpush1.msra.mxu0 %v1957
  %2665 = vmatprep.subr.mxu0 0.0
  %2666 = vmatpush2.msra.mxu0 0.0
  %2667 = vmatprep.subr.mxu0 0.0
  %2668 = vmatpush2.msra.mxu0 0.0
  %2669 = vmatprep.subr.mxu0 0.0
  %2670 = vmatpush2.msra.mxu0 0.0
  %2671 = vmatprep.subr.mxu0 0.0
  %2672 = vmatpush2.msra.mxu0 0.0
  %2673 = vmatprep.subr.mxu0 0.0
  %2674 = vmatpush2.msra.mxu0 0.0
  %2675 = vmatprep.subr.mxu0 0.0
  %2676 = vmatpush2.msra.mxu0 0.0
  %2677 = vmatprep.subr.mxu0 0.0
  %2678 = vmatpush2.msra.mxu0 0.0
  %2679 = vmatprep.subr.mxu0 0.0
  %2680 = vmatpush2.msra.mxu0 0.0
  %2681 = vmatprep.subr.mxu0 0.0
  %2682 = vmatpush2.msra.mxu0 0.0
  %2683 = vmatprep.subr.mxu0 0.0
  %2684 = vmatpush2.msra.mxu0 0.0
  %2685 = vmatprep.subr.mxu0 0.0
  %2686 = vmatpush2.msra.mxu0 0.0
  %2687 = vmatprep.subr.mxu0 0.0
  %2688 = vmatpush2.msra.mxu0 0.0
  %2689 = vmatprep.subr.mxu0 0.0
  %2690 = vmatpush2.msra.mxu0 0.0
  %2691 = vmatprep.subr.mxu0 0.0
  %2692 = vmatpush2.msra.mxu0 0.0
  %2693 = vmatprep.subr.mxu0 0.0
  %2694 = vmatpush2.msra.mxu0 0.0
  %2695 = vmatprep.subr.mxu0 0.0
  %2696 = vmatpush2.msra.mxu0 0.0
  %2697 = vmatprep.mubr.f32.mxu0 0.0
  %2698 = vmatmul.mubr.f32.gmra.mxu0 %v2047
  %v2699 = vpop.f32.mrf.mxu0
  %v2700 = vadd.f32 %v2561, %v2699
  %v2701 = vpop.f32.mrf.mxu0
  %2702 = vdwg.mxu0
  %2703 = vmatprep.subr.mxu0 0.0
  %2704 = vmatpush1.msra.mxu0 0.0
  %2705 = vmatprep.subr.mxu0 0.0
  %2706 = vmatpush1.msra.mxu0 0.0
  %2707 = vmatprep.subr.mxu0 0.0
  %2708 = vmatpush1.msra.mxu0 0.0
  %2709 = vmatprep.subr.mxu0 0.0
  %2710 = vmatpush1.msra.mxu0 0.0
  %2711 = vmatprep.subr.mxu0 0.0
  %2712 = vmatpush1.msra.mxu0 0.0
  %2713 = vmatprep.subr.mxu0 0.0
  %2714 = vmatpush1.msra.mxu0 0.0
  %2715 = vmatprep.subr.mxu0 0.0
  %2716 = vmatpush1.msra.mxu0 0.0
  %2717 = vmatprep.subr.mxu0 0.0
  %2718 = vmatpush1.msra.mxu0 0.0
  %2719 = vmatprep.subr.mxu0 0.0
  %2720 = vmatpush1.msra.mxu0 %v1964
  %2721 = vmatprep.subr.mxu0 0.0
  %2722 = vmatpush1.msra.mxu0 %v1963
  %2723 = vmatprep.subr.mxu0 0.0
  %2724 = vmatpush1.msra.mxu0 %v1962
  %2725 = vmatprep.subr.mxu0 0.0
  %2726 = vmatpush1.msra.mxu0 %v1961
  %2727 = vmatprep.subr.mxu0 0.0
  %2728 = vmatpush1.msra.mxu0 %v1960
  %2729 = vmatprep.subr.mxu0 0.0
  %2730 = vmatpush1.msra.mxu0 %v1959
  %2731 = vmatprep.subr.mxu0 0.0
  %2732 = vmatpush1.msra.mxu0 %v1958
  %2733 = vmatprep.subr.mxu0 0.0
  %2734 = vmatpush1.msra.mxu0 %v1957
  %2735 = vmatprep.subr.mxu0 0.0
  %2736 = vmatpush2.msra.mxu0 0.0
  %2737 = vmatprep.subr.mxu0 0.0
  %2738 = vmatpush2.msra.mxu0 0.0
  %2739 = vmatprep.subr.mxu0 0.0
  %2740 = vmatpush2.msra.mxu0 0.0
  %2741 = vmatprep.subr.mxu0 0.0
  %2742 = vmatpush2.msra.mxu0 0.0
  %2743 = vmatprep.subr.mxu0 0.0
  %2744 = vmatpush2.msra.mxu0 0.0
  %2745 = vmatprep.subr.mxu0 0.0
  %2746 = vmatpush2.msra.mxu0 0.0
  %2747 = vmatprep.subr.mxu0 0.0
  %2748 = vmatpush2.msra.mxu0 0.0
  %2749 = vmatprep.subr.mxu0 0.0
  %2750 = vmatpush2.msra.mxu0 0.0
  %2751 = vmatprep.subr.mxu0 0.0
  %2752 = vmatpush2.msra.mxu0 0.0
  %2753 = vmatprep.subr.mxu0 0.0
  %2754 = vmatpush2.msra.mxu0 0.0
  %2755 = vmatprep.subr.mxu0 0.0
  %2756 = vmatpush2.msra.mxu0 0.0
  %2757 = vmatprep.subr.mxu0 0.0
  %2758 = vmatpush2.msra.mxu0 0.0
  %2759 = vmatprep.subr.mxu0 0.0
  %2760 = vmatpush2.msra.mxu0 0.0
  %2761 = vmatprep.subr.mxu0 0.0
  %2762 = vmatpush2.msra.mxu0 0.0
  %2763 = vmatprep.subr.mxu0 0.0
  %2764 = vmatpush2.msra.mxu0 0.0
  %2765 = vmatprep.subr.mxu0 0.0
  %2766 = vmatpush2.msra.mxu0 0.0
  %2767 = vmatprep.mubr.f32.mxu0 0.0
  %2768 = vmatmul.mubr.f32.gmra.mxu0 %v2120
  %v2769 = vpop.f32.mrf.mxu0
  %v2770 = vadd.f32 %v2561, %v2769
  %v2771 = vpop.f32.mrf.mxu0
  %2772 = vdwg.mxu0
  %2773 = vmatprep.subr.mxu0 0.0
  %2774 = vmatpush1.msra.mxu0 0.0
  %2775 = vmatprep.subr.mxu0 0.0
  %2776 = vmatpush1.msra.mxu0 0.0
  %2777 = vmatprep.subr.mxu0 0.0
  %2778 = vmatpush1.msra.mxu0 0.0
  %2779 = vmatprep.subr.mxu0 0.0
  %2780 = vmatpush1.msra.mxu0 0.0
  %2781 = vmatprep.subr.mxu0 0.0
  %2782 = vmatpush1.msra.mxu0 0.0
  %2783 = vmatprep.subr.mxu0 0.0
  %2784 = vmatpush1.msra.mxu0 0.0
  %2785 = vmatprep.subr.mxu0 0.0
  %2786 = vmatpush1.msra.mxu0 0.0
  %2787 = vmatprep.subr.mxu0 0.0
  %2788 = vmatpush1.msra.mxu0 0.0
  %2789 = vmatprep.subr.mxu0 0.0
  %2790 = vmatpush1.msra.mxu0 %v1964
  %2791 = vmatprep.subr.mxu0 0.0
  %2792 = vmatpush1.msra.mxu0 %v1963
  %2793 = vmatprep.subr.mxu0 0.0
  %2794 = vmatpush1.msra.mxu0 %v1962
  %2795 = vmatprep.subr.mxu0 0.0
  %2796 = vmatpush1.msra.mxu0 %v1961
  %2797 = vmatprep.subr.mxu0 0.0
  %2798 = vmatpush1.msra.mxu0 %v1960
  %2799 = vmatprep.subr.mxu0 0.0
  %2800 = vmatpush1.msra.mxu0 %v1959
  %2801 = vmatprep.subr.mxu0 0.0
  %2802 = vmatpush1.msra.mxu0 %v1958
  %2803 = vmatprep.subr.mxu0 0.0
  %2804 = vmatpush1.msra.mxu0 %v1957
  %2805 = vmatprep.subr.mxu0 0.0
  %2806 = vmatpush2.msra.mxu0 0.0
  %2807 = vmatprep.subr.mxu0 0.0
  %2808 = vmatpush2.msra.mxu0 0.0
  %2809 = vmatprep.subr.mxu0 0.0
  %2810 = vmatpush2.msra.mxu0 0.0
  %2811 = vmatprep.subr.mxu0 0.0
  %2812 = vmatpush2.msra.mxu0 0.0
  %2813 = vmatprep.subr.mxu0 0.0
  %2814 = vmatpush2.msra.mxu0 0.0
  %2815 = vmatprep.subr.mxu0 0.0
  %2816 = vmatpush2.msra.mxu0 0.0
  %2817 = vmatprep.subr.mxu0 0.0
  %2818 = vmatpush2.msra.mxu0 0.0
  %2819 = vmatprep.subr.mxu0 0.0
  %2820 = vmatpush2.msra.mxu0 0.0
  %2821 = vmatprep.subr.mxu0 0.0
  %2822 = vmatpush2.msra.mxu0 0.0
  %2823 = vmatprep.subr.mxu0 0.0
  %2824 = vmatpush2.msra.mxu0 0.0
  %2825 = vmatprep.subr.mxu0 0.0
  %2826 = vmatpush2.msra.mxu0 0.0
  %2827 = vmatprep.subr.mxu0 0.0
  %2828 = vmatpush2.msra.mxu0 0.0
  %2829 = vmatprep.subr.mxu0 0.0
  %2830 = vmatpush2.msra.mxu0 0.0
  %2831 = vmatprep.subr.mxu0 0.0
  %2832 = vmatpush2.msra.mxu0 0.0
  %2833 = vmatprep.subr.mxu0 0.0
  %2834 = vmatpush2.msra.mxu0 0.0
  %2835 = vmatprep.subr.mxu0 0.0
  %2836 = vmatpush2.msra.mxu0 0.0
  %2837 = vmatprep.mubr.f32.mxu0 0.0
  %2838 = vmatmul.mubr.f32.gmra.mxu0 %v2193
  %v2839 = vpop.f32.mrf.mxu0
  %v2840 = vadd.f32 %v2561, %v2839
  %v2841 = vpop.f32.mrf.mxu0
  %2842 = vdwg.mxu0
  %2843 = vmatprep.subr.mxu0 0.0
  %2844 = vmatpush1.msra.mxu0 0.0
  %2845 = vmatprep.subr.mxu0 0.0
  %2846 = vmatpush1.msra.mxu0 0.0
  %2847 = vmatprep.subr.mxu0 0.0
  %2848 = vmatpush1.msra.mxu0 0.0
  %2849 = vmatprep.subr.mxu0 0.0
  %2850 = vmatpush1.msra.mxu0 0.0
  %2851 = vmatprep.subr.mxu0 0.0
  %2852 = vmatpush1.msra.mxu0 0.0
  %2853 = vmatprep.subr.mxu0 0.0
  %2854 = vmatpush1.msra.mxu0 0.0
  %2855 = vmatprep.subr.mxu0 0.0
  %2856 = vmatpush1.msra.mxu0 0.0
  %2857 = vmatprep.subr.mxu0 0.0
  %2858 = vmatpush1.msra.mxu0 0.0
  %2859 = vmatprep.subr.mxu0 0.0
  %2860 = vmatpush1.msra.mxu0 %v1964
  %2861 = vmatprep.subr.mxu0 0.0
  %2862 = vmatpush1.msra.mxu0 %v1963
  %2863 = vmatprep.subr.mxu0 0.0
  %2864 = vmatpush1.msra.mxu0 %v1962
  %2865 = vmatprep.subr.mxu0 0.0
  %2866 = vmatpush1.msra.mxu0 %v1961
  %2867 = vmatprep.subr.mxu0 0.0
  %2868 = vmatpush1.msra.mxu0 %v1960
  %2869 = vmatprep.subr.mxu0 0.0
  %2870 = vmatpush1.msra.mxu0 %v1959
  %2871 = vmatprep.subr.mxu0 0.0
  %2872 = vmatpush1.msra.mxu0 %v1958
  %2873 = vmatprep.subr.mxu0 0.0
  %2874 = vmatpush1.msra.mxu0 %v1957
  %2875 = vmatprep.subr.mxu0 0.0
  %2876 = vmatpush2.msra.mxu0 0.0
  %2877 = vmatprep.subr.mxu0 0.0
  %2878 = vmatpush2.msra.mxu0 0.0
  %2879 = vmatprep.subr.mxu0 0.0
  %2880 = vmatpush2.msra.mxu0 0.0
  %2881 = vmatprep.subr.mxu0 0.0
  %2882 = vmatpush2.msra.mxu0 0.0
  %2883 = vmatprep.subr.mxu0 0.0
  %2884 = vmatpush2.msra.mxu0 0.0
  %2885 = vmatprep.subr.mxu0 0.0
  %2886 = vmatpush2.msra.mxu0 0.0
  %2887 = vmatprep.subr.mxu0 0.0
  %2888 = vmatpush2.msra.mxu0 0.0
  %2889 = vmatprep.subr.mxu0 0.0
  %2890 = vmatpush2.msra.mxu0 0.0
  %2891 = vmatprep.subr.mxu0 0.0
  %2892 = vmatpush2.msra.mxu0 0.0
  %2893 = vmatprep.subr.mxu0 0.0
  %2894 = vmatpush2.msra.mxu0 0.0
  %2895 = vmatprep.subr.mxu0 0.0
  %2896 = vmatpush2.msra.mxu0 0.0
  %2897 = vmatprep.subr.mxu0 0.0
  %2898 = vmatpush2.msra.mxu0 0.0
  %2899 = vmatprep.subr.mxu0 0.0
  %2900 = vmatpush2.msra.mxu0 0.0
  %2901 = vmatprep.subr.mxu0 0.0
  %2902 = vmatpush2.msra.mxu0 0.0
  %2903 = vmatprep.subr.mxu0 0.0
  %2904 = vmatpush2.msra.mxu0 0.0
  %2905 = vmatprep.subr.mxu0 0.0
  %2906 = vmatpush2.msra.mxu0 0.0
  %2907 = vmatprep.mubr.f32.mxu0 0.0
  %2908 = vmatmul.mubr.f32.gmra.mxu0 %v2266
  %v2909 = vpop.f32.mrf.mxu0
  %v2910 = vadd.f32 %v2561, %v2909
  %v2911 = vpop.f32.mrf.mxu0
  %2912 = vdwg.mxu0
  %2913 = vmatprep.subr.mxu0 0.0
  %2914 = vmatpush1.msra.mxu0 0.0
  %2915 = vmatprep.subr.mxu0 0.0
  %2916 = vmatpush1.msra.mxu0 0.0
  %2917 = vmatprep.subr.mxu0 0.0
  %2918 = vmatpush1.msra.mxu0 0.0
  %2919 = vmatprep.subr.mxu0 0.0
  %2920 = vmatpush1.msra.mxu0 0.0
  %2921 = vmatprep.subr.mxu0 0.0
  %2922 = vmatpush1.msra.mxu0 0.0
  %2923 = vmatprep.subr.mxu0 0.0
  %2924 = vmatpush1.msra.mxu0 0.0
  %2925 = vmatprep.subr.mxu0 0.0
  %2926 = vmatpush1.msra.mxu0 0.0
  %2927 = vmatprep.subr.mxu0 0.0
  %2928 = vmatpush1.msra.mxu0 0.0
  %2929 = vmatprep.subr.mxu0 0.0
  %2930 = vmatpush1.msra.mxu0 %v1964
  %2931 = vmatprep.subr.mxu0 0.0
  %2932 = vmatpush1.msra.mxu0 %v1963
  %2933 = vmatprep.subr.mxu0 0.0
  %2934 = vmatpush1.msra.mxu0 %v1962
  %2935 = vmatprep.subr.mxu0 0.0
  %2936 = vmatpush1.msra.mxu0 %v1961
  %2937 = vmatprep.subr.mxu0 0.0
  %2938 = vmatpush1.msra.mxu0 %v1960
  %2939 = vmatprep.subr.mxu0 0.0
  %2940 = vmatpush1.msra.mxu0 %v1959
  %2941 = vmatprep.subr.mxu0 0.0
  %2942 = vmatpush1.msra.mxu0 %v1958
  %2943 = vmatprep.subr.mxu0 0.0
  %2944 = vmatpush1.msra.mxu0 %v1957
  %2945 = vmatprep.subr.mxu0 0.0
  %2946 = vmatpush2.msra.mxu0 0.0
  %2947 = vmatprep.subr.mxu0 0.0
  %2948 = vmatpush2.msra.mxu0 0.0
  %2949 = vmatprep.subr.mxu0 0.0
  %2950 = vmatpush2.msra.mxu0 0.0
  %2951 = vmatprep.subr.mxu0 0.0
  %2952 = vmatpush2.msra.mxu0 0.0
  %2953 = vmatprep.subr.mxu0 0.0
  %2954 = vmatpush2.msra.mxu0 0.0
  %2955 = vmatprep.subr.mxu0 0.0
  %2956 = vmatpush2.msra.mxu0 0.0
  %2957 = vmatprep.subr.mxu0 0.0
  %2958 = vmatpush2.msra.mxu0 0.0
  %2959 = vmatprep.subr.mxu0 0.0
  %2960 = vmatpush2.msra.mxu0 0.0
  %2961 = vmatprep.subr.mxu0 0.0
  %2962 = vmatpush2.msra.mxu0 0.0
  %2963 = vmatprep.subr.mxu0 0.0
  %2964 = vmatpush2.msra.mxu0 0.0
  %2965 = vmatprep.subr.mxu0 0.0
  %2966 = vmatpush2.msra.mxu0 0.0
  %2967 = vmatprep.subr.mxu0 0.0
  %2968 = vmatpush2.msra.mxu0 0.0
  %2969 = vmatprep.subr.mxu0 0.0
  %2970 = vmatpush2.msra.mxu0 0.0
  %2971 = vmatprep.subr.mxu0 0.0
  %2972 = vmatpush2.msra.mxu0 0.0
  %2973 = vmatprep.subr.mxu0 0.0
  %2974 = vmatpush2.msra.mxu0 0.0
  %2975 = vmatprep.subr.mxu0 0.0
  %2976 = vmatpush2.msra.mxu0 0.0
  %2977 = vmatprep.mubr.f32.mxu0 0.0
  %2978 = vmatmul.mubr.f32.gmra.mxu0 %v2339
  %v2979 = vpop.f32.mrf.mxu0
  %v2980 = vadd.f32 %v2561, %v2979
  %v2981 = vpop.f32.mrf.mxu0
  %2982 = vdwg.mxu0
  %2983 = vmatprep.subr.mxu0 0.0
  %2984 = vmatpush1.msra.mxu0 0.0
  %2985 = vmatprep.subr.mxu0 0.0
  %2986 = vmatpush1.msra.mxu0 0.0
  %2987 = vmatprep.subr.mxu0 0.0
  %2988 = vmatpush1.msra.mxu0 0.0
  %2989 = vmatprep.subr.mxu0 0.0
  %2990 = vmatpush1.msra.mxu0 0.0
  %2991 = vmatprep.subr.mxu0 0.0
  %2992 = vmatpush1.msra.mxu0 0.0
  %2993 = vmatprep.subr.mxu0 0.0
  %2994 = vmatpush1.msra.mxu0 0.0
  %2995 = vmatprep.subr.mxu0 0.0
  %2996 = vmatpush1.msra.mxu0 0.0
  %2997 = vmatprep.subr.mxu0 0.0
  %2998 = vmatpush1.msra.mxu0 0.0
  %2999 = vmatprep.subr.mxu0 0.0
  %3000 = vmatpush1.msra.mxu0 %v1964
  %3001 = vmatprep.subr.mxu0 0.0
  %3002 = vmatpush1.msra.mxu0 %v1963
  %3003 = vmatprep.subr.mxu0 0.0
  %3004 = vmatpush1.msra.mxu0 %v1962
  %3005 = vmatprep.subr.mxu0 0.0
  %3006 = vmatpush1.msra.mxu0 %v1961
  %3007 = vmatprep.subr.mxu0 0.0
  %3008 = vmatpush1.msra.mxu0 %v1960
  %3009 = vmatprep.subr.mxu0 0.0
  %3010 = vmatpush1.msra.mxu0 %v1959
  %3011 = vmatprep.subr.mxu0 0.0
  %3012 = vmatpush1.msra.mxu0 %v1958
  %3013 = vmatprep.subr.mxu0 0.0
  %3014 = vmatpush1.msra.mxu0 %v1957
  %3015 = vmatprep.subr.mxu0 0.0
  %3016 = vmatpush2.msra.mxu0 0.0
  %3017 = vmatprep.subr.mxu0 0.0
  %3018 = vmatpush2.msra.mxu0 0.0
  %3019 = vmatprep.subr.mxu0 0.0
  %3020 = vmatpush2.msra.mxu0 0.0
  %3021 = vmatprep.subr.mxu0 0.0
  %3022 = vmatpush2.msra.mxu0 0.0
  %3023 = vmatprep.subr.mxu0 0.0
  %3024 = vmatpush2.msra.mxu0 0.0
  %3025 = vmatprep.subr.mxu0 0.0
  %3026 = vmatpush2.msra.mxu0 0.0
  %3027 = vmatprep.subr.mxu0 0.0
  %3028 = vmatpush2.msra.mxu0 0.0
  %3029 = vmatprep.subr.mxu0 0.0
  %3030 = vmatpush2.msra.mxu0 0.0
  %3031 = vmatprep.subr.mxu0 0.0
  %3032 = vmatpush2.msra.mxu0 0.0
  %3033 = vmatprep.subr.mxu0 0.0
  %3034 = vmatpush2.msra.mxu0 0.0
  %3035 = vmatprep.subr.mxu0 0.0
  %3036 = vmatpush2.msra.mxu0 0.0
  %3037 = vmatprep.subr.mxu0 0.0
  %3038 = vmatpush2.msra.mxu0 0.0
  %3039 = vmatprep.subr.mxu0 0.0
  %3040 = vmatpush2.msra.mxu0 0.0
  %3041 = vmatprep.subr.mxu0 0.0
  %3042 = vmatpush2.msra.mxu0 0.0
  %3043 = vmatprep.subr.mxu0 0.0
  %3044 = vmatpush2.msra.mxu0 0.0
  %3045 = vmatprep.subr.mxu0 0.0
  %3046 = vmatpush2.msra.mxu0 0.0
  %3047 = vmatprep.mubr.f32.mxu0 0.0
  %3048 = vmatmul.mubr.f32.gmra.mxu0 %v2412
  %v3049 = vpop.f32.mrf.mxu0
  %v3050 = vadd.f32 %v2561, %v3049
  %v3051 = vpop.f32.mrf.mxu0
  %3052 = vdwg.mxu0
  %3053 = vmatprep.subr.mxu0 0.0
  %3054 = vmatpush1.msra.mxu0 0.0
  %3055 = vmatprep.subr.mxu0 0.0
  %3056 = vmatpush1.msra.mxu0 0.0
  %3057 = vmatprep.subr.mxu0 0.0
  %3058 = vmatpush1.msra.mxu0 0.0
  %3059 = vmatprep.subr.mxu0 0.0
  %3060 = vmatpush1.msra.mxu0 0.0
  %3061 = vmatprep.subr.mxu0 0.0
  %3062 = vmatpush1.msra.mxu0 0.0
  %3063 = vmatprep.subr.mxu0 0.0
  %3064 = vmatpush1.msra.mxu0 0.0
  %3065 = vmatprep.subr.mxu0 0.0
  %3066 = vmatpush1.msra.mxu0 0.0
  %3067 = vmatprep.subr.mxu0 0.0
  %3068 = vmatpush1.msra.mxu0 0.0
  %3069 = vmatprep.subr.mxu0 0.0
  %3070 = vmatpush1.msra.mxu0 %v1964
  %3071 = vmatprep.subr.mxu0 0.0
  %3072 = vmatpush1.msra.mxu0 %v1963
  %3073 = vmatprep.subr.mxu0 0.0
  %3074 = vmatpush1.msra.mxu0 %v1962
  %3075 = vmatprep.subr.mxu0 0.0
  %3076 = vmatpush1.msra.mxu0 %v1961
  %3077 = vmatprep.subr.mxu0 0.0
  %3078 = vmatpush1.msra.mxu0 %v1960
  %3079 = vmatprep.subr.mxu0 0.0
  %3080 = vmatpush1.msra.mxu0 %v1959
  %3081 = vmatprep.subr.mxu0 0.0
  %3082 = vmatpush1.msra.mxu0 %v1958
  %3083 = vmatprep.subr.mxu0 0.0
  %3084 = vmatpush1.msra.mxu0 %v1957
  %3085 = vmatprep.subr.mxu0 0.0
  %3086 = vmatpush2.msra.mxu0 0.0
  %3087 = vmatprep.subr.mxu0 0.0
  %3088 = vmatpush2.msra.mxu0 0.0
  %3089 = vmatprep.subr.mxu0 0.0
  %3090 = vmatpush2.msra.mxu0 0.0
  %3091 = vmatprep.subr.mxu0 0.0
  %3092 = vmatpush2.msra.mxu0 0.0
  %3093 = vmatprep.subr.mxu0 0.0
  %3094 = vmatpush2.msra.mxu0 0.0
  %3095 = vmatprep.subr.mxu0 0.0
  %3096 = vmatpush2.msra.mxu0 0.0
  %3097 = vmatprep.subr.mxu0 0.0
  %3098 = vmatpush2.msra.mxu0 0.0
  %3099 = vmatprep.subr.mxu0 0.0
  %3100 = vmatpush2.msra.mxu0 0.0
  %3101 = vmatprep.subr.mxu0 0.0
  %3102 = vmatpush2.msra.mxu0 0.0
  %3103 = vmatprep.subr.mxu0 0.0
  %3104 = vmatpush2.msra.mxu0 0.0
  %3105 = vmatprep.subr.mxu0 0.0
  %3106 = vmatpush2.msra.mxu0 0.0
  %3107 = vmatprep.subr.mxu0 0.0
  %3108 = vmatpush2.msra.mxu0 0.0
  %3109 = vmatprep.subr.mxu0 0.0
  %3110 = vmatpush2.msra.mxu0 0.0
  %3111 = vmatprep.subr.mxu0 0.0
  %3112 = vmatpush2.msra.mxu0 0.0
  %3113 = vmatprep.subr.mxu0 0.0
  %3114 = vmatpush2.msra.mxu0 0.0
  %3115 = vmatprep.subr.mxu0 0.0
  %3116 = vmatpush2.msra.mxu0 0.0
  %3117 = vmatprep.mubr.f32.mxu0 0.0
  %3118 = vmatmul.mubr.f32.gmra.mxu0 %v2485
  %v3119 = vpop.f32.mrf.mxu0
  %v3120 = vadd.f32 %v2561, %v3119
  %v3121 = vpop.f32.mrf.mxu0
  %3122 = vdwg.mxu0
  %v3123 = vld [vmem:[%s8] sm:$0xff]
  %v3124 = vld [vmem:[%s8 + $0x8] sm:$0xff]
  %v3125 = vld [vmem:[%s8 + $0x10] sm:$0xff]
  %v3126 = vld [vmem:[%s8 + $0x18] sm:$0xff]
  %v3127 = vld [vmem:[%s9] sm:$0xff]
  %v3128 = vld [vmem:[%s9 + $0x8] sm:$0xff]
  %v3129 = vld [vmem:[%s9 + $0x10] sm:$0xff]
  %v3130 = vld [vmem:[%s9 + $0x18] sm:$0xff]
  %v3131 = vld [vmem:[%s12] sm:$0x1]
  %v3132 = vld [vmem:[%s13] sm:$0x1]
  %v3134 = vlaneseq
  %v3135 = vshrl.u32 %v3134, 7
  %v3136 = vsub.s32 0, %v3135
  %v3137 = vrot.slane %v3131, %v3136
  %3139 = vmatprep.subr.mxu0 0.0
  %3140 = vmatpush1.msra.mxu0 0.0
  %3141 = vmatprep.subr.mxu0 0.0
  %3142 = vmatpush1.msra.mxu0 0.0
  %3143 = vmatprep.subr.mxu0 0.0
  %3144 = vmatpush1.msra.mxu0 0.0
  %3145 = vmatprep.subr.mxu0 0.0
  %3146 = vmatpush1.msra.mxu0 0.0
  %3147 = vmatprep.subr.mxu0 0.0
  %3148 = vmatpush1.msra.mxu0 0.0
  %3149 = vmatprep.subr.mxu0 0.0
  %3150 = vmatpush1.msra.mxu0 0.0
  %3151 = vmatprep.subr.mxu0 0.0
  %3152 = vmatpush1.msra.mxu0 0.0
  %3153 = vmatprep.subr.mxu0 0.0
  %3154 = vmatpush1.msra.mxu0 0.0
  %3155 = vmatprep.subr.mxu0 0.0
  %3156 = vmatpush1.msra.mxu0 0.0
  %3157 = vmatprep.subr.mxu0 0.0
  %3158 = vmatpush1.msra.mxu0 0.0
  %3159 = vmatprep.subr.mxu0 0.0
  %3160 = vmatpush1.msra.mxu0 0.0
  %3161 = vmatprep.subr.mxu0 0.0
  %3162 = vmatpush1.msra.mxu0 0.0
  %3163 = vmatprep.subr.mxu0 0.0
  %3164 = vmatpush1.msra.mxu0 %v3126
  %3165 = vmatprep.subr.mxu0 0.0
  %3166 = vmatpush1.msra.mxu0 %v3125
  %3167 = vmatprep.subr.mxu0 0.0
  %3168 = vmatpush1.msra.mxu0 %v3124
  %3169 = vmatprep.subr.mxu0 0.0
  %3170 = vmatpush1.msra.mxu0 %v3123
  %3171 = vmatprep.subr.mxu0 0.0
  %3172 = vmatpush2.msra.mxu0 0.0
  %3173 = vmatprep.subr.mxu0 0.0
  %3174 = vmatpush2.msra.mxu0 0.0
  %3175 = vmatprep.subr.mxu0 0.0
  %3176 = vmatpush2.msra.mxu0 0.0
  %3177 = vmatprep.subr.mxu0 0.0
  %3178 = vmatpush2.msra.mxu0 0.0
  %3179 = vmatprep.subr.mxu0 0.0
  %3180 = vmatpush2.msra.mxu0 0.0
  %3181 = vmatprep.subr.mxu0 0.0
  %3182 = vmatpush2.msra.mxu0 0.0
  %3183 = vmatprep.subr.mxu0 0.0
  %3184 = vmatpush2.msra.mxu0 0.0
  %3185 = vmatprep.subr.mxu0 0.0
  %3186 = vmatpush2.msra.mxu0 0.0
  %3187 = vmatprep.subr.mxu0 0.0
  %3188 = vmatpush2.msra.mxu0 0.0
  %3189 = vmatprep.subr.mxu0 0.0
  %3190 = vmatpush2.msra.mxu0 0.0
  %3191 = vmatprep.subr.mxu0 0.0
  %3192 = vmatpush2.msra.mxu0 0.0
  %3193 = vmatprep.subr.mxu0 0.0
  %3194 = vmatpush2.msra.mxu0 0.0
  %3195 = vmatprep.subr.mxu0 0.0
  %3196 = vmatpush2.msra.mxu0 0.0
  %3197 = vmatprep.subr.mxu0 0.0
  %3198 = vmatpush2.msra.mxu0 0.0
  %3199 = vmatprep.subr.mxu0 0.0
  %3200 = vmatpush2.msra.mxu0 0.0
  %3201 = vmatprep.subr.mxu0 0.0
  %3202 = vmatpush2.msra.mxu0 0.0
  %3203 = vmatprep.mubr.f32.mxu0 0.0
  %3204 = vmatmul.mubr.f32.gmra.mxu0 %v301
  %v3205 = vpop.f32.mrf.mxu0
  %v3206 = vadd.f32 %v3137, %v3205
  %v3207 = vpop.f32.mrf.mxu0
  %3208 = vdwg.mxu0
  %v3210 = vlaneseq
  %v3211 = vshrl.u32 %v3210, 7
  %v3212 = vsub.s32 0, %v3211
  %v3213 = vrot.slane %v3132, %v3212
  %3215 = vmatprep.subr.mxu0 0.0
  %3216 = vmatpush1.msra.mxu0 0.0
  %3217 = vmatprep.subr.mxu0 0.0
  %3218 = vmatpush1.msra.mxu0 0.0
  %3219 = vmatprep.subr.mxu0 0.0
  %3220 = vmatpush1.msra.mxu0 0.0
  %3221 = vmatprep.subr.mxu0 0.0
  %3222 = vmatpush1.msra.mxu0 0.0
  %3223 = vmatprep.subr.mxu0 0.0
  %3224 = vmatpush1.msra.mxu0 0.0
  %3225 = vmatprep.subr.mxu0 0.0
  %3226 = vmatpush1.msra.mxu0 0.0
  %3227 = vmatprep.subr.mxu0 0.0
  %3228 = vmatpush1.msra.mxu0 0.0
  %3229 = vmatprep.subr.mxu0 0.0
  %3230 = vmatpush1.msra.mxu0 0.0
  %3231 = vmatprep.subr.mxu0 0.0
  %3232 = vmatpush1.msra.mxu0 0.0
  %3233 = vmatprep.subr.mxu0 0.0
  %3234 = vmatpush1.msra.mxu0 0.0
  %3235 = vmatprep.subr.mxu0 0.0
  %3236 = vmatpush1.msra.mxu0 0.0
  %3237 = vmatprep.subr.mxu0 0.0
  %3238 = vmatpush1.msra.mxu0 0.0
  %3239 = vmatprep.subr.mxu0 0.0
  %3240 = vmatpush1.msra.mxu0 %v3130
  %3241 = vmatprep.subr.mxu0 0.0
  %3242 = vmatpush1.msra.mxu0 %v3129
  %3243 = vmatprep.subr.mxu0 0.0
  %3244 = vmatpush1.msra.mxu0 %v3128
  %3245 = vmatprep.subr.mxu0 0.0
  %3246 = vmatpush1.msra.mxu0 %v3127
  %3247 = vmatprep.subr.mxu0 0.0
  %3248 = vmatpush2.msra.mxu0 0.0
  %3249 = vmatprep.subr.mxu0 0.0
  %3250 = vmatpush2.msra.mxu0 0.0
  %3251 = vmatprep.subr.mxu0 0.0
  %3252 = vmatpush2.msra.mxu0 0.0
  %3253 = vmatprep.subr.mxu0 0.0
  %3254 = vmatpush2.msra.mxu0 0.0
  %3255 = vmatprep.subr.mxu0 0.0
  %3256 = vmatpush2.msra.mxu0 0.0
  %3257 = vmatprep.subr.mxu0 0.0
  %3258 = vmatpush2.msra.mxu0 0.0
  %3259 = vmatprep.subr.mxu0 0.0
  %3260 = vmatpush2.msra.mxu0 0.0
  %3261 = vmatprep.subr.mxu0 0.0
  %3262 = vmatpush2.msra.mxu0 0.0
  %3263 = vmatprep.subr.mxu0 0.0
  %3264 = vmatpush2.msra.mxu0 0.0
  %3265 = vmatprep.subr.mxu0 0.0
  %3266 = vmatpush2.msra.mxu0 0.0
  %3267 = vmatprep.subr.mxu0 0.0
  %3268 = vmatpush2.msra.mxu0 0.0
  %3269 = vmatprep.subr.mxu0 0.0
  %3270 = vmatpush2.msra.mxu0 0.0
  %3271 = vmatprep.subr.mxu0 0.0
  %3272 = vmatpush2.msra.mxu0 0.0
  %3273 = vmatprep.subr.mxu0 0.0
  %3274 = vmatpush2.msra.mxu0 0.0
  %3275 = vmatprep.subr.mxu0 0.0
  %3276 = vmatpush2.msra.mxu0 0.0
  %3277 = vmatprep.subr.mxu0 0.0
  %3278 = vmatpush2.msra.mxu0 0.0
  %3279 = vmatprep.mubr.f32.mxu0 0.0
  %3280 = vmatmul.mubr.f32.gmra.mxu0 %v301
  %v3281 = vpop.f32.mrf.mxu0
  %v3282 = vadd.f32 %v3213, %v3281
  %v3283 = vpop.f32.mrf.mxu0
  %3284 = vdwg.mxu0
  %v3285 = vadd.f32 %v2043, %v3206
  %v3286 = vxor.u32 %v3285, 2147483648
  %v3287 = vmul.f32 %v3286, 1.442695
  %v3288 = vpow.pop %v3287
  %v3289 = vadd.f32 %v3288, 1.0
  %v3290 = vrcp.pop %v3289
  %v3291 = vmul.f32 1.0, %v3290
  %v3292 = vadd.f32 %v3120, %v3282
  %v3293 = vxor.u32 %v3292, 2147483648
  %v3294 = vmul.f32 %v3293, 1.442695
  %v3295 = vpow.pop %v3294
  %v3296 = vadd.f32 %v3295, 1.0
  %v3297 = vrcp.pop %v3296
  %v3298 = vmul.f32 1.0, %v3297
  %3300 = vrot.lane.b32.xlu0 %v3206, 64
  %v3301 = vpop.permute.xlu0 %3300
  %v3303 = vmul.f32 %v3291, %v3301
  %3305 = vrot.lane.b32.xlu0 %v3303, 64
  %v3306 = vpop.permute.xlu0 %3305
  %v3308 = vadd.f32 %v2043, %v3306
  %v3309 = vtanh.pop %v3308
  %3311 = vrot.lane.b32.xlu0 %v3282, 64
  %v3312 = vpop.permute.xlu0 %3311
  %v3314 = vmul.f32 %v3298, %v3312
  %3316 = vrot.lane.b32.xlu0 %v3314, 64
  %v3317 = vpop.permute.xlu0 %3316
  %v3319 = vadd.f32 %v3120, %v3317
  %v3320 = vtanh.pop %v3319
  %v3321 = vsub.f32 1.0, %v3291
  %3323 = vrot.lane.b32.xlu0 %v3309, 96
  %v3324 = vpop.permute.xlu0 %3323
  %v3326 = vmul.f32 %v3321, %v3324
  %v3327 = vmul.f32 %v3291, 0.0
  %v3328 = vadd.f32 %v3326, %v3327
  %v3329 = vsub.f32 1.0, %v3298
  %3331 = vrot.lane.b32.xlu0 %v3320, 96
  %v3332 = vpop.permute.xlu0 %3331
  %v3334 = vmul.f32 %v3329, %v3332
  %v3335 = vmul.f32 %v3298, 0.0
  %v3336 = vadd.f32 %v3334, %v3335
  %3338 = vrot.lane.b32.xlu0 %v3328, 96
  %v3339 = vpop.permute.xlu0 %3338
  %v3340 = vsel %vm208, %v3339, 0
  %3342 = vmatprep.subr.mxu0 0.0
  %3343 = vmatpush1.msra.mxu0 0.0
  %3344 = vmatprep.subr.mxu0 0.0
  %3345 = vmatpush1.msra.mxu0 0.0
  %3346 = vmatprep.subr.mxu0 0.0
  %3347 = vmatpush1.msra.mxu0 0.0
  %3348 = vmatprep.subr.mxu0 0.0
  %3349 = vmatpush1.msra.mxu0 0.0
  %3350 = vmatprep.subr.mxu0 0.0
  %3351 = vmatpush1.msra.mxu0 0.0
  %3352 = vmatprep.subr.mxu0 0.0
  %3353 = vmatpush1.msra.mxu0 0.0
  %3354 = vmatprep.subr.mxu0 0.0
  %3355 = vmatpush1.msra.mxu0 0.0
  %3356 = vmatprep.subr.mxu0 0.0
  %3357 = vmatpush1.msra.mxu0 0.0
  %3358 = vmatprep.subr.mxu0 0.0
  %3359 = vmatpush1.msra.mxu0 0.0
  %3360 = vmatprep.subr.mxu0 0.0
  %3361 = vmatpush1.msra.mxu0 0.0
  %3362 = vmatprep.subr.mxu0 0.0
  %3363 = vmatpush1.msra.mxu0 0.0
  %3364 = vmatprep.subr.mxu0 0.0
  %3365 = vmatpush1.msra.mxu0 0.0
  %3366 = vmatprep.subr.mxu0 0.0
  %3367 = vmatpush1.msra.mxu0 %v3126
  %3368 = vmatprep.subr.mxu0 0.0
  %3369 = vmatpush1.msra.mxu0 %v3125
  %3370 = vmatprep.subr.mxu0 0.0
  %3371 = vmatpush1.msra.mxu0 %v3124
  %3372 = vmatprep.subr.mxu0 0.0
  %3373 = vmatpush1.msra.mxu0 %v3123
  %3374 = vmatprep.subr.mxu0 0.0
  %3375 = vmatpush2.msra.mxu0 0.0
  %3376 = vmatprep.subr.mxu0 0.0
  %3377 = vmatpush2.msra.mxu0 0.0
  %3378 = vmatprep.subr.mxu0 0.0
  %3379 = vmatpush2.msra.mxu0 0.0
  %3380 = vmatprep.subr.mxu0 0.0
  %3381 = vmatpush2.msra.mxu0 0.0
  %3382 = vmatprep.subr.mxu0 0.0
  %3383 = vmatpush2.msra.mxu0 0.0
  %3384 = vmatprep.subr.mxu0 0.0
  %3385 = vmatpush2.msra.mxu0 0.0
  %3386 = vmatprep.subr.mxu0 0.0
  %3387 = vmatpush2.msra.mxu0 0.0
  %3388 = vmatprep.subr.mxu0 0.0
  %3389 = vmatpush2.msra.mxu0 0.0
  %3390 = vmatprep.subr.mxu0 0.0
  %3391 = vmatpush2.msra.mxu0 0.0
  %3392 = vmatprep.subr.mxu0 0.0
  %3393 = vmatpush2.msra.mxu0 0.0
  %3394 = vmatprep.subr.mxu0 0.0
  %3395 = vmatpush2.msra.mxu0 0.0
  %3396 = vmatprep.subr.mxu0 0.0
  %3397 = vmatpush2.msra.mxu0 0.0
  %3398 = vmatprep.subr.mxu0 0.0
  %3399 = vmatpush2.msra.mxu0 0.0
  %3400 = vmatprep.subr.mxu0 0.0
  %3401 = vmatpush2.msra.mxu0 0.0
  %3402 = vmatprep.subr.mxu0 0.0
  %3403 = vmatpush2.msra.mxu0 0.0
  %3404 = vmatprep.subr.mxu0 0.0
  %3405 = vmatpush2.msra.mxu0 0.0
  %3406 = vmatprep.mubr.f32.mxu0 0.0
  %3407 = vmatmul.mubr.f32.gmra.mxu0 %v3340
  %v3408 = vpop.f32.mrf.mxu0
  %v3409 = vadd.f32 %v3137, %v3408
  %v3410 = vpop.f32.mrf.mxu0
  %3411 = vdwg.mxu0
  %3413 = vrot.lane.b32.xlu0 %v3336, 96
  %v3414 = vpop.permute.xlu0 %3413
  %v3415 = vsel %vm208, %v3414, 0
  %3417 = vmatprep.subr.mxu0 0.0
  %3418 = vmatpush1.msra.mxu0 0.0
  %3419 = vmatprep.subr.mxu0 0.0
  %3420 = vmatpush1.msra.mxu0 0.0
  %3421 = vmatprep.subr.mxu0 0.0
  %3422 = vmatpush1.msra.mxu0 0.0
  %3423 = vmatprep.subr.mxu0 0.0
  %3424 = vmatpush1.msra.mxu0 0.0
  %3425 = vmatprep.subr.mxu0 0.0
  %3426 = vmatpush1.msra.mxu0 0.0
  %3427 = vmatprep.subr.mxu0 0.0
  %3428 = vmatpush1.msra.mxu0 0.0
  %3429 = vmatprep.subr.mxu0 0.0
  %3430 = vmatpush1.msra.mxu0 0.0
  %3431 = vmatprep.subr.mxu0 0.0
  %3432 = vmatpush1.msra.mxu0 0.0
  %3433 = vmatprep.subr.mxu0 0.0
  %3434 = vmatpush1.msra.mxu0 0.0
  %3435 = vmatprep.subr.mxu0 0.0
  %3436 = vmatpush1.msra.mxu0 0.0
  %3437 = vmatprep.subr.mxu0 0.0
  %3438 = vmatpush1.msra.mxu0 0.0
  %3439 = vmatprep.subr.mxu0 0.0
  %3440 = vmatpush1.msra.mxu0 0.0
  %3441 = vmatprep.subr.mxu0 0.0
  %3442 = vmatpush1.msra.mxu0 %v3130
  %3443 = vmatprep.subr.mxu0 0.0
  %3444 = vmatpush1.msra.mxu0 %v3129
  %3445 = vmatprep.subr.mxu0 0.0
  %3446 = vmatpush1.msra.mxu0 %v3128
  %3447 = vmatprep.subr.mxu0 0.0
  %3448 = vmatpush1.msra.mxu0 %v3127
  %3449 = vmatprep.subr.mxu0 0.0
  %3450 = vmatpush2.msra.mxu0 0.0
  %3451 = vmatprep.subr.mxu0 0.0
  %3452 = vmatpush2.msra.mxu0 0.0
  %3453 = vmatprep.subr.mxu0 0.0
  %3454 = vmatpush2.msra.mxu0 0.0
  %3455 = vmatprep.subr.mxu0 0.0
  %3456 = vmatpush2.msra.mxu0 0.0
  %3457 = vmatprep.subr.mxu0 0.0
  %3458 = vmatpush2.msra.mxu0 0.0
  %3459 = vmatprep.subr.mxu0 0.0
  %3460 = vmatpush2.msra.mxu0 0.0
  %3461 = vmatprep.subr.mxu0 0.0
  %3462 = vmatpush2.msra.mxu0 0.0
  %3463 = vmatprep.subr.mxu0 0.0
  %3464 = vmatpush2.msra.mxu0 0.0
  %3465 = vmatprep.subr.mxu0 0.0
  %3466 = vmatpush2.msra.mxu0 0.0
  %3467 = vmatprep.subr.mxu0 0.0
  %3468 = vmatpush2.msra.mxu0 0.0
  %3469 = vmatprep.subr.mxu0 0.0
  %3470 = vmatpush2.msra.mxu0 0.0
  %3471 = vmatprep.subr.mxu0 0.0
  %3472 = vmatpush2.msra.mxu0 0.0
  %3473 = vmatprep.subr.mxu0 0.0
  %3474 = vmatpush2.msra.mxu0 0.0
  %3475 = vmatprep.subr.mxu0 0.0
  %3476 = vmatpush2.msra.mxu0 0.0
  %3477 = vmatprep.subr.mxu0 0.0
  %3478 = vmatpush2.msra.mxu0 0.0
  %3479 = vmatprep.subr.mxu0 0.0
  %3480 = vmatpush2.msra.mxu0 0.0
  %3481 = vmatprep.mubr.f32.mxu0 0.0
  %3482 = vmatmul.mubr.f32.gmra.mxu0 %v3415
  %v3483 = vpop.f32.mrf.mxu0
  %v3484 = vadd.f32 %v3213, %v3483
  %v3485 = vpop.f32.mrf.mxu0
  %3486 = vdwg.mxu0
  %v3487 = vadd.f32 %v2116, %v3409
  %v3488 = vxor.u32 %v3487, 2147483648
  %v3489 = vmul.f32 %v3488, 1.442695
  %v3490 = vpow.pop %v3489
  %v3491 = vadd.f32 %v3490, 1.0
  %v3492 = vrcp.pop %v3491
  %v3493 = vmul.f32 1.0, %v3492
  %v3494 = vadd.f32 %v3050, %v3484
  %v3495 = vxor.u32 %v3494, 2147483648
  %v3496 = vmul.f32 %v3495, 1.442695
  %v3497 = vpow.pop %v3496
  %v3498 = vadd.f32 %v3497, 1.0
  %v3499 = vrcp.pop %v3498
  %v3500 = vmul.f32 1.0, %v3499
  %3502 = vrot.lane.b32.xlu0 %v3409, 64
  %v3503 = vpop.permute.xlu0 %3502
  %v3505 = vmul.f32 %v3493, %v3503
  %3507 = vrot.lane.b32.xlu0 %v3505, 64
  %v3508 = vpop.permute.xlu0 %3507
  %v3510 = vadd.f32 %v2116, %v3508
  %v3511 = vtanh.pop %v3510
  %3513 = vrot.lane.b32.xlu0 %v3484, 64
  %v3514 = vpop.permute.xlu0 %3513
  %v3516 = vmul.f32 %v3500, %v3514
  %3518 = vrot.lane.b32.xlu0 %v3516, 64
  %v3519 = vpop.permute.xlu0 %3518
  %v3521 = vadd.f32 %v3050, %v3519
  %v3522 = vtanh.pop %v3521
  %v3523 = vsub.f32 1.0, %v3493
  %3525 = vrot.lane.b32.xlu0 %v3511, 96
  %v3526 = vpop.permute.xlu0 %3525
  %v3528 = vmul.f32 %v3523, %v3526
  %v3529 = vmul.f32 %v3493, %v3328
  %v3530 = vadd.f32 %v3528, %v3529
  %v3531 = vsub.f32 1.0, %v3500
  %3533 = vrot.lane.b32.xlu0 %v3522, 96
  %v3534 = vpop.permute.xlu0 %3533
  %v3536 = vmul.f32 %v3531, %v3534
  %v3537 = vmul.f32 %v3500, %v3336
  %v3538 = vadd.f32 %v3536, %v3537
  %3540 = vrot.lane.b32.xlu0 %v3530, 96
  %v3541 = vpop.permute.xlu0 %3540
  %v3542 = vsel %vm208, %v3541, 0
  %3544 = vmatprep.subr.mxu0 0.0
  %3545 = vmatpush1.msra.mxu0 0.0
  %3546 = vmatprep.subr.mxu0 0.0
  %3547 = vmatpush1.msra.mxu0 0.0
  %3548 = vmatprep.subr.mxu0 0.0
  %3549 = vmatpush1.msra.mxu0 0.0
  %3550 = vmatprep.subr.mxu0 0.0
  %3551 = vmatpush1.msra.mxu0 0.0
  %3552 = vmatprep.subr.mxu0 0.0
  %3553 = vmatpush1.msra.mxu0 0.0
  %3554 = vmatprep.subr.mxu0 0.0
  %3555 = vmatpush1.msra.mxu0 0.0
  %3556 = vmatprep.subr.mxu0 0.0
  %3557 = vmatpush1.msra.mxu0 0.0
  %3558 = vmatprep.subr.mxu0 0.0
  %3559 = vmatpush1.msra.mxu0 0.0
  %3560 = vmatprep.subr.mxu0 0.0
  %3561 = vmatpush1.msra.mxu0 0.0
  %3562 = vmatprep.subr.mxu0 0.0
  %3563 = vmatpush1.msra.mxu0 0.0
  %3564 = vmatprep.subr.mxu0 0.0
  %3565 = vmatpush1.msra.mxu0 0.0
  %3566 = vmatprep.subr.mxu0 0.0
  %3567 = vmatpush1.msra.mxu0 0.0
  %3568 = vmatprep.subr.mxu0 0.0
  %3569 = vmatpush1.msra.mxu0 %v3126
  %3570 = vmatprep.subr.mxu0 0.0
  %3571 = vmatpush1.msra.mxu0 %v3125
  %3572 = vmatprep.subr.mxu0 0.0
  %3573 = vmatpush1.msra.mxu0 %v3124
  %3574 = vmatprep.subr.mxu0 0.0
  %3575 = vmatpush1.msra.mxu0 %v3123
  %3576 = vmatprep.subr.mxu0 0.0
  %3577 = vmatpush2.msra.mxu0 0.0
  %3578 = vmatprep.subr.mxu0 0.0
  %3579 = vmatpush2.msra.mxu0 0.0
  %3580 = vmatprep.subr.mxu0 0.0
  %3581 = vmatpush2.msra.mxu0 0.0
  %3582 = vmatprep.subr.mxu0 0.0
  %3583 = vmatpush2.msra.mxu0 0.0
  %3584 = vmatprep.subr.mxu0 0.0
  %3585 = vmatpush2.msra.mxu0 0.0
  %3586 = vmatprep.subr.mxu0 0.0
  %3587 = vmatpush2.msra.mxu0 0.0
  %3588 = vmatprep.subr.mxu0 0.0
  %3589 = vmatpush2.msra.mxu0 0.0
  %3590 = vmatprep.subr.mxu0 0.0
  %3591 = vmatpush2.msra.mxu0 0.0
  %3592 = vmatprep.subr.mxu0 0.0
  %3593 = vmatpush2.msra.mxu0 0.0
  %3594 = vmatprep.subr.mxu0 0.0
  %3595 = vmatpush2.msra.mxu0 0.0
  %3596 = vmatprep.subr.mxu0 0.0
  %3597 = vmatpush2.msra.mxu0 0.0
  %3598 = vmatprep.subr.mxu0 0.0
  %3599 = vmatpush2.msra.mxu0 0.0
  %3600 = vmatprep.subr.mxu0 0.0
  %3601 = vmatpush2.msra.mxu0 0.0
  %3602 = vmatprep.subr.mxu0 0.0
  %3603 = vmatpush2.msra.mxu0 0.0
  %3604 = vmatprep.subr.mxu0 0.0
  %3605 = vmatpush2.msra.mxu0 0.0
  %3606 = vmatprep.subr.mxu0 0.0
  %3607 = vmatpush2.msra.mxu0 0.0
  %3608 = vmatprep.mubr.f32.mxu0 0.0
  %3609 = vmatmul.mubr.f32.gmra.mxu0 %v3542
  %v3610 = vpop.f32.mrf.mxu0
  %v3611 = vadd.f32 %v3137, %v3610
  %v3612 = vpop.f32.mrf.mxu0
  %3613 = vdwg.mxu0
  %3615 = vrot.lane.b32.xlu0 %v3538, 96
  %v3616 = vpop.permute.xlu0 %3615
  %v3617 = vsel %vm208, %v3616, 0
  %3619 = vmatprep.subr.mxu0 0.0
  %3620 = vmatpush1.msra.mxu0 0.0
  %3621 = vmatprep.subr.mxu0 0.0
  %3622 = vmatpush1.msra.mxu0 0.0
  %3623 = vmatprep.subr.mxu0 0.0
  %3624 = vmatpush1.msra.mxu0 0.0
  %3625 = vmatprep.subr.mxu0 0.0
  %3626 = vmatpush1.msra.mxu0 0.0
  %3627 = vmatprep.subr.mxu0 0.0
  %3628 = vmatpush1.msra.mxu0 0.0
  %3629 = vmatprep.subr.mxu0 0.0
  %3630 = vmatpush1.msra.mxu0 0.0
  %3631 = vmatprep.subr.mxu0 0.0
  %3632 = vmatpush1.msra.mxu0 0.0
  %3633 = vmatprep.subr.mxu0 0.0
  %3634 = vmatpush1.msra.mxu0 0.0
  %3635 = vmatprep.subr.mxu0 0.0
  %3636 = vmatpush1.msra.mxu0 0.0
  %3637 = vmatprep.subr.mxu0 0.0
  %3638 = vmatpush1.msra.mxu0 0.0
  %3639 = vmatprep.subr.mxu0 0.0
  %3640 = vmatpush1.msra.mxu0 0.0
  %3641 = vmatprep.subr.mxu0 0.0
  %3642 = vmatpush1.msra.mxu0 0.0
  %3643 = vmatprep.subr.mxu0 0.0
  %3644 = vmatpush1.msra.mxu0 %v3130
  %3645 = vmatprep.subr.mxu0 0.0
  %3646 = vmatpush1.msra.mxu0 %v3129
  %3647 = vmatprep.subr.mxu0 0.0
  %3648 = vmatpush1.msra.mxu0 %v3128
  %3649 = vmatprep.subr.mxu0 0.0
  %3650 = vmatpush1.msra.mxu0 %v3127
  %3651 = vmatprep.subr.mxu0 0.0
  %3652 = vmatpush2.msra.mxu0 0.0
  %3653 = vmatprep.subr.mxu0 0.0
  %3654 = vmatpush2.msra.mxu0 0.0
  %3655 = vmatprep.subr.mxu0 0.0
  %3656 = vmatpush2.msra.mxu0 0.0
  %3657 = vmatprep.subr.mxu0 0.0
  %3658 = vmatpush2.msra.mxu0 0.0
  %3659 = vmatprep.subr.mxu0 0.0
  %3660 = vmatpush2.msra.mxu0 0.0
  %3661 = vmatprep.subr.mxu0 0.0
  %3662 = vmatpush2.msra.mxu0 0.0
  %3663 = vmatprep.subr.mxu0 0.0
  %3664 = vmatpush2.msra.mxu0 0.0
  %3665 = vmatprep.subr.mxu0 0.0
  %3666 = vmatpush2.msra.mxu0 0.0
  %3667 = vmatprep.subr.mxu0 0.0
  %3668 = vmatpush2.msra.mxu0 0.0
  %3669 = vmatprep.subr.mxu0 0.0
  %3670 = vmatpush2.msra.mxu0 0.0
  %3671 = vmatprep.subr.mxu0 0.0
  %3672 = vmatpush2.msra.mxu0 0.0
  %3673 = vmatprep.subr.mxu0 0.0
  %3674 = vmatpush2.msra.mxu0 0.0
  %3675 = vmatprep.subr.mxu0 0.0
  %3676 = vmatpush2.msra.mxu0 0.0
  %3677 = vmatprep.subr.mxu0 0.0
  %3678 = vmatpush2.msra.mxu0 0.0
  %3679 = vmatprep.subr.mxu0 0.0
  %3680 = vmatpush2.msra.mxu0 0.0
  %3681 = vmatprep.subr.mxu0 0.0
  %3682 = vmatpush2.msra.mxu0 0.0
  %3683 = vmatprep.mubr.f32.mxu0 0.0
  %3684 = vmatmul.mubr.f32.gmra.mxu0 %v3617
  %v3685 = vpop.f32.mrf.mxu0
  %v3686 = vadd.f32 %v3213, %v3685
  %v3687 = vpop.f32.mrf.mxu0
  %3688 = vdwg.mxu0
  %v3689 = vadd.f32 %v2189, %v3611
  %v3690 = vxor.u32 %v3689, 2147483648
  %v3691 = vmul.f32 %v3690, 1.442695
  %v3692 = vpow.pop %v3691
  %v3693 = vadd.f32 %v3692, 1.0
  %v3694 = vrcp.pop %v3693
  %v3695 = vmul.f32 1.0, %v3694
  %v3696 = vadd.f32 %v2980, %v3686
  %v3697 = vxor.u32 %v3696, 2147483648
  %v3698 = vmul.f32 %v3697, 1.442695
  %v3699 = vpow.pop %v3698
  %v3700 = vadd.f32 %v3699, 1.0
  %v3701 = vrcp.pop %v3700
  %v3702 = vmul.f32 1.0, %v3701
  %3704 = vrot.lane.b32.xlu0 %v3611, 64
  %v3705 = vpop.permute.xlu0 %3704
  %v3707 = vmul.f32 %v3695, %v3705
  %3709 = vrot.lane.b32.xlu0 %v3707, 64
  %v3710 = vpop.permute.xlu0 %3709
  %v3712 = vadd.f32 %v2189, %v3710
  %v3713 = vtanh.pop %v3712
  %3715 = vrot.lane.b32.xlu0 %v3686, 64
  %v3716 = vpop.permute.xlu0 %3715
  %v3718 = vmul.f32 %v3702, %v3716
  %3720 = vrot.lane.b32.xlu0 %v3718, 64
  %v3721 = vpop.permute.xlu0 %3720
  %v3723 = vadd.f32 %v2980, %v3721
  %v3724 = vtanh.pop %v3723
  %v3725 = vsub.f32 1.0, %v3695
  %3727 = vrot.lane.b32.xlu0 %v3713, 96
  %v3728 = vpop.permute.xlu0 %3727
  %v3730 = vmul.f32 %v3725, %v3728
  %v3731 = vmul.f32 %v3695, %v3530
  %v3732 = vadd.f32 %v3730, %v3731
  %v3733 = vsub.f32 1.0, %v3702
  %3735 = vrot.lane.b32.xlu0 %v3724, 96
  %v3736 = vpop.permute.xlu0 %3735
  %v3738 = vmul.f32 %v3733, %v3736
  %v3739 = vmul.f32 %v3702, %v3538
  %v3740 = vadd.f32 %v3738, %v3739
  %3742 = vrot.lane.b32.xlu0 %v3732, 96
  %v3743 = vpop.permute.xlu0 %3742
  %v3744 = vsel %vm208, %v3743, 0
  %3746 = vmatprep.subr.mxu0 0.0
  %3747 = vmatpush1.msra.mxu0 0.0
  %3748 = vmatprep.subr.mxu0 0.0
  %3749 = vmatpush1.msra.mxu0 0.0
  %3750 = vmatprep.subr.mxu0 0.0
  %3751 = vmatpush1.msra.mxu0 0.0
  %3752 = vmatprep.subr.mxu0 0.0
  %3753 = vmatpush1.msra.mxu0 0.0
  %3754 = vmatprep.subr.mxu0 0.0
  %3755 = vmatpush1.msra.mxu0 0.0
  %3756 = vmatprep.subr.mxu0 0.0
  %3757 = vmatpush1.msra.mxu0 0.0
  %3758 = vmatprep.subr.mxu0 0.0
  %3759 = vmatpush1.msra.mxu0 0.0
  %3760 = vmatprep.subr.mxu0 0.0
  %3761 = vmatpush1.msra.mxu0 0.0
  %3762 = vmatprep.subr.mxu0 0.0
  %3763 = vmatpush1.msra.mxu0 0.0
  %3764 = vmatprep.subr.mxu0 0.0
  %3765 = vmatpush1.msra.mxu0 0.0
  %3766 = vmatprep.subr.mxu0 0.0
  %3767 = vmatpush1.msra.mxu0 0.0
  %3768 = vmatprep.subr.mxu0 0.0
  %3769 = vmatpush1.msra.mxu0 0.0
  %3770 = vmatprep.subr.mxu0 0.0
  %3771 = vmatpush1.msra.mxu0 %v3126
  %3772 = vmatprep.subr.mxu0 0.0
  %3773 = vmatpush1.msra.mxu0 %v3125
  %3774 = vmatprep.subr.mxu0 0.0
  %3775 = vmatpush1.msra.mxu0 %v3124
  %3776 = vmatprep.subr.mxu0 0.0
  %3777 = vmatpush1.msra.mxu0 %v3123
  %3778 = vmatprep.subr.mxu0 0.0
  %3779 = vmatpush2.msra.mxu0 0.0
  %3780 = vmatprep.subr.mxu0 0.0
  %3781 = vmatpush2.msra.mxu0 0.0
  %3782 = vmatprep.subr.mxu0 0.0
  %3783 = vmatpush2.msra.mxu0 0.0
  %3784 = vmatprep.subr.mxu0 0.0
  %3785 = vmatpush2.msra.mxu0 0.0
  %3786 = vmatprep.subr.mxu0 0.0
  %3787 = vmatpush2.msra.mxu0 0.0
  %3788 = vmatprep.subr.mxu0 0.0
  %3789 = vmatpush2.msra.mxu0 0.0
  %3790 = vmatprep.subr.mxu0 0.0
  %3791 = vmatpush2.msra.mxu0 0.0
  %3792 = vmatprep.subr.mxu0 0.0
  %3793 = vmatpush2.msra.mxu0 0.0
  %3794 = vmatprep.subr.mxu0 0.0
  %3795 = vmatpush2.msra.mxu0 0.0
  %3796 = vmatprep.subr.mxu0 0.0
  %3797 = vmatpush2.msra.mxu0 0.0
  %3798 = vmatprep.subr.mxu0 0.0
  %3799 = vmatpush2.msra.mxu0 0.0
  %3800 = vmatprep.subr.mxu0 0.0
  %3801 = vmatpush2.msra.mxu0 0.0
  %3802 = vmatprep.subr.mxu0 0.0
  %3803 = vmatpush2.msra.mxu0 0.0
  %3804 = vmatprep.subr.mxu0 0.0
  %3805 = vmatpush2.msra.mxu0 0.0
  %3806 = vmatprep.subr.mxu0 0.0
  %3807 = vmatpush2.msra.mxu0 0.0
  %3808 = vmatprep.subr.mxu0 0.0
  %3809 = vmatpush2.msra.mxu0 0.0
  %3810 = vmatprep.mubr.f32.mxu0 0.0
  %3811 = vmatmul.mubr.f32.gmra.mxu0 %v3744
  %v3812 = vpop.f32.mrf.mxu0
  %v3813 = vadd.f32 %v3137, %v3812
  %v3814 = vpop.f32.mrf.mxu0
  %3815 = vdwg.mxu0
  %3817 = vrot.lane.b32.xlu0 %v3740, 96
  %v3818 = vpop.permute.xlu0 %3817
  %v3819 = vsel %vm208, %v3818, 0
  %3821 = vmatprep.subr.mxu0 0.0
  %3822 = vmatpush1.msra.mxu0 0.0
  %3823 = vmatprep.subr.mxu0 0.0
  %3824 = vmatpush1.msra.mxu0 0.0
  %3825 = vmatprep.subr.mxu0 0.0
  %3826 = vmatpush1.msra.mxu0 0.0
  %3827 = vmatprep.subr.mxu0 0.0
  %3828 = vmatpush1.msra.mxu0 0.0
  %3829 = vmatprep.subr.mxu0 0.0
  %3830 = vmatpush1.msra.mxu0 0.0
  %3831 = vmatprep.subr.mxu0 0.0
  %3832 = vmatpush1.msra.mxu0 0.0
  %3833 = vmatprep.subr.mxu0 0.0
  %3834 = vmatpush1.msra.mxu0 0.0
  %3835 = vmatprep.subr.mxu0 0.0
  %3836 = vmatpush1.msra.mxu0 0.0
  %3837 = vmatprep.subr.mxu0 0.0
  %3838 = vmatpush1.msra.mxu0 0.0
  %3839 = vmatprep.subr.mxu0 0.0
  %3840 = vmatpush1.msra.mxu0 0.0
  %3841 = vmatprep.subr.mxu0 0.0
  %3842 = vmatpush1.msra.mxu0 0.0
  %3843 = vmatprep.subr.mxu0 0.0
  %3844 = vmatpush1.msra.mxu0 0.0
  %3845 = vmatprep.subr.mxu0 0.0
  %3846 = vmatpush1.msra.mxu0 %v3130
  %3847 = vmatprep.subr.mxu0 0.0
  %3848 = vmatpush1.msra.mxu0 %v3129
  %3849 = vmatprep.subr.mxu0 0.0
  %3850 = vmatpush1.msra.mxu0 %v3128
  %3851 = vmatprep.subr.mxu0 0.0
  %3852 = vmatpush1.msra.mxu0 %v3127
  %3853 = vmatprep.subr.mxu0 0.0
  %3854 = vmatpush2.msra.mxu0 0.0
  %3855 = vmatprep.subr.mxu0 0.0
  %3856 = vmatpush2.msra.mxu0 0.0
  %3857 = vmatprep.subr.mxu0 0.0
  %3858 = vmatpush2.msra.mxu0 0.0
  %3859 = vmatprep.subr.mxu0 0.0
  %3860 = vmatpush2.msra.mxu0 0.0
  %3861 = vmatprep.subr.mxu0 0.0
  %3862 = vmatpush2.msra.mxu0 0.0
  %3863 = vmatprep.subr.mxu0 0.0
  %3864 = vmatpush2.msra.mxu0 0.0
  %3865 = vmatprep.subr.mxu0 0.0
  %3866 = vmatpush2.msra.mxu0 0.0
  %3867 = vmatprep.subr.mxu0 0.0
  %3868 = vmatpush2.msra.mxu0 0.0
  %3869 = vmatprep.subr.mxu0 0.0
  %3870 = vmatpush2.msra.mxu0 0.0
  %3871 = vmatprep.subr.mxu0 0.0
  %3872 = vmatpush2.msra.mxu0 0.0
  %3873 = vmatprep.subr.mxu0 0.0
  %3874 = vmatpush2.msra.mxu0 0.0
  %3875 = vmatprep.subr.mxu0 0.0
  %3876 = vmatpush2.msra.mxu0 0.0
  %3877 = vmatprep.subr.mxu0 0.0
  %3878 = vmatpush2.msra.mxu0 0.0
  %3879 = vmatprep.subr.mxu0 0.0
  %3880 = vmatpush2.msra.mxu0 0.0
  %3881 = vmatprep.subr.mxu0 0.0
  %3882 = vmatpush2.msra.mxu0 0.0
  %3883 = vmatprep.subr.mxu0 0.0
  %3884 = vmatpush2.msra.mxu0 0.0
  %3885 = vmatprep.mubr.f32.mxu0 0.0
  %3886 = vmatmul.mubr.f32.gmra.mxu0 %v3819
  %v3887 = vpop.f32.mrf.mxu0
  %v3888 = vadd.f32 %v3213, %v3887
  %v3889 = vpop.f32.mrf.mxu0
  %3890 = vdwg.mxu0
  %v3891 = vadd.f32 %v2262, %v3813
  %v3892 = vxor.u32 %v3891, 2147483648
  %v3893 = vmul.f32 %v3892, 1.442695
  %v3894 = vpow.pop %v3893
  %v3895 = vadd.f32 %v3894, 1.0
  %v3896 = vrcp.pop %v3895
  %v3897 = vmul.f32 1.0, %v3896
  %v3898 = vadd.f32 %v2910, %v3888
  %v3899 = vxor.u32 %v3898, 2147483648
  %v3900 = vmul.f32 %v3899, 1.442695
  %v3901 = vpow.pop %v3900
  %v3902 = vadd.f32 %v3901, 1.0
  %v3903 = vrcp.pop %v3902
  %v3904 = vmul.f32 1.0, %v3903
  %3906 = vrot.lane.b32.xlu0 %v3813, 64
  %v3907 = vpop.permute.xlu0 %3906
  %v3909 = vmul.f32 %v3897, %v3907
  %3911 = vrot.lane.b32.xlu0 %v3909, 64
  %v3912 = vpop.permute.xlu0 %3911
  %v3914 = vadd.f32 %v2262, %v3912
  %v3915 = vtanh.pop %v3914
  %3917 = vrot.lane.b32.xlu0 %v3888, 64
  %v3918 = vpop.permute.xlu0 %3917
  %v3920 = vmul.f32 %v3904, %v3918
  %3922 = vrot.lane.b32.xlu0 %v3920, 64
  %v3923 = vpop.permute.xlu0 %3922
  %v3925 = vadd.f32 %v2910, %v3923
  %v3926 = vtanh.pop %v3925
  %v3927 = vsub.f32 1.0, %v3897
  %3929 = vrot.lane.b32.xlu0 %v3915, 96
  %v3930 = vpop.permute.xlu0 %3929
  %v3932 = vmul.f32 %v3927, %v3930
  %v3933 = vmul.f32 %v3897, %v3732
  %v3934 = vadd.f32 %v3932, %v3933
  %v3935 = vsub.f32 1.0, %v3904
  %3937 = vrot.lane.b32.xlu0 %v3926, 96
  %v3938 = vpop.permute.xlu0 %3937
  %v3940 = vmul.f32 %v3935, %v3938
  %v3941 = vmul.f32 %v3904, %v3740
  %v3942 = vadd.f32 %v3940, %v3941
  %3944 = vrot.lane.b32.xlu0 %v3934, 96
  %v3945 = vpop.permute.xlu0 %3944
  %v3946 = vsel %vm208, %v3945, 0
  %3948 = vmatprep.subr.mxu0 0.0
  %3949 = vmatpush1.msra.mxu0 0.0
  %3950 = vmatprep.subr.mxu0 0.0
  %3951 = vmatpush1.msra.mxu0 0.0
  %3952 = vmatprep.subr.mxu0 0.0
  %3953 = vmatpush1.msra.mxu0 0.0
  %3954 = vmatprep.subr.mxu0 0.0
  %3955 = vmatpush1.msra.mxu0 0.0
  %3956 = vmatprep.subr.mxu0 0.0
  %3957 = vmatpush1.msra.mxu0 0.0
  %3958 = vmatprep.subr.mxu0 0.0
  %3959 = vmatpush1.msra.mxu0 0.0
  %3960 = vmatprep.subr.mxu0 0.0
  %3961 = vmatpush1.msra.mxu0 0.0
  %3962 = vmatprep.subr.mxu0 0.0
  %3963 = vmatpush1.msra.mxu0 0.0
  %3964 = vmatprep.subr.mxu0 0.0
  %3965 = vmatpush1.msra.mxu0 0.0
  %3966 = vmatprep.subr.mxu0 0.0
  %3967 = vmatpush1.msra.mxu0 0.0
  %3968 = vmatprep.subr.mxu0 0.0
  %3969 = vmatpush1.msra.mxu0 0.0
  %3970 = vmatprep.subr.mxu0 0.0
  %3971 = vmatpush1.msra.mxu0 0.0
  %3972 = vmatprep.subr.mxu0 0.0
  %3973 = vmatpush1.msra.mxu0 %v3126
  %3974 = vmatprep.subr.mxu0 0.0
  %3975 = vmatpush1.msra.mxu0 %v3125
  %3976 = vmatprep.subr.mxu0 0.0
  %3977 = vmatpush1.msra.mxu0 %v3124
  %3978 = vmatprep.subr.mxu0 0.0
  %3979 = vmatpush1.msra.mxu0 %v3123
  %3980 = vmatprep.subr.mxu0 0.0
  %3981 = vmatpush2.msra.mxu0 0.0
  %3982 = vmatprep.subr.mxu0 0.0
  %3983 = vmatpush2.msra.mxu0 0.0
  %3984 = vmatprep.subr.mxu0 0.0
  %3985 = vmatpush2.msra.mxu0 0.0
  %3986 = vmatprep.subr.mxu0 0.0
  %3987 = vmatpush2.msra.mxu0 0.0
  %3988 = vmatprep.subr.mxu0 0.0
  %3989 = vmatpush2.msra.mxu0 0.0
  %3990 = vmatprep.subr.mxu0 0.0
  %3991 = vmatpush2.msra.mxu0 0.0
  %3992 = vmatprep.subr.mxu0 0.0
  %3993 = vmatpush2.msra.mxu0 0.0
  %3994 = vmatprep.subr.mxu0 0.0
  %3995 = vmatpush2.msra.mxu0 0.0
  %3996 = vmatprep.subr.mxu0 0.0
  %3997 = vmatpush2.msra.mxu0 0.0
  %3998 = vmatprep.subr.mxu0 0.0
  %3999 = vmatpush2.msra.mxu0 0.0
  %4000 = vmatprep.subr.mxu0 0.0
  %4001 = vmatpush2.msra.mxu0 0.0
  %4002 = vmatprep.subr.mxu0 0.0
  %4003 = vmatpush2.msra.mxu0 0.0
  %4004 = vmatprep.subr.mxu0 0.0
  %4005 = vmatpush2.msra.mxu0 0.0
  %4006 = vmatprep.subr.mxu0 0.0
  %4007 = vmatpush2.msra.mxu0 0.0
  %4008 = vmatprep.subr.mxu0 0.0
  %4009 = vmatpush2.msra.mxu0 0.0
  %4010 = vmatprep.subr.mxu0 0.0
  %4011 = vmatpush2.msra.mxu0 0.0
  %4012 = vmatprep.mubr.f32.mxu0 0.0
  %4013 = vmatmul.mubr.f32.gmra.mxu0 %v3946
  %v4014 = vpop.f32.mrf.mxu0
  %v4015 = vadd.f32 %v3137, %v4014
  %v4016 = vpop.f32.mrf.mxu0
  %4017 = vdwg.mxu0
  %4019 = vrot.lane.b32.xlu0 %v3942, 96
  %v4020 = vpop.permute.xlu0 %4019
  %v4021 = vsel %vm208, %v4020, 0
  %4023 = vmatprep.subr.mxu0 0.0
  %4024 = vmatpush1.msra.mxu0 0.0
  %4025 = vmatprep.subr.mxu0 0.0
  %4026 = vmatpush1.msra.mxu0 0.0
  %4027 = vmatprep.subr.mxu0 0.0
  %4028 = vmatpush1.msra.mxu0 0.0
  %4029 = vmatprep.subr.mxu0 0.0
  %4030 = vmatpush1.msra.mxu0 0.0
  %4031 = vmatprep.subr.mxu0 0.0
  %4032 = vmatpush1.msra.mxu0 0.0
  %4033 = vmatprep.subr.mxu0 0.0
  %4034 = vmatpush1.msra.mxu0 0.0
  %4035 = vmatprep.subr.mxu0 0.0
  %4036 = vmatpush1.msra.mxu0 0.0
  %4037 = vmatprep.subr.mxu0 0.0
  %4038 = vmatpush1.msra.mxu0 0.0
  %4039 = vmatprep.subr.mxu0 0.0
  %4040 = vmatpush1.msra.mxu0 0.0
  %4041 = vmatprep.subr.mxu0 0.0
  %4042 = vmatpush1.msra.mxu0 0.0
  %4043 = vmatprep.subr.mxu0 0.0
  %4044 = vmatpush1.msra.mxu0 0.0
  %4045 = vmatprep.subr.mxu0 0.0
  %4046 = vmatpush1.msra.mxu0 0.0
  %4047 = vmatprep.subr.mxu0 0.0
  %4048 = vmatpush1.msra.mxu0 %v3130
  %4049 = vmatprep.subr.mxu0 0.0
  %4050 = vmatpush1.msra.mxu0 %v3129
  %4051 = vmatprep.subr.mxu0 0.0
  %4052 = vmatpush1.msra.mxu0 %v3128
  %4053 = vmatprep.subr.mxu0 0.0
  %4054 = vmatpush1.msra.mxu0 %v3127
  %4055 = vmatprep.subr.mxu0 0.0
  %4056 = vmatpush2.msra.mxu0 0.0
  %4057 = vmatprep.subr.mxu0 0.0
  %4058 = vmatpush2.msra.mxu0 0.0
  %4059 = vmatprep.subr.mxu0 0.0
  %4060 = vmatpush2.msra.mxu0 0.0
  %4061 = vmatprep.subr.mxu0 0.0
  %4062 = vmatpush2.msra.mxu0 0.0
  %4063 = vmatprep.subr.mxu0 0.0
  %4064 = vmatpush2.msra.mxu0 0.0
  %4065 = vmatprep.subr.mxu0 0.0
  %4066 = vmatpush2.msra.mxu0 0.0
  %4067 = vmatprep.subr.mxu0 0.0
  %4068 = vmatpush2.msra.mxu0 0.0
  %4069 = vmatprep.subr.mxu0 0.0
  %4070 = vmatpush2.msra.mxu0 0.0
  %4071 = vmatprep.subr.mxu0 0.0
  %4072 = vmatpush2.msra.mxu0 0.0
  %4073 = vmatprep.subr.mxu0 0.0
  %4074 = vmatpush2.msra.mxu0 0.0
  %4075 = vmatprep.subr.mxu0 0.0
  %4076 = vmatpush2.msra.mxu0 0.0
  %4077 = vmatprep.subr.mxu0 0.0
  %4078 = vmatpush2.msra.mxu0 0.0
  %4079 = vmatprep.subr.mxu0 0.0
  %4080 = vmatpush2.msra.mxu0 0.0
  %4081 = vmatprep.subr.mxu0 0.0
  %4082 = vmatpush2.msra.mxu0 0.0
  %4083 = vmatprep.subr.mxu0 0.0
  %4084 = vmatpush2.msra.mxu0 0.0
  %4085 = vmatprep.subr.mxu0 0.0
  %4086 = vmatpush2.msra.mxu0 0.0
  %4087 = vmatprep.mubr.f32.mxu0 0.0
  %4088 = vmatmul.mubr.f32.gmra.mxu0 %v4021
  %v4089 = vpop.f32.mrf.mxu0
  %v4090 = vadd.f32 %v3213, %v4089
  %v4091 = vpop.f32.mrf.mxu0
  %4092 = vdwg.mxu0
  %v4093 = vadd.f32 %v2335, %v4015
  %v4094 = vxor.u32 %v4093, 2147483648
  %v4095 = vmul.f32 %v4094, 1.442695
  %v4096 = vpow.pop %v4095
  %v4097 = vadd.f32 %v4096, 1.0
  %v4098 = vrcp.pop %v4097
  %v4099 = vmul.f32 1.0, %v4098
  %v4100 = vadd.f32 %v2840, %v4090
  %v4101 = vxor.u32 %v4100, 2147483648
  %v4102 = vmul.f32 %v4101, 1.442695
  %v4103 = vpow.pop %v4102
  %v4104 = vadd.f32 %v4103, 1.0
  %v4105 = vrcp.pop %v4104
  %v4106 = vmul.f32 1.0, %v4105
  %4108 = vrot.lane.b32.xlu0 %v4015, 64
  %v4109 = vpop.permute.xlu0 %4108
  %v4111 = vmul.f32 %v4099, %v4109
  %4113 = vrot.lane.b32.xlu0 %v4111, 64
  %v4114 = vpop.permute.xlu0 %4113
  %v4116 = vadd.f32 %v2335, %v4114
  %v4117 = vtanh.pop %v4116
  %4119 = vrot.lane.b32.xlu0 %v4090, 64
  %v4120 = vpop.permute.xlu0 %4119
  %v4122 = vmul.f32 %v4106, %v4120
  %4124 = vrot.lane.b32.xlu0 %v4122, 64
  %v4125 = vpop.permute.xlu0 %4124
  %v4127 = vadd.f32 %v2840, %v4125
  %v4128 = vtanh.pop %v4127
  %v4129 = vsub.f32 1.0, %v4099
  %4131 = vrot.lane.b32.xlu0 %v4117, 96
  %v4132 = vpop.permute.xlu0 %4131
  %v4134 = vmul.f32 %v4129, %v4132
  %v4135 = vmul.f32 %v4099, %v3934
  %v4136 = vadd.f32 %v4134, %v4135
  %v4137 = vsub.f32 1.0, %v4106
  %4139 = vrot.lane.b32.xlu0 %v4128, 96
  %v4140 = vpop.permute.xlu0 %4139
  %v4142 = vmul.f32 %v4137, %v4140
  %v4143 = vmul.f32 %v4106, %v3942
  %v4144 = vadd.f32 %v4142, %v4143
  %4146 = vrot.lane.b32.xlu0 %v4136, 96
  %v4147 = vpop.permute.xlu0 %4146
  %v4148 = vsel %vm208, %v4147, 0
  %4150 = vmatprep.subr.mxu0 0.0
  %4151 = vmatpush1.msra.mxu0 0.0
  %4152 = vmatprep.subr.mxu0 0.0
  %4153 = vmatpush1.msra.mxu0 0.0
  %4154 = vmatprep.subr.mxu0 0.0
  %4155 = vmatpush1.msra.mxu0 0.0
  %4156 = vmatprep.subr.mxu0 0.0
  %4157 = vmatpush1.msra.mxu0 0.0
  %4158 = vmatprep.subr.mxu0 0.0
  %4159 = vmatpush1.msra.mxu0 0.0
  %4160 = vmatprep.subr.mxu0 0.0
  %4161 = vmatpush1.msra.mxu0 0.0
  %4162 = vmatprep.subr.mxu0 0.0
  %4163 = vmatpush1.msra.mxu0 0.0
  %4164 = vmatprep.subr.mxu0 0.0
  %4165 = vmatpush1.msra.mxu0 0.0
  %4166 = vmatprep.subr.mxu0 0.0
  %4167 = vmatpush1.msra.mxu0 0.0
  %4168 = vmatprep.subr.mxu0 0.0
  %4169 = vmatpush1.msra.mxu0 0.0
  %4170 = vmatprep.subr.mxu0 0.0
  %4171 = vmatpush1.msra.mxu0 0.0
  %4172 = vmatprep.subr.mxu0 0.0
  %4173 = vmatpush1.msra.mxu0 0.0
  %4174 = vmatprep.subr.mxu0 0.0
  %4175 = vmatpush1.msra.mxu0 %v3126
  %4176 = vmatprep.subr.mxu0 0.0
  %4177 = vmatpush1.msra.mxu0 %v3125
  %4178 = vmatprep.subr.mxu0 0.0
  %4179 = vmatpush1.msra.mxu0 %v3124
  %4180 = vmatprep.subr.mxu0 0.0
  %4181 = vmatpush1.msra.mxu0 %v3123
  %4182 = vmatprep.subr.mxu0 0.0
  %4183 = vmatpush2.msra.mxu0 0.0
  %4184 = vmatprep.subr.mxu0 0.0
  %4185 = vmatpush2.msra.mxu0 0.0
  %4186 = vmatprep.subr.mxu0 0.0
  %4187 = vmatpush2.msra.mxu0 0.0
  %4188 = vmatprep.subr.mxu0 0.0
  %4189 = vmatpush2.msra.mxu0 0.0
  %4190 = vmatprep.subr.mxu0 0.0
  %4191 = vmatpush2.msra.mxu0 0.0
  %4192 = vmatprep.subr.mxu0 0.0
  %4193 = vmatpush2.msra.mxu0 0.0
  %4194 = vmatprep.subr.mxu0 0.0
  %4195 = vmatpush2.msra.mxu0 0.0
  %4196 = vmatprep.subr.mxu0 0.0
  %4197 = vmatpush2.msra.mxu0 0.0
  %4198 = vmatprep.subr.mxu0 0.0
  %4199 = vmatpush2.msra.mxu0 0.0
  %4200 = vmatprep.subr.mxu0 0.0
  %4201 = vmatpush2.msra.mxu0 0.0
  %4202 = vmatprep.subr.mxu0 0.0
  %4203 = vmatpush2.msra.mxu0 0.0
  %4204 = vmatprep.subr.mxu0 0.0
  %4205 = vmatpush2.msra.mxu0 0.0
  %4206 = vmatprep.subr.mxu0 0.0
  %4207 = vmatpush2.msra.mxu0 0.0
  %4208 = vmatprep.subr.mxu0 0.0
  %4209 = vmatpush2.msra.mxu0 0.0
  %4210 = vmatprep.subr.mxu0 0.0
  %4211 = vmatpush2.msra.mxu0 0.0
  %4212 = vmatprep.subr.mxu0 0.0
  %4213 = vmatpush2.msra.mxu0 0.0
  %4214 = vmatprep.mubr.f32.mxu0 0.0
  %4215 = vmatmul.mubr.f32.gmra.mxu0 %v4148
  %v4216 = vpop.f32.mrf.mxu0
  %v4217 = vadd.f32 %v3137, %v4216
  %v4218 = vpop.f32.mrf.mxu0
  %4219 = vdwg.mxu0
  %4221 = vrot.lane.b32.xlu0 %v4144, 96
  %v4222 = vpop.permute.xlu0 %4221
  %v4223 = vsel %vm208, %v4222, 0
  %4225 = vmatprep.subr.mxu0 0.0
  %4226 = vmatpush1.msra.mxu0 0.0
  %4227 = vmatprep.subr.mxu0 0.0
  %4228 = vmatpush1.msra.mxu0 0.0
  %4229 = vmatprep.subr.mxu0 0.0
  %4230 = vmatpush1.msra.mxu0 0.0
  %4231 = vmatprep.subr.mxu0 0.0
  %4232 = vmatpush1.msra.mxu0 0.0
  %4233 = vmatprep.subr.mxu0 0.0
  %4234 = vmatpush1.msra.mxu0 0.0
  %4235 = vmatprep.subr.mxu0 0.0
  %4236 = vmatpush1.msra.mxu0 0.0
  %4237 = vmatprep.subr.mxu0 0.0
  %4238 = vmatpush1.msra.mxu0 0.0
  %4239 = vmatprep.subr.mxu0 0.0
  %4240 = vmatpush1.msra.mxu0 0.0
  %4241 = vmatprep.subr.mxu0 0.0
  %4242 = vmatpush1.msra.mxu0 0.0
  %4243 = vmatprep.subr.mxu0 0.0
  %4244 = vmatpush1.msra.mxu0 0.0
  %4245 = vmatprep.subr.mxu0 0.0
  %4246 = vmatpush1.msra.mxu0 0.0
  %4247 = vmatprep.subr.mxu0 0.0
  %4248 = vmatpush1.msra.mxu0 0.0
  %4249 = vmatprep.subr.mxu0 0.0
  %4250 = vmatpush1.msra.mxu0 %v3130
  %4251 = vmatprep.subr.mxu0 0.0
  %4252 = vmatpush1.msra.mxu0 %v3129
  %4253 = vmatprep.subr.mxu0 0.0
  %4254 = vmatpush1.msra.mxu0 %v3128
  %4255 = vmatprep.subr.mxu0 0.0
  %4256 = vmatpush1.msra.mxu0 %v3127
  %4257 = vmatprep.subr.mxu0 0.0
  %4258 = vmatpush2.msra.mxu0 0.0
  %4259 = vmatprep.subr.mxu0 0.0
  %4260 = vmatpush2.msra.mxu0 0.0
  %4261 = vmatprep.subr.mxu0 0.0
  %4262 = vmatpush2.msra.mxu0 0.0
  %4263 = vmatprep.subr.mxu0 0.0
  %4264 = vmatpush2.msra.mxu0 0.0
  %4265 = vmatprep.subr.mxu0 0.0
  %4266 = vmatpush2.msra.mxu0 0.0
  %4267 = vmatprep.subr.mxu0 0.0
  %4268 = vmatpush2.msra.mxu0 0.0
  %4269 = vmatprep.subr.mxu0 0.0
  %4270 = vmatpush2.msra.mxu0 0.0
  %4271 = vmatprep.subr.mxu0 0.0
  %4272 = vmatpush2.msra.mxu0 0.0
  %4273 = vmatprep.subr.mxu0 0.0
  %4274 = vmatpush2.msra.mxu0 0.0
  %4275 = vmatprep.subr.mxu0 0.0
  %4276 = vmatpush2.msra.mxu0 0.0
  %4277 = vmatprep.subr.mxu0 0.0
  %4278 = vmatpush2.msra.mxu0 0.0
  %4279 = vmatprep.subr.mxu0 0.0
  %4280 = vmatpush2.msra.mxu0 0.0
  %4281 = vmatprep.subr.mxu0 0.0
  %4282 = vmatpush2.msra.mxu0 0.0
  %4283 = vmatprep.subr.mxu0 0.0
  %4284 = vmatpush2.msra.mxu0 0.0
  %4285 = vmatprep.subr.mxu0 0.0
  %4286 = vmatpush2.msra.mxu0 0.0
  %4287 = vmatprep.subr.mxu0 0.0
  %4288 = vmatpush2.msra.mxu0 0.0
  %4289 = vmatprep.mubr.f32.mxu0 0.0
  %4290 = vmatmul.mubr.f32.gmra.mxu0 %v4223
  %v4291 = vpop.f32.mrf.mxu0
  %v4292 = vadd.f32 %v3213, %v4291
  %v4293 = vpop.f32.mrf.mxu0
  %4294 = vdwg.mxu0
  %v4295 = vadd.f32 %v2408, %v4217
  %v4296 = vxor.u32 %v4295, 2147483648
  %v4297 = vmul.f32 %v4296, 1.442695
  %v4298 = vpow.pop %v4297
  %v4299 = vadd.f32 %v4298, 1.0
  %v4300 = vrcp.pop %v4299
  %v4301 = vmul.f32 1.0, %v4300
  %v4302 = vadd.f32 %v2770, %v4292
  %v4303 = vxor.u32 %v4302, 2147483648
  %v4304 = vmul.f32 %v4303, 1.442695
  %v4305 = vpow.pop %v4304
  %v4306 = vadd.f32 %v4305, 1.0
  %v4307 = vrcp.pop %v4306
  %v4308 = vmul.f32 1.0, %v4307
  %4310 = vrot.lane.b32.xlu0 %v4217, 64
  %v4311 = vpop.permute.xlu0 %4310
  %v4313 = vmul.f32 %v4301, %v4311
  %4315 = vrot.lane.b32.xlu0 %v4313, 64
  %v4316 = vpop.permute.xlu0 %4315
  %v4318 = vadd.f32 %v2408, %v4316
  %v4319 = vtanh.pop %v4318
  %4321 = vrot.lane.b32.xlu0 %v4292, 64
  %v4322 = vpop.permute.xlu0 %4321
  %v4324 = vmul.f32 %v4308, %v4322
  %4326 = vrot.lane.b32.xlu0 %v4324, 64
  %v4327 = vpop.permute.xlu0 %4326
  %v4329 = vadd.f32 %v2770, %v4327
  %v4330 = vtanh.pop %v4329
  %v4331 = vsub.f32 1.0, %v4301
  %4333 = vrot.lane.b32.xlu0 %v4319, 96
  %v4334 = vpop.permute.xlu0 %4333
  %v4336 = vmul.f32 %v4331, %v4334
  %v4337 = vmul.f32 %v4301, %v4136
  %v4338 = vadd.f32 %v4336, %v4337
  %v4339 = vsub.f32 1.0, %v4308
  %4341 = vrot.lane.b32.xlu0 %v4330, 96
  %v4342 = vpop.permute.xlu0 %4341
  %v4344 = vmul.f32 %v4339, %v4342
  %v4345 = vmul.f32 %v4308, %v4144
  %v4346 = vadd.f32 %v4344, %v4345
  %4348 = vrot.lane.b32.xlu0 %v4338, 96
  %v4349 = vpop.permute.xlu0 %4348
  %v4350 = vsel %vm208, %v4349, 0
  %4352 = vmatprep.subr.mxu0 0.0
  %4353 = vmatpush1.msra.mxu0 0.0
  %4354 = vmatprep.subr.mxu0 0.0
  %4355 = vmatpush1.msra.mxu0 0.0
  %4356 = vmatprep.subr.mxu0 0.0
  %4357 = vmatpush1.msra.mxu0 0.0
  %4358 = vmatprep.subr.mxu0 0.0
  %4359 = vmatpush1.msra.mxu0 0.0
  %4360 = vmatprep.subr.mxu0 0.0
  %4361 = vmatpush1.msra.mxu0 0.0
  %4362 = vmatprep.subr.mxu0 0.0
  %4363 = vmatpush1.msra.mxu0 0.0
  %4364 = vmatprep.subr.mxu0 0.0
  %4365 = vmatpush1.msra.mxu0 0.0
  %4366 = vmatprep.subr.mxu0 0.0
  %4367 = vmatpush1.msra.mxu0 0.0
  %4368 = vmatprep.subr.mxu0 0.0
  %4369 = vmatpush1.msra.mxu0 0.0
  %4370 = vmatprep.subr.mxu0 0.0
  %4371 = vmatpush1.msra.mxu0 0.0
  %4372 = vmatprep.subr.mxu0 0.0
  %4373 = vmatpush1.msra.mxu0 0.0
  %4374 = vmatprep.subr.mxu0 0.0
  %4375 = vmatpush1.msra.mxu0 0.0
  %4376 = vmatprep.subr.mxu0 0.0
  %4377 = vmatpush1.msra.mxu0 %v3126
  %4378 = vmatprep.subr.mxu0 0.0
  %4379 = vmatpush1.msra.mxu0 %v3125
  %4380 = vmatprep.subr.mxu0 0.0
  %4381 = vmatpush1.msra.mxu0 %v3124
  %4382 = vmatprep.subr.mxu0 0.0
  %4383 = vmatpush1.msra.mxu0 %v3123
  %4384 = vmatprep.subr.mxu0 0.0
  %4385 = vmatpush2.msra.mxu0 0.0
  %4386 = vmatprep.subr.mxu0 0.0
  %4387 = vmatpush2.msra.mxu0 0.0
  %4388 = vmatprep.subr.mxu0 0.0
  %4389 = vmatpush2.msra.mxu0 0.0
  %4390 = vmatprep.subr.mxu0 0.0
  %4391 = vmatpush2.msra.mxu0 0.0
  %4392 = vmatprep.subr.mxu0 0.0
  %4393 = vmatpush2.msra.mxu0 0.0
  %4394 = vmatprep.subr.mxu0 0.0
  %4395 = vmatpush2.msra.mxu0 0.0
  %4396 = vmatprep.subr.mxu0 0.0
  %4397 = vmatpush2.msra.mxu0 0.0
  %4398 = vmatprep.subr.mxu0 0.0
  %4399 = vmatpush2.msra.mxu0 0.0
  %4400 = vmatprep.subr.mxu0 0.0
  %4401 = vmatpush2.msra.mxu0 0.0
  %4402 = vmatprep.subr.mxu0 0.0
  %4403 = vmatpush2.msra.mxu0 0.0
  %4404 = vmatprep.subr.mxu0 0.0
  %4405 = vmatpush2.msra.mxu0 0.0
  %4406 = vmatprep.subr.mxu0 0.0
  %4407 = vmatpush2.msra.mxu0 0.0
  %4408 = vmatprep.subr.mxu0 0.0
  %4409 = vmatpush2.msra.mxu0 0.0
  %4410 = vmatprep.subr.mxu0 0.0
  %4411 = vmatpush2.msra.mxu0 0.0
  %4412 = vmatprep.subr.mxu0 0.0
  %4413 = vmatpush2.msra.mxu0 0.0
  %4414 = vmatprep.subr.mxu0 0.0
  %4415 = vmatpush2.msra.mxu0 0.0
  %4416 = vmatprep.mubr.f32.mxu0 0.0
  %4417 = vmatmul.mubr.f32.gmra.mxu0 %v4350
  %v4418 = vpop.f32.mrf.mxu0
  %v4419 = vadd.f32 %v3137, %v4418
  %v4420 = vpop.f32.mrf.mxu0
  %4421 = vdwg.mxu0
  %4423 = vrot.lane.b32.xlu0 %v4346, 96
  %v4424 = vpop.permute.xlu0 %4423
  %v4425 = vsel %vm208, %v4424, 0
  %4427 = vmatprep.subr.mxu0 0.0
  %4428 = vmatpush1.msra.mxu0 0.0
  %4429 = vmatprep.subr.mxu0 0.0
  %4430 = vmatpush1.msra.mxu0 0.0
  %4431 = vmatprep.subr.mxu0 0.0
  %4432 = vmatpush1.msra.mxu0 0.0
  %4433 = vmatprep.subr.mxu0 0.0
  %4434 = vmatpush1.msra.mxu0 0.0
  %4435 = vmatprep.subr.mxu0 0.0
  %4436 = vmatpush1.msra.mxu0 0.0
  %4437 = vmatprep.subr.mxu0 0.0
  %4438 = vmatpush1.msra.mxu0 0.0
  %4439 = vmatprep.subr.mxu0 0.0
  %4440 = vmatpush1.msra.mxu0 0.0
  %4441 = vmatprep.subr.mxu0 0.0
  %4442 = vmatpush1.msra.mxu0 0.0
  %4443 = vmatprep.subr.mxu0 0.0
  %4444 = vmatpush1.msra.mxu0 0.0
  %4445 = vmatprep.subr.mxu0 0.0
  %4446 = vmatpush1.msra.mxu0 0.0
  %4447 = vmatprep.subr.mxu0 0.0
  %4448 = vmatpush1.msra.mxu0 0.0
  %4449 = vmatprep.subr.mxu0 0.0
  %4450 = vmatpush1.msra.mxu0 0.0
  %4451 = vmatprep.subr.mxu0 0.0
  %4452 = vmatpush1.msra.mxu0 %v3130
  %4453 = vmatprep.subr.mxu0 0.0
  %4454 = vmatpush1.msra.mxu0 %v3129
  %4455 = vmatprep.subr.mxu0 0.0
  %4456 = vmatpush1.msra.mxu0 %v3128
  %4457 = vmatprep.subr.mxu0 0.0
  %4458 = vmatpush1.msra.mxu0 %v3127
  %4459 = vmatprep.subr.mxu0 0.0
  %4460 = vmatpush2.msra.mxu0 0.0
  %4461 = vmatprep.subr.mxu0 0.0
  %4462 = vmatpush2.msra.mxu0 0.0
  %4463 = vmatprep.subr.mxu0 0.0
  %4464 = vmatpush2.msra.mxu0 0.0
  %4465 = vmatprep.subr.mxu0 0.0
  %4466 = vmatpush2.msra.mxu0 0.0
  %4467 = vmatprep.subr.mxu0 0.0
  %4468 = vmatpush2.msra.mxu0 0.0
  %4469 = vmatprep.subr.mxu0 0.0
  %4470 = vmatpush2.msra.mxu0 0.0
  %4471 = vmatprep.subr.mxu0 0.0
  %4472 = vmatpush2.msra.mxu0 0.0
  %4473 = vmatprep.subr.mxu0 0.0
  %4474 = vmatpush2.msra.mxu0 0.0
  %4475 = vmatprep.subr.mxu0 0.0
  %4476 = vmatpush2.msra.mxu0 0.0
  %4477 = vmatprep.subr.mxu0 0.0
  %4478 = vmatpush2.msra.mxu0 0.0
  %4479 = vmatprep.subr.mxu0 0.0
  %4480 = vmatpush2.msra.mxu0 0.0
  %4481 = vmatprep.subr.mxu0 0.0
  %4482 = vmatpush2.msra.mxu0 0.0
  %4483 = vmatprep.subr.mxu0 0.0
  %4484 = vmatpush2.msra.mxu0 0.0
  %4485 = vmatprep.subr.mxu0 0.0
  %4486 = vmatpush2.msra.mxu0 0.0
  %4487 = vmatprep.subr.mxu0 0.0
  %4488 = vmatpush2.msra.mxu0 0.0
  %4489 = vmatprep.subr.mxu0 0.0
  %4490 = vmatpush2.msra.mxu0 0.0
  %4491 = vmatprep.mubr.f32.mxu0 0.0
  %4492 = vmatmul.mubr.f32.gmra.mxu0 %v4425
  %v4493 = vpop.f32.mrf.mxu0
  %v4494 = vadd.f32 %v3213, %v4493
  %v4495 = vpop.f32.mrf.mxu0
  %4496 = vdwg.mxu0
  %v4497 = vadd.f32 %v2481, %v4419
  %v4498 = vxor.u32 %v4497, 2147483648
  %v4499 = vmul.f32 %v4498, 1.442695
  %v4500 = vpow.pop %v4499
  %v4501 = vadd.f32 %v4500, 1.0
  %v4502 = vrcp.pop %v4501
  %v4503 = vmul.f32 1.0, %v4502
  %v4504 = vadd.f32 %v2700, %v4494
  %v4505 = vxor.u32 %v4504, 2147483648
  %v4506 = vmul.f32 %v4505, 1.442695
  %v4507 = vpow.pop %v4506
  %v4508 = vadd.f32 %v4507, 1.0
  %v4509 = vrcp.pop %v4508
  %v4510 = vmul.f32 1.0, %v4509
  %4512 = vrot.lane.b32.xlu0 %v4419, 64
  %v4513 = vpop.permute.xlu0 %4512
  %v4515 = vmul.f32 %v4503, %v4513
  %4517 = vrot.lane.b32.xlu0 %v4515, 64
  %v4518 = vpop.permute.xlu0 %4517
  %v4520 = vadd.f32 %v2481, %v4518
  %v4521 = vtanh.pop %v4520
  %4523 = vrot.lane.b32.xlu0 %v4494, 64
  %v4524 = vpop.permute.xlu0 %4523
  %v4526 = vmul.f32 %v4510, %v4524
  %4528 = vrot.lane.b32.xlu0 %v4526, 64
  %v4529 = vpop.permute.xlu0 %4528
  %v4531 = vadd.f32 %v2700, %v4529
  %v4532 = vtanh.pop %v4531
  %v4533 = vsub.f32 1.0, %v4503
  %4535 = vrot.lane.b32.xlu0 %v4521, 96
  %v4536 = vpop.permute.xlu0 %4535
  %v4538 = vmul.f32 %v4533, %v4536
  %v4539 = vmul.f32 %v4503, %v4338
  %v4540 = vadd.f32 %v4538, %v4539
  %v4541 = vsub.f32 1.0, %v4510
  %4543 = vrot.lane.b32.xlu0 %v4532, 96
  %v4544 = vpop.permute.xlu0 %4543
  %v4546 = vmul.f32 %v4541, %v4544
  %v4547 = vmul.f32 %v4510, %v4346
  %v4548 = vadd.f32 %v4546, %v4547
  %4550 = vrot.lane.b32.xlu0 %v4540, 96
  %v4551 = vpop.permute.xlu0 %4550
  %v4552 = vsel %vm208, %v4551, 0
  %4554 = vmatprep.subr.mxu0 0.0
  %4555 = vmatpush1.msra.mxu0 0.0
  %4556 = vmatprep.subr.mxu0 0.0
  %4557 = vmatpush1.msra.mxu0 0.0
  %4558 = vmatprep.subr.mxu0 0.0
  %4559 = vmatpush1.msra.mxu0 0.0
  %4560 = vmatprep.subr.mxu0 0.0
  %4561 = vmatpush1.msra.mxu0 0.0
  %4562 = vmatprep.subr.mxu0 0.0
  %4563 = vmatpush1.msra.mxu0 0.0
  %4564 = vmatprep.subr.mxu0 0.0
  %4565 = vmatpush1.msra.mxu0 0.0
  %4566 = vmatprep.subr.mxu0 0.0
  %4567 = vmatpush1.msra.mxu0 0.0
  %4568 = vmatprep.subr.mxu0 0.0
  %4569 = vmatpush1.msra.mxu0 0.0
  %4570 = vmatprep.subr.mxu0 0.0
  %4571 = vmatpush1.msra.mxu0 0.0
  %4572 = vmatprep.subr.mxu0 0.0
  %4573 = vmatpush1.msra.mxu0 0.0
  %4574 = vmatprep.subr.mxu0 0.0
  %4575 = vmatpush1.msra.mxu0 0.0
  %4576 = vmatprep.subr.mxu0 0.0
  %4577 = vmatpush1.msra.mxu0 0.0
  %4578 = vmatprep.subr.mxu0 0.0
  %4579 = vmatpush1.msra.mxu0 %v3126
  %4580 = vmatprep.subr.mxu0 0.0
  %4581 = vmatpush1.msra.mxu0 %v3125
  %4582 = vmatprep.subr.mxu0 0.0
  %4583 = vmatpush1.msra.mxu0 %v3124
  %4584 = vmatprep.subr.mxu0 0.0
  %4585 = vmatpush1.msra.mxu0 %v3123
  %4586 = vmatprep.subr.mxu0 0.0
  %4587 = vmatpush2.msra.mxu0 0.0
  %4588 = vmatprep.subr.mxu0 0.0
  %4589 = vmatpush2.msra.mxu0 0.0
  %4590 = vmatprep.subr.mxu0 0.0
  %4591 = vmatpush2.msra.mxu0 0.0
  %4592 = vmatprep.subr.mxu0 0.0
  %4593 = vmatpush2.msra.mxu0 0.0
  %4594 = vmatprep.subr.mxu0 0.0
  %4595 = vmatpush2.msra.mxu0 0.0
  %4596 = vmatprep.subr.mxu0 0.0
  %4597 = vmatpush2.msra.mxu0 0.0
  %4598 = vmatprep.subr.mxu0 0.0
  %4599 = vmatpush2.msra.mxu0 0.0
  %4600 = vmatprep.subr.mxu0 0.0
  %4601 = vmatpush2.msra.mxu0 0.0
  %4602 = vmatprep.subr.mxu0 0.0
  %4603 = vmatpush2.msra.mxu0 0.0
  %4604 = vmatprep.subr.mxu0 0.0
  %4605 = vmatpush2.msra.mxu0 0.0
  %4606 = vmatprep.subr.mxu0 0.0
  %4607 = vmatpush2.msra.mxu0 0.0
  %4608 = vmatprep.subr.mxu0 0.0
  %4609 = vmatpush2.msra.mxu0 0.0
  %4610 = vmatprep.subr.mxu0 0.0
  %4611 = vmatpush2.msra.mxu0 0.0
  %4612 = vmatprep.subr.mxu0 0.0
  %4613 = vmatpush2.msra.mxu0 0.0
  %4614 = vmatprep.subr.mxu0 0.0
  %4615 = vmatpush2.msra.mxu0 0.0
  %4616 = vmatprep.subr.mxu0 0.0
  %4617 = vmatpush2.msra.mxu0 0.0
  %4618 = vmatprep.mubr.f32.mxu0 0.0
  %4619 = vmatmul.mubr.f32.gmra.mxu0 %v4552
  %v4620 = vpop.f32.mrf.mxu0
  %v4621 = vadd.f32 %v3137, %v4620
  %v4622 = vpop.f32.mrf.mxu0
  %4623 = vdwg.mxu0
  %4625 = vrot.lane.b32.xlu0 %v4548, 96
  %v4626 = vpop.permute.xlu0 %4625
  %v4627 = vsel %vm208, %v4626, 0
  %4629 = vmatprep.subr.mxu0 0.0
  %4630 = vmatpush1.msra.mxu0 0.0
  %4631 = vmatprep.subr.mxu0 0.0
  %4632 = vmatpush1.msra.mxu0 0.0
  %4633 = vmatprep.subr.mxu0 0.0
  %4634 = vmatpush1.msra.mxu0 0.0
  %4635 = vmatprep.subr.mxu0 0.0
  %4636 = vmatpush1.msra.mxu0 0.0
  %4637 = vmatprep.subr.mxu0 0.0
  %4638 = vmatpush1.msra.mxu0 0.0
  %4639 = vmatprep.subr.mxu0 0.0
  %4640 = vmatpush1.msra.mxu0 0.0
  %4641 = vmatprep.subr.mxu0 0.0
  %4642 = vmatpush1.msra.mxu0 0.0
  %4643 = vmatprep.subr.mxu0 0.0
  %4644 = vmatpush1.msra.mxu0 0.0
  %4645 = vmatprep.subr.mxu0 0.0
  %4646 = vmatpush1.msra.mxu0 0.0
  %4647 = vmatprep.subr.mxu0 0.0
  %4648 = vmatpush1.msra.mxu0 0.0
  %4649 = vmatprep.subr.mxu0 0.0
  %4650 = vmatpush1.msra.mxu0 0.0
  %4651 = vmatprep.subr.mxu0 0.0
  %4652 = vmatpush1.msra.mxu0 0.0
  %4653 = vmatprep.subr.mxu0 0.0
  %4654 = vmatpush1.msra.mxu0 %v3130
  %4655 = vmatprep.subr.mxu0 0.0
  %4656 = vmatpush1.msra.mxu0 %v3129
  %4657 = vmatprep.subr.mxu0 0.0
  %4658 = vmatpush1.msra.mxu0 %v3128
  %4659 = vmatprep.subr.mxu0 0.0
  %4660 = vmatpush1.msra.mxu0 %v3127
  %4661 = vmatprep.subr.mxu0 0.0
  %4662 = vmatpush2.msra.mxu0 0.0
  %4663 = vmatprep.subr.mxu0 0.0
  %4664 = vmatpush2.msra.mxu0 0.0
  %4665 = vmatprep.subr.mxu0 0.0
  %4666 = vmatpush2.msra.mxu0 0.0
  %4667 = vmatprep.subr.mxu0 0.0
  %4668 = vmatpush2.msra.mxu0 0.0
  %4669 = vmatprep.subr.mxu0 0.0
  %4670 = vmatpush2.msra.mxu0 0.0
  %4671 = vmatprep.subr.mxu0 0.0
  %4672 = vmatpush2.msra.mxu0 0.0
  %4673 = vmatprep.subr.mxu0 0.0
  %4674 = vmatpush2.msra.mxu0 0.0
  %4675 = vmatprep.subr.mxu0 0.0
  %4676 = vmatpush2.msra.mxu0 0.0
  %4677 = vmatprep.subr.mxu0 0.0
  %4678 = vmatpush2.msra.mxu0 0.0
  %4679 = vmatprep.subr.mxu0 0.0
  %4680 = vmatpush2.msra.mxu0 0.0
  %4681 = vmatprep.subr.mxu0 0.0
  %4682 = vmatpush2.msra.mxu0 0.0
  %4683 = vmatprep.subr.mxu0 0.0
  %4684 = vmatpush2.msra.mxu0 0.0
  %4685 = vmatprep.subr.mxu0 0.0
  %4686 = vmatpush2.msra.mxu0 0.0
  %4687 = vmatprep.subr.mxu0 0.0
  %4688 = vmatpush2.msra.mxu0 0.0
  %4689 = vmatprep.subr.mxu0 0.0
  %4690 = vmatpush2.msra.mxu0 0.0
  %4691 = vmatprep.subr.mxu0 0.0
  %4692 = vmatpush2.msra.mxu0 0.0
  %4693 = vmatprep.mubr.f32.mxu0 0.0
  %4694 = vmatmul.mubr.f32.gmra.mxu0 %v4627
  %v4695 = vpop.f32.mrf.mxu0
  %v4696 = vadd.f32 %v3213, %v4695
  %v4697 = vpop.f32.mrf.mxu0
  %4698 = vdwg.mxu0
  %v4699 = vadd.f32 %v2554, %v4621
  %v4700 = vxor.u32 %v4699, 2147483648
  %v4701 = vmul.f32 %v4700, 1.442695
  %v4702 = vpow.pop %v4701
  %v4703 = vadd.f32 %v4702, 1.0
  %v4704 = vrcp.pop %v4703
  %v4705 = vmul.f32 1.0, %v4704
  %v4706 = vadd.f32 %v2630, %v4696
  %v4707 = vxor.u32 %v4706, 2147483648
  %v4708 = vmul.f32 %v4707, 1.442695
  %v4709 = vpow.pop %v4708
  %v4710 = vadd.f32 %v4709, 1.0
  %v4711 = vrcp.pop %v4710
  %v4712 = vmul.f32 1.0, %v4711
  %4714 = vrot.lane.b32.xlu0 %v4621, 64
  %v4715 = vpop.permute.xlu0 %4714
  %v4717 = vmul.f32 %v4705, %v4715
  %4719 = vrot.lane.b32.xlu0 %v4717, 64
  %v4720 = vpop.permute.xlu0 %4719
  %v4722 = vadd.f32 %v2554, %v4720
  %v4723 = vtanh.pop %v4722
  %4725 = vrot.lane.b32.xlu0 %v4696, 64
  %v4726 = vpop.permute.xlu0 %4725
  %v4728 = vmul.f32 %v4712, %v4726
  %4730 = vrot.lane.b32.xlu0 %v4728, 64
  %v4731 = vpop.permute.xlu0 %4730
  %v4733 = vadd.f32 %v2630, %v4731
  %v4734 = vtanh.pop %v4733
  %v4735 = vsub.f32 1.0, %v4705
  %4737 = vrot.lane.b32.xlu0 %v4723, 96
  %v4738 = vpop.permute.xlu0 %4737
  %v4740 = vmul.f32 %v4735, %v4738
  %v4741 = vmul.f32 %v4705, %v4540
  %v4742 = vadd.f32 %v4740, %v4741
  %v4743 = vsub.f32 1.0, %v4712
  %4745 = vrot.lane.b32.xlu0 %v4734, 96
  %v4746 = vpop.permute.xlu0 %4745
  %v4748 = vmul.f32 %v4743, %v4746
  %v4749 = vmul.f32 %v4712, %v4548
  %v4750 = vadd.f32 %v4748, %v4749
  %v4752 = vsel %vm208, %v3339, %v4750
  %v4754 = vsel %vm208, %v3541, %v4548
  %v4756 = vsel %vm208, %v3743, %v4346
  %v4758 = vsel %vm208, %v3945, %v4144
  %v4760 = vsel %vm208, %v4147, %v3942
  %v4762 = vsel %vm208, %v4349, %v3740
  %v4764 = vsel %vm208, %v4551, %v3538
  %4766 = vrot.lane.b32.xlu0 %v4742, 96
  %v4767 = vpop.permute.xlu0 %4766
  %v4769 = vsel %vm208, %v4767, %v3336
  %v4770 = vld [vmem:[%s14] sm:$0x1]
  %v4771 = vld [vmem:[%s15] sm:$0x1]
  %v4773 = vlaneseq
  %v4774 = vshrl.u32 %v4773, 7
  %v4775 = vsub.s32 0, %v4774
  %v4776 = vrot.slane %v4770, %v4775
  %v4778 = vmul.f32 %v1910, %v4776
  %vm4779 = vcmask 517120
  %v4780 = vsel %vm4779, %v4778, 0.0
  %4781 = vadd.xlane.f32.xlu0 %v4780
  %v4782 = vpop.xlane.xlu0 %4781
  %v4784 = vlaneseq
  %v4785 = vshrl.u32 %v4784, 7
  %v4786 = vsub.s32 0, %v4785
  %v4787 = vrot.slane %v4771, %v4786
  %v4789 = vadd.f32 %v4782, %v4787
  %v4790 = vtanh.pop %v4789
  %v4791 = vmul.f32 %v4790, 1.442695
  %v4792 = vpow.pop %v4791
  %v4793 = vmul.f32 %v1915, %v4776
  %v4794 = vsel %vm4779, %v4793, 0.0
  %4795 = vadd.xlane.f32.xlu0 %v4794
  %v4796 = vpop.xlane.xlu0 %4795
  %v4797 = vadd.f32 %v4796, %v4787
  %v4798 = vtanh.pop %v4797
  %v4799 = vmul.f32 %v4798, 1.442695
  %v4800 = vpow.pop %v4799
  %v4801 = vmul.f32 %v1920, %v4776
  %v4802 = vsel %vm4779, %v4801, 0.0
  %4803 = vadd.xlane.f32.xlu0 %v4802
  %v4804 = vpop.xlane.xlu0 %4803
  %v4805 = vadd.f32 %v4804, %v4787
  %v4806 = vtanh.pop %v4805
  %v4807 = vmul.f32 %v4806, 1.442695
  %v4808 = vpow.pop %v4807
  %v4809 = vmul.f32 %v1925, %v4776
  %v4810 = vsel %vm4779, %v4809, 0.0
  %4811 = vadd.xlane.f32.xlu0 %v4810
  %v4812 = vpop.xlane.xlu0 %4811
  %v4813 = vadd.f32 %v4812, %v4787
  %v4814 = vtanh.pop %v4813
  %v4815 = vmul.f32 %v4814, 1.442695
  %v4816 = vpow.pop %v4815
  %v4817 = vmul.f32 %v1930, %v4776
  %v4818 = vsel %vm4779, %v4817, 0.0
  %4819 = vadd.xlane.f32.xlu0 %v4818
  %v4820 = vpop.xlane.xlu0 %4819
  %v4821 = vadd.f32 %v4820, %v4787
  %v4822 = vtanh.pop %v4821
  %v4823 = vmul.f32 %v4822, 1.442695
  %v4824 = vpow.pop %v4823
  %v4825 = vmul.f32 %v1935, %v4776
  %v4826 = vsel %vm4779, %v4825, 0.0
  %4827 = vadd.xlane.f32.xlu0 %v4826
  %v4828 = vpop.xlane.xlu0 %4827
  %v4829 = vadd.f32 %v4828, %v4787
  %v4830 = vtanh.pop %v4829
  %v4831 = vmul.f32 %v4830, 1.442695
  %v4832 = vpow.pop %v4831
  %v4833 = vmul.f32 %v1940, %v4776
  %v4834 = vsel %vm4779, %v4833, 0.0
  %4835 = vadd.xlane.f32.xlu0 %v4834
  %v4836 = vpop.xlane.xlu0 %4835
  %v4837 = vadd.f32 %v4836, %v4787
  %v4838 = vtanh.pop %v4837
  %v4839 = vmul.f32 %v4838, 1.442695
  %v4840 = vpow.pop %v4839
  %v4841 = vmul.f32 %v1948, %v4776
  %v4842 = vsel %vm4779, %v4841, 0.0
  %4843 = vadd.xlane.f32.xlu0 %v4842
  %v4844 = vpop.xlane.xlu0 %4843
  %v4845 = vadd.f32 %v4844, %v4787
  %v4846 = vtanh.pop %v4845
  %v4847 = vmul.f32 %v4846, 1.442695
  %v4848 = vpow.pop %v4847
  %4850 = vrot.lane.b32.xlu0 %v4800, 127
  %v4851 = vpop.permute.xlu0 %4850
  %v4853 = vadd.f32 %v4792, %v4851
  %4855 = vrot.lane.b32.xlu0 %v4808, 126
  %v4856 = vpop.permute.xlu0 %4855
  %v4858 = vadd.f32 %v4853, %v4856
  %4860 = vrot.lane.b32.xlu0 %v4816, 125
  %v4861 = vpop.permute.xlu0 %4860
  %v4863 = vadd.f32 %v4858, %v4861
  %4865 = vrot.lane.b32.xlu0 %v4824, 124
  %v4866 = vpop.permute.xlu0 %4865
  %v4868 = vadd.f32 %v4863, %v4866
  %4870 = vrot.lane.b32.xlu0 %v4832, 123
  %v4871 = vpop.permute.xlu0 %4870
  %v4873 = vadd.f32 %v4868, %v4871
  %4875 = vrot.lane.b32.xlu0 %v4840, 122
  %v4876 = vpop.permute.xlu0 %4875
  %v4878 = vadd.f32 %v4873, %v4876
  %4880 = vrot.lane.b32.xlu0 %v4848, 121
  %v4881 = vpop.permute.xlu0 %4880
  %v4883 = vadd.f32 %v4878, %v4881
  %v4884 = vadd.f32 %v4883, 1e-10
  %v4885 = vrcp.pop %v4884
  %v4886 = vmul.f32 %v4792, %v4885
  %4888 = vset.pattern.permute.xlu0 0
  %4889 = vperm.xlu0 %4888, %v4886
  %v4890 = vpop.permute.xlu0 %4889
  %v4892 = vmul.f32 %v1910, %v4890
  %4894 = vrot.lane.b32.xlu0 %v4885, 1
  %v4895 = vpop.permute.xlu0 %4894
  %v4897 = vmul.f32 %v4800, %v4895
  %4899 = vset.pattern.permute.xlu0 1
  %4900 = vperm.xlu0 %4899, %v4897
  %v4901 = vpop.permute.xlu0 %4900
  %v4903 = vmul.f32 %v1915, %v4901
  %v4904 = vadd.f32 %v4892, %v4903
  %4905 = vrot.lane.b32.xlu0 %v4885, 2
  %v4906 = vpop.permute.xlu0 %4905
  %v4908 = vmul.f32 %v4808, %v4906
  %4910 = vset.pattern.permute.xlu0 2
  %4911 = vperm.xlu0 %4910, %v4908
  %v4912 = vpop.permute.xlu0 %4911
  %v4914 = vmul.f32 %v1920, %v4912
  %v4915 = vadd.f32 %v4904, %v4914
  %4916 = vrot.lane.b32.xlu0 %v4885, 3
  %v4917 = vpop.permute.xlu0 %4916
  %v4919 = vmul.f32 %v4816, %v4917
  %4921 = vset.pattern.permute.xlu0 3
  %4922 = vperm.xlu0 %4921, %v4919
  %v4923 = vpop.permute.xlu0 %4922
  %v4925 = vmul.f32 %v1925, %v4923
  %v4926 = vadd.f32 %v4915, %v4925
  %4927 = vrot.lane.b32.xlu0 %v4885, 4
  %v4928 = vpop.permute.xlu0 %4927
  %v4930 = vmul.f32 %v4824, %v4928
  %4932 = vset.pattern.permute.xlu0 4
  %4933 = vperm.xlu0 %4932, %v4930
  %v4934 = vpop.permute.xlu0 %4933
  %v4936 = vmul.f32 %v1930, %v4934
  %v4937 = vadd.f32 %v4926, %v4936
  %4938 = vrot.lane.b32.xlu0 %v4885, 5
  %v4939 = vpop.permute.xlu0 %4938
  %v4941 = vmul.f32 %v4832, %v4939
  %4943 = vset.pattern.permute.xlu0 5
  %4944 = vperm.xlu0 %4943, %v4941
  %v4945 = vpop.permute.xlu0 %4944
  %v4947 = vmul.f32 %v1935, %v4945
  %v4948 = vadd.f32 %v4937, %v4947
  %4949 = vrot.lane.b32.xlu0 %v4885, 6
  %v4950 = vpop.permute.xlu0 %4949
  %v4952 = vmul.f32 %v4840, %v4950
  %4954 = vset.pattern.permute.xlu0 6
  %4955 = vperm.xlu0 %4954, %v4952
  %v4956 = vpop.permute.xlu0 %4955
  %v4958 = vmul.f32 %v1940, %v4956
  %v4959 = vadd.f32 %v4948, %v4958
  %4960 = vrot.lane.b32.xlu0 %v4885, 7
  %v4961 = vpop.permute.xlu0 %4960
  %v4963 = vmul.f32 %v4848, %v4961
  %4965 = vset.pattern.permute.xlu0 7
  %4966 = vperm.xlu0 %4965, %v4963
  %v4967 = vpop.permute.xlu0 %4966
  %v4969 = vmul.f32 %v1948, %v4967
  %v4970 = vadd.f32 %v4959, %v4969
  %v4971 = vld [vmem:[%s16] sm:$0x1]
  %v4972 = vld [vmem:[%s17] sm:$0x1]
  %v4974 = vlaneseq
  %v4975 = vshrl.u32 %v4974, 7
  %v4976 = vsub.s32 0, %v4975
  %v4977 = vrot.slane %v4971, %v4976
  %v4979 = vmul.f32 %v4752, %v4977
  %v4980 = vsel %vm4779, %v4979, 0.0
  %4981 = vadd.xlane.f32.xlu0 %v4980
  %v4982 = vpop.xlane.xlu0 %4981
  %v4984 = vlaneseq
  %v4985 = vshrl.u32 %v4984, 7
  %v4986 = vsub.s32 0, %v4985
  %v4987 = vrot.slane %v4972, %v4986
  %v4989 = vadd.f32 %v4982, %v4987
  %v4990 = vtanh.pop %v4989
  %v4991 = vmul.f32 %v4990, 1.442695
  %v4992 = vpow.pop %v4991
  %v4993 = vmul.f32 %v4754, %v4977
  %v4994 = vsel %vm4779, %v4993, 0.0
  %4995 = vadd.xlane.f32.xlu0 %v4994
  %v4996 = vpop.xlane.xlu0 %4995
  %v4997 = vadd.f32 %v4996, %v4987
  %v4998 = vtanh.pop %v4997
  %v4999 = vmul.f32 %v4998, 1.442695
  %v5000 = vpow.pop %v4999
  %v5001 = vmul.f32 %v4756, %v4977
  %v5002 = vsel %vm4779, %v5001, 0.0
  %5003 = vadd.xlane.f32.xlu0 %v5002
  %v5004 = vpop.xlane.xlu0 %5003
  %v5005 = vadd.f32 %v5004, %v4987
  %v5006 = vtanh.pop %v5005
  %v5007 = vmul.f32 %v5006, 1.442695
  %v5008 = vpow.pop %v5007
  %v5009 = vmul.f32 %v4758, %v4977
  %v5010 = vsel %vm4779, %v5009, 0.0
  %5011 = vadd.xlane.f32.xlu0 %v5010
  %v5012 = vpop.xlane.xlu0 %5011
  %v5013 = vadd.f32 %v5012, %v4987
  %v5014 = vtanh.pop %v5013
  %v5015 = vmul.f32 %v5014, 1.442695
  %v5016 = vpow.pop %v5015
  %v5017 = vmul.f32 %v4760, %v4977
  %v5018 = vsel %vm4779, %v5017, 0.0
  %5019 = vadd.xlane.f32.xlu0 %v5018
  %v5020 = vpop.xlane.xlu0 %5019
  %v5021 = vadd.f32 %v5020, %v4987
  %v5022 = vtanh.pop %v5021
  %v5023 = vmul.f32 %v5022, 1.442695
  %v5024 = vpow.pop %v5023
  %v5025 = vmul.f32 %v4762, %v4977
  %v5026 = vsel %vm4779, %v5025, 0.0
  %5027 = vadd.xlane.f32.xlu0 %v5026
  %v5028 = vpop.xlane.xlu0 %5027
  %v5029 = vadd.f32 %v5028, %v4987
  %v5030 = vtanh.pop %v5029
  %v5031 = vmul.f32 %v5030, 1.442695
  %v5032 = vpow.pop %v5031
  %v5033 = vmul.f32 %v4764, %v4977
  %v5034 = vsel %vm4779, %v5033, 0.0
  %5035 = vadd.xlane.f32.xlu0 %v5034
  %v5036 = vpop.xlane.xlu0 %5035
  %v5037 = vadd.f32 %v5036, %v4987
  %v5038 = vtanh.pop %v5037
  %v5039 = vmul.f32 %v5038, 1.442695
  %v5040 = vpow.pop %v5039
  %v5041 = vmul.f32 %v4769, %v4977
  %v5042 = vsel %vm4779, %v5041, 0.0
  %5043 = vadd.xlane.f32.xlu0 %v5042
  %v5044 = vpop.xlane.xlu0 %5043
  %v5045 = vadd.f32 %v5044, %v4987
  %v5046 = vtanh.pop %v5045
  %v5047 = vmul.f32 %v5046, 1.442695
  %v5048 = vpow.pop %v5047
  %5050 = vrot.lane.b32.xlu0 %v5000, 127
  %v5051 = vpop.permute.xlu0 %5050
  %v5053 = vadd.f32 %v4992, %v5051
  %5055 = vrot.lane.b32.xlu0 %v5008, 126
  %v5056 = vpop.permute.xlu0 %5055
  %v5058 = vadd.f32 %v5053, %v5056
  %5060 = vrot.lane.b32.xlu0 %v5016, 125
  %v5061 = vpop.permute.xlu0 %5060
  %v5063 = vadd.f32 %v5058, %v5061
  %5065 = vrot.lane.b32.xlu0 %v5024, 124
  %v5066 = vpop.permute.xlu0 %5065
  %v5068 = vadd.f32 %v5063, %v5066
  %5070 = vrot.lane.b32.xlu0 %v5032, 123
  %v5071 = vpop.permute.xlu0 %5070
  %v5073 = vadd.f32 %v5068, %v5071
  %5075 = vrot.lane.b32.xlu0 %v5040, 122
  %v5076 = vpop.permute.xlu0 %5075
  %v5078 = vadd.f32 %v5073, %v5076
  %5080 = vrot.lane.b32.xlu0 %v5048, 121
  %v5081 = vpop.permute.xlu0 %5080
  %v5083 = vadd.f32 %v5078, %v5081
  %v5084 = vadd.f32 %v5083, 1e-10
  %v5085 = vrcp.pop %v5084
  %v5086 = vmul.f32 %v4992, %v5085
  %5088 = vset.pattern.permute.xlu0 0
  %5089 = vperm.xlu0 %5088, %v5086
  %v5090 = vpop.permute.xlu0 %5089
  %v5092 = vmul.f32 %v4752, %v5090
  %5094 = vrot.lane.b32.xlu0 %v5085, 1
  %v5095 = vpop.permute.xlu0 %5094
  %v5097 = vmul.f32 %v5000, %v5095
  %5099 = vset.pattern.permute.xlu0 1
  %5100 = vperm.xlu0 %5099, %v5097
  %v5101 = vpop.permute.xlu0 %5100
  %v5103 = vmul.f32 %v4754, %v5101
  %v5104 = vadd.f32 %v5092, %v5103
  %5105 = vrot.lane.b32.xlu0 %v5085, 2
  %v5106 = vpop.permute.xlu0 %5105
  %v5108 = vmul.f32 %v5008, %v5106
  %5110 = vset.pattern.permute.xlu0 2
  %5111 = vperm.xlu0 %5110, %v5108
  %v5112 = vpop.permute.xlu0 %5111
  %v5114 = vmul.f32 %v4756, %v5112
  %v5115 = vadd.f32 %v5104, %v5114
  %5116 = vrot.lane.b32.xlu0 %v5085, 3
  %v5117 = vpop.permute.xlu0 %5116
  %v5119 = vmul.f32 %v5016, %v5117
  %5121 = vset.pattern.permute.xlu0 3
  %5122 = vperm.xlu0 %5121, %v5119
  %v5123 = vpop.permute.xlu0 %5122
  %v5125 = vmul.f32 %v4758, %v5123
  %v5126 = vadd.f32 %v5115, %v5125
  %5127 = vrot.lane.b32.xlu0 %v5085, 4
  %v5128 = vpop.permute.xlu0 %5127
  %v5130 = vmul.f32 %v5024, %v5128
  %5132 = vset.pattern.permute.xlu0 4
  %5133 = vperm.xlu0 %5132, %v5130
  %v5134 = vpop.permute.xlu0 %5133
  %v5136 = vmul.f32 %v4760, %v5134
  %v5137 = vadd.f32 %v5126, %v5136
  %5138 = vrot.lane.b32.xlu0 %v5085, 5
  %v5139 = vpop.permute.xlu0 %5138
  %v5141 = vmul.f32 %v5032, %v5139
  %5143 = vset.pattern.permute.xlu0 5
  %5144 = vperm.xlu0 %5143, %v5141
  %v5145 = vpop.permute.xlu0 %5144
  %v5147 = vmul.f32 %v4762, %v5145
  %v5148 = vadd.f32 %v5137, %v5147
  %5149 = vrot.lane.b32.xlu0 %v5085, 6
  %v5150 = vpop.permute.xlu0 %5149
  %v5152 = vmul.f32 %v5040, %v5150
  %5154 = vset.pattern.permute.xlu0 6
  %5155 = vperm.xlu0 %5154, %v5152
  %v5156 = vpop.permute.xlu0 %5155
  %v5158 = vmul.f32 %v4764, %v5156
  %v5159 = vadd.f32 %v5148, %v5158
  %5160 = vrot.lane.b32.xlu0 %v5085, 7
  %v5161 = vpop.permute.xlu0 %5160
  %v5163 = vmul.f32 %v5048, %v5161
  %5165 = vset.pattern.permute.xlu0 7
  %5166 = vperm.xlu0 %5165, %v5163
  %v5167 = vpop.permute.xlu0 %5166
  %v5169 = vmul.f32 %v4769, %v5167
  %v5170 = vadd.f32 %v5159, %v5169
  %v5171 = vadd.f32 %v4752, %v4754
  %v5172 = vmax.f32 %v4752, %v4754
  %v5173 = vadd.f32 %v5171, %v4756
  %v5174 = vmax.f32 %v5172, %v4756
  %v5175 = vadd.f32 %v5173, %v4758
  %v5176 = vmax.f32 %v5174, %v4758
  %v5177 = vadd.f32 %v5175, %v4760
  %v5178 = vmax.f32 %v5176, %v4760
  %v5179 = vadd.f32 %v5177, %v4762
  %v5180 = vmax.f32 %v5178, %v4762
  %v5181 = vadd.f32 %v5179, %v4764
  %v5182 = vmax.f32 %v5180, %v4764
  %v5183 = vadd.f32 %v5181, %v4769
  %v5184 = vmax.f32 %v5182, %v4769
  %v5185 = vmul.f32 %v5183, 0.125
  %v5186 = vmul.f32 %v4970, %v5170
  %v5187 = vmul.f32 %v4970, %v5185
  %v5188 = vmul.f32 %v4970, %v5184
  %v5189 = vmul.f32 %v5170, %v5185
  %v5190 = vmul.f32 %v5170, %v5184
  %v5191 = vmul.f32 %v5185, %v5184
  %v5192 = vld [vmem:[%s18] sm:$0x3]
  %v5193 = vld [vmem:[%s19] sm:$0x7]
  %v5194 = vld [vmem:[%s20] sm:$0x7]
  %5196 = vset.pattern.permute.xlu0 0
  %5197 = vperm.xlu0 %5196, %v5192
  %v5198 = vpop.permute.xlu0 %5197
  %v5200 = vlaneseq
  %v5201 = vshrl.u32 %v5200, 7
  %v5202 = vsub.s32 0, %v5201
  %v5203 = vrot.slane %v5193, %v5202
  %v5204 = vmul.f32 %v5198, %v5203
  %v5205 = vlaneseq
  %v5206 = vshrl.u32 %v5205, 7
  %v5207 = vsub.s32 0, %v5206
  %v5208 = vrot.slane %v5194, %v5207
  %v5209 = vadd.f32 %v5204, %v5208
  %v5210 = vmax.f32 %v5209, 0.0
  %5211 = vset.pattern.permute.xlu0 1
  %5212 = vperm.xlu0 %5211, %v5192
  %v5213 = vpop.permute.xlu0 %5212
  %v5215 = vlaneseq
  %v5216 = vshrl.u32 %v5215, 7
  %v5217 = vsub.s32 1, %v5216
  %v5218 = vrot.slane %v5193, %v5217
  %v5219 = vmul.f32 %v5213, %v5218
  %v5220 = vlaneseq
  %v5221 = vshrl.u32 %v5220, 7
  %v5222 = vsub.s32 1, %v5221
  %v5223 = vrot.slane %v5194, %v5222
  %v5224 = vadd.f32 %v5219, %v5223
  %v5225 = vmax.f32 %v5224, 0.0
  %5226 = vset.pattern.permute.xlu0 2
  %5227 = vperm.xlu0 %5226, %v5192
  %v5228 = vpop.permute.xlu0 %5227
  %v5230 = vlaneseq
  %v5231 = vshrl.u32 %v5230, 7
  %v5232 = vsub.s32 2, %v5231
  %v5233 = vrot.slane %v5193, %v5232
  %v5234 = vmul.f32 %v5228, %v5233
  %v5235 = vlaneseq
  %v5236 = vshrl.u32 %v5235, 7
  %v5237 = vsub.s32 2, %v5236
  %v5238 = vrot.slane %v5194, %v5237
  %v5239 = vadd.f32 %v5234, %v5238
  %v5240 = vmax.f32 %v5239, 0.0
  %5242 = vrot.lane.b32.xlu0 %v5170, 64
  %v5243 = vpop.permute.xlu0 %5242
  %v5245 = vsel %vm106, %v4970, %v5243
  %5247 = vrot.lane.b32.xlu0 %v5184, 64
  %v5248 = vpop.permute.xlu0 %5247
  %v5250 = vsel %vm106, %v5185, %v5248
  %5252 = vrot.lane.b32.xlu0 %v5187, 64
  %v5253 = vpop.permute.xlu0 %5252
  %v5255 = vsel %vm106, %v5186, %v5253
  %5257 = vrot.lane.b32.xlu0 %v5189, 64
  %v5258 = vpop.permute.xlu0 %5257
  %v5260 = vsel %vm106, %v5188, %v5258
  %5262 = vrot.lane.b32.xlu0 %v5191, 64
  %v5263 = vpop.permute.xlu0 %5262
  %v5265 = vsel %vm106, %v5190, %v5263
  %5267 = vrot.lane.b32.xlu0 %v5225, 32
  %v5268 = vpop.permute.xlu0 %5267
  %5271 = vrot.lane.b32.xlu0 %v5240, 64
  %v5272 = vpop.permute.xlu0 %5271
  %v5274 = vsel %vm208, %v5210, %v5268
  %v5275 = vsel %vm106, %v5274, %v5272
  %v5276 = vld [vmem:[%s21] sm:$0xff]
  %v5277 = vld [vmem:[%s21 + $0x8] sm:$0xff]
  %v5278 = vld [vmem:[%s21 + $0x10] sm:$0xff]
  %v5279 = vld [vmem:[%s21 + $0x18] sm:$0xff]
  %v5280 = vld [vmem:[%s21 + $0x20] sm:$0xff]
  %v5281 = vld [vmem:[%s21 + $0x28] sm:$0xff]
  %v5282 = vld [vmem:[%s21 + $0x30] sm:$0xff]
  %v5283 = vld [vmem:[%s21 + $0x38] sm:$0xff]
  %v5284 = vld [vmem:[%s21 + $0x40] sm:$0xff]
  %v5285 = vld [vmem:[%s21 + $0x48] sm:$0xff]
  %v5286 = vld [vmem:[%s21 + $0x50] sm:$0xff]
  %v5287 = vld [vmem:[%s21 + $0x58] sm:$0xff]
  %v5288 = vld [vmem:[%s21 + $0x60] sm:$0xff]
  %v5289 = vld [vmem:[%s21 + $0x68] sm:$0xff]
  %v5290 = vld [vmem:[%s21 + $0x70] sm:$0xff]
  %v5291 = vld [vmem:[%s21 + $0x78] sm:$0xff]
  %v5292 = vld [vmem:[%s21 + $0x80] sm:$0xff]
  %v5293 = vld [vmem:[%s21 + $0x88] sm:$0xff]
  %v5294 = vld [vmem:[%s21 + $0x90] sm:$0xff]
  %v5295 = vld [vmem:[%s21 + $0x98] sm:$0xff]
  %v5296 = vld [vmem:[%s21 + $0xa0] sm:$0xff]
  %v5297 = vld [vmem:[%s21 + $0xa8] sm:$0xff]
  %v5298 = vld [vmem:[%s21 + $0xb0] sm:$0xff]
  %v5299 = vld [vmem:[%s21 + $0xb8] sm:$0xff]
  %v5300 = vld [vmem:[%s21 + $0xc0] sm:$0xff]
  %v5301 = vld [vmem:[%s21 + $0xc8] sm:$0xff]
  %v5302 = vld [vmem:[%s21 + $0xd0] sm:$0xff]
  %v5303 = vld [vmem:[%s21 + $0xd8] sm:$0xff]
  %v5304 = vld [vmem:[%s21 + $0xe0] sm:$0xff]
  %v5305 = vld [vmem:[%s21 + $0xe8] sm:$0xff]
  %v5306 = vld [vmem:[%s21 + $0xf0] sm:$0xff]
  %v5307 = vld [vmem:[%s21 + $0xf8] sm:$0xff]
  %5308 = vmatprep.subr.mxu0 0.0
  %5309 = vmatpush1.msra.mxu0 %v5307
  %5310 = vmatprep.subr.mxu0 0.0
  %5311 = vmatpush1.msra.mxu0 %v5306
  %5312 = vmatprep.subr.mxu0 0.0
  %5313 = vmatpush1.msra.mxu0 %v5305
  %5314 = vmatprep.subr.mxu0 0.0
  %5315 = vmatpush1.msra.mxu0 %v5304
  %5316 = vmatprep.subr.mxu0 0.0
  %5317 = vmatpush1.msra.mxu0 %v5303
  %5318 = vmatprep.subr.mxu0 0.0
  %5319 = vmatpush1.msra.mxu0 %v5302
  %5320 = vmatprep.subr.mxu0 0.0
  %5321 = vmatpush1.msra.mxu0 %v5301
  %5322 = vmatprep.subr.mxu0 0.0
  %5323 = vmatpush1.msra.mxu0 %v5300
  %5324 = vmatprep.subr.mxu0 0.0
  %5325 = vmatpush1.msra.mxu0 %v5299
  %5326 = vmatprep.subr.mxu0 0.0
  %5327 = vmatpush1.msra.mxu0 %v5298
  %5328 = vmatprep.subr.mxu0 0.0
  %5329 = vmatpush1.msra.mxu0 %v5297
  %5330 = vmatprep.subr.mxu0 0.0
  %5331 = vmatpush1.msra.mxu0 %v5296
  %5332 = vmatprep.subr.mxu0 0.0
  %5333 = vmatpush1.msra.mxu0 %v5295
  %5334 = vmatprep.subr.mxu0 0.0
  %5335 = vmatpush1.msra.mxu0 %v5294
  %5336 = vmatprep.subr.mxu0 0.0
  %5337 = vmatpush1.msra.mxu0 %v5293
  %5338 = vmatprep.subr.mxu0 0.0
  %5339 = vmatpush1.msra.mxu0 %v5292
  %5340 = vmatprep.subr.mxu0 0.0
  %5341 = vmatpush2.msra.mxu0 0.0
  %5342 = vmatprep.subr.mxu0 0.0
  %5343 = vmatpush2.msra.mxu0 0.0
  %5344 = vmatprep.subr.mxu0 0.0
  %5345 = vmatpush2.msra.mxu0 0.0
  %5346 = vmatprep.subr.mxu0 0.0
  %5347 = vmatpush2.msra.mxu0 0.0
  %5348 = vmatprep.subr.mxu0 0.0
  %5349 = vmatpush2.msra.mxu0 0.0
  %5350 = vmatprep.subr.mxu0 0.0
  %5351 = vmatpush2.msra.mxu0 0.0
  %5352 = vmatprep.subr.mxu0 0.0
  %5353 = vmatpush2.msra.mxu0 0.0
  %5354 = vmatprep.subr.mxu0 0.0
  %5355 = vmatpush2.msra.mxu0 0.0
  %5356 = vmatprep.subr.mxu0 0.0
  %5357 = vmatpush2.msra.mxu0 0.0
  %5358 = vmatprep.subr.mxu0 0.0
  %5359 = vmatpush2.msra.mxu0 0.0
  %5360 = vmatprep.subr.mxu0 0.0
  %5361 = vmatpush2.msra.mxu0 0.0
  %5362 = vmatprep.subr.mxu0 0.0
  %5363 = vmatpush2.msra.mxu0 0.0
  %5364 = vmatprep.subr.mxu0 0.0
  %5365 = vmatpush2.msra.mxu0 0.0
  %5366 = vmatprep.subr.mxu0 0.0
  %5367 = vmatpush2.msra.mxu0 0.0
  %5368 = vmatprep.subr.mxu0 0.0
  %5369 = vmatpush2.msra.mxu0 0.0
  %5370 = vmatprep.subr.mxu0 0.0
  %5371 = vmatpush2.msra.mxu0 0.0
  %5372 = vmatprep.mubr.f32.mxu0 0.0
  %5373 = vmatmul.mubr.f32.gmra.mxu0 %v5250
  %v5374 = vpop.f32.mrf.mxu0
  %v5375 = vadd.f32 0.0, %v5374
  %v5376 = vpop.f32.mrf.mxu0
  %5377 = vdwg.mxu0
  %v5378 = vld [vmem:[%s21 + $0x100] sm:$0xff]
  %v5379 = vld [vmem:[%s21 + $0x108] sm:$0xff]
  %v5380 = vld [vmem:[%s21 + $0x110] sm:$0xff]
  %v5381 = vld [vmem:[%s21 + $0x118] sm:$0xff]
  %v5382 = vld [vmem:[%s21 + $0x120] sm:$0xff]
  %v5383 = vld [vmem:[%s21 + $0x128] sm:$0xff]
  %v5384 = vld [vmem:[%s21 + $0x130] sm:$0xff]
  %v5385 = vld [vmem:[%s21 + $0x138] sm:$0xff]
  %v5386 = vld [vmem:[%s21 + $0x140] sm:$0xff]
  %v5387 = vld [vmem:[%s21 + $0x148] sm:$0xff]
  %v5388 = vld [vmem:[%s21 + $0x150] sm:$0xff]
  %v5389 = vld [vmem:[%s21 + $0x158] sm:$0xff]
  %v5390 = vld [vmem:[%s21 + $0x160] sm:$0xff]
  %v5391 = vld [vmem:[%s21 + $0x168] sm:$0xff]
  %v5392 = vld [vmem:[%s21 + $0x170] sm:$0xff]
  %v5393 = vld [vmem:[%s21 + $0x178] sm:$0xff]
  %v5394 = vld [vmem:[%s21 + $0x180] sm:$0xff]
  %v5395 = vld [vmem:[%s21 + $0x188] sm:$0xff]
  %v5396 = vld [vmem:[%s21 + $0x190] sm:$0xff]
  %v5397 = vld [vmem:[%s21 + $0x198] sm:$0xff]
  %v5398 = vld [vmem:[%s21 + $0x1a0] sm:$0xff]
  %v5399 = vld [vmem:[%s21 + $0x1a8] sm:$0xff]
  %v5400 = vld [vmem:[%s21 + $0x1b0] sm:$0xff]
  %v5401 = vld [vmem:[%s21 + $0x1b8] sm:$0xff]
  %v5402 = vld [vmem:[%s21 + $0x1c0] sm:$0xff]
  %v5403 = vld [vmem:[%s21 + $0x1c8] sm:$0xff]
  %v5404 = vld [vmem:[%s21 + $0x1d0] sm:$0xff]
  %v5405 = vld [vmem:[%s21 + $0x1d8] sm:$0xff]
  %v5406 = vld [vmem:[%s21 + $0x1e0] sm:$0xff]
  %v5407 = vld [vmem:[%s21 + $0x1e8] sm:$0xff]
  %v5408 = vld [vmem:[%s21 + $0x1f0] sm:$0xff]
  %v5409 = vld [vmem:[%s21 + $0x1f8] sm:$0xff]
  %5410 = vmatprep.subr.mxu0 0.0
  %5411 = vmatpush1.msra.mxu0 %v5409
  %5412 = vmatprep.subr.mxu0 0.0
  %5413 = vmatpush1.msra.mxu0 %v5408
  %5414 = vmatprep.subr.mxu0 0.0
  %5415 = vmatpush1.msra.mxu0 %v5407
  %5416 = vmatprep.subr.mxu0 0.0
  %5417 = vmatpush1.msra.mxu0 %v5406
  %5418 = vmatprep.subr.mxu0 0.0
  %5419 = vmatpush1.msra.mxu0 %v5405
  %5420 = vmatprep.subr.mxu0 0.0
  %5421 = vmatpush1.msra.mxu0 %v5404
  %5422 = vmatprep.subr.mxu0 0.0
  %5423 = vmatpush1.msra.mxu0 %v5403
  %5424 = vmatprep.subr.mxu0 0.0
  %5425 = vmatpush1.msra.mxu0 %v5402
  %5426 = vmatprep.subr.mxu0 0.0
  %5427 = vmatpush1.msra.mxu0 %v5401
  %5428 = vmatprep.subr.mxu0 0.0
  %5429 = vmatpush1.msra.mxu0 %v5400
  %5430 = vmatprep.subr.mxu0 0.0
  %5431 = vmatpush1.msra.mxu0 %v5399
  %5432 = vmatprep.subr.mxu0 0.0
  %5433 = vmatpush1.msra.mxu0 %v5398
  %5434 = vmatprep.subr.mxu0 0.0
  %5435 = vmatpush1.msra.mxu0 %v5397
  %5436 = vmatprep.subr.mxu0 0.0
  %5437 = vmatpush1.msra.mxu0 %v5396
  %5438 = vmatprep.subr.mxu0 0.0
  %5439 = vmatpush1.msra.mxu0 %v5395
  %5440 = vmatprep.subr.mxu0 0.0
  %5441 = vmatpush1.msra.mxu0 %v5394
  %5442 = vmatprep.subr.mxu0 0.0
  %5443 = vmatpush2.msra.mxu0 0.0
  %5444 = vmatprep.subr.mxu0 0.0
  %5445 = vmatpush2.msra.mxu0 0.0
  %5446 = vmatprep.subr.mxu0 0.0
  %5447 = vmatpush2.msra.mxu0 0.0
  %5448 = vmatprep.subr.mxu0 0.0
  %5449 = vmatpush2.msra.mxu0 0.0
  %5450 = vmatprep.subr.mxu0 0.0
  %5451 = vmatpush2.msra.mxu0 0.0
  %5452 = vmatprep.subr.mxu0 0.0
  %5453 = vmatpush2.msra.mxu0 0.0
  %5454 = vmatprep.subr.mxu0 0.0
  %5455 = vmatpush2.msra.mxu0 0.0
  %5456 = vmatprep.subr.mxu0 0.0
  %5457 = vmatpush2.msra.mxu0 0.0
  %5458 = vmatprep.subr.mxu0 0.0
  %5459 = vmatpush2.msra.mxu0 0.0
  %5460 = vmatprep.subr.mxu0 0.0
  %5461 = vmatpush2.msra.mxu0 0.0
  %5462 = vmatprep.subr.mxu0 0.0
  %5463 = vmatpush2.msra.mxu0 0.0
  %5464 = vmatprep.subr.mxu0 0.0
  %5465 = vmatpush2.msra.mxu0 0.0
  %5466 = vmatprep.subr.mxu0 0.0
  %5467 = vmatpush2.msra.mxu0 0.0
  %5468 = vmatprep.subr.mxu0 0.0
  %5469 = vmatpush2.msra.mxu0 0.0
  %5470 = vmatprep.subr.mxu0 0.0
  %5471 = vmatpush2.msra.mxu0 0.0
  %5472 = vmatprep.subr.mxu0 0.0
  %5473 = vmatpush2.msra.mxu0 0.0
  %5474 = vmatprep.mubr.f32.mxu0 0.0
  %5475 = vmatmul.mubr.f32.gmra.mxu0 %v5260
  %v5476 = vpop.f32.mrf.mxu0
  %v5477 = vadd.f32 0.0, %v5476
  %v5478 = vpop.f32.mrf.mxu0
  %5479 = vdwg.mxu0
  %v5480 = vld [vmem:[%s21 + $0x200] sm:$0xff]
  %v5481 = vld [vmem:[%s21 + $0x208] sm:$0xff]
  %v5482 = vld [vmem:[%s21 + $0x210] sm:$0xff]
  %v5483 = vld [vmem:[%s21 + $0x218] sm:$0xff]
  %v5484 = vld [vmem:[%s21 + $0x220] sm:$0xff]
  %v5485 = vld [vmem:[%s21 + $0x228] sm:$0xff]
  %v5486 = vld [vmem:[%s21 + $0x230] sm:$0xff]
  %v5487 = vld [vmem:[%s21 + $0x238] sm:$0xff]
  %v5488 = vld [vmem:[%s21 + $0x240] sm:$0xff]
  %v5489 = vld [vmem:[%s21 + $0x248] sm:$0xff]
  %v5490 = vld [vmem:[%s21 + $0x250] sm:$0xff]
  %v5491 = vld [vmem:[%s21 + $0x258] sm:$0xff]
  %v5492 = vld [vmem:[%s21 + $0x260] sm:$0xff]
  %v5493 = vld [vmem:[%s21 + $0x268] sm:$0xff]
  %v5494 = vld [vmem:[%s21 + $0x270] sm:$0xff]
  %v5495 = vld [vmem:[%s21 + $0x278] sm:$0xff]
  %v5496 = vld [vmem:[%s21 + $0x280] sm:$0xff]
  %v5497 = vld [vmem:[%s21 + $0x288] sm:$0xff]
  %v5498 = vld [vmem:[%s21 + $0x290] sm:$0xff]
  %v5499 = vld [vmem:[%s21 + $0x298] sm:$0xff]
  %v5500 = vld [vmem:[%s21 + $0x2a0] sm:$0xff]
  %v5501 = vld [vmem:[%s21 + $0x2a8] sm:$0xff]
  %v5502 = vld [vmem:[%s21 + $0x2b0] sm:$0xff]
  %v5503 = vld [vmem:[%s21 + $0x2b8] sm:$0xff]
  %v5504 = vld [vmem:[%s21 + $0x2c0] sm:$0xff]
  %v5505 = vld [vmem:[%s21 + $0x2c8] sm:$0xff]
  %v5506 = vld [vmem:[%s21 + $0x2d0] sm:$0xff]
  %v5507 = vld [vmem:[%s21 + $0x2d8] sm:$0xff]
  %vm5508 = vcmask 785408
  %v5510 = vsel %vm5508, %v5275, 0
  %5512 = vmatprep.subr.mxu0 0.0
  %5513 = vmatpush1.msra.mxu0 0.0
  %5514 = vmatprep.subr.mxu0 0.0
  %5515 = vmatpush1.msra.mxu0 0.0
  %5516 = vmatprep.subr.mxu0 0.0
  %5517 = vmatpush1.msra.mxu0 0.0
  %5518 = vmatprep.subr.mxu0 0.0
  %5519 = vmatpush1.msra.mxu0 0.0
  %5520 = vmatprep.subr.mxu0 0.0
  %5521 = vmatpush1.msra.mxu0 %v5507
  %5522 = vmatprep.subr.mxu0 0.0
  %5523 = vmatpush1.msra.mxu0 %v5506
  %5524 = vmatprep.subr.mxu0 0.0
  %5525 = vmatpush1.msra.mxu0 %v5505
  %5526 = vmatprep.subr.mxu0 0.0
  %5527 = vmatpush1.msra.mxu0 %v5504
  %5528 = vmatprep.subr.mxu0 0.0
  %5529 = vmatpush1.msra.mxu0 %v5503
  %5530 = vmatprep.subr.mxu0 0.0
  %5531 = vmatpush1.msra.mxu0 %v5502
  %5532 = vmatprep.subr.mxu0 0.0
  %5533 = vmatpush1.msra.mxu0 %v5501
  %5534 = vmatprep.subr.mxu0 0.0
  %5535 = vmatpush1.msra.mxu0 %v5500
  %5536 = vmatprep.subr.mxu0 0.0
  %5537 = vmatpush1.msra.mxu0 %v5499
  %5538 = vmatprep.subr.mxu0 0.0
  %5539 = vmatpush1.msra.mxu0 %v5498
  %5540 = vmatprep.subr.mxu0 0.0
  %5541 = vmatpush1.msra.mxu0 %v5497
  %5542 = vmatprep.subr.mxu0 0.0
  %5543 = vmatpush1.msra.mxu0 %v5496
  %5544 = vmatprep.subr.mxu0 0.0
  %5545 = vmatpush2.msra.mxu0 0.0
  %5546 = vmatprep.subr.mxu0 0.0
  %5547 = vmatpush2.msra.mxu0 0.0
  %5548 = vmatprep.subr.mxu0 0.0
  %5549 = vmatpush2.msra.mxu0 0.0
  %5550 = vmatprep.subr.mxu0 0.0
  %5551 = vmatpush2.msra.mxu0 0.0
  %5552 = vmatprep.subr.mxu0 0.0
  %5553 = vmatpush2.msra.mxu0 0.0
  %5554 = vmatprep.subr.mxu0 0.0
  %5555 = vmatpush2.msra.mxu0 0.0
  %5556 = vmatprep.subr.mxu0 0.0
  %5557 = vmatpush2.msra.mxu0 0.0
  %5558 = vmatprep.subr.mxu0 0.0
  %5559 = vmatpush2.msra.mxu0 0.0
  %5560 = vmatprep.subr.mxu0 0.0
  %5561 = vmatpush2.msra.mxu0 0.0
  %5562 = vmatprep.subr.mxu0 0.0
  %5563 = vmatpush2.msra.mxu0 0.0
  %5564 = vmatprep.subr.mxu0 0.0
  %5565 = vmatpush2.msra.mxu0 0.0
  %5566 = vmatprep.subr.mxu0 0.0
  %5567 = vmatpush2.msra.mxu0 0.0
  %5568 = vmatprep.subr.mxu0 0.0
  %5569 = vmatpush2.msra.mxu0 0.0
  %5570 = vmatprep.subr.mxu0 0.0
  %5571 = vmatpush2.msra.mxu0 0.0
  %5572 = vmatprep.subr.mxu0 0.0
  %5573 = vmatpush2.msra.mxu0 0.0
  %5574 = vmatprep.subr.mxu0 0.0
  %5575 = vmatpush2.msra.mxu0 0.0
  %5576 = vmatprep.mubr.f32.mxu0 0.0
  %5577 = vmatmul.mubr.f32.gmra.mxu0 %v5510
  %v5578 = vpop.f32.mrf.mxu0
  %v5579 = vadd.f32 0.0, %v5578
  %v5580 = vpop.f32.mrf.mxu0
  %5581 = vdwg.mxu0
  %5582 = vmatprep.subr.mxu0 0.0
  %5583 = vmatpush1.msra.mxu0 %v5291
  %5584 = vmatprep.subr.mxu0 0.0
  %5585 = vmatpush1.msra.mxu0 %v5290
  %5586 = vmatprep.subr.mxu0 0.0
  %5587 = vmatpush1.msra.mxu0 %v5289
  %5588 = vmatprep.subr.mxu0 0.0
  %5589 = vmatpush1.msra.mxu0 %v5288
  %5590 = vmatprep.subr.mxu0 0.0
  %5591 = vmatpush1.msra.mxu0 %v5287
  %5592 = vmatprep.subr.mxu0 0.0
  %5593 = vmatpush1.msra.mxu0 %v5286
  %5594 = vmatprep.subr.mxu0 0.0
  %5595 = vmatpush1.msra.mxu0 %v5285
  %5596 = vmatprep.subr.mxu0 0.0
  %5597 = vmatpush1.msra.mxu0 %v5284
  %5598 = vmatprep.subr.mxu0 0.0
  %5599 = vmatpush1.msra.mxu0 %v5283
  %5600 = vmatprep.subr.mxu0 0.0
  %5601 = vmatpush1.msra.mxu0 %v5282
  %5602 = vmatprep.subr.mxu0 0.0
  %5603 = vmatpush1.msra.mxu0 %v5281
  %5604 = vmatprep.subr.mxu0 0.0
  %5605 = vmatpush1.msra.mxu0 %v5280
  %5606 = vmatprep.subr.mxu0 0.0
  %5607 = vmatpush1.msra.mxu0 %v5279
  %5608 = vmatprep.subr.mxu0 0.0
  %5609 = vmatpush1.msra.mxu0 %v5278
  %5610 = vmatprep.subr.mxu0 0.0
  %5611 = vmatpush1.msra.mxu0 %v5277
  %5612 = vmatprep.subr.mxu0 0.0
  %5613 = vmatpush1.msra.mxu0 %v5276
  %5614 = vmatprep.subr.mxu0 0.0
  %5615 = vmatpush2.msra.mxu0 0.0
  %5616 = vmatprep.subr.mxu0 0.0
  %5617 = vmatpush2.msra.mxu0 0.0
  %5618 = vmatprep.subr.mxu0 0.0
  %5619 = vmatpush2.msra.mxu0 0.0
  %5620 = vmatprep.subr.mxu0 0.0
  %5621 = vmatpush2.msra.mxu0 0.0
  %5622 = vmatprep.subr.mxu0 0.0
  %5623 = vmatpush2.msra.mxu0 0.0
  %5624 = vmatprep.subr.mxu0 0.0
  %5625 = vmatpush2.msra.mxu0 0.0
  %5626 = vmatprep.subr.mxu0 0.0
  %5627 = vmatpush2.msra.mxu0 0.0
  %5628 = vmatprep.subr.mxu0 0.0
  %5629 = vmatpush2.msra.mxu0 0.0
  %5630 = vmatprep.subr.mxu0 0.0
  %5631 = vmatpush2.msra.mxu0 0.0
  %5632 = vmatprep.subr.mxu0 0.0
  %5633 = vmatpush2.msra.mxu0 0.0
  %5634 = vmatprep.subr.mxu0 0.0
  %5635 = vmatpush2.msra.mxu0 0.0
  %5636 = vmatprep.subr.mxu0 0.0
  %5637 = vmatpush2.msra.mxu0 0.0
  %5638 = vmatprep.subr.mxu0 0.0
  %5639 = vmatpush2.msra.mxu0 0.0
  %5640 = vmatprep.subr.mxu0 0.0
  %5641 = vmatpush2.msra.mxu0 0.0
  %5642 = vmatprep.subr.mxu0 0.0
  %5643 = vmatpush2.msra.mxu0 0.0
  %5644 = vmatprep.subr.mxu0 0.0
  %5645 = vmatpush2.msra.mxu0 0.0
  %5646 = vmatprep.mubr.f32.mxu0 0.0
  %5647 = vmatmul.mubr.f32.gmra.mxu0 %v5245
  %v5648 = vpop.f32.mrf.mxu0
  %v5649 = vadd.f32 %v5375, %v5648
  %v5650 = vpop.f32.mrf.mxu0
  %5651 = vdwg.mxu0
  %5652 = vmatprep.subr.mxu0 0.0
  %5653 = vmatpush1.msra.mxu0 %v5393
  %5654 = vmatprep.subr.mxu0 0.0
  %5655 = vmatpush1.msra.mxu0 %v5392
  %5656 = vmatprep.subr.mxu0 0.0
  %5657 = vmatpush1.msra.mxu0 %v5391
  %5658 = vmatprep.subr.mxu0 0.0
  %5659 = vmatpush1.msra.mxu0 %v5390
  %5660 = vmatprep.subr.mxu0 0.0
  %5661 = vmatpush1.msra.mxu0 %v5389
  %5662 = vmatprep.subr.mxu0 0.0
  %5663 = vmatpush1.msra.mxu0 %v5388
  %5664 = vmatprep.subr.mxu0 0.0
  %5665 = vmatpush1.msra.mxu0 %v5387
  %5666 = vmatprep.subr.mxu0 0.0
  %5667 = vmatpush1.msra.mxu0 %v5386
  %5668 = vmatprep.subr.mxu0 0.0
  %5669 = vmatpush1.msra.mxu0 %v5385
  %5670 = vmatprep.subr.mxu0 0.0
  %5671 = vmatpush1.msra.mxu0 %v5384
  %5672 = vmatprep.subr.mxu0 0.0
  %5673 = vmatpush1.msra.mxu0 %v5383
  %5674 = vmatprep.subr.mxu0 0.0
  %5675 = vmatpush1.msra.mxu0 %v5382
  %5676 = vmatprep.subr.mxu0 0.0
  %5677 = vmatpush1.msra.mxu0 %v5381
  %5678 = vmatprep.subr.mxu0 0.0
  %5679 = vmatpush1.msra.mxu0 %v5380
  %5680 = vmatprep.subr.mxu0 0.0
  %5681 = vmatpush1.msra.mxu0 %v5379
  %5682 = vmatprep.subr.mxu0 0.0
  %5683 = vmatpush1.msra.mxu0 %v5378
  %5684 = vmatprep.subr.mxu0 0.0
  %5685 = vmatpush2.msra.mxu0 0.0
  %5686 = vmatprep.subr.mxu0 0.0
  %5687 = vmatpush2.msra.mxu0 0.0
  %5688 = vmatprep.subr.mxu0 0.0
  %5689 = vmatpush2.msra.mxu0 0.0
  %5690 = vmatprep.subr.mxu0 0.0
  %5691 = vmatpush2.msra.mxu0 0.0
  %5692 = vmatprep.subr.mxu0 0.0
  %5693 = vmatpush2.msra.mxu0 0.0
  %5694 = vmatprep.subr.mxu0 0.0
  %5695 = vmatpush2.msra.mxu0 0.0
  %5696 = vmatprep.subr.mxu0 0.0
  %5697 = vmatpush2.msra.mxu0 0.0
  %5698 = vmatprep.subr.mxu0 0.0
  %5699 = vmatpush2.msra.mxu0 0.0
  %5700 = vmatprep.subr.mxu0 0.0
  %5701 = vmatpush2.msra.mxu0 0.0
  %5702 = vmatprep.subr.mxu0 0.0
  %5703 = vmatpush2.msra.mxu0 0.0
  %5704 = vmatprep.subr.mxu0 0.0
  %5705 = vmatpush2.msra.mxu0 0.0
  %5706 = vmatprep.subr.mxu0 0.0
  %5707 = vmatpush2.msra.mxu0 0.0
  %5708 = vmatprep.subr.mxu0 0.0
  %5709 = vmatpush2.msra.mxu0 0.0
  %5710 = vmatprep.subr.mxu0 0.0
  %5711 = vmatpush2.msra.mxu0 0.0
  %5712 = vmatprep.subr.mxu0 0.0
  %5713 = vmatpush2.msra.mxu0 0.0
  %5714 = vmatprep.subr.mxu0 0.0
  %5715 = vmatpush2.msra.mxu0 0.0
  %5716 = vmatprep.mubr.f32.mxu0 0.0
  %5717 = vmatmul.mubr.f32.gmra.mxu0 %v5255
  %v5718 = vpop.f32.mrf.mxu0
  %v5719 = vadd.f32 %v5477, %v5718
  %v5720 = vpop.f32.mrf.mxu0
  %5721 = vdwg.mxu0
  %5722 = vmatprep.subr.mxu0 0.0
  %5723 = vmatpush1.msra.mxu0 %v5495
  %5724 = vmatprep.subr.mxu0 0.0
  %5725 = vmatpush1.msra.mxu0 %v5494
  %5726 = vmatprep.subr.mxu0 0.0
  %5727 = vmatpush1.msra.mxu0 %v5493
  %5728 = vmatprep.subr.mxu0 0.0
  %5729 = vmatpush1.msra.mxu0 %v5492
  %5730 = vmatprep.subr.mxu0 0.0
  %5731 = vmatpush1.msra.mxu0 %v5491
  %5732 = vmatprep.subr.mxu0 0.0
  %5733 = vmatpush1.msra.mxu0 %v5490
  %5734 = vmatprep.subr.mxu0 0.0
  %5735 = vmatpush1.msra.mxu0 %v5489
  %5736 = vmatprep.subr.mxu0 0.0
  %5737 = vmatpush1.msra.mxu0 %v5488
  %5738 = vmatprep.subr.mxu0 0.0
  %5739 = vmatpush1.msra.mxu0 %v5487
  %5740 = vmatprep.subr.mxu0 0.0
  %5741 = vmatpush1.msra.mxu0 %v5486
  %5742 = vmatprep.subr.mxu0 0.0
  %5743 = vmatpush1.msra.mxu0 %v5485
  %5744 = vmatprep.subr.mxu0 0.0
  %5745 = vmatpush1.msra.mxu0 %v5484
  %5746 = vmatprep.subr.mxu0 0.0
  %5747 = vmatpush1.msra.mxu0 %v5483
  %5748 = vmatprep.subr.mxu0 0.0
  %5749 = vmatpush1.msra.mxu0 %v5482
  %5750 = vmatprep.subr.mxu0 0.0
  %5751 = vmatpush1.msra.mxu0 %v5481
  %5752 = vmatprep.subr.mxu0 0.0
  %5753 = vmatpush1.msra.mxu0 %v5480
  %5754 = vmatprep.subr.mxu0 0.0
  %5755 = vmatpush2.msra.mxu0 0.0
  %5756 = vmatprep.subr.mxu0 0.0
  %5757 = vmatpush2.msra.mxu0 0.0
  %5758 = vmatprep.subr.mxu0 0.0
  %5759 = vmatpush2.msra.mxu0 0.0
  %5760 = vmatprep.subr.mxu0 0.0
  %5761 = vmatpush2.msra.mxu0 0.0
  %5762 = vmatprep.subr.mxu0 0.0
  %5763 = vmatpush2.msra.mxu0 0.0
  %5764 = vmatprep.subr.mxu0 0.0
  %5765 = vmatpush2.msra.mxu0 0.0
  %5766 = vmatprep.subr.mxu0 0.0
  %5767 = vmatpush2.msra.mxu0 0.0
  %5768 = vmatprep.subr.mxu0 0.0
  %5769 = vmatpush2.msra.mxu0 0.0
  %5770 = vmatprep.subr.mxu0 0.0
  %5771 = vmatpush2.msra.mxu0 0.0
  %5772 = vmatprep.subr.mxu0 0.0
  %5773 = vmatpush2.msra.mxu0 0.0
  %5774 = vmatprep.subr.mxu0 0.0
  %5775 = vmatpush2.msra.mxu0 0.0
  %5776 = vmatprep.subr.mxu0 0.0
  %5777 = vmatpush2.msra.mxu0 0.0
  %5778 = vmatprep.subr.mxu0 0.0
  %5779 = vmatpush2.msra.mxu0 0.0
  %5780 = vmatprep.subr.mxu0 0.0
  %5781 = vmatpush2.msra.mxu0 0.0
  %5782 = vmatprep.subr.mxu0 0.0
  %5783 = vmatpush2.msra.mxu0 0.0
  %5784 = vmatprep.subr.mxu0 0.0
  %5785 = vmatpush2.msra.mxu0 0.0
  %5786 = vmatprep.mubr.f32.mxu0 0.0
  %5787 = vmatmul.mubr.f32.gmra.mxu0 %v5265
  %v5788 = vpop.f32.mrf.mxu0
  %v5789 = vadd.f32 %v5579, %v5788
  %v5790 = vpop.f32.mrf.mxu0
  %5791 = vdwg.mxu0
  %v5792 = vadd.f32 %v5649, %v5719
  %v5793 = vadd.f32 %v5792, %v5789
  %v5794 = vld [vmem:[%s22] sm:$0x1]
  %v5796 = vlaneseq
  %v5797 = vshrl.u32 %v5796, 7
  %v5798 = vsub.s32 0, %v5797
  %v5799 = vrot.slane %v5794, %v5798
  %v5801 = vadd.f32 %v5793, %v5799
  %v5802 = vmax.f32 %v5801, 0.0
  %v5803 = vld [vmem:[%s23] sm:$0xff]
  %v5804 = vld [vmem:[%s23 + $0x8] sm:$0xff]
  %v5805 = vld [vmem:[%s23 + $0x10] sm:$0xff]
  %v5806 = vld [vmem:[%s23 + $0x18] sm:$0xff]
  %v5807 = vld [vmem:[#allocation2] sm:$0x1]
  %v5809 = vlaneseq
  %v5810 = vshrl.u32 %v5809, 7
  %v5811 = vsub.s32 0, %v5810
  %v5812 = vrot.slane %v5807, %v5811
  %v5815 = vsel %vm208, %v5802, 0
  %5817 = vmatprep.subr.mxu0 0.0
  %5818 = vmatpush1.msra.mxu0 0.0
  %5819 = vmatprep.subr.mxu0 0.0
  %5820 = vmatpush1.msra.mxu0 0.0
  %5821 = vmatprep.subr.mxu0 0.0
  %5822 = vmatpush1.msra.mxu0 0.0
  %5823 = vmatprep.subr.mxu0 0.0
  %5824 = vmatpush1.msra.mxu0 0.0
  %5825 = vmatprep.subr.mxu0 0.0
  %5826 = vmatpush1.msra.mxu0 0.0
  %5827 = vmatprep.subr.mxu0 0.0
  %5828 = vmatpush1.msra.mxu0 0.0
  %5829 = vmatprep.subr.mxu0 0.0
  %5830 = vmatpush1.msra.mxu0 0.0
  %5831 = vmatprep.subr.mxu0 0.0
  %5832 = vmatpush1.msra.mxu0 0.0
  %5833 = vmatprep.subr.mxu0 0.0
  %5834 = vmatpush1.msra.mxu0 0.0
  %5835 = vmatprep.subr.mxu0 0.0
  %5836 = vmatpush1.msra.mxu0 0.0
  %5837 = vmatprep.subr.mxu0 0.0
  %5838 = vmatpush1.msra.mxu0 0.0
  %5839 = vmatprep.subr.mxu0 0.0
  %5840 = vmatpush1.msra.mxu0 0.0
  %5841 = vmatprep.subr.mxu0 0.0
  %5842 = vmatpush1.msra.mxu0 %v5806
  %5843 = vmatprep.subr.mxu0 0.0
  %5844 = vmatpush1.msra.mxu0 %v5805
  %5845 = vmatprep.subr.mxu0 0.0
  %5846 = vmatpush1.msra.mxu0 %v5804
  %5847 = vmatprep.subr.mxu0 0.0
  %5848 = vmatpush1.msra.mxu0 %v5803
  %5849 = vmatprep.subr.mxu0 0.0
  %5850 = vmatpush2.msra.mxu0 0.0
  %5851 = vmatprep.subr.mxu0 0.0
  %5852 = vmatpush2.msra.mxu0 0.0
  %5853 = vmatprep.subr.mxu0 0.0
  %5854 = vmatpush2.msra.mxu0 0.0
  %5855 = vmatprep.subr.mxu0 0.0
  %5856 = vmatpush2.msra.mxu0 0.0
  %5857 = vmatprep.subr.mxu0 0.0
  %5858 = vmatpush2.msra.mxu0 0.0
  %5859 = vmatprep.subr.mxu0 0.0
  %5860 = vmatpush2.msra.mxu0 0.0
  %5861 = vmatprep.subr.mxu0 0.0
  %5862 = vmatpush2.msra.mxu0 0.0
  %5863 = vmatprep.subr.mxu0 0.0
  %5864 = vmatpush2.msra.mxu0 0.0
  %5865 = vmatprep.subr.mxu0 0.0
  %5866 = vmatpush2.msra.mxu0 0.0
  %5867 = vmatprep.subr.mxu0 0.0
  %5868 = vmatpush2.msra.mxu0 0.0
  %5869 = vmatprep.subr.mxu0 0.0
  %5870 = vmatpush2.msra.mxu0 0.0
  %5871 = vmatprep.subr.mxu0 0.0
  %5872 = vmatpush2.msra.mxu0 0.0
  %5873 = vmatprep.subr.mxu0 0.0
  %5874 = vmatpush2.msra.mxu0 0.0
  %5875 = vmatprep.subr.mxu0 0.0
  %5876 = vmatpush2.msra.mxu0 0.0
  %5877 = vmatprep.subr.mxu0 0.0
  %5878 = vmatpush2.msra.mxu0 0.0
  %5879 = vmatprep.subr.mxu0 0.0
  %5880 = vmatpush2.msra.mxu0 0.0
  %5881 = vmatprep.mubr.f32.mxu0 0.0
  %5882 = vmatmul.mubr.f32.gmra.mxu0 %v5815
  %v5883 = vpop.f32.mrf.mxu0
  %v5884 = vadd.f32 %v5812, %v5883
  %v5885 = vpop.f32.mrf.mxu0
  %5886 = vdwg.mxu0
  %vm5887 = vcmask 1024
  %5888 = vst.msk [vmem:[%s25] sm:$0x3] %vm5887, %v5884
  // Predicated region
  $region102: #{tpu_custom_call.1} parent=0 // pred_check
    _
  $region103: #{tpu_custom_call.1} parent=0 // pred_check_branch
    %5890 = sbr.rel (0) target = $region105
  $region104: #{tpu_custom_call.1} parent=0 // pred_region
    _
  $region105: #{tpu_custom_call.1} parent=0 // pred_fallthru
    _
  // Predicated region
  $region106: #{tpu_custom_call.1} parent=0 // pred_check
    _
  $region107: #{tpu_custom_call.1} parent=0 // pred_check_branch
    %5892 = sbr.rel (0) target = $region109
  $region108: #{tpu_custom_call.1} parent=0 // pred_region
    _
  $region109: #{tpu_custom_call.1} parent=0 // pred_fallthru
    _

</llo_original>
